<compile_context>
chip_gen: v6e
topology: v6e:2x2x1
jax: 0.10.0
libtpu: 0.0.40
codegen_flags: <defaults>
</compile_context>

<pallas_src>
import math

import jax
import jax.numpy as jnp
from jax.experimental import pallas as pl
from jax.experimental.pallas import tpu as pltpu

# ----------------------------- TreeNet hyper-parameters (defaults) -----------------------------
LAYERS = 4
BLOCKS = 2
DIL_CH = 40       # dilation_channels
RES_CH = 32       # residual_channels
SKIP_CH = 64      # skip_channels
CLASSES = 1
KSIZE = 3
N_LAYERS = LAYERS * BLOCKS
BN_EPS = 1e-5

# per-layer dilations: real_dilation resets to 1 at each block, *= kernel_size per layer
DILATIONS = []
for _b in range(BLOCKS):
    _rd = 1.0
    for _i in range(LAYERS):
        DILATIONS.append(int(round(_rd)))
        _rd *= 1 * KSIZE            # dilation_factor * kernel_size
# DILATIONS == [1, 3, 9, 27, 1, 3, 9, 27]

_SQRT_HALF = 0.7071067811865476


def _gelu(x):
    # exact GELU (PyTorch nn.GELU() default): 0.5 * x * (1 + erf(x / sqrt(2)))
    return 0.5 * x * (1.0 + jax.lax.erf(x * _SQRT_HALF))


# ------------------------------------------ kernel ------------------------------------------
def _make_kernel(seq_len):
    """Kernel closure over the per-sample sequence length (needed for within-sample masks)."""
    distinct_dils = sorted(set(DILATIONS))

    def kernel(x_ref, start_w_ref, filt_w_ref, filt_b_ref, sr_w_ref, sr_b_ref,
               hw1_ref, hb1_ref, hw2_ref, hb2_ref, out_ref):
        lanes = x_ref.shape[-1]                       # batch_per_step * seq_len
        xin = x_ref[...]                              # (CLASSES=1, lanes) f32

        # start_conv: Conv1d(1 -> RES_CH, k=1, bias=False) == outer-product broadcast (VPU)
        x = start_w_ref[...] * xin                    # (RES_CH, 1) * (1, lanes) -> (RES_CH, lanes)

        # Hoisted shift-validity masks: one pair per distinct dilation, computed once.
        # They use the WITHIN-SAMPLE column index, so roll wrap-around across the
        # lane-stacked sample boundaries is zeroed (== conv zero padding).
        lane_idx = jax.lax.broadcasted_iota(jnp.int32, (1, lanes), 1)
        col = lane_idx % seq_len
        mask_lo = {d: col >= d for d in distinct_dils}              # tap off = -d valid
        mask_hi = {d: col < (seq_len - d) for d in distinct_dils}   # tap off = +d valid

        skip = None
        for i, d in enumerate(DILATIONS):             # statically unrolled 8 layers
            residual = x

            # Dilated Conv1d(k=3, padding=d, bias=False) with BatchNorm scale folded into
            # the weights: stack [x(l-d); x(l); x(l+d)] on sublanes -> one (40,96)x(96,lanes) dot.
            x_m = jnp.where(mask_lo[d], pltpu.roll(x, shift=d, axis=1), 0.0)
            x_p = jnp.where(mask_hi[d], pltpu.roll(x, shift=(lanes - d) % lanes, axis=1), 0.0)
            x3 = jnp.concatenate([x_m, x, x_p], axis=0).astype(jnp.bfloat16)   # (3*RES_CH, lanes)
            y = jnp.dot(filt_w_ref[i], x3, preferred_element_type=jnp.float32)
            y = y + filt_b_ref[i]                      # padding-aware folded BN-shift bias field
            xd = _gelu(y)                              # (DIL_CH, lanes) f32

            # Fused skip conv (DIL_CH->SKIP_CH) + residual conv (DIL_CH->RES_CH):
            # one (96,40)x(40,lanes) dot, GELU, then sublane-aligned slices.
            sr = jnp.dot(sr_w_ref[i], xd.astype(jnp.bfloat16),
                         preferred_element_type=jnp.float32) + sr_b_ref[i]
            sr = _gelu(sr)                             # (SKIP_CH + RES_CH, lanes)
            s = sr[:SKIP_CH]
            skip = s if skip is None else skip + s     # all layer lengths equal -> plain sum
            x = sr[SKIP_CH:] + residual                # (RES_CH, lanes)

        # head: GELU -> Dropout(id) -> Conv1x1 -> GELU -> Dropout(id) -> [BN folded] -> Conv1x1
        h = _gelu(skip)
        h = _gelu(jnp.dot(hw1_ref[...], h.astype(jnp.bfloat16),
                          preferred_element_type=jnp.float32) + hb1_ref[...])
        out = jnp.dot(hw2_ref[...], h.astype(jnp.bfloat16),
                      preferred_element_type=jnp.float32) + hb2_ref[...]
        out_ref[...] = out                             # (CLASSES, lanes), lane-dense store

    return kernel


# ----------------------------------- host-side param packing -----------------------------------
def _pack_params(p, seq_len, batch_per_step):
    """Fold BN into weights, pack the 3 dilated taps, fuse skip+res convs, cast matmul
    weights to bf16 (biases / elementwise params stay f32)."""
    # fold BatchNorm scale into the filter weights and pack taps along the contraction dim
    scale = p["bn_scale"][..., 0]                       # (N_LAYERS, RES_CH)
    shift = p["bn_shift"][..., 0]                       # (N_LAYERS, RES_CH)
    fw = p["filt_w"]                                    # (N_LAYERS, KSIZE, DIL_CH, RES_CH)
    fw_scaled = fw * scale[:, None, None, :]
    filt_w_packed = (fw_scaled.transpose(0, 2, 1, 3)    # (NL, DIL_CH, KSIZE, RES_CH)
                     .reshape(N_LAYERS, DIL_CH, KSIZE * RES_CH)
                     .astype(jnp.bfloat16))

    # BN-shift bias field: per layer / output channel / lane column, aware of the conv's
    # zero padding (edge taps contribute no shift there) and of the sample lane-stacking.
    tap_bias = jnp.einsum("ltoc,lc->lto", fw, shift)    # (N_LAYERS, KSIZE, DIL_CH)
    col = jnp.arange(seq_len)
    rows = []
    for i, d in enumerate(DILATIONS):
        m_lo = (col >= d).astype(jnp.float32)           # tap 0 (off = -d) valid
        m_hi = (col < seq_len - d).astype(jnp.float32)  # tap 2 (off = +d) valid
        bf = (tap_bias[i, 0][:, None] * m_lo[None, :]
              + tap_bias[i, 1][:, None]
              + tap_bias[i, 2][:, None] * m_hi[None, :])        # (DIL_CH, seq_len)
        rows.append(jnp.tile(bf, (1, batch_per_step)))          # (DIL_CH, lanes)
    filt_bias = jnp.stack(rows, axis=0).astype(jnp.float32)     # (NL, DIL_CH, lanes)

    # fuse skip conv + residual conv into one weight / bias per layer
    sr_w = jnp.concatenate([p["skip_w"], p["res_w"]], axis=1).astype(jnp.bfloat16)  # (NL, 96, 40)
    sr_b = jnp.concatenate([p["skip_b"], p["res_b"]], axis=1).astype(jnp.float32)   # (NL, 96, 1)

    # fold the head BatchNorm into the final 1x1 conv
    hbn_s = p["head_bn_scale"][:, 0]                    # (SKIP_CH,)
    hbn_b = p["head_bn_shift"]                          # (SKIP_CH, 1)
    hw2 = p["head_w2"]                                  # (CLASSES, SKIP_CH)
    hw2_f = (hw2 * hbn_s[None, :]).astype(jnp.bfloat16)
    hb2_f = (hw2 @ hbn_b + p["head_b2"]).astype(jnp.float32)    # (CLASSES, 1)

    return [
        p["start_w"].astype(jnp.float32),
        filt_w_packed, filt_bias,
        sr_w, sr_b,
        p["head_w1"].astype(jnp.bfloat16), p["head_b1"].astype(jnp.float32),
        hw2_f, hb2_f,
    ]


def _full_spec(shape):
    ndim = len(shape)
    return pl.BlockSpec(shape, lambda b: (0,) * ndim)   # resident across all grid steps


def _choose_batch_per_step(n):
    # Lane-stack samples so the matmul N dim is >=256 lanes (v6e/v7x MXU) while
    # keeping >=2 parallel grid steps (both v7x TensorCores busy) when possible.
    for bs in (8, 4, 2):
        if n % bs == 0 and n // bs >= 2:
            return bs
    for bs in (8, 4, 2):
        if n % bs == 0:
            return bs
    return 1


def treenet_forward(x, params, batch_per_step=None):
    """x: (N, L, classes), matching the PyTorch forward input (it transposes internally).
    Returns (N, L) float32, matching torch.squeeze(head_out, dim=-2)."""
    N, L, C = x.shape
    assert C == CLASSES
    if batch_per_step is None:
        batch_per_step = _choose_batch_per_step(N)
    assert N % batch_per_step == 0, (N, batch_per_step)
    steps = N // batch_per_step
    lanes = batch_per_step * L

    # (N, L, C) -> (N, C, L) -> lane-stack batch_per_step samples per grid step.
    x_ncl = jnp.transpose(x, (0, 2, 1)).astype(jnp.float32)        # (N, C, L)
    x_stacked = (x_ncl.reshape(steps, batch_per_step, CLASSES, L)
                 .transpose(0, 2, 1, 3)
                 .reshape(steps, CLASSES, lanes))                  # (steps, C, lanes)

    packed = _pack_params(params, L, batch_per_step)
    io_spec = pl.BlockSpec((None, CLASSES, lanes), lambda b: (b, 0, 0))
    in_specs = [io_spec] + [_full_spec(tuple(p.shape)) for p in packed]

    out = pl.pallas_call(
        _make_kernel(L),
        out_shape=jax.ShapeDtypeStruct((steps, CLASSES, lanes), jnp.float32),
        grid=(steps,),
        in_specs=in_specs,
        out_specs=pl.BlockSpec((None, CLASSES, lanes), lambda b: (b, 0, 0)),
        compiler_params=pltpu.CompilerParams(dimension_semantics=("parallel",)),
    )(x_stacked, *packed)

    # (steps, C, lanes) -> (N, C, L) -> drop the classes dim (== torch.squeeze(x, dim=-2))
    out_ncl = (out.reshape(steps, CLASSES, batch_per_step, L)
               .transpose(0, 2, 1, 3)
               .reshape(N, CLASSES, L))
    return out_ncl.reshape(N, L)


# ---------------------------------------- synthetic params ----------------------------------------
def init_params(key):
    """Deterministic synthetic parameters with the module's shapes (eval-mode BN folded)."""
    ks = jax.random.split(key, 14)

    def nrm(k, shape, fan_in):
        return jax.random.normal(k, shape, jnp.float32) / math.sqrt(fan_in)

    p = {}
    # start_conv: Conv1d(CLASSES -> RES_CH, k=1, bias=False); weight (RES_CH, CLASSES, 1)
    p["start_w"] = nrm(ks[0], (RES_CH, CLASSES), CLASSES)

    # BatchNorm1d(RES_CH) per layer, folded with running stats (mean=0, var=1)
    gamma = 1.0 + 0.1 * jax.random.normal(ks[1], (N_LAYERS, RES_CH, 1), jnp.float32)
    beta = 0.1 * jax.random.normal(ks[2], (N_LAYERS, RES_CH, 1), jnp.float32)
    run_mean = jnp.zeros((N_LAYERS, RES_CH, 1), jnp.float32)
    run_var = jnp.ones((N_LAYERS, RES_CH, 1), jnp.float32)
    scale = gamma * jax.lax.rsqrt(run_var + BN_EPS)
    p["bn_scale"] = scale
    p["bn_shift"] = beta - run_mean * scale

    # filter convs: Conv1d(RES_CH -> DIL_CH, k=3, bias=False); stored as (layer, tap, out, in)
    p["filt_w"] = nrm(ks[3], (N_LAYERS, KSIZE, DIL_CH, RES_CH), RES_CH * KSIZE)

    # skip convs: Conv1d(DIL_CH -> SKIP_CH, k=1, bias=True)
    p["skip_w"] = nrm(ks[4], (N_LAYERS, SKIP_CH, DIL_CH), DIL_CH)
    p["skip_b"] = 0.05 * jax.random.normal(ks[5], (N_LAYERS, SKIP_CH, 1), jnp.float32)

    # residual convs: Conv1d(DIL_CH -> RES_CH, k=1, bias=True)
    p["res_w"] = nrm(ks[6], (N_LAYERS, RES_CH, DIL_CH), DIL_CH)
    p["res_b"] = 0.05 * jax.random.normal(ks[7], (N_LAYERS, RES_CH, 1), jnp.float32)

    # head
    p["head_w1"] = nrm(ks[8], (SKIP_CH, SKIP_CH), SKIP_CH)
    p["head_b1"] = 0.05 * jax.random.normal(ks[9], (SKIP_CH, 1), jnp.float32)
    hgamma = 1.0 + 0.1 * jax.random.normal(ks[10], (SKIP_CH, 1), jnp.float32)
    hbeta = 0.1 * jax.random.normal(ks[11], (SKIP_CH, 1), jnp.float32)
    hscale = hgamma * jax.lax.rsqrt(jnp.ones_like(hgamma) + BN_EPS)
    p["head_bn_scale"] = hscale
    p["head_bn_shift"] = hbeta
    p["head_w2"] = nrm(ks[12], (CLASSES, SKIP_CH), SKIP_CH)
    p["head_b2"] = 0.05 * jax.random.normal(ks[13], (CLASSES, 1), jnp.float32)
    return p


if __name__ == "__main__":
    # Small, lane-aligned shapes: 8 samples of length 128 -> 2 parallel grid steps
    # with 4 lane-stacked samples (512 lanes) each.
    N, L = 8, 128
    key = jax.random.PRNGKey(0)
    k_x, k_p = jax.random.split(key)

    x = jax.random.normal(k_x, (N, L, CLASSES), jnp.float32)   # (N, L_in, C_in) like the PyTorch forward
    params = init_params(k_p)

    out = treenet_forward(x, params)
    out = jax.block_until_ready(out)

    assert out.shape == (N, L), out.shape
    assert bool(jnp.all(jnp.isfinite(out)))
    print("KERNEL_OK")
</pallas_src>

<mosaic_0001>
module attributes {stable_mosaic.version = 11 : i64} {
  func.func @kernel(%arg0: i32, %arg1: memref<1x1x512xf32, #tpu.memory_space<vmem>>, %arg2: memref<32x1xf32, #tpu.memory_space<vmem>>, %arg3: memref<8x40x96xbf16, #tpu.memory_space<vmem>>, %arg4: memref<8x40x512xf32, #tpu.memory_space<vmem>>, %arg5: memref<8x96x40xbf16, #tpu.memory_space<vmem>>, %arg6: memref<8x96x1xf32, #tpu.memory_space<vmem>>, %arg7: memref<64x64xbf16, #tpu.memory_space<vmem>>, %arg8: memref<64x1xf32, #tpu.memory_space<vmem>>, %arg9: memref<1x64xbf16, #tpu.memory_space<vmem>>, %arg10: memref<1x1xf32, #tpu.memory_space<vmem>>, %arg11: memref<1x1x512xf32, #tpu.memory_space<vmem>>) attributes {dimension_semantics = [#tpu.dimension_semantics<parallel>], iteration_bounds = array<i64: 2>, scalar_prefetch = 0 : i64, scratch_operands = 0 : i64, tpu.core_type = #tpu.core_type<tc>, window_params = [{transform_indices = @transform_0, window_bounds = array<i64: 1, 1, 512>}, {pipeline_mode = #tpu.pipeline_mode<synchronous>, transform_indices = @transform_1, window_bounds = array<i64: 32, 1>}, {pipeline_mode = #tpu.pipeline_mode<synchronous>, transform_indices = @transform_2, window_bounds = array<i64: 8, 40, 96>}, {pipeline_mode = #tpu.pipeline_mode<synchronous>, transform_indices = @transform_3, window_bounds = array<i64: 8, 40, 512>}, {pipeline_mode = #tpu.pipeline_mode<synchronous>, transform_indices = @transform_4, window_bounds = array<i64: 8, 96, 40>}, {pipeline_mode = #tpu.pipeline_mode<synchronous>, transform_indices = @transform_5, window_bounds = array<i64: 8, 96, 1>}, {pipeline_mode = #tpu.pipeline_mode<synchronous>, transform_indices = @transform_6, window_bounds = array<i64: 64, 64>}, {pipeline_mode = #tpu.pipeline_mode<synchronous>, transform_indices = @transform_7, window_bounds = array<i64: 64, 1>}, {pipeline_mode = #tpu.pipeline_mode<synchronous>, transform_indices = @transform_8, window_bounds = array<i64: 1, 64>}, {pipeline_mode = #tpu.pipeline_mode<synchronous>, transform_indices = @transform_9, window_bounds = array<i64: 1, 1>}, {transform_indices = @transform_10, window_bounds = array<i64: 1, 1, 512>}]} {
    %c0 = arith.constant 0 : index
    %c0_0 = arith.constant 0 : index
    %c0_1 = arith.constant 0 : index
    %0 = vector.load %arg1[%c0, %c0_0, %c0_1] : memref<1x1x512xf32, #tpu.memory_space<vmem>>, vector<1x1x512xf32>
    %1 = vector.shape_cast %0 : vector<1x1x512xf32> to vector<1x512xf32>
    %c0_2 = arith.constant 0 : index
    %c0_3 = arith.constant 0 : index
    %2 = vector.load %arg2[%c0_2, %c0_3] : memref<32x1xf32, #tpu.memory_space<vmem>>, vector<32x1xf32>
    %3 = vector.broadcast %2 : vector<32x1xf32> to vector<32x512xf32>
    %4 = vector.broadcast %1 : vector<1x512xf32> to vector<32x512xf32>
    %5 = arith.mulf %3, %4 : vector<32x512xf32>
    %6 = tpu.iota {dimensions = array<i32: 1>} : vector<1x512xi32>
    %c128_i32 = arith.constant 128 : i32
    %c0_i32 = arith.constant 0 : i32
    %7 = arith.cmpi eq, %c128_i32, %c0_i32 : i32
    %c1_i32 = arith.constant 1 : i32
    %8 = arith.select %7, %c1_i32, %c128_i32 : i32
    %9 = vector.broadcast %8 : i32 to vector<1x512xi32>
    %10 = arith.remsi %6, %9 : vector<1x512xi32>
    %c0_i32_4 = arith.constant 0 : i32
    %11 = vector.broadcast %c0_i32_4 : i32 to vector<1x512xi32>
    %12 = arith.cmpi ne, %10, %11 : vector<1x512xi32>
    %c0_i32_5 = arith.constant 0 : i32
    %13 = vector.broadcast %c0_i32_5 : i32 to vector<1x512xi32>
    %14 = arith.cmpi slt, %10, %13 : vector<1x512xi32>
    %c0_i32_6 = arith.constant 0 : i32
    %15 = arith.cmpi slt, %8, %c0_i32_6 : i32
    %16 = vector.broadcast %15 : i1 to vector<1x512xi1>
    %17 = vector.broadcast %16 : vector<1x512xi1> to vector<1x512xi1>
    %18 = arith.xori %14, %17 : vector<1x512xi1>
    %19 = arith.andi %18, %12 : vector<1x512xi1>
    %20 = vector.broadcast %8 : i32 to vector<1x512xi32>
    %21 = arith.addi %10, %20 : vector<1x512xi32>
    %22 = arith.select %19, %21, %10 : vector<1x512xi1>, vector<1x512xi32>
    %c1_i32_7 = arith.constant 1 : i32
    %23 = vector.broadcast %c1_i32_7 : i32 to vector<1x512xi32>
    %24 = arith.cmpi sge, %22, %23 : vector<1x512xi32>
    %c3_i32 = arith.constant 3 : i32
    %25 = vector.broadcast %c3_i32 : i32 to vector<1x512xi32>
    %26 = arith.cmpi sge, %22, %25 : vector<1x512xi32>
    %c9_i32 = arith.constant 9 : i32
    %27 = vector.broadcast %c9_i32 : i32 to vector<1x512xi32>
    %28 = arith.cmpi sge, %22, %27 : vector<1x512xi32>
    %c27_i32 = arith.constant 27 : i32
    %29 = vector.broadcast %c27_i32 : i32 to vector<1x512xi32>
    %30 = arith.cmpi sge, %22, %29 : vector<1x512xi32>
    %c127_i32 = arith.constant 127 : i32
    %31 = vector.broadcast %c127_i32 : i32 to vector<1x512xi32>
    %32 = arith.cmpi slt, %22, %31 : vector<1x512xi32>
    %c125_i32 = arith.constant 125 : i32
    %33 = vector.broadcast %c125_i32 : i32 to vector<1x512xi32>
    %34 = arith.cmpi slt, %22, %33 : vector<1x512xi32>
    %c119_i32 = arith.constant 119 : i32
    %35 = vector.broadcast %c119_i32 : i32 to vector<1x512xi32>
    %36 = arith.cmpi slt, %22, %35 : vector<1x512xi32>
    %c101_i32 = arith.constant 101 : i32
    %37 = vector.broadcast %c101_i32 : i32 to vector<1x512xi32>
    %38 = arith.cmpi slt, %22, %37 : vector<1x512xi32>
    %c1_i32_8 = arith.constant 1 : i32
    %39 = tpu.dynamic_rotate %5 by %c1_i32_8 dim 1 : vector<32x512xf32>, i32 -> vector<32x512xf32>
    %cst = arith.constant 0.000000e+00 : f32
    %40 = vector.shape_cast %24 : vector<1x512xi1> to vector<1x512xi1>
    %41 = vector.broadcast %40 : vector<1x512xi1> to vector<32x512xi1>
    %42 = vector.broadcast %cst : f32 to vector<32x512xf32>
    %43 = arith.select %41, %39, %42 : vector<32x512xi1>, vector<32x512xf32>
    %c511_i32 = arith.constant 511 : i32
    %44 = tpu.dynamic_rotate %5 by %c511_i32 dim 1 : vector<32x512xf32>, i32 -> vector<32x512xf32>
    %cst_9 = arith.constant 0.000000e+00 : f32
    %45 = vector.shape_cast %32 : vector<1x512xi1> to vector<1x512xi1>
    %46 = vector.broadcast %45 : vector<1x512xi1> to vector<32x512xi1>
    %47 = vector.broadcast %cst_9 : f32 to vector<32x512xf32>
    %48 = arith.select %46, %44, %47 : vector<32x512xi1>, vector<32x512xf32>
    %49 = tpu.concatenate %43, %5, %48 in 0 : vector<32x512xf32>, vector<32x512xf32>, vector<32x512xf32> -> vector<96x512xf32>
    %50 = arith.truncf %49 : vector<96x512xf32> to vector<96x512xbf16>
    %c0_10 = arith.constant 0 : index
    %c0_11 = arith.constant 0 : index
    %c0_12 = arith.constant 0 : index
    %51 = vector.load %arg3[%c0_10, %c0_11, %c0_12] : memref<8x40x96xbf16, #tpu.memory_space<vmem>>, vector<1x40x96xbf16>
    %52 = vector.shape_cast %51 : vector<1x40x96xbf16> to vector<40x96xbf16>
    %cst_13 = arith.constant dense<0.000000e+00> : vector<40x512xf32>
    %53 = tpu.matmul %52, %50, %cst_13 {dimension_numbers = #tpu.dot_dimension_numbers<[1], [0], [0], [1], [0, 0, 1, 1], [], []>} : vector<40x96xbf16>, vector<96x512xbf16>, vector<40x512xf32> -> vector<40x512xf32>
    %c0_14 = arith.constant 0 : index
    %c0_15 = arith.constant 0 : index
    %c0_16 = arith.constant 0 : index
    %54 = vector.load %arg4[%c0_14, %c0_15, %c0_16] : memref<8x40x512xf32, #tpu.memory_space<vmem>>, vector<1x40x512xf32>
    %55 = vector.shape_cast %54 : vector<1x40x512xf32> to vector<40x512xf32>
    %56 = arith.addf %53, %55 : vector<40x512xf32>
    %cst_17 = arith.constant 5.000000e-01 : f32
    %57 = vector.broadcast %cst_17 : f32 to vector<40x512xf32>
    %58 = arith.mulf %57, %56 : vector<40x512xf32>
    %cst_18 = arith.constant 0.707106769 : f32
    %59 = vector.broadcast %cst_18 : f32 to vector<40x512xf32>
    %60 = arith.mulf %56, %59 : vector<40x512xf32>
    %61 = math.erf %60 : vector<40x512xf32>
    %cst_19 = arith.constant 1.000000e+00 : f32
    %62 = vector.broadcast %cst_19 : f32 to vector<40x512xf32>
    %63 = arith.addf %62, %61 : vector<40x512xf32>
    %64 = arith.mulf %58, %63 : vector<40x512xf32>
    %c0_20 = arith.constant 0 : index
    %c0_21 = arith.constant 0 : index
    %c0_22 = arith.constant 0 : index
    %65 = vector.load %arg5[%c0_20, %c0_21, %c0_22] : memref<8x96x40xbf16, #tpu.memory_space<vmem>>, vector<1x96x40xbf16>
    %66 = vector.shape_cast %65 : vector<1x96x40xbf16> to vector<96x40xbf16>
    %67 = arith.truncf %64 : vector<40x512xf32> to vector<40x512xbf16>
    %cst_23 = arith.constant dense<0.000000e+00> : vector<96x512xf32>
    %68 = tpu.matmul %66, %67, %cst_23 {dimension_numbers = #tpu.dot_dimension_numbers<[1], [0], [0], [1], [0, 0, 1, 1], [], []>} : vector<96x40xbf16>, vector<40x512xbf16>, vector<96x512xf32> -> vector<96x512xf32>
    %c0_24 = arith.constant 0 : index
    %c0_25 = arith.constant 0 : index
    %c0_26 = arith.constant 0 : index
    %69 = vector.load %arg6[%c0_24, %c0_25, %c0_26] : memref<8x96x1xf32, #tpu.memory_space<vmem>>, vector<1x96x1xf32>
    %70 = vector.shape_cast %69 : vector<1x96x1xf32> to vector<96x1xf32>
    %71 = vector.broadcast %70 : vector<96x1xf32> to vector<96x512xf32>
    %72 = arith.addf %68, %71 : vector<96x512xf32>
    %cst_27 = arith.constant 5.000000e-01 : f32
    %73 = vector.broadcast %cst_27 : f32 to vector<96x512xf32>
    %74 = arith.mulf %73, %72 : vector<96x512xf32>
    %cst_28 = arith.constant 0.707106769 : f32
    %75 = vector.broadcast %cst_28 : f32 to vector<96x512xf32>
    %76 = arith.mulf %72, %75 : vector<96x512xf32>
    %77 = math.erf %76 : vector<96x512xf32>
    %cst_29 = arith.constant 1.000000e+00 : f32
    %78 = vector.broadcast %cst_29 : f32 to vector<96x512xf32>
    %79 = arith.addf %78, %77 : vector<96x512xf32>
    %80 = arith.mulf %74, %79 : vector<96x512xf32>
    %81 = vector.extract_strided_slice %80 {offsets = [0, 0], sizes = [64, 512], strides = [1, 1]} : vector<96x512xf32> to vector<64x512xf32>
    %82 = vector.extract_strided_slice %80 {offsets = [64, 0], sizes = [32, 512], strides = [1, 1]} : vector<96x512xf32> to vector<32x512xf32>
    %83 = arith.addf %82, %5 : vector<32x512xf32>
    %c3_i32_30 = arith.constant 3 : i32
    %84 = tpu.dynamic_rotate %83 by %c3_i32_30 dim 1 : vector<32x512xf32>, i32 -> vector<32x512xf32>
    %cst_31 = arith.constant 0.000000e+00 : f32
    %85 = vector.shape_cast %26 : vector<1x512xi1> to vector<1x512xi1>
    %86 = vector.broadcast %85 : vector<1x512xi1> to vector<32x512xi1>
    %87 = vector.broadcast %cst_31 : f32 to vector<32x512xf32>
    %88 = arith.select %86, %84, %87 : vector<32x512xi1>, vector<32x512xf32>
    %c509_i32 = arith.constant 509 : i32
    %89 = tpu.dynamic_rotate %83 by %c509_i32 dim 1 : vector<32x512xf32>, i32 -> vector<32x512xf32>
    %cst_32 = arith.constant 0.000000e+00 : f32
    %90 = vector.shape_cast %34 : vector<1x512xi1> to vector<1x512xi1>
    %91 = vector.broadcast %90 : vector<1x512xi1> to vector<32x512xi1>
    %92 = vector.broadcast %cst_32 : f32 to vector<32x512xf32>
    %93 = arith.select %91, %89, %92 : vector<32x512xi1>, vector<32x512xf32>
    %94 = tpu.concatenate %88, %83, %93 in 0 : vector<32x512xf32>, vector<32x512xf32>, vector<32x512xf32> -> vector<96x512xf32>
    %95 = arith.truncf %94 : vector<96x512xf32> to vector<96x512xbf16>
    %c1 = arith.constant 1 : index
    %c0_33 = arith.constant 0 : index
    %c0_34 = arith.constant 0 : index
    %96 = vector.load %arg3[%c1, %c0_33, %c0_34] : memref<8x40x96xbf16, #tpu.memory_space<vmem>>, vector<1x40x96xbf16>
    %97 = vector.shape_cast %96 : vector<1x40x96xbf16> to vector<40x96xbf16>
    %cst_35 = arith.constant dense<0.000000e+00> : vector<40x512xf32>
    %98 = tpu.matmul %97, %95, %cst_35 {dimension_numbers = #tpu.dot_dimension_numbers<[1], [0], [0], [1], [0, 0, 1, 1], [], []>} : vector<40x96xbf16>, vector<96x512xbf16>, vector<40x512xf32> -> vector<40x512xf32>
    %c1_36 = arith.constant 1 : index
    %c0_37 = arith.constant 0 : index
    %c0_38 = arith.constant 0 : index
    %99 = vector.load %arg4[%c1_36, %c0_37, %c0_38] : memref<8x40x512xf32, #tpu.memory_space<vmem>>, vector<1x40x512xf32>
    %100 = vector.shape_cast %99 : vector<1x40x512xf32> to vector<40x512xf32>
    %101 = arith.addf %98, %100 : vector<40x512xf32>
    %cst_39 = arith.constant 5.000000e-01 : f32
    %102 = vector.broadcast %cst_39 : f32 to vector<40x512xf32>
    %103 = arith.mulf %102, %101 : vector<40x512xf32>
    %cst_40 = arith.constant 0.707106769 : f32
    %104 = vector.broadcast %cst_40 : f32 to vector<40x512xf32>
    %105 = arith.mulf %101, %104 : vector<40x512xf32>
    %106 = math.erf %105 : vector<40x512xf32>
    %cst_41 = arith.constant 1.000000e+00 : f32
    %107 = vector.broadcast %cst_41 : f32 to vector<40x512xf32>
    %108 = arith.addf %107, %106 : vector<40x512xf32>
    %109 = arith.mulf %103, %108 : vector<40x512xf32>
    %c1_42 = arith.constant 1 : index
    %c0_43 = arith.constant 0 : index
    %c0_44 = arith.constant 0 : index
    %110 = vector.load %arg5[%c1_42, %c0_43, %c0_44] : memref<8x96x40xbf16, #tpu.memory_space<vmem>>, vector<1x96x40xbf16>
    %111 = vector.shape_cast %110 : vector<1x96x40xbf16> to vector<96x40xbf16>
    %112 = arith.truncf %109 : vector<40x512xf32> to vector<40x512xbf16>
    %cst_45 = arith.constant dense<0.000000e+00> : vector<96x512xf32>
    %113 = tpu.matmul %111, %112, %cst_45 {dimension_numbers = #tpu.dot_dimension_numbers<[1], [0], [0], [1], [0, 0, 1, 1], [], []>} : vector<96x40xbf16>, vector<40x512xbf16>, vector<96x512xf32> -> vector<96x512xf32>
    %c1_46 = arith.constant 1 : index
    %c0_47 = arith.constant 0 : index
    %c0_48 = arith.constant 0 : index
    %114 = vector.load %arg6[%c1_46, %c0_47, %c0_48] : memref<8x96x1xf32, #tpu.memory_space<vmem>>, vector<1x96x1xf32>
    %115 = vector.shape_cast %114 : vector<1x96x1xf32> to vector<96x1xf32>
    %116 = vector.broadcast %115 : vector<96x1xf32> to vector<96x512xf32>
    %117 = arith.addf %113, %116 : vector<96x512xf32>
    %cst_49 = arith.constant 5.000000e-01 : f32
    %118 = vector.broadcast %cst_49 : f32 to vector<96x512xf32>
    %119 = arith.mulf %118, %117 : vector<96x512xf32>
    %cst_50 = arith.constant 0.707106769 : f32
    %120 = vector.broadcast %cst_50 : f32 to vector<96x512xf32>
    %121 = arith.mulf %117, %120 : vector<96x512xf32>
    %122 = math.erf %121 : vector<96x512xf32>
    %cst_51 = arith.constant 1.000000e+00 : f32
    %123 = vector.broadcast %cst_51 : f32 to vector<96x512xf32>
    %124 = arith.addf %123, %122 : vector<96x512xf32>
    %125 = arith.mulf %119, %124 : vector<96x512xf32>
    %126 = vector.extract_strided_slice %125 {offsets = [0, 0], sizes = [64, 512], strides = [1, 1]} : vector<96x512xf32> to vector<64x512xf32>
    %127 = arith.addf %81, %126 : vector<64x512xf32>
    %128 = vector.extract_strided_slice %125 {offsets = [64, 0], sizes = [32, 512], strides = [1, 1]} : vector<96x512xf32> to vector<32x512xf32>
    %129 = arith.addf %128, %83 : vector<32x512xf32>
    %c9_i32_52 = arith.constant 9 : i32
    %130 = tpu.dynamic_rotate %129 by %c9_i32_52 dim 1 : vector<32x512xf32>, i32 -> vector<32x512xf32>
    %cst_53 = arith.constant 0.000000e+00 : f32
    %131 = vector.shape_cast %28 : vector<1x512xi1> to vector<1x512xi1>
    %132 = vector.broadcast %131 : vector<1x512xi1> to vector<32x512xi1>
    %133 = vector.broadcast %cst_53 : f32 to vector<32x512xf32>
    %134 = arith.select %132, %130, %133 : vector<32x512xi1>, vector<32x512xf32>
    %c503_i32 = arith.constant 503 : i32
    %135 = tpu.dynamic_rotate %129 by %c503_i32 dim 1 : vector<32x512xf32>, i32 -> vector<32x512xf32>
    %cst_54 = arith.constant 0.000000e+00 : f32
    %136 = vector.shape_cast %36 : vector<1x512xi1> to vector<1x512xi1>
    %137 = vector.broadcast %136 : vector<1x512xi1> to vector<32x512xi1>
    %138 = vector.broadcast %cst_54 : f32 to vector<32x512xf32>
    %139 = arith.select %137, %135, %138 : vector<32x512xi1>, vector<32x512xf32>
    %140 = tpu.concatenate %134, %129, %139 in 0 : vector<32x512xf32>, vector<32x512xf32>, vector<32x512xf32> -> vector<96x512xf32>
    %141 = arith.truncf %140 : vector<96x512xf32> to vector<96x512xbf16>
    %c2 = arith.constant 2 : index
    %c0_55 = arith.constant 0 : index
    %c0_56 = arith.constant 0 : index
    %142 = vector.load %arg3[%c2, %c0_55, %c0_56] : memref<8x40x96xbf16, #tpu.memory_space<vmem>>, vector<1x40x96xbf16>
    %143 = vector.shape_cast %142 : vector<1x40x96xbf16> to vector<40x96xbf16>
    %cst_57 = arith.constant dense<0.000000e+00> : vector<40x512xf32>
    %144 = tpu.matmul %143, %141, %cst_57 {dimension_numbers = #tpu.dot_dimension_numbers<[1], [0], [0], [1], [0, 0, 1, 1], [], []>} : vector<40x96xbf16>, vector<96x512xbf16>, vector<40x512xf32> -> vector<40x512xf32>
    %c2_58 = arith.constant 2 : index
    %c0_59 = arith.constant 0 : index
    %c0_60 = arith.constant 0 : index
    %145 = vector.load %arg4[%c2_58, %c0_59, %c0_60] : memref<8x40x512xf32, #tpu.memory_space<vmem>>, vector<1x40x512xf32>
    %146 = vector.shape_cast %145 : vector<1x40x512xf32> to vector<40x512xf32>
    %147 = arith.addf %144, %146 : vector<40x512xf32>
    %cst_61 = arith.constant 5.000000e-01 : f32
    %148 = vector.broadcast %cst_61 : f32 to vector<40x512xf32>
    %149 = arith.mulf %148, %147 : vector<40x512xf32>
    %cst_62 = arith.constant 0.707106769 : f32
    %150 = vector.broadcast %cst_62 : f32 to vector<40x512xf32>
    %151 = arith.mulf %147, %150 : vector<40x512xf32>
    %152 = math.erf %151 : vector<40x512xf32>
    %cst_63 = arith.constant 1.000000e+00 : f32
    %153 = vector.broadcast %cst_63 : f32 to vector<40x512xf32>
    %154 = arith.addf %153, %152 : vector<40x512xf32>
    %155 = arith.mulf %149, %154 : vector<40x512xf32>
    %c2_64 = arith.constant 2 : index
    %c0_65 = arith.constant 0 : index
    %c0_66 = arith.constant 0 : index
    %156 = vector.load %arg5[%c2_64, %c0_65, %c0_66] : memref<8x96x40xbf16, #tpu.memory_space<vmem>>, vector<1x96x40xbf16>
    %157 = vector.shape_cast %156 : vector<1x96x40xbf16> to vector<96x40xbf16>
    %158 = arith.truncf %155 : vector<40x512xf32> to vector<40x512xbf16>
    %cst_67 = arith.constant dense<0.000000e+00> : vector<96x512xf32>
    %159 = tpu.matmul %157, %158, %cst_67 {dimension_numbers = #tpu.dot_dimension_numbers<[1], [0], [0], [1], [0, 0, 1, 1], [], []>} : vector<96x40xbf16>, vector<40x512xbf16>, vector<96x512xf32> -> vector<96x512xf32>
    %c2_68 = arith.constant 2 : index
    %c0_69 = arith.constant 0 : index
    %c0_70 = arith.constant 0 : index
    %160 = vector.load %arg6[%c2_68, %c0_69, %c0_70] : memref<8x96x1xf32, #tpu.memory_space<vmem>>, vector<1x96x1xf32>
    %161 = vector.shape_cast %160 : vector<1x96x1xf32> to vector<96x1xf32>
    %162 = vector.broadcast %161 : vector<96x1xf32> to vector<96x512xf32>
    %163 = arith.addf %159, %162 : vector<96x512xf32>
    %cst_71 = arith.constant 5.000000e-01 : f32
    %164 = vector.broadcast %cst_71 : f32 to vector<96x512xf32>
    %165 = arith.mulf %164, %163 : vector<96x512xf32>
    %cst_72 = arith.constant 0.707106769 : f32
    %166 = vector.broadcast %cst_72 : f32 to vector<96x512xf32>
    %167 = arith.mulf %163, %166 : vector<96x512xf32>
    %168 = math.erf %167 : vector<96x512xf32>
    %cst_73 = arith.constant 1.000000e+00 : f32
    %169 = vector.broadcast %cst_73 : f32 to vector<96x512xf32>
    %170 = arith.addf %169, %168 : vector<96x512xf32>
    %171 = arith.mulf %165, %170 : vector<96x512xf32>
    %172 = vector.extract_strided_slice %171 {offsets = [0, 0], sizes = [64, 512], strides = [1, 1]} : vector<96x512xf32> to vector<64x512xf32>
    %173 = arith.addf %127, %172 : vector<64x512xf32>
    %174 = vector.extract_strided_slice %171 {offsets = [64, 0], sizes = [32, 512], strides = [1, 1]} : vector<96x512xf32> to vector<32x512xf32>
    %175 = arith.addf %174, %129 : vector<32x512xf32>
    %c27_i32_74 = arith.constant 27 : i32
    %176 = tpu.dynamic_rotate %175 by %c27_i32_74 dim 1 : vector<32x512xf32>, i32 -> vector<32x512xf32>
    %cst_75 = arith.constant 0.000000e+00 : f32
    %177 = vector.shape_cast %30 : vector<1x512xi1> to vector<1x512xi1>
    %178 = vector.broadcast %177 : vector<1x512xi1> to vector<32x512xi1>
    %179 = vector.broadcast %cst_75 : f32 to vector<32x512xf32>
    %180 = arith.select %178, %176, %179 : vector<32x512xi1>, vector<32x512xf32>
    %c485_i32 = arith.constant 485 : i32
    %181 = tpu.dynamic_rotate %175 by %c485_i32 dim 1 : vector<32x512xf32>, i32 -> vector<32x512xf32>
    %cst_76 = arith.constant 0.000000e+00 : f32
    %182 = vector.shape_cast %38 : vector<1x512xi1> to vector<1x512xi1>
    %183 = vector.broadcast %182 : vector<1x512xi1> to vector<32x512xi1>
    %184 = vector.broadcast %cst_76 : f32 to vector<32x512xf32>
    %185 = arith.select %183, %181, %184 : vector<32x512xi1>, vector<32x512xf32>
    %186 = tpu.concatenate %180, %175, %185 in 0 : vector<32x512xf32>, vector<32x512xf32>, vector<32x512xf32> -> vector<96x512xf32>
    %187 = arith.truncf %186 : vector<96x512xf32> to vector<96x512xbf16>
    %c3 = arith.constant 3 : index
    %c0_77 = arith.constant 0 : index
    %c0_78 = arith.constant 0 : index
    %188 = vector.load %arg3[%c3, %c0_77, %c0_78] : memref<8x40x96xbf16, #tpu.memory_space<vmem>>, vector<1x40x96xbf16>
    %189 = vector.shape_cast %188 : vector<1x40x96xbf16> to vector<40x96xbf16>
    %cst_79 = arith.constant dense<0.000000e+00> : vector<40x512xf32>
    %190 = tpu.matmul %189, %187, %cst_79 {dimension_numbers = #tpu.dot_dimension_numbers<[1], [0], [0], [1], [0, 0, 1, 1], [], []>} : vector<40x96xbf16>, vector<96x512xbf16>, vector<40x512xf32> -> vector<40x512xf32>
    %c3_80 = arith.constant 3 : index
    %c0_81 = arith.constant 0 : index
    %c0_82 = arith.constant 0 : index
    %191 = vector.load %arg4[%c3_80, %c0_81, %c0_82] : memref<8x40x512xf32, #tpu.memory_space<vmem>>, vector<1x40x512xf32>
    %192 = vector.shape_cast %191 : vector<1x40x512xf32> to vector<40x512xf32>
    %193 = arith.addf %190, %192 : vector<40x512xf32>
    %cst_83 = arith.constant 5.000000e-01 : f32
    %194 = vector.broadcast %cst_83 : f32 to vector<40x512xf32>
    %195 = arith.mulf %194, %193 : vector<40x512xf32>
    %cst_84 = arith.constant 0.707106769 : f32
    %196 = vector.broadcast %cst_84 : f32 to vector<40x512xf32>
    %197 = arith.mulf %193, %196 : vector<40x512xf32>
    %198 = math.erf %197 : vector<40x512xf32>
    %cst_85 = arith.constant 1.000000e+00 : f32
    %199 = vector.broadcast %cst_85 : f32 to vector<40x512xf32>
    %200 = arith.addf %199, %198 : vector<40x512xf32>
    %201 = arith.mulf %195, %200 : vector<40x512xf32>
    %c3_86 = arith.constant 3 : index
    %c0_87 = arith.constant 0 : index
    %c0_88 = arith.constant 0 : index
    %202 = vector.load %arg5[%c3_86, %c0_87, %c0_88] : memref<8x96x40xbf16, #tpu.memory_space<vmem>>, vector<1x96x40xbf16>
    %203 = vector.shape_cast %202 : vector<1x96x40xbf16> to vector<96x40xbf16>
    %204 = arith.truncf %201 : vector<40x512xf32> to vector<40x512xbf16>
    %cst_89 = arith.constant dense<0.000000e+00> : vector<96x512xf32>
    %205 = tpu.matmul %203, %204, %cst_89 {dimension_numbers = #tpu.dot_dimension_numbers<[1], [0], [0], [1], [0, 0, 1, 1], [], []>} : vector<96x40xbf16>, vector<40x512xbf16>, vector<96x512xf32> -> vector<96x512xf32>
    %c3_90 = arith.constant 3 : index
    %c0_91 = arith.constant 0 : index
    %c0_92 = arith.constant 0 : index
    %206 = vector.load %arg6[%c3_90, %c0_91, %c0_92] : memref<8x96x1xf32, #tpu.memory_space<vmem>>, vector<1x96x1xf32>
    %207 = vector.shape_cast %206 : vector<1x96x1xf32> to vector<96x1xf32>
    %208 = vector.broadcast %207 : vector<96x1xf32> to vector<96x512xf32>
    %209 = arith.addf %205, %208 : vector<96x512xf32>
    %cst_93 = arith.constant 5.000000e-01 : f32
    %210 = vector.broadcast %cst_93 : f32 to vector<96x512xf32>
    %211 = arith.mulf %210, %209 : vector<96x512xf32>
    %cst_94 = arith.constant 0.707106769 : f32
    %212 = vector.broadcast %cst_94 : f32 to vector<96x512xf32>
    %213 = arith.mulf %209, %212 : vector<96x512xf32>
    %214 = math.erf %213 : vector<96x512xf32>
    %cst_95 = arith.constant 1.000000e+00 : f32
    %215 = vector.broadcast %cst_95 : f32 to vector<96x512xf32>
    %216 = arith.addf %215, %214 : vector<96x512xf32>
    %217 = arith.mulf %211, %216 : vector<96x512xf32>
    %218 = vector.extract_strided_slice %217 {offsets = [0, 0], sizes = [64, 512], strides = [1, 1]} : vector<96x512xf32> to vector<64x512xf32>
    %219 = arith.addf %173, %218 : vector<64x512xf32>
    %220 = vector.extract_strided_slice %217 {offsets = [64, 0], sizes = [32, 512], strides = [1, 1]} : vector<96x512xf32> to vector<32x512xf32>
    %221 = arith.addf %220, %175 : vector<32x512xf32>
    %c1_i32_96 = arith.constant 1 : i32
    %222 = tpu.dynamic_rotate %221 by %c1_i32_96 dim 1 : vector<32x512xf32>, i32 -> vector<32x512xf32>
    %cst_97 = arith.constant 0.000000e+00 : f32
    %223 = vector.shape_cast %24 : vector<1x512xi1> to vector<1x512xi1>
    %224 = vector.broadcast %223 : vector<1x512xi1> to vector<32x512xi1>
    %225 = vector.broadcast %cst_97 : f32 to vector<32x512xf32>
    %226 = arith.select %224, %222, %225 : vector<32x512xi1>, vector<32x512xf32>
    %c511_i32_98 = arith.constant 511 : i32
    %227 = tpu.dynamic_rotate %221 by %c511_i32_98 dim 1 : vector<32x512xf32>, i32 -> vector<32x512xf32>
    %cst_99 = arith.constant 0.000000e+00 : f32
    %228 = vector.shape_cast %32 : vector<1x512xi1> to vector<1x512xi1>
    %229 = vector.broadcast %228 : vector<1x512xi1> to vector<32x512xi1>
    %230 = vector.broadcast %cst_99 : f32 to vector<32x512xf32>
    %231 = arith.select %229, %227, %230 : vector<32x512xi1>, vector<32x512xf32>
    %232 = tpu.concatenate %226, %221, %231 in 0 : vector<32x512xf32>, vector<32x512xf32>, vector<32x512xf32> -> vector<96x512xf32>
    %233 = arith.truncf %232 : vector<96x512xf32> to vector<96x512xbf16>
    %c4 = arith.constant 4 : index
    %c0_100 = arith.constant 0 : index
    %c0_101 = arith.constant 0 : index
    %234 = vector.load %arg3[%c4, %c0_100, %c0_101] : memref<8x40x96xbf16, #tpu.memory_space<vmem>>, vector<1x40x96xbf16>
    %235 = vector.shape_cast %234 : vector<1x40x96xbf16> to vector<40x96xbf16>
    %cst_102 = arith.constant dense<0.000000e+00> : vector<40x512xf32>
    %236 = tpu.matmul %235, %233, %cst_102 {dimension_numbers = #tpu.dot_dimension_numbers<[1], [0], [0], [1], [0, 0, 1, 1], [], []>} : vector<40x96xbf16>, vector<96x512xbf16>, vector<40x512xf32> -> vector<40x512xf32>
    %c4_103 = arith.constant 4 : index
    %c0_104 = arith.constant 0 : index
    %c0_105 = arith.constant 0 : index
    %237 = vector.load %arg4[%c4_103, %c0_104, %c0_105] : memref<8x40x512xf32, #tpu.memory_space<vmem>>, vector<1x40x512xf32>
    %238 = vector.shape_cast %237 : vector<1x40x512xf32> to vector<40x512xf32>
    %239 = arith.addf %236, %238 : vector<40x512xf32>
    %cst_106 = arith.constant 5.000000e-01 : f32
    %240 = vector.broadcast %cst_106 : f32 to vector<40x512xf32>
    %241 = arith.mulf %240, %239 : vector<40x512xf32>
    %cst_107 = arith.constant 0.707106769 : f32
    %242 = vector.broadcast %cst_107 : f32 to vector<40x512xf32>
    %243 = arith.mulf %239, %242 : vector<40x512xf32>
    %244 = math.erf %243 : vector<40x512xf32>
    %cst_108 = arith.constant 1.000000e+00 : f32
    %245 = vector.broadcast %cst_108 : f32 to vector<40x512xf32>
    %246 = arith.addf %245, %244 : vector<40x512xf32>
    %247 = arith.mulf %241, %246 : vector<40x512xf32>
    %c4_109 = arith.constant 4 : index
    %c0_110 = arith.constant 0 : index
    %c0_111 = arith.constant 0 : index
    %248 = vector.load %arg5[%c4_109, %c0_110, %c0_111] : memref<8x96x40xbf16, #tpu.memory_space<vmem>>, vector<1x96x40xbf16>
    %249 = vector.shape_cast %248 : vector<1x96x40xbf16> to vector<96x40xbf16>
    %250 = arith.truncf %247 : vector<40x512xf32> to vector<40x512xbf16>
    %cst_112 = arith.constant dense<0.000000e+00> : vector<96x512xf32>
    %251 = tpu.matmul %249, %250, %cst_112 {dimension_numbers = #tpu.dot_dimension_numbers<[1], [0], [0], [1], [0, 0, 1, 1], [], []>} : vector<96x40xbf16>, vector<40x512xbf16>, vector<96x512xf32> -> vector<96x512xf32>
    %c4_113 = arith.constant 4 : index
    %c0_114 = arith.constant 0 : index
    %c0_115 = arith.constant 0 : index
    %252 = vector.load %arg6[%c4_113, %c0_114, %c0_115] : memref<8x96x1xf32, #tpu.memory_space<vmem>>, vector<1x96x1xf32>
    %253 = vector.shape_cast %252 : vector<1x96x1xf32> to vector<96x1xf32>
    %254 = vector.broadcast %253 : vector<96x1xf32> to vector<96x512xf32>
    %255 = arith.addf %251, %254 : vector<96x512xf32>
    %cst_116 = arith.constant 5.000000e-01 : f32
    %256 = vector.broadcast %cst_116 : f32 to vector<96x512xf32>
    %257 = arith.mulf %256, %255 : vector<96x512xf32>
    %cst_117 = arith.constant 0.707106769 : f32
    %258 = vector.broadcast %cst_117 : f32 to vector<96x512xf32>
    %259 = arith.mulf %255, %258 : vector<96x512xf32>
    %260 = math.erf %259 : vector<96x512xf32>
    %cst_118 = arith.constant 1.000000e+00 : f32
    %261 = vector.broadcast %cst_118 : f32 to vector<96x512xf32>
    %262 = arith.addf %261, %260 : vector<96x512xf32>
    %263 = arith.mulf %257, %262 : vector<96x512xf32>
    %264 = vector.extract_strided_slice %263 {offsets = [0, 0], sizes = [64, 512], strides = [1, 1]} : vector<96x512xf32> to vector<64x512xf32>
    %265 = arith.addf %219, %264 : vector<64x512xf32>
    %266 = vector.extract_strided_slice %263 {offsets = [64, 0], sizes = [32, 512], strides = [1, 1]} : vector<96x512xf32> to vector<32x512xf32>
    %267 = arith.addf %266, %221 : vector<32x512xf32>
    %c3_i32_119 = arith.constant 3 : i32
    %268 = tpu.dynamic_rotate %267 by %c3_i32_119 dim 1 : vector<32x512xf32>, i32 -> vector<32x512xf32>
    %cst_120 = arith.constant 0.000000e+00 : f32
    %269 = vector.shape_cast %26 : vector<1x512xi1> to vector<1x512xi1>
    %270 = vector.broadcast %269 : vector<1x512xi1> to vector<32x512xi1>
    %271 = vector.broadcast %cst_120 : f32 to vector<32x512xf32>
    %272 = arith.select %270, %268, %271 : vector<32x512xi1>, vector<32x512xf32>
    %c509_i32_121 = arith.constant 509 : i32
    %273 = tpu.dynamic_rotate %267 by %c509_i32_121 dim 1 : vector<32x512xf32>, i32 -> vector<32x512xf32>
    %cst_122 = arith.constant 0.000000e+00 : f32
    %274 = vector.shape_cast %34 : vector<1x512xi1> to vector<1x512xi1>
    %275 = vector.broadcast %274 : vector<1x512xi1> to vector<32x512xi1>
    %276 = vector.broadcast %cst_122 : f32 to vector<32x512xf32>
    %277 = arith.select %275, %273, %276 : vector<32x512xi1>, vector<32x512xf32>
    %278 = tpu.concatenate %272, %267, %277 in 0 : vector<32x512xf32>, vector<32x512xf32>, vector<32x512xf32> -> vector<96x512xf32>
    %279 = arith.truncf %278 : vector<96x512xf32> to vector<96x512xbf16>
    %c5 = arith.constant 5 : index
    %c0_123 = arith.constant 0 : index
    %c0_124 = arith.constant 0 : index
    %280 = vector.load %arg3[%c5, %c0_123, %c0_124] : memref<8x40x96xbf16, #tpu.memory_space<vmem>>, vector<1x40x96xbf16>
    %281 = vector.shape_cast %280 : vector<1x40x96xbf16> to vector<40x96xbf16>
    %cst_125 = arith.constant dense<0.000000e+00> : vector<40x512xf32>
    %282 = tpu.matmul %281, %279, %cst_125 {dimension_numbers = #tpu.dot_dimension_numbers<[1], [0], [0], [1], [0, 0, 1, 1], [], []>} : vector<40x96xbf16>, vector<96x512xbf16>, vector<40x512xf32> -> vector<40x512xf32>
    %c5_126 = arith.constant 5 : index
    %c0_127 = arith.constant 0 : index
    %c0_128 = arith.constant 0 : index
    %283 = vector.load %arg4[%c5_126, %c0_127, %c0_128] : memref<8x40x512xf32, #tpu.memory_space<vmem>>, vector<1x40x512xf32>
    %284 = vector.shape_cast %283 : vector<1x40x512xf32> to vector<40x512xf32>
    %285 = arith.addf %282, %284 : vector<40x512xf32>
    %cst_129 = arith.constant 5.000000e-01 : f32
    %286 = vector.broadcast %cst_129 : f32 to vector<40x512xf32>
    %287 = arith.mulf %286, %285 : vector<40x512xf32>
    %cst_130 = arith.constant 0.707106769 : f32
    %288 = vector.broadcast %cst_130 : f32 to vector<40x512xf32>
    %289 = arith.mulf %285, %288 : vector<40x512xf32>
    %290 = math.erf %289 : vector<40x512xf32>
    %cst_131 = arith.constant 1.000000e+00 : f32
    %291 = vector.broadcast %cst_131 : f32 to vector<40x512xf32>
    %292 = arith.addf %291, %290 : vector<40x512xf32>
    %293 = arith.mulf %287, %292 : vector<40x512xf32>
    %c5_132 = arith.constant 5 : index
    %c0_133 = arith.constant 0 : index
    %c0_134 = arith.constant 0 : index
    %294 = vector.load %arg5[%c5_132, %c0_133, %c0_134] : memref<8x96x40xbf16, #tpu.memory_space<vmem>>, vector<1x96x40xbf16>
    %295 = vector.shape_cast %294 : vector<1x96x40xbf16> to vector<96x40xbf16>
    %296 = arith.truncf %293 : vector<40x512xf32> to vector<40x512xbf16>
    %cst_135 = arith.constant dense<0.000000e+00> : vector<96x512xf32>
    %297 = tpu.matmul %295, %296, %cst_135 {dimension_numbers = #tpu.dot_dimension_numbers<[1], [0], [0], [1], [0, 0, 1, 1], [], []>} : vector<96x40xbf16>, vector<40x512xbf16>, vector<96x512xf32> -> vector<96x512xf32>
    %c5_136 = arith.constant 5 : index
    %c0_137 = arith.constant 0 : index
    %c0_138 = arith.constant 0 : index
    %298 = vector.load %arg6[%c5_136, %c0_137, %c0_138] : memref<8x96x1xf32, #tpu.memory_space<vmem>>, vector<1x96x1xf32>
    %299 = vector.shape_cast %298 : vector<1x96x1xf32> to vector<96x1xf32>
    %300 = vector.broadcast %299 : vector<96x1xf32> to vector<96x512xf32>
    %301 = arith.addf %297, %300 : vector<96x512xf32>
    %cst_139 = arith.constant 5.000000e-01 : f32
    %302 = vector.broadcast %cst_139 : f32 to vector<96x512xf32>
    %303 = arith.mulf %302, %301 : vector<96x512xf32>
    %cst_140 = arith.constant 0.707106769 : f32
    %304 = vector.broadcast %cst_140 : f32 to vector<96x512xf32>
    %305 = arith.mulf %301, %304 : vector<96x512xf32>
    %306 = math.erf %305 : vector<96x512xf32>
    %cst_141 = arith.constant 1.000000e+00 : f32
    %307 = vector.broadcast %cst_141 : f32 to vector<96x512xf32>
    %308 = arith.addf %307, %306 : vector<96x512xf32>
    %309 = arith.mulf %303, %308 : vector<96x512xf32>
    %310 = vector.extract_strided_slice %309 {offsets = [0, 0], sizes = [64, 512], strides = [1, 1]} : vector<96x512xf32> to vector<64x512xf32>
    %311 = arith.addf %265, %310 : vector<64x512xf32>
    %312 = vector.extract_strided_slice %309 {offsets = [64, 0], sizes = [32, 512], strides = [1, 1]} : vector<96x512xf32> to vector<32x512xf32>
    %313 = arith.addf %312, %267 : vector<32x512xf32>
    %c9_i32_142 = arith.constant 9 : i32
    %314 = tpu.dynamic_rotate %313 by %c9_i32_142 dim 1 : vector<32x512xf32>, i32 -> vector<32x512xf32>
    %cst_143 = arith.constant 0.000000e+00 : f32
    %315 = vector.shape_cast %28 : vector<1x512xi1> to vector<1x512xi1>
    %316 = vector.broadcast %315 : vector<1x512xi1> to vector<32x512xi1>
    %317 = vector.broadcast %cst_143 : f32 to vector<32x512xf32>
    %318 = arith.select %316, %314, %317 : vector<32x512xi1>, vector<32x512xf32>
    %c503_i32_144 = arith.constant 503 : i32
    %319 = tpu.dynamic_rotate %313 by %c503_i32_144 dim 1 : vector<32x512xf32>, i32 -> vector<32x512xf32>
    %cst_145 = arith.constant 0.000000e+00 : f32
    %320 = vector.shape_cast %36 : vector<1x512xi1> to vector<1x512xi1>
    %321 = vector.broadcast %320 : vector<1x512xi1> to vector<32x512xi1>
    %322 = vector.broadcast %cst_145 : f32 to vector<32x512xf32>
    %323 = arith.select %321, %319, %322 : vector<32x512xi1>, vector<32x512xf32>
    %324 = tpu.concatenate %318, %313, %323 in 0 : vector<32x512xf32>, vector<32x512xf32>, vector<32x512xf32> -> vector<96x512xf32>
    %325 = arith.truncf %324 : vector<96x512xf32> to vector<96x512xbf16>
    %c6 = arith.constant 6 : index
    %c0_146 = arith.constant 0 : index
    %c0_147 = arith.constant 0 : index
    %326 = vector.load %arg3[%c6, %c0_146, %c0_147] : memref<8x40x96xbf16, #tpu.memory_space<vmem>>, vector<1x40x96xbf16>
    %327 = vector.shape_cast %326 : vector<1x40x96xbf16> to vector<40x96xbf16>
    %cst_148 = arith.constant dense<0.000000e+00> : vector<40x512xf32>
    %328 = tpu.matmul %327, %325, %cst_148 {dimension_numbers = #tpu.dot_dimension_numbers<[1], [0], [0], [1], [0, 0, 1, 1], [], []>} : vector<40x96xbf16>, vector<96x512xbf16>, vector<40x512xf32> -> vector<40x512xf32>
    %c6_149 = arith.constant 6 : index
    %c0_150 = arith.constant 0 : index
    %c0_151 = arith.constant 0 : index
    %329 = vector.load %arg4[%c6_149, %c0_150, %c0_151] : memref<8x40x512xf32, #tpu.memory_space<vmem>>, vector<1x40x512xf32>
    %330 = vector.shape_cast %329 : vector<1x40x512xf32> to vector<40x512xf32>
    %331 = arith.addf %328, %330 : vector<40x512xf32>
    %cst_152 = arith.constant 5.000000e-01 : f32
    %332 = vector.broadcast %cst_152 : f32 to vector<40x512xf32>
    %333 = arith.mulf %332, %331 : vector<40x512xf32>
    %cst_153 = arith.constant 0.707106769 : f32
    %334 = vector.broadcast %cst_153 : f32 to vector<40x512xf32>
    %335 = arith.mulf %331, %334 : vector<40x512xf32>
    %336 = math.erf %335 : vector<40x512xf32>
    %cst_154 = arith.constant 1.000000e+00 : f32
    %337 = vector.broadcast %cst_154 : f32 to vector<40x512xf32>
    %338 = arith.addf %337, %336 : vector<40x512xf32>
    %339 = arith.mulf %333, %338 : vector<40x512xf32>
    %c6_155 = arith.constant 6 : index
    %c0_156 = arith.constant 0 : index
    %c0_157 = arith.constant 0 : index
    %340 = vector.load %arg5[%c6_155, %c0_156, %c0_157] : memref<8x96x40xbf16, #tpu.memory_space<vmem>>, vector<1x96x40xbf16>
    %341 = vector.shape_cast %340 : vector<1x96x40xbf16> to vector<96x40xbf16>
    %342 = arith.truncf %339 : vector<40x512xf32> to vector<40x512xbf16>
    %cst_158 = arith.constant dense<0.000000e+00> : vector<96x512xf32>
    %343 = tpu.matmul %341, %342, %cst_158 {dimension_numbers = #tpu.dot_dimension_numbers<[1], [0], [0], [1], [0, 0, 1, 1], [], []>} : vector<96x40xbf16>, vector<40x512xbf16>, vector<96x512xf32> -> vector<96x512xf32>
    %c6_159 = arith.constant 6 : index
    %c0_160 = arith.constant 0 : index
    %c0_161 = arith.constant 0 : index
    %344 = vector.load %arg6[%c6_159, %c0_160, %c0_161] : memref<8x96x1xf32, #tpu.memory_space<vmem>>, vector<1x96x1xf32>
    %345 = vector.shape_cast %344 : vector<1x96x1xf32> to vector<96x1xf32>
    %346 = vector.broadcast %345 : vector<96x1xf32> to vector<96x512xf32>
    %347 = arith.addf %343, %346 : vector<96x512xf32>
    %cst_162 = arith.constant 5.000000e-01 : f32
    %348 = vector.broadcast %cst_162 : f32 to vector<96x512xf32>
    %349 = arith.mulf %348, %347 : vector<96x512xf32>
    %cst_163 = arith.constant 0.707106769 : f32
    %350 = vector.broadcast %cst_163 : f32 to vector<96x512xf32>
    %351 = arith.mulf %347, %350 : vector<96x512xf32>
    %352 = math.erf %351 : vector<96x512xf32>
    %cst_164 = arith.constant 1.000000e+00 : f32
    %353 = vector.broadcast %cst_164 : f32 to vector<96x512xf32>
    %354 = arith.addf %353, %352 : vector<96x512xf32>
    %355 = arith.mulf %349, %354 : vector<96x512xf32>
    %356 = vector.extract_strided_slice %355 {offsets = [0, 0], sizes = [64, 512], strides = [1, 1]} : vector<96x512xf32> to vector<64x512xf32>
    %357 = arith.addf %311, %356 : vector<64x512xf32>
    %358 = vector.extract_strided_slice %355 {offsets = [64, 0], sizes = [32, 512], strides = [1, 1]} : vector<96x512xf32> to vector<32x512xf32>
    %359 = arith.addf %358, %313 : vector<32x512xf32>
    %c27_i32_165 = arith.constant 27 : i32
    %360 = tpu.dynamic_rotate %359 by %c27_i32_165 dim 1 : vector<32x512xf32>, i32 -> vector<32x512xf32>
    %cst_166 = arith.constant 0.000000e+00 : f32
    %361 = vector.shape_cast %30 : vector<1x512xi1> to vector<1x512xi1>
    %362 = vector.broadcast %361 : vector<1x512xi1> to vector<32x512xi1>
    %363 = vector.broadcast %cst_166 : f32 to vector<32x512xf32>
    %364 = arith.select %362, %360, %363 : vector<32x512xi1>, vector<32x512xf32>
    %c485_i32_167 = arith.constant 485 : i32
    %365 = tpu.dynamic_rotate %359 by %c485_i32_167 dim 1 : vector<32x512xf32>, i32 -> vector<32x512xf32>
    %cst_168 = arith.constant 0.000000e+00 : f32
    %366 = vector.shape_cast %38 : vector<1x512xi1> to vector<1x512xi1>
    %367 = vector.broadcast %366 : vector<1x512xi1> to vector<32x512xi1>
    %368 = vector.broadcast %cst_168 : f32 to vector<32x512xf32>
    %369 = arith.select %367, %365, %368 : vector<32x512xi1>, vector<32x512xf32>
    %370 = tpu.concatenate %364, %359, %369 in 0 : vector<32x512xf32>, vector<32x512xf32>, vector<32x512xf32> -> vector<96x512xf32>
    %371 = arith.truncf %370 : vector<96x512xf32> to vector<96x512xbf16>
    %c7 = arith.constant 7 : index
    %c0_169 = arith.constant 0 : index
    %c0_170 = arith.constant 0 : index
    %372 = vector.load %arg3[%c7, %c0_169, %c0_170] : memref<8x40x96xbf16, #tpu.memory_space<vmem>>, vector<1x40x96xbf16>
    %373 = vector.shape_cast %372 : vector<1x40x96xbf16> to vector<40x96xbf16>
    %cst_171 = arith.constant dense<0.000000e+00> : vector<40x512xf32>
    %374 = tpu.matmul %373, %371, %cst_171 {dimension_numbers = #tpu.dot_dimension_numbers<[1], [0], [0], [1], [0, 0, 1, 1], [], []>} : vector<40x96xbf16>, vector<96x512xbf16>, vector<40x512xf32> -> vector<40x512xf32>
    %c7_172 = arith.constant 7 : index
    %c0_173 = arith.constant 0 : index
    %c0_174 = arith.constant 0 : index
    %375 = vector.load %arg4[%c7_172, %c0_173, %c0_174] : memref<8x40x512xf32, #tpu.memory_space<vmem>>, vector<1x40x512xf32>
    %376 = vector.shape_cast %375 : vector<1x40x512xf32> to vector<40x512xf32>
    %377 = arith.addf %374, %376 : vector<40x512xf32>
    %cst_175 = arith.constant 5.000000e-01 : f32
    %378 = vector.broadcast %cst_175 : f32 to vector<40x512xf32>
    %379 = arith.mulf %378, %377 : vector<40x512xf32>
    %cst_176 = arith.constant 0.707106769 : f32
    %380 = vector.broadcast %cst_176 : f32 to vector<40x512xf32>
    %381 = arith.mulf %377, %380 : vector<40x512xf32>
    %382 = math.erf %381 : vector<40x512xf32>
    %cst_177 = arith.constant 1.000000e+00 : f32
    %383 = vector.broadcast %cst_177 : f32 to vector<40x512xf32>
    %384 = arith.addf %383, %382 : vector<40x512xf32>
    %385 = arith.mulf %379, %384 : vector<40x512xf32>
    %c7_178 = arith.constant 7 : index
    %c0_179 = arith.constant 0 : index
    %c0_180 = arith.constant 0 : index
    %386 = vector.load %arg5[%c7_178, %c0_179, %c0_180] : memref<8x96x40xbf16, #tpu.memory_space<vmem>>, vector<1x96x40xbf16>
    %387 = vector.shape_cast %386 : vector<1x96x40xbf16> to vector<96x40xbf16>
    %388 = arith.truncf %385 : vector<40x512xf32> to vector<40x512xbf16>
    %cst_181 = arith.constant dense<0.000000e+00> : vector<96x512xf32>
    %389 = tpu.matmul %387, %388, %cst_181 {dimension_numbers = #tpu.dot_dimension_numbers<[1], [0], [0], [1], [0, 0, 1, 1], [], []>} : vector<96x40xbf16>, vector<40x512xbf16>, vector<96x512xf32> -> vector<96x512xf32>
    %c7_182 = arith.constant 7 : index
    %c0_183 = arith.constant 0 : index
    %c0_184 = arith.constant 0 : index
    %390 = vector.load %arg6[%c7_182, %c0_183, %c0_184] : memref<8x96x1xf32, #tpu.memory_space<vmem>>, vector<1x96x1xf32>
    %391 = vector.shape_cast %390 : vector<1x96x1xf32> to vector<96x1xf32>
    %392 = vector.broadcast %391 : vector<96x1xf32> to vector<96x512xf32>
    %393 = arith.addf %389, %392 : vector<96x512xf32>
    %cst_185 = arith.constant 5.000000e-01 : f32
    %394 = vector.broadcast %cst_185 : f32 to vector<96x512xf32>
    %395 = arith.mulf %394, %393 : vector<96x512xf32>
    %cst_186 = arith.constant 0.707106769 : f32
    %396 = vector.broadcast %cst_186 : f32 to vector<96x512xf32>
    %397 = arith.mulf %393, %396 : vector<96x512xf32>
    %398 = math.erf %397 : vector<96x512xf32>
    %cst_187 = arith.constant 1.000000e+00 : f32
    %399 = vector.broadcast %cst_187 : f32 to vector<96x512xf32>
    %400 = arith.addf %399, %398 : vector<96x512xf32>
    %401 = arith.mulf %395, %400 : vector<96x512xf32>
    %402 = vector.extract_strided_slice %401 {offsets = [0, 0], sizes = [64, 512], strides = [1, 1]} : vector<96x512xf32> to vector<64x512xf32>
    %403 = arith.addf %357, %402 : vector<64x512xf32>
    %cst_188 = arith.constant 5.000000e-01 : f32
    %404 = vector.broadcast %cst_188 : f32 to vector<64x512xf32>
    %405 = arith.mulf %404, %403 : vector<64x512xf32>
    %cst_189 = arith.constant 0.707106769 : f32
    %406 = vector.broadcast %cst_189 : f32 to vector<64x512xf32>
    %407 = arith.mulf %403, %406 : vector<64x512xf32>
    %408 = math.erf %407 : vector<64x512xf32>
    %cst_190 = arith.constant 1.000000e+00 : f32
    %409 = vector.broadcast %cst_190 : f32 to vector<64x512xf32>
    %410 = arith.addf %409, %408 : vector<64x512xf32>
    %411 = arith.mulf %405, %410 : vector<64x512xf32>
    %c0_191 = arith.constant 0 : index
    %c0_192 = arith.constant 0 : index
    %412 = vector.load %arg7[%c0_191, %c0_192] : memref<64x64xbf16, #tpu.memory_space<vmem>>, vector<64x64xbf16>
    %413 = arith.truncf %411 : vector<64x512xf32> to vector<64x512xbf16>
    %cst_193 = arith.constant dense<0.000000e+00> : vector<64x512xf32>
    %414 = tpu.matmul %412, %413, %cst_193 {dimension_numbers = #tpu.dot_dimension_numbers<[1], [0], [0], [1], [0, 0, 1, 1], [], []>} : vector<64x64xbf16>, vector<64x512xbf16>, vector<64x512xf32> -> vector<64x512xf32>
    %c0_194 = arith.constant 0 : index
    %c0_195 = arith.constant 0 : index
    %415 = vector.load %arg8[%c0_194, %c0_195] : memref<64x1xf32, #tpu.memory_space<vmem>>, vector<64x1xf32>
    %416 = vector.broadcast %415 : vector<64x1xf32> to vector<64x512xf32>
    %417 = arith.addf %414, %416 : vector<64x512xf32>
    %cst_196 = arith.constant 5.000000e-01 : f32
    %418 = vector.broadcast %cst_196 : f32 to vector<64x512xf32>
    %419 = arith.mulf %418, %417 : vector<64x512xf32>
    %cst_197 = arith.constant 0.707106769 : f32
    %420 = vector.broadcast %cst_197 : f32 to vector<64x512xf32>
    %421 = arith.mulf %417, %420 : vector<64x512xf32>
    %422 = math.erf %421 : vector<64x512xf32>
    %cst_198 = arith.constant 1.000000e+00 : f32
    %423 = vector.broadcast %cst_198 : f32 to vector<64x512xf32>
    %424 = arith.addf %423, %422 : vector<64x512xf32>
    %425 = arith.mulf %419, %424 : vector<64x512xf32>
    %c0_199 = arith.constant 0 : index
    %c0_200 = arith.constant 0 : index
    %426 = vector.load %arg9[%c0_199, %c0_200] : memref<1x64xbf16, #tpu.memory_space<vmem>>, vector<1x64xbf16>
    %427 = arith.truncf %425 : vector<64x512xf32> to vector<64x512xbf16>
    %cst_201 = arith.constant dense<0.000000e+00> : vector<1x512xf32>
    %428 = tpu.matmul %426, %427, %cst_201 {dimension_numbers = #tpu.dot_dimension_numbers<[1], [0], [0], [1], [0, 0, 1, 1], [], []>} : vector<1x64xbf16>, vector<64x512xbf16>, vector<1x512xf32> -> vector<1x512xf32>
    %c0_202 = arith.constant 0 : index
    %c0_203 = arith.constant 0 : index
    %429 = vector.load %arg10[%c0_202, %c0_203] : memref<1x1xf32, #tpu.memory_space<vmem>>, vector<1x1xf32>
    %430 = vector.broadcast %429 : vector<1x1xf32> to vector<1x512xf32>
    %431 = arith.addf %428, %430 : vector<1x512xf32>
    %c0_204 = arith.constant 0 : index
    %c0_205 = arith.constant 0 : index
    %c0_206 = arith.constant 0 : index
    %432 = vector.load %arg11[%c0_204, %c0_205, %c0_206] : memref<1x1x512xf32, #tpu.memory_space<vmem>>, vector<1x1x512xf32>
    %433 = vector.shape_cast %432 : vector<1x1x512xf32> to vector<1x512xf32>
    %434 = vector.shape_cast %431 : vector<1x512xf32> to vector<1x1x512xf32>
    tpu.vector_store %arg11[%c0_204, %c0_205, %c0_206], %434 {strides = array<i32>} : memref<1x1x512xf32, #tpu.memory_space<vmem>>, vector<1x1x512xf32>,
    return
  }
  func.func @transform_0(%arg0: i32) -> (i32, i32, i32) {
    %c0_i32 = arith.constant 0 : i32
    %c0_i32_0 = arith.constant 0 : i32
    %c0_i32_1 = arith.constant 0 : i32
    return %arg0, %c0_i32, %c0_i32_0 : i32, i32, i32
  }
  func.func @transform_1(%arg0: i32) -> (i32, i32) {
    %c0_i32 = arith.constant 0 : i32
    %c0_i32_0 = arith.constant 0 : i32
    %c0_i32_1 = arith.constant 0 : i32
    return %c0_i32, %c0_i32_0 : i32, i32
  }
  func.func @transform_2(%arg0: i32) -> (i32, i32, i32) {
    %c0_i32 = arith.constant 0 : i32
    %c0_i32_0 = arith.constant 0 : i32
    %c0_i32_1 = arith.constant 0 : i32
    %c0_i32_2 = arith.constant 0 : i32
    return %c0_i32, %c0_i32_0, %c0_i32_1 : i32, i32, i32
  }
  func.func @transform_3(%arg0: i32) -> (i32, i32, i32) {
    %c0_i32 = arith.constant 0 : i32
    %c0_i32_0 = arith.constant 0 : i32
    %c0_i32_1 = arith.constant 0 : i32
    %c0_i32_2 = arith.constant 0 : i32
    return %c0_i32, %c0_i32_0, %c0_i32_1 : i32, i32, i32
  }
  func.func @transform_4(%arg0: i32) -> (i32, i32, i32) {
    %c0_i32 = arith.constant 0 : i32
    %c0_i32_0 = arith.constant 0 : i32
    %c0_i32_1 = arith.constant 0 : i32
    %c0_i32_2 = arith.constant 0 : i32
    return %c0_i32, %c0_i32_0, %c0_i32_1 : i32, i32, i32
  }
  func.func @transform_5(%arg0: i32) -> (i32, i32, i32) {
    %c0_i32 = arith.constant 0 : i32
    %c0_i32_0 = arith.constant 0 : i32
    %c0_i32_1 = arith.constant 0 : i32
    %c0_i32_2 = arith.constant 0 : i32
    return %c0_i32, %c0_i32_0, %c0_i32_1 : i32, i32, i32
  }
  func.func @transform_6(%arg0: i32) -> (i32, i32) {
    %c0_i32 = arith.constant 0 : i32
    %c0_i32_0 = arith.constant 0 : i32
    %c0_i32_1 = arith.constant 0 : i32
    return %c0_i32, %c0_i32_0 : i32, i32
  }
  func.func @transform_7(%arg0: i32) -> (i32, i32) {
    %c0_i32 = arith.constant 0 : i32
    %c0_i32_0 = arith.constant 0 : i32
    %c0_i32_1 = arith.constant 0 : i32
    return %c0_i32, %c0_i32_0 : i32, i32
  }
  func.func @transform_8(%arg0: i32) -> (i32, i32) {
    %c0_i32 = arith.constant 0 : i32
    %c0_i32_0 = arith.constant 0 : i32
    %c0_i32_1 = arith.constant 0 : i32
    return %c0_i32, %c0_i32_0 : i32, i32
  }
  func.func @transform_9(%arg0: i32) -> (i32, i32) {
    %c0_i32 = arith.constant 0 : i32
    %c0_i32_0 = arith.constant 0 : i32
    %c0_i32_1 = arith.constant 0 : i32
    return %c0_i32, %c0_i32_0 : i32, i32
  }
  func.func @transform_10(%arg0: i32) -> (i32, i32, i32) {
    %c0_i32 = arith.constant 0 : i32
    %c0_i32_0 = arith.constant 0 : i32
    %c0_i32_1 = arith.constant 0 : i32
    return %arg0, %c0_i32, %c0_i32_0 : i32, i32, i32
  }
}

</mosaic_0001>

<llo_original>
// kernel: tpu_custom_call.1
$region0: #{tpu_custom_call.1}
  #allocation0 [shape = 'u32[]', space=smem, size = 0x4, offset = 0x4, fixed_abs, tag = 'smem constant byte address 0x4 - core index']
  #allocation1 [shape = 'u32[144,128]{1,0:T(1,128)}', space=vmem, size = 0x12000, scoped, tag = 'internal scratch']
  #allocation2 [shape = 'f32[1,1]{1,0:T(1,128)S(1)}', space=vmem, size = 0x200, scoped, tag = 'scoped memory for tpu_custom_call.1']
  %s0 = inlined_call_operand.vmem [shape: f32[2,1,512], index: 0, kind: input, shape index: {}]
  %s1 = inlined_call_operand.vmem [shape: f32[32,1], index: 1, kind: input, shape index: {}]
  %s2 = inlined_call_operand.hbm [shape: bf16[8,40,96], index: 2, kind: input, shape index: {}]
  %s3 = inlined_call_operand.vmem [shape: f32[8,40,512], index: 3, kind: input, shape index: {}]
  %s4 = inlined_call_operand.vmem [shape: bf16[8,96,40], index: 4, kind: input, shape index: {}]
  %s5 = inlined_call_operand.vmem [shape: f32[8,96,1], index: 5, kind: input, shape index: {}]
  %s6 = inlined_call_operand.vmem [shape: bf16[64,64], index: 6, kind: input, shape index: {}]
  %s7 = inlined_call_operand.vmem [shape: f32[64,1], index: 7, kind: input, shape index: {}]
  %s8 = inlined_call_operand.vmem [shape: bf16[1,64], index: 8, kind: input, shape index: {}]
  %s9 = inlined_call_operand.<no memory space> [shape: f32[1,1], index: 9, kind: input, shape index: {}]
  %s10 = inlined_call_operand.hbm [shape: f32[2,1,512], index: 10, kind: output, shape index: {}]
  %s11 = sld [smem:[#allocation0]]
  $region77: #{tpu_custom_call.1} parent=0
    _
  %s13 = ssub.s32 1, %s11
  %s14 = scalar_select 0, %s13, %s11
  %v15 = vstv %s9
  %16 = vst [vmem:[#allocation2] sm:$0x1] %v15
  $region1: #{tpu_custom_call.1} parent=0
    #allocation3 [shape = 'u8[81920]{0}', space=vmem, size = 0x14000, scoped, tag = 'input window, operand 2, single buffered']
    #allocation4 [shape = 's32[2]{0}', space=sflag, size = 0x8, scoped, tag = 'scoped memory for tpu_custom_call.1']
    #allocation5 [shape = 's32[2]{0}', space=sflag, size = 0x8, scoped, tag = 'scoped memory for tpu_custom_call.1']
    #allocation6 [shape = 'u8[4096]{0}', space=vmem, size = 0x1000, scoped, tag = 'output window, operand 0']
    %17 = vsyncpa [#allocation4], 0
    %18 = vsyncpa [#allocation5], 0
    %s19 = scalar_lea.sflag [#allocation5], 1
    %20 = vsyncpa %s19, 0
    loop: start=0, step=1, limit=4
    $region2: #{tpu_custom_call.1} parent=1 // loop_pre_header
      _
    $region3: #{tpu_custom_call.1} parent=1 // loop_header
      %s22 = sphi 0, %s26
      %p23 = scmp.ge.s32.totalorder %s22, 4
      %s32 = sphi 0, %s34
      %s35 = sphi 0, %s32
      %s36 = sphi 0, %s35
      %s52 = sphi 0, %s36
      %s56 = sphi 0, %s56
      %s58 = sphi 0, %s56
      %s59 = sphi 0, %s58
      %s73 = sphi 0, %s59
      %s77 = sphi 0, %s77
      %s79 = sphi 0, %s77
      %s80 = sphi 0, %s79
      %s94 = sphi 0, %s80
      %s98 = sphi 0, %s98
      %s100 = sphi 0, %s98
      %s101 = sphi 0, %s100
      %s115 = sphi 0, %s101
      %s119 = sphi 0, %s119
      %s121 = sphi 0, %s119
      %s122 = sphi 0, %s121
      %s136 = sphi 0, %s122
      %s140 = sphi 0, %s140
      %s142 = sphi 0, %s140
      %s143 = sphi 0, %s142
      %s157 = sphi 0, %s143
      %s161 = sphi 0, %s161
      %s163 = sphi 0, %s161
      %s164 = sphi 0, %s163
      %s178 = sphi 0, %s164
      %s182 = sphi 0, %s182
      %s184 = sphi 0, %s182
      %s185 = sphi 0, %s184
      %s199 = sphi 0, %s185
      %s203 = sphi 0, %s203
      %s205 = sphi 0, %s203
      %s206 = sphi 0, %s205
      %s220 = sphi 0, %s206
      %s224 = sphi 0, %s224
      %s226 = sphi 0, %s224
      %s227 = sphi 0, %s226
      %s241 = sphi 0, %s227
      %s247 = sphi 0, %s249
      %s250 = sphi 0, %s247
      %s251 = sphi 0, %s250
      %s267 = sphi 0, %s251
    $region4: #{tpu_custom_call.1} parent=1 // loop_header_branch
      %25 = sbr.rel (%p23) target = $region8
    $region5: #{tpu_custom_call.1} parent=1 // loop_body
      %s27 = ssub.s32 %s22, 1
      %s28 = ssub.s32 %s22, 2
      %s29 = sadd.s32 %s22, 1
      %s30 = ssub.s32 %s22, %s29
      %p31 = scmp.eq.s32.totalorder %s30, 0
      %s33 = sadd.s32 %s32, 1
      %s34 = scalar_select %p31, %s32, %s33
      %p37 = pneg %p31
      %p38 = scmp.eq.s32.totalorder %s22, 1
      %p39 = por %p37, %p38
      %p40 = scmp.ne.s32.totalorder %s32, %s35
      %p41 = scmp.eq.s32.totalorder %s22, 0
      %p42 = por %p40, %p41
      %p43 = scmp.ne.s32.totalorder %s32, %s35
      %p44 = scmp.eq.s32.totalorder %s27, 1
      %p45 = por %p43, %p44
      %p46 = scmp.ne.s32.totalorder %s35, %s36
      %p47 = scmp.eq.s32.totalorder %s27, 0
      %p48 = por %p46, %p47
      %p49 = scmp.ne.s32.totalorder %s35, %s36
      %p50 = scmp.eq.s32.totalorder %s28, 1
      %p51 = por %p49, %p50
      %p53 = scmp.ne.s32.totalorder %s36, %s52
      %p54 = scmp.eq.s32.totalorder %s28, 0
      %p55 = por %p53, %p54
      %s57 = sadd.s32 %s56, 1
      %p60 = scmp.eq.s32.totalorder %s22, 1
      %p61 = scmp.ne.s32.totalorder %s56, %s58
      %p62 = scmp.eq.s32.totalorder %s22, 0
      %p63 = por %p61, %p62
      %p64 = scmp.ne.s32.totalorder %s56, %s58
      %p65 = scmp.eq.s32.totalorder %s27, 1
      %p66 = por %p64, %p65
      %p67 = scmp.ne.s32.totalorder %s58, %s59
      %p68 = scmp.eq.s32.totalorder %s27, 0
      %p69 = por %p67, %p68
      %p70 = scmp.ne.s32.totalorder %s58, %s59
      %p71 = scmp.eq.s32.totalorder %s28, 1
      %p72 = por %p70, %p71
      %p74 = scmp.ne.s32.totalorder %s59, %s73
      %p75 = scmp.eq.s32.totalorder %s28, 0
      %p76 = por %p74, %p75
      %s78 = sadd.s32 %s77, 1
      %p81 = scmp.eq.s32.totalorder %s22, 1
      %p82 = scmp.ne.s32.totalorder %s77, %s79
      %p83 = scmp.eq.s32.totalorder %s22, 0
      %p84 = por %p82, %p83
      %p85 = scmp.ne.s32.totalorder %s77, %s79
      %p86 = scmp.eq.s32.totalorder %s27, 1
      %p87 = por %p85, %p86
      %p88 = scmp.ne.s32.totalorder %s79, %s80
      %p89 = scmp.eq.s32.totalorder %s27, 0
      %p90 = por %p88, %p89
      %p91 = scmp.ne.s32.totalorder %s79, %s80
      %p92 = scmp.eq.s32.totalorder %s28, 1
      %p93 = por %p91, %p92
      %p95 = scmp.ne.s32.totalorder %s80, %s94
      %p96 = scmp.eq.s32.totalorder %s28, 0
      %p97 = por %p95, %p96
      %s99 = sadd.s32 %s98, 1
      %p102 = scmp.eq.s32.totalorder %s22, 1
      %p103 = scmp.ne.s32.totalorder %s98, %s100
      %p104 = scmp.eq.s32.totalorder %s22, 0
      %p105 = por %p103, %p104
      %p106 = scmp.ne.s32.totalorder %s98, %s100
      %p107 = scmp.eq.s32.totalorder %s27, 1
      %p108 = por %p106, %p107
      %p109 = scmp.ne.s32.totalorder %s100, %s101
      %p110 = scmp.eq.s32.totalorder %s27, 0
      %p111 = por %p109, %p110
      %p112 = scmp.ne.s32.totalorder %s100, %s101
      %p113 = scmp.eq.s32.totalorder %s28, 1
      %p114 = por %p112, %p113
      %p116 = scmp.ne.s32.totalorder %s101, %s115
      %p117 = scmp.eq.s32.totalorder %s28, 0
      %p118 = por %p116, %p117
      %s120 = sadd.s32 %s119, 1
      %p123 = scmp.eq.s32.totalorder %s22, 1
      %p124 = scmp.ne.s32.totalorder %s119, %s121
      %p125 = scmp.eq.s32.totalorder %s22, 0
      %p126 = por %p124, %p125
      %p127 = scmp.ne.s32.totalorder %s119, %s121
      %p128 = scmp.eq.s32.totalorder %s27, 1
      %p129 = por %p127, %p128
      %p130 = scmp.ne.s32.totalorder %s121, %s122
      %p131 = scmp.eq.s32.totalorder %s27, 0
      %p132 = por %p130, %p131
      %p133 = scmp.ne.s32.totalorder %s121, %s122
      %p134 = scmp.eq.s32.totalorder %s28, 1
      %p135 = por %p133, %p134
      %p137 = scmp.ne.s32.totalorder %s122, %s136
      %p138 = scmp.eq.s32.totalorder %s28, 0
      %p139 = por %p137, %p138
      %s141 = sadd.s32 %s140, 1
      %p144 = scmp.eq.s32.totalorder %s22, 1
      %p145 = scmp.ne.s32.totalorder %s140, %s142
      %p146 = scmp.eq.s32.totalorder %s22, 0
      %p147 = por %p145, %p146
      %p148 = scmp.ne.s32.totalorder %s140, %s142
      %p149 = scmp.eq.s32.totalorder %s27, 1
      %p150 = por %p148, %p149
      %p151 = scmp.ne.s32.totalorder %s142, %s143
      %p152 = scmp.eq.s32.totalorder %s27, 0
      %p153 = por %p151, %p152
      %p154 = scmp.ne.s32.totalorder %s142, %s143
      %p155 = scmp.eq.s32.totalorder %s28, 1
      %p156 = por %p154, %p155
      %p158 = scmp.ne.s32.totalorder %s143, %s157
      %p159 = scmp.eq.s32.totalorder %s28, 0
      %p160 = por %p158, %p159
      %s162 = sadd.s32 %s161, 1
      %p165 = scmp.eq.s32.totalorder %s22, 1
      %p166 = scmp.ne.s32.totalorder %s161, %s163
      %p167 = scmp.eq.s32.totalorder %s22, 0
      %p168 = por %p166, %p167
      %p169 = scmp.ne.s32.totalorder %s161, %s163
      %p170 = scmp.eq.s32.totalorder %s27, 1
      %p171 = por %p169, %p170
      %p172 = scmp.ne.s32.totalorder %s163, %s164
      %p173 = scmp.eq.s32.totalorder %s27, 0
      %p174 = por %p172, %p173
      %p175 = scmp.ne.s32.totalorder %s163, %s164
      %p176 = scmp.eq.s32.totalorder %s28, 1
      %p177 = por %p175, %p176
      %p179 = scmp.ne.s32.totalorder %s164, %s178
      %p180 = scmp.eq.s32.totalorder %s28, 0
      %p181 = por %p179, %p180
      %s183 = sadd.s32 %s182, 1
      %p186 = scmp.eq.s32.totalorder %s22, 1
      %p187 = scmp.ne.s32.totalorder %s182, %s184
      %p188 = scmp.eq.s32.totalorder %s22, 0
      %p189 = por %p187, %p188
      %p190 = scmp.ne.s32.totalorder %s182, %s184
      %p191 = scmp.eq.s32.totalorder %s27, 1
      %p192 = por %p190, %p191
      %p193 = scmp.ne.s32.totalorder %s184, %s185
      %p194 = scmp.eq.s32.totalorder %s27, 0
      %p195 = por %p193, %p194
      %p196 = scmp.ne.s32.totalorder %s184, %s185
      %p197 = scmp.eq.s32.totalorder %s28, 1
      %p198 = por %p196, %p197
      %p200 = scmp.ne.s32.totalorder %s185, %s199
      %p201 = scmp.eq.s32.totalorder %s28, 0
      %p202 = por %p200, %p201
      %s204 = sadd.s32 %s203, 1
      %p207 = scmp.eq.s32.totalorder %s22, 1
      %p208 = scmp.ne.s32.totalorder %s203, %s205
      %p209 = scmp.eq.s32.totalorder %s22, 0
      %p210 = por %p208, %p209
      %p211 = scmp.ne.s32.totalorder %s203, %s205
      %p212 = scmp.eq.s32.totalorder %s27, 1
      %p213 = por %p211, %p212
      %p214 = scmp.ne.s32.totalorder %s205, %s206
      %p215 = scmp.eq.s32.totalorder %s27, 0
      %p216 = por %p214, %p215
      %p217 = scmp.ne.s32.totalorder %s205, %s206
      %p218 = scmp.eq.s32.totalorder %s28, 1
      %p219 = por %p217, %p218
      %p221 = scmp.ne.s32.totalorder %s206, %s220
      %p222 = scmp.eq.s32.totalorder %s28, 0
      %p223 = por %p221, %p222
      %s225 = sadd.s32 %s224, 1
      %p228 = scmp.eq.s32.totalorder %s22, 1
      %p229 = scmp.ne.s32.totalorder %s224, %s226
      %p230 = scmp.eq.s32.totalorder %s22, 0
      %p231 = por %p229, %p230
      %p232 = scmp.ne.s32.totalorder %s224, %s226
      %p233 = scmp.eq.s32.totalorder %s27, 1
      %p234 = por %p232, %p233
      %p235 = scmp.ne.s32.totalorder %s226, %s227
      %p236 = scmp.eq.s32.totalorder %s27, 0
      %p237 = por %p235, %p236
      %p238 = scmp.ne.s32.totalorder %s226, %s227
      %p239 = scmp.eq.s32.totalorder %s28, 1
      %p240 = por %p238, %p239
      %p242 = scmp.ne.s32.totalorder %s227, %s241
      %p243 = scmp.eq.s32.totalorder %s28, 0
      %p244 = por %p242, %p243
      %s245 = ssub.s32 %s22, %s29
      %p246 = scmp.eq.s32.totalorder %s245, 0
      %s248 = sadd.s32 %s247, 1
      %s249 = scalar_select %p246, %s247, %s248
      %p252 = pneg %p246
      %p253 = scmp.eq.s32.totalorder %s22, 1
      %p254 = por %p252, %p253
      %p255 = scmp.ne.s32.totalorder %s247, %s250
      %p256 = scmp.eq.s32.totalorder %s22, 0
      %p257 = por %p255, %p256
      %p258 = scmp.ne.s32.totalorder %s247, %s250
      %p259 = scmp.eq.s32.totalorder %s27, 1
      %p260 = por %p258, %p259
      %p261 = scmp.ne.s32.totalorder %s250, %s251
      %p262 = scmp.eq.s32.totalorder %s27, 0
      %p263 = por %p261, %p262
      %p264 = scmp.ne.s32.totalorder %s250, %s251
      %p265 = scmp.eq.s32.totalorder %s28, 1
      %p266 = por %p264, %p265
      %p268 = scmp.ne.s32.totalorder %s251, %s267
      %p269 = scmp.eq.s32.totalorder %s28, 0
      %p270 = por %p268, %p269
      %p271 = scmp.le.s32.totalorder 1, %s22
      %p272 = scmp.lt.s32.totalorder %s22, 3
      %p273 = pnand %p271, %p272
      %p274 = pneg %p273
      // Predicated region
      $region9: #{tpu_custom_call.1} parent=5 // pred_check
        _
      $region10: #{tpu_custom_call.1} parent=5 // pred_check_branch
        %276 = sbr.rel (%p273) target = $region12
      $region11: #{tpu_custom_call.1} parent=5 // pred_region
        %s277 = ssub.s32 %s22, 1
        // Predicated region
        $region13: #{tpu_custom_call.1} parent=11 // pred_check
          %p278 = pneg %p69
        $region14: #{tpu_custom_call.1} parent=11 // pred_check_branch
          %280 = sbr.rel (%p278) target = $region16
        $region15: #{tpu_custom_call.1} parent=11 // pred_region
          _
        $region16: #{tpu_custom_call.1} parent=11 // pred_fallthru
          _
        // Predicated region
        $region17: #{tpu_custom_call.1} parent=11 // pred_check
          %p281 = pneg %p90
        $region18: #{tpu_custom_call.1} parent=11 // pred_check_branch
          %283 = sbr.rel (%p281) target = $region20
        $region19: #{tpu_custom_call.1} parent=11 // pred_region
          %s285 = ssub.s32 2560, 2560
          %286 = vsyncadd [#allocation4], %s285
          %s287 = sshll.u32 [#allocation3], 4
          %s288 = int_to_ptr.vmem [resolvable:$true] %s287
          %293 = dma.hbm_to_vmem [thread:$0]  %s2, 2560, %s288, [#allocation4], 64, 64, 4
        $region20: #{tpu_custom_call.1} parent=11 // pred_fallthru
          _
        // Predicated region
        $region21: #{tpu_custom_call.1} parent=11 // pred_check
          %p294 = pneg %p111
        $region22: #{tpu_custom_call.1} parent=11 // pred_check_branch
          %296 = sbr.rel (%p294) target = $region24
        $region23: #{tpu_custom_call.1} parent=11 // pred_region
          _
        $region24: #{tpu_custom_call.1} parent=11 // pred_fallthru
          _
        // Predicated region
        $region25: #{tpu_custom_call.1} parent=11 // pred_check
          %p297 = pneg %p132
        $region26: #{tpu_custom_call.1} parent=11 // pred_check_branch
          %299 = sbr.rel (%p297) target = $region28
        $region27: #{tpu_custom_call.1} parent=11 // pred_region
          _
        $region28: #{tpu_custom_call.1} parent=11 // pred_fallthru
          _
        // Predicated region
        $region29: #{tpu_custom_call.1} parent=11 // pred_check
          %p300 = pneg %p153
        $region30: #{tpu_custom_call.1} parent=11 // pred_check_branch
          %302 = sbr.rel (%p300) target = $region32
        $region31: #{tpu_custom_call.1} parent=11 // pred_region
          _
        $region32: #{tpu_custom_call.1} parent=11 // pred_fallthru
          _
        // Predicated region
        $region33: #{tpu_custom_call.1} parent=11 // pred_check
          %p303 = pneg %p174
        $region34: #{tpu_custom_call.1} parent=11 // pred_check_branch
          %305 = sbr.rel (%p303) target = $region36
        $region35: #{tpu_custom_call.1} parent=11 // pred_region
          _
        $region36: #{tpu_custom_call.1} parent=11 // pred_fallthru
          _
        // Predicated region
        $region37: #{tpu_custom_call.1} parent=11 // pred_check
          %p306 = pneg %p195
        $region38: #{tpu_custom_call.1} parent=11 // pred_check_branch
          %308 = sbr.rel (%p306) target = $region40
        $region39: #{tpu_custom_call.1} parent=11 // pred_region
          _
        $region40: #{tpu_custom_call.1} parent=11 // pred_fallthru
          _
        // Predicated region
        $region41: #{tpu_custom_call.1} parent=11 // pred_check
          %p309 = pneg %p216
        $region42: #{tpu_custom_call.1} parent=11 // pred_check_branch
          %311 = sbr.rel (%p309) target = $region44
        $region43: #{tpu_custom_call.1} parent=11 // pred_region
          _
        $region44: #{tpu_custom_call.1} parent=11 // pred_fallthru
          _
        // Predicated region
        $region45: #{tpu_custom_call.1} parent=11 // pred_check
          %p312 = pneg %p237
        $region46: #{tpu_custom_call.1} parent=11 // pred_check_branch
          %314 = sbr.rel (%p312) target = $region48
        $region47: #{tpu_custom_call.1} parent=11 // pred_region
          _
        $region48: #{tpu_custom_call.1} parent=11 // pred_fallthru
          _
      $region12: #{tpu_custom_call.1} parent=5 // pred_fallthru
        _
      %p315 = scmp.lt.s32.totalorder %s22, 2
      // Predicated region
      $region49: #{tpu_custom_call.1} parent=5 // pred_check
        %p316 = pneg %p315
      $region50: #{tpu_custom_call.1} parent=5 // pred_check_branch
        %318 = sbr.rel (%p316) target = $region52
      $region51: #{tpu_custom_call.1} parent=5 // pred_region
        // Predicated region
        $region53: #{tpu_custom_call.1} parent=51 // pred_check
          %p319 = pneg %p42
        $region54: #{tpu_custom_call.1} parent=51 // pred_check_branch
          %321 = sbr.rel (%p319) target = $region56
        $region55: #{tpu_custom_call.1} parent=51 // pred_region
          %p322 = scmp.lt.s32.totalorder %s22, 1
          %s323 = scalar_select %p322, %s22, 1
          %s324 = smul.addr %s323, 4
          %s325 = scalar_lea.vmem %s0, %s324
        $region56: #{tpu_custom_call.1} parent=51 // pred_fallthru
          _
      $region52: #{tpu_custom_call.1} parent=5 // pred_fallthru
        _
      %p326 = scmp.le.s32.totalorder 1, %s22
      %p327 = scmp.lt.s32.totalorder %s22, 3
      %p328 = pnand %p326, %p327
      %p329 = pneg %p328
      // Predicated region
      $region57: #{tpu_custom_call.1} parent=5 // pred_check
        _
      $region58: #{tpu_custom_call.1} parent=5 // pred_check_branch
        %331 = sbr.rel (%p328) target = $region60
      $region59: #{tpu_custom_call.1} parent=5 // pred_region
        %s332 = ssub.s32 %s22, 1
        // Predicated region
        $region61: #{tpu_custom_call.1} parent=59 // pred_check
          %p333 = pneg %p90
        $region62: #{tpu_custom_call.1} parent=59 // pred_check_branch
          %335 = sbr.rel (%p333) target = $region64
        $region63: #{tpu_custom_call.1} parent=59 // pred_region
          %336 = dma.done [#allocation4], 2560
        $region64: #{tpu_custom_call.1} parent=59 // pred_fallthru
          _
        %p337 = scmp.lt.s32.totalorder %s27, 1
        %s338 = scalar_select %p337, %s27, 1
        %s339 = smul.addr %s338, 4
        %s340 = scalar_lea.vmem %s0, %s339
        %p341 = pneg %p48
        %p342 = pneg %p45
        %p343 = pneg %p69
        %p344 = pneg %p66
        %p345 = pneg %p90
        %p346 = pneg %p87
        %p347 = pneg %p111
        %p348 = pneg %p108
        %p349 = pneg %p132
        %p350 = pneg %p129
        %p351 = pneg %p153
        %p352 = pneg %p150
        %p353 = pneg %p174
        %p354 = pneg %p171
        %p355 = pneg %p195
        %p356 = pneg %p192
        %p357 = pneg %p216
        %p358 = pneg %p213
        %p359 = pneg %p237
        %p360 = pneg %p234
        %p361 = pneg %p263
        %p362 = pneg %p260
        %s363 = sand.u32 %s250, 1
        %s364 = scalar_lea.sflag [#allocation5], %s363
        %s365 = sand.u32 %s250, 1
        %s366 = smul.addr %s365, 4
        %s367 = scalar_lea.vmem [#allocation6], %s366
        %p368 = scmp.lt.s32.totalorder %s27, 1
        %s369 = scalar_select %p368, %s27, 1
        %s370 = smul.addr %s369, 4
        %s371 = scalar_lea.vmem %s0, %s370
        %v373 = vld [vmem:[%s371] sm:$0xf]
        %v374 = vld [vmem:[%s1] sm:$0xff]
        %v375 = vld [vmem:[%s1 + $0x8] sm:$0xff]
        %v376 = vld [vmem:[%s1 + $0x10] sm:$0xff]
        %v377 = vld [vmem:[%s1 + $0x18] sm:$0xff]
        %379 = vset.pattern.permute.xlu0 0
        %380 = vperm.xlu0 %379, %v374
        %v381 = vpop.permute.xlu0 %380
        %384 = vset.pattern.permute.xlu0 0
        %385 = vperm.xlu0 %384, %v375
        %v386 = vpop.permute.xlu0 %385
        %389 = vset.pattern.permute.xlu0 0
        %390 = vperm.xlu0 %389, %v376
        %v391 = vpop.permute.xlu0 %390
        %394 = vset.pattern.permute.xlu0 0
        %395 = vperm.xlu0 %394, %v377
        %v396 = vpop.permute.xlu0 %395
        %v399 = vlaneseq
        %v400 = vshrl.u32 %v399, 7
        %v401 = vsub.s32 0, %v400
        %v402 = vrot.slane %v373, %v401
        %v403 = vlaneseq
        %v404 = vshrl.u32 %v403, 7
        %v405 = vsub.s32 1, %v404
        %v406 = vrot.slane %v373, %v405
        %v407 = vlaneseq
        %v408 = vshrl.u32 %v407, 7
        %v409 = vsub.s32 2, %v408
        %v410 = vrot.slane %v373, %v409
        %v411 = vlaneseq
        %v412 = vshrl.u32 %v411, 7
        %v413 = vsub.s32 3, %v412
        %v414 = vrot.slane %v373, %v413
        %v419 = vmul.f32 %v381, %v402
        %v420 = vmul.f32 %v381, %v406
        %v421 = vmul.f32 %v381, %v410
        %v422 = vmul.f32 %v381, %v414
        %v423 = vmul.f32 %v386, %v402
        %v424 = vmul.f32 %v386, %v406
        %v425 = vmul.f32 %v386, %v410
        %v426 = vmul.f32 %v386, %v414
        %v427 = vmul.f32 %v391, %v402
        %v428 = vmul.f32 %v391, %v406
        %v429 = vmul.f32 %v391, %v410
        %v430 = vmul.f32 %v391, %v414
        %v431 = vmul.f32 %v396, %v402
        %v432 = vmul.f32 %v396, %v406
        %v433 = vmul.f32 %v396, %v410
        %v434 = vmul.f32 %v396, %v414
        %v435 = vlaneseq
        %v436 = vand.u32 %v435, 127
        %v437 = vadd.s32 %v436, 128
        %v438 = vadd.s32 %v436, 256
        %v439 = vadd.s32 %v436, 384
        %vm440 = vcmp.lt.s32.totalorder %v436, 0
        %v441 = vsub.s32 0, %v436
        %v442 = vsel %vm440, %v441, %v436
        %v443 = vshrl.u32 %v442, 7
        %v444 = vand.u32 %v442, 127
        %v445 = vsub.s32 0, %v444
        %v446 = vsel %vm440, %v445, %v444
        %vm447 = vcmp.lt.s32.totalorder %v437, 0
        %v448 = vsub.s32 0, %v437
        %v449 = vsel %vm447, %v448, %v437
        %v450 = vshrl.u32 %v449, 7
        %v451 = vand.u32 %v449, 127
        %v452 = vsub.s32 0, %v451
        %v453 = vsel %vm447, %v452, %v451
        %vm454 = vcmp.lt.s32.totalorder %v438, 0
        %v455 = vsub.s32 0, %v438
        %v456 = vsel %vm454, %v455, %v438
        %v457 = vshrl.u32 %v456, 7
        %v458 = vand.u32 %v456, 127
        %v459 = vsub.s32 0, %v458
        %v460 = vsel %vm454, %v459, %v458
        %vm461 = vcmp.lt.s32.totalorder %v439, 0
        %v462 = vsub.s32 0, %v439
        %v463 = vsel %vm461, %v462, %v439
        %v464 = vshrl.u32 %v463, 7
        %v465 = vand.u32 %v463, 127
        %v466 = vsub.s32 0, %v465
        %v467 = vsel %vm461, %v466, %v465
        %vm468 = vcmp.ne.s32.totalorder %v446, 0
        %vm469 = vcmp.ne.s32.totalorder %v453, 0
        %vm470 = vcmp.ne.s32.totalorder %v460, 0
        %vm471 = vcmp.ne.s32.totalorder %v467, 0
        %vm472 = vcmp.lt.s32.totalorder %v446, 0
        %vm473 = vcmp.lt.s32.totalorder %v453, 0
        %vm474 = vcmp.lt.s32.totalorder %v460, 0
        %vm475 = vcmp.lt.s32.totalorder %v467, 0
        %vm476 = vmand %vm472, %vm468
        %vm477 = vmand %vm473, %vm469
        %vm478 = vmand %vm474, %vm470
        %vm479 = vmand %vm475, %vm471
        %v480 = vadd.s32 %v446, 128
        %v481 = vadd.s32 %v453, 128
        %v482 = vadd.s32 %v460, 128
        %v483 = vadd.s32 %v467, 128
        %v484 = vsel %vm476, %v480, %v446
        %v485 = vsel %vm477, %v481, %v453
        %v486 = vsel %vm478, %v482, %v460
        %v487 = vsel %vm479, %v483, %v467
        %vm488 = vcmp.ge.s32.totalorder %v484, 1
        %vm489 = vcmp.ge.s32.totalorder %v485, 1
        %vm490 = vcmp.ge.s32.totalorder %v486, 1
        %vm491 = vcmp.ge.s32.totalorder %v487, 1
        %vm492 = vcmp.ge.s32.totalorder %v484, 3
        %vm493 = vcmp.ge.s32.totalorder %v485, 3
        %vm494 = vcmp.ge.s32.totalorder %v486, 3
        %vm495 = vcmp.ge.s32.totalorder %v487, 3
        %vm496 = vcmp.ge.s32.totalorder %v484, 9
        %vm497 = vcmp.ge.s32.totalorder %v485, 9
        %vm498 = vcmp.ge.s32.totalorder %v486, 9
        %vm499 = vcmp.ge.s32.totalorder %v487, 9
        %vm500 = vcmp.ge.s32.totalorder %v484, 27
        %vm501 = vcmp.ge.s32.totalorder %v485, 27
        %vm502 = vcmp.ge.s32.totalorder %v486, 27
        %vm503 = vcmp.ge.s32.totalorder %v487, 27
        %vm504 = vcmp.lt.s32.totalorder %v484, 127
        %vm505 = vcmp.lt.s32.totalorder %v485, 127
        %vm506 = vcmp.lt.s32.totalorder %v486, 127
        %vm507 = vcmp.lt.s32.totalorder %v487, 127
        %vm508 = vcmp.lt.s32.totalorder %v484, 125
        %vm509 = vcmp.lt.s32.totalorder %v485, 125
        %vm510 = vcmp.lt.s32.totalorder %v486, 125
        %vm511 = vcmp.lt.s32.totalorder %v487, 125
        %vm512 = vcmp.lt.s32.totalorder %v484, 119
        %vm513 = vcmp.lt.s32.totalorder %v485, 119
        %vm514 = vcmp.lt.s32.totalorder %v486, 119
        %vm515 = vcmp.lt.s32.totalorder %v487, 119
        %vm516 = vcmp.lt.s32.totalorder %v484, 101
        %vm517 = vcmp.lt.s32.totalorder %v485, 101
        %vm518 = vcmp.lt.s32.totalorder %v486, 101
        %vm519 = vcmp.lt.s32.totalorder %v487, 101
        %520 = vrot.lane.b32.xlu0 %v419, 1
        %v521 = vpop.permute.xlu0 %520
        %522 = vrot.lane.b32.xlu0 %v423, 1
        %v523 = vpop.permute.xlu0 %522
        %524 = vrot.lane.b32.xlu0 %v427, 1
        %v525 = vpop.permute.xlu0 %524
        %526 = vrot.lane.b32.xlu0 %v431, 1
        %v527 = vpop.permute.xlu0 %526
        %528 = vrot.lane.b32.xlu0 %v420, 1
        %v529 = vpop.permute.xlu0 %528
        %530 = vrot.lane.b32.xlu0 %v424, 1
        %v531 = vpop.permute.xlu0 %530
        %532 = vrot.lane.b32.xlu0 %v428, 1
        %v533 = vpop.permute.xlu0 %532
        %534 = vrot.lane.b32.xlu0 %v432, 1
        %v535 = vpop.permute.xlu0 %534
        %536 = vrot.lane.b32.xlu0 %v421, 1
        %v537 = vpop.permute.xlu0 %536
        %538 = vrot.lane.b32.xlu0 %v425, 1
        %v539 = vpop.permute.xlu0 %538
        %540 = vrot.lane.b32.xlu0 %v429, 1
        %v541 = vpop.permute.xlu0 %540
        %542 = vrot.lane.b32.xlu0 %v433, 1
        %v543 = vpop.permute.xlu0 %542
        %544 = vrot.lane.b32.xlu0 %v422, 1
        %v545 = vpop.permute.xlu0 %544
        %546 = vrot.lane.b32.xlu0 %v426, 1
        %v547 = vpop.permute.xlu0 %546
        %548 = vrot.lane.b32.xlu0 %v430, 1
        %v549 = vpop.permute.xlu0 %548
        %550 = vrot.lane.b32.xlu0 %v434, 1
        %v551 = vpop.permute.xlu0 %550
        %vm552 = vcmp.lt.s32.totalorder %v436, 1
        %v553 = vsel %vm552, %v537, %v545
        %v554 = vsel %vm552, %v539, %v547
        %v555 = vsel %vm552, %v541, %v549
        %v556 = vsel %vm552, %v543, %v551
        %v557 = vsel %vm552, %v529, %v537
        %v558 = vsel %vm552, %v531, %v539
        %v559 = vsel %vm552, %v533, %v541
        %v560 = vsel %vm552, %v535, %v543
        %v561 = vsel %vm552, %v521, %v529
        %v562 = vsel %vm552, %v523, %v531
        %v563 = vsel %vm552, %v525, %v533
        %v564 = vsel %vm552, %v527, %v535
        %v565 = vsel %vm552, %v545, %v521
        %v566 = vsel %vm552, %v547, %v523
        %v567 = vsel %vm552, %v549, %v525
        %v568 = vsel %vm552, %v551, %v527
        %v569 = vsel %vm488, 1, 0
        %v570 = vsel %vm489, 1, 0
        %v571 = vsel %vm490, 1, 0
        %v572 = vsel %vm491, 1, 0
        %vm573 = vcmp.eq.s32.totalorder %v569, 1
        %vm574 = vcmp.eq.s32.totalorder %v570, 1
        %vm575 = vcmp.eq.s32.totalorder %v571, 1
        %vm576 = vcmp.eq.s32.totalorder %v572, 1
        %v577 = vsel %vm573, %v565, 0.0
        %v578 = vsel %vm574, %v561, 0.0
        %v579 = vsel %vm575, %v557, 0.0
        %v580 = vsel %vm576, %v553, 0.0
        %v581 = vsel %vm573, %v566, 0.0
        %v582 = vsel %vm574, %v562, 0.0
        %v583 = vsel %vm575, %v558, 0.0
        %v584 = vsel %vm576, %v554, 0.0
        %v585 = vsel %vm573, %v567, 0.0
        %v586 = vsel %vm574, %v563, 0.0
        %v587 = vsel %vm575, %v559, 0.0
        %v588 = vsel %vm576, %v555, 0.0
        %v589 = vsel %vm573, %v568, 0.0
        %v590 = vsel %vm574, %v564, 0.0
        %v591 = vsel %vm575, %v560, 0.0
        %v592 = vsel %vm576, %v556, 0.0
        %593 = vrot.lane.b32.xlu0 %v419, 127
        %v594 = vpop.permute.xlu0 %593
        %595 = vrot.lane.b32.xlu0 %v423, 127
        %v596 = vpop.permute.xlu0 %595
        %597 = vrot.lane.b32.xlu0 %v427, 127
        %v598 = vpop.permute.xlu0 %597
        %599 = vrot.lane.b32.xlu0 %v431, 127
        %v600 = vpop.permute.xlu0 %599
        %601 = vrot.lane.b32.xlu0 %v420, 127
        %v602 = vpop.permute.xlu0 %601
        %603 = vrot.lane.b32.xlu0 %v424, 127
        %v604 = vpop.permute.xlu0 %603
        %605 = vrot.lane.b32.xlu0 %v428, 127
        %v606 = vpop.permute.xlu0 %605
        %607 = vrot.lane.b32.xlu0 %v432, 127
        %v608 = vpop.permute.xlu0 %607
        %609 = vrot.lane.b32.xlu0 %v421, 127
        %v610 = vpop.permute.xlu0 %609
        %611 = vrot.lane.b32.xlu0 %v425, 127
        %v612 = vpop.permute.xlu0 %611
        %613 = vrot.lane.b32.xlu0 %v429, 127
        %v614 = vpop.permute.xlu0 %613
        %615 = vrot.lane.b32.xlu0 %v433, 127
        %v616 = vpop.permute.xlu0 %615
        %617 = vrot.lane.b32.xlu0 %v422, 127
        %v618 = vpop.permute.xlu0 %617
        %619 = vrot.lane.b32.xlu0 %v426, 127
        %v620 = vpop.permute.xlu0 %619
        %621 = vrot.lane.b32.xlu0 %v430, 127
        %v622 = vpop.permute.xlu0 %621
        %623 = vrot.lane.b32.xlu0 %v434, 127
        %v624 = vpop.permute.xlu0 %623
        %vm625 = vcmp.lt.s32.totalorder %v436, 127
        %v626 = vsel %vm625, %v610, %v618
        %v627 = vsel %vm625, %v612, %v620
        %v628 = vsel %vm625, %v614, %v622
        %v629 = vsel %vm625, %v616, %v624
        %v630 = vsel %vm625, %v602, %v610
        %v631 = vsel %vm625, %v604, %v612
        %v632 = vsel %vm625, %v606, %v614
        %v633 = vsel %vm625, %v608, %v616
        %v634 = vsel %vm625, %v594, %v602
        %v635 = vsel %vm625, %v596, %v604
        %v636 = vsel %vm625, %v598, %v606
        %v637 = vsel %vm625, %v600, %v608
        %v638 = vsel %vm625, %v618, %v594
        %v639 = vsel %vm625, %v620, %v596
        %v640 = vsel %vm625, %v622, %v598
        %v641 = vsel %vm625, %v624, %v600
        %v642 = vsel %vm504, 1, 0
        %v643 = vsel %vm505, 1, 0
        %v644 = vsel %vm506, 1, 0
        %v645 = vsel %vm507, 1, 0
        %vm646 = vcmp.eq.s32.totalorder %v642, 1
        %vm647 = vcmp.eq.s32.totalorder %v643, 1
        %vm648 = vcmp.eq.s32.totalorder %v644, 1
        %vm649 = vcmp.eq.s32.totalorder %v645, 1
        %v650 = vsel %vm646, %v634, 0.0
        %v651 = vsel %vm647, %v630, 0.0
        %v652 = vsel %vm648, %v626, 0.0
        %v653 = vsel %vm649, %v638, 0.0
        %v654 = vsel %vm646, %v635, 0.0
        %v655 = vsel %vm647, %v631, 0.0
        %v656 = vsel %vm648, %v627, 0.0
        %v657 = vsel %vm649, %v639, 0.0
        %v658 = vsel %vm646, %v636, 0.0
        %v659 = vsel %vm647, %v632, 0.0
        %v660 = vsel %vm648, %v628, 0.0
        %v661 = vsel %vm649, %v640, 0.0
        %v662 = vsel %vm646, %v637, 0.0
        %v663 = vsel %vm647, %v633, 0.0
        %v664 = vsel %vm648, %v629, 0.0
        %v665 = vsel %vm649, %v641, 0.0
        %v666 = vpack.c.bf16 %v581, %v577
        %v667 = vpack.c.bf16 %v582, %v578
        %v668 = vpack.c.bf16 %v583, %v579
        %v669 = vpack.c.bf16 %v584, %v580
        %v670 = vpack.c.bf16 %v589, %v585
        %v671 = vpack.c.bf16 %v590, %v586
        %v672 = vpack.c.bf16 %v591, %v587
        %v673 = vpack.c.bf16 %v592, %v588
        %v674 = vpack.c.bf16 %v423, %v419
        %v675 = vpack.c.bf16 %v424, %v420
        %v676 = vpack.c.bf16 %v425, %v421
        %v677 = vpack.c.bf16 %v426, %v422
        %v678 = vpack.c.bf16 %v431, %v427
        %v679 = vpack.c.bf16 %v432, %v428
        %v680 = vpack.c.bf16 %v433, %v429
        %v681 = vpack.c.bf16 %v434, %v430
        %v682 = vpack.c.bf16 %v654, %v650
        %v683 = vpack.c.bf16 %v655, %v651
        %v684 = vpack.c.bf16 %v656, %v652
        %v685 = vpack.c.bf16 %v657, %v653
        %v686 = vpack.c.bf16 %v662, %v658
        %v687 = vpack.c.bf16 %v663, %v659
        %v688 = vpack.c.bf16 %v664, %v660
        %v689 = vpack.c.bf16 %v665, %v661
        %v690 = vld [vmem:[#allocation3] sm:$0xf]
        %v691 = vld [vmem:[#allocation3 + $0x4] sm:$0xf]
        %v692 = vld [vmem:[#allocation3 + $0x8] sm:$0xf]
        %v693 = vld [vmem:[#allocation3 + $0xc] sm:$0xf]
        %v694 = vld [vmem:[#allocation3 + $0x10] sm:$0xf]
        %v695 = vld [vmem:[%s3] sm:$0xff]
        %v696 = vld [vmem:[%s3 + $0x8] sm:$0xff]
        %v697 = vld [vmem:[%s3 + $0x10] sm:$0xff]
        %v698 = vld [vmem:[%s3 + $0x18] sm:$0xff]
        %v699 = vld [vmem:[%s3 + $0x20] sm:$0xff]
        %v700 = vld [vmem:[%s3 + $0x28] sm:$0xff]
        %v701 = vld [vmem:[%s3 + $0x30] sm:$0xff]
        %v702 = vld [vmem:[%s3 + $0x38] sm:$0xff]
        %v703 = vld [vmem:[%s3 + $0x40] sm:$0xff]
        %v704 = vld [vmem:[%s3 + $0x48] sm:$0xff]
        %v705 = vld [vmem:[%s3 + $0x50] sm:$0xff]
        %v706 = vld [vmem:[%s3 + $0x58] sm:$0xff]
        %v707 = vld [vmem:[%s3 + $0x60] sm:$0xff]
        %v708 = vld [vmem:[%s3 + $0x68] sm:$0xff]
        %v709 = vld [vmem:[%s3 + $0x70] sm:$0xff]
        %v710 = vld [vmem:[%s3 + $0x78] sm:$0xff]
        %v711 = vld [vmem:[%s3 + $0x80] sm:$0xff]
        %v712 = vld [vmem:[%s3 + $0x88] sm:$0xff]
        %v713 = vld [vmem:[%s3 + $0x90] sm:$0xff]
        %v714 = vld [vmem:[%s3 + $0x98] sm:$0xff]
        %v720 = vunpack.c.l.b16 %v690
        %v721 = vunpack.c.l.b16 %v691
        %v722 = vunpack.c.l.b16 %v692
        %v723 = vunpack.c.l.b16 %v693
        %v724 = vunpack.c.l.b16 %v694
        %v725 = vpack.c.b16 %v721, %v720
        %v726 = vpack.c.b16 %v723, %v722
        %v727 = vpack.c.b16 %v724, %v724
        %vm728 = vcmask 785408
        %v730 = vsel %vm728, %v725, 0
        %v733 = vsel %vm728, %v726, 0
        %v736 = vsel %vm728, %v727, 0
        %738 = vmatprep.subr.bf16.mxu0 0
        %739 = vmatpush1.bf16.msra.mxu0 0
        %740 = vmatprep.subr.bf16.mxu0 0
        %741 = vmatpush1.bf16.msra.mxu0 0
        %742 = vmatprep.subr.bf16.mxu0 %v687
        %743 = vmatpush1.bf16.msra.mxu0 %v686
        %744 = vmatprep.subr.bf16.mxu0 %v683
        %745 = vmatpush1.bf16.msra.mxu0 %v682
        %746 = vmatprep.subr.bf16.mxu0 %v679
        %747 = vmatpush1.bf16.msra.mxu0 %v678
        %748 = vmatprep.subr.bf16.mxu0 %v675
        %749 = vmatpush1.bf16.msra.mxu0 %v674
        %750 = vmatprep.subr.bf16.mxu0 %v671
        %751 = vmatpush1.bf16.msra.mxu0 %v670
        %752 = vmatprep.subr.bf16.mxu0 %v667
        %753 = vmatpush1.bf16.msra.mxu0 %v666
        %754 = vmatprep.subr.bf16.mxu0 0
        %755 = vmatpush2.bf16.msra.mxu0 0
        %756 = vmatprep.subr.bf16.mxu0 0
        %757 = vmatpush2.bf16.msra.mxu0 0
        %758 = vmatprep.subr.bf16.mxu0 0
        %759 = vmatpush2.bf16.msra.mxu0 0
        %760 = vmatprep.subr.bf16.mxu0 0
        %761 = vmatpush2.bf16.msra.mxu0 0
        %762 = vmatprep.subr.bf16.mxu0 0
        %763 = vmatpush2.bf16.msra.mxu0 0
        %764 = vmatprep.subr.bf16.mxu0 0
        %765 = vmatpush2.bf16.msra.mxu0 0
        %766 = vmatprep.subr.bf16.mxu0 0
        %767 = vmatpush2.bf16.msra.mxu0 0
        %768 = vmatprep.subr.bf16.mxu0 0
        %769 = vmatpush2.bf16.msra.mxu0 0
        %770 = vmatprep.mubr.bf16.mxu0 0
        %771 = vmatmul.mubr.bf16.gmra.mxu0 %v730
        %v772 = vpop.f32.mrf.mxu0
        %v773 = vadd.f32 %v695, %v772
        %v774 = vpop.f32.mrf.mxu0
        %v775 = vadd.f32 %v696, %v774
        %v776 = vpop.f32.mrf.mxu0
        %v777 = vadd.f32 %v699, %v776
        %v778 = vpop.f32.mrf.mxu0
        %v779 = vadd.f32 %v700, %v778
        %780 = vmatprep.mubr.bf16.mxu0 0
        %781 = vmatmul.mubr.bf16.gmra.mxu0 %v733
        %v782 = vpop.f32.mrf.mxu0
        %v783 = vadd.f32 %v703, %v782
        %v784 = vpop.f32.mrf.mxu0
        %v785 = vadd.f32 %v704, %v784
        %v786 = vpop.f32.mrf.mxu0
        %v787 = vadd.f32 %v707, %v786
        %v788 = vpop.f32.mrf.mxu0
        %v789 = vadd.f32 %v708, %v788
        %790 = vmatprep.mubr.bf16.mxu0 0
        %791 = vmatmul.mubr.bf16.gmra.mxu0 %v736
        %v792 = vpop.f32.mrf.mxu0
        %v793 = vadd.f32 %v711, %v792
        %v794 = vpop.f32.mrf.mxu0
        %v795 = vadd.f32 %v712, %v794
        %v796 = vpop.f32.mrf.mxu0
        %v797 = vpop.f32.mrf.mxu0
        %798 = vdwg.mxu0
        %799 = vmatprep.subr.bf16.mxu0 0
        %800 = vmatpush1.bf16.msra.mxu0 0
        %801 = vmatprep.subr.bf16.mxu0 0
        %802 = vmatpush1.bf16.msra.mxu0 0
        %803 = vmatprep.subr.bf16.mxu0 %v689
        %804 = vmatpush1.bf16.msra.mxu0 %v688
        %805 = vmatprep.subr.bf16.mxu0 %v685
        %806 = vmatpush1.bf16.msra.mxu0 %v684
        %807 = vmatprep.subr.bf16.mxu0 %v681
        %808 = vmatpush1.bf16.msra.mxu0 %v680
        %809 = vmatprep.subr.bf16.mxu0 %v677
        %810 = vmatpush1.bf16.msra.mxu0 %v676
        %811 = vmatprep.subr.bf16.mxu0 %v673
        %812 = vmatpush1.bf16.msra.mxu0 %v672
        %813 = vmatprep.subr.bf16.mxu0 %v669
        %814 = vmatpush1.bf16.msra.mxu0 %v668
        %815 = vmatprep.subr.bf16.mxu0 0
        %816 = vmatpush2.bf16.msra.mxu0 0
        %817 = vmatprep.subr.bf16.mxu0 0
        %818 = vmatpush2.bf16.msra.mxu0 0
        %819 = vmatprep.subr.bf16.mxu0 0
        %820 = vmatpush2.bf16.msra.mxu0 0
        %821 = vmatprep.subr.bf16.mxu0 0
        %822 = vmatpush2.bf16.msra.mxu0 0
        %823 = vmatprep.subr.bf16.mxu0 0
        %824 = vmatpush2.bf16.msra.mxu0 0
        %825 = vmatprep.subr.bf16.mxu0 0
        %826 = vmatpush2.bf16.msra.mxu0 0
        %827 = vmatprep.subr.bf16.mxu0 0
        %828 = vmatpush2.bf16.msra.mxu0 0
        %829 = vmatprep.subr.bf16.mxu0 0
        %830 = vmatpush2.bf16.msra.mxu0 0
        %831 = vmatprep.mubr.bf16.mxu0 0
        %832 = vmatmul.mubr.bf16.gmra.mxu0 %v730
        %v833 = vpop.f32.mrf.mxu0
        %v834 = vadd.f32 %v697, %v833
        %v835 = vpop.f32.mrf.mxu0
        %v836 = vadd.f32 %v698, %v835
        %v837 = vpop.f32.mrf.mxu0
        %v838 = vadd.f32 %v701, %v837
        %v839 = vpop.f32.mrf.mxu0
        %v840 = vadd.f32 %v702, %v839
        %841 = vmatprep.mubr.bf16.mxu0 0
        %842 = vmatmul.mubr.bf16.gmra.mxu0 %v733
        %v843 = vpop.f32.mrf.mxu0
        %v844 = vadd.f32 %v705, %v843
        %v845 = vpop.f32.mrf.mxu0
        %v846 = vadd.f32 %v706, %v845
        %v847 = vpop.f32.mrf.mxu0
        %v848 = vadd.f32 %v709, %v847
        %v849 = vpop.f32.mrf.mxu0
        %v850 = vadd.f32 %v710, %v849
        %851 = vmatprep.mubr.bf16.mxu0 0
        %852 = vmatmul.mubr.bf16.gmra.mxu0 %v736
        %v853 = vpop.f32.mrf.mxu0
        %v854 = vadd.f32 %v713, %v853
        %v855 = vpop.f32.mrf.mxu0
        %v856 = vadd.f32 %v714, %v855
        %v857 = vpop.f32.mrf.mxu0
        %v858 = vpop.f32.mrf.mxu0
        %859 = vdwg.mxu0
        %v860 = vmul.f32 %v773, 0.5
        %v861 = vmul.f32 %v775, 0.5
        %v862 = vmul.f32 %v834, 0.5
        %v863 = vmul.f32 %v836, 0.5
        %v864 = vmul.f32 %v777, 0.5
        %v865 = vmul.f32 %v779, 0.5
        %v866 = vmul.f32 %v838, 0.5
        %v867 = vmul.f32 %v840, 0.5
        %v868 = vmul.f32 %v783, 0.5
        %v869 = vmul.f32 %v785, 0.5
        %v870 = vmul.f32 %v844, 0.5
        %v871 = vmul.f32 %v846, 0.5
        %v872 = vmul.f32 %v787, 0.5
        %v873 = vmul.f32 %v789, 0.5
        %v874 = vmul.f32 %v848, 0.5
        %v875 = vmul.f32 %v850, 0.5
        %v876 = vmul.f32 %v793, 0.5
        %v877 = vmul.f32 %v795, 0.5
        %v878 = vmul.f32 %v854, 0.5
        %v879 = vmul.f32 %v856, 0.5
        %v880 = vmul.f32 %v773, 0.70710677
        %v881 = vmul.f32 %v775, 0.70710677
        %v882 = vmul.f32 %v834, 0.70710677
        %v883 = vmul.f32 %v836, 0.70710677
        %v884 = vmul.f32 %v777, 0.70710677
        %v885 = vmul.f32 %v779, 0.70710677
        %v886 = vmul.f32 %v838, 0.70710677
        %v887 = vmul.f32 %v840, 0.70710677
        %v888 = vmul.f32 %v783, 0.70710677
        %v889 = vmul.f32 %v785, 0.70710677
        %v890 = vmul.f32 %v844, 0.70710677
        %v891 = vmul.f32 %v846, 0.70710677
        %v892 = vmul.f32 %v787, 0.70710677
        %v893 = vmul.f32 %v789, 0.70710677
        %v894 = vmul.f32 %v848, 0.70710677
        %v895 = vmul.f32 %v850, 0.70710677
        %v896 = vmul.f32 %v793, 0.70710677
        %v897 = vmul.f32 %v795, 0.70710677
        %v898 = vmul.f32 %v854, 0.70710677
        %v899 = vmul.f32 %v856, 0.70710677
        %v900 = verf.f32.pop %v880
        %v901 = verf.f32.pop %v881
        %v902 = verf.f32.pop %v882
        %v903 = verf.f32.pop %v883
        %v904 = verf.f32.pop %v884
        %v905 = verf.f32.pop %v885
        %v906 = verf.f32.pop %v886
        %v907 = verf.f32.pop %v887
        %v908 = verf.f32.pop %v888
        %v909 = verf.f32.pop %v889
        %v910 = verf.f32.pop %v890
        %v911 = verf.f32.pop %v891
        %v912 = verf.f32.pop %v892
        %v913 = verf.f32.pop %v893
        %v914 = verf.f32.pop %v894
        %v915 = verf.f32.pop %v895
        %v916 = verf.f32.pop %v896
        %v917 = verf.f32.pop %v897
        %v918 = verf.f32.pop %v898
        %v919 = verf.f32.pop %v899
        %v920 = vadd.f32 %v900, 1.0
        %v921 = vadd.f32 %v901, 1.0
        %v922 = vadd.f32 %v902, 1.0
        %v923 = vadd.f32 %v903, 1.0
        %v924 = vadd.f32 %v904, 1.0
        %v925 = vadd.f32 %v905, 1.0
        %v926 = vadd.f32 %v906, 1.0
        %v927 = vadd.f32 %v907, 1.0
        %v928 = vadd.f32 %v908, 1.0
        %v929 = vadd.f32 %v909, 1.0
        %v930 = vadd.f32 %v910, 1.0
        %v931 = vadd.f32 %v911, 1.0
        %v932 = vadd.f32 %v912, 1.0
        %v933 = vadd.f32 %v913, 1.0
        %v934 = vadd.f32 %v914, 1.0
        %v935 = vadd.f32 %v915, 1.0
        %v936 = vadd.f32 %v916, 1.0
        %v937 = vadd.f32 %v917, 1.0
        %v938 = vadd.f32 %v918, 1.0
        %v939 = vadd.f32 %v919, 1.0
        %v940 = vmul.f32 %v860, %v920
        %v941 = vmul.f32 %v861, %v921
        %v942 = vmul.f32 %v862, %v922
        %v943 = vmul.f32 %v863, %v923
        %v944 = vmul.f32 %v864, %v924
        %v945 = vmul.f32 %v865, %v925
        %v946 = vmul.f32 %v866, %v926
        %v947 = vmul.f32 %v867, %v927
        %v948 = vmul.f32 %v868, %v928
        %v949 = vmul.f32 %v869, %v929
        %v950 = vmul.f32 %v870, %v930
        %v951 = vmul.f32 %v871, %v931
        %v952 = vmul.f32 %v872, %v932
        %v953 = vmul.f32 %v873, %v933
        %v954 = vmul.f32 %v874, %v934
        %v955 = vmul.f32 %v875, %v935
        %v956 = vmul.f32 %v876, %v936
        %v957 = vmul.f32 %v877, %v937
        %v958 = vmul.f32 %v878, %v938
        %v959 = vmul.f32 %v879, %v939
        %v960 = vld [vmem:[%s4] sm:$0xf]
        %v961 = vld [vmem:[%s4 + $0x4] sm:$0xf]
        %v962 = vld [vmem:[%s4 + $0x8] sm:$0xf]
        %v963 = vld [vmem:[%s4 + $0xc] sm:$0xf]
        %v964 = vld [vmem:[%s4 + $0x10] sm:$0xf]
        %v965 = vld [vmem:[%s4 + $0x14] sm:$0xf]
        %v966 = vld [vmem:[%s4 + $0x18] sm:$0xf]
        %v967 = vld [vmem:[%s4 + $0x1c] sm:$0xf]
        %v968 = vld [vmem:[%s4 + $0x20] sm:$0xf]
        %v969 = vld [vmem:[%s4 + $0x24] sm:$0xf]
        %v970 = vld [vmem:[%s4 + $0x28] sm:$0xf]
        %v971 = vld [vmem:[%s4 + $0x2c] sm:$0xf]
        %v972 = vpack.c.bf16 %v944, %v940
        %v973 = vpack.c.bf16 %v945, %v941
        %v974 = vpack.c.bf16 %v946, %v942
        %v975 = vpack.c.bf16 %v947, %v943
        %v976 = vpack.c.bf16 %v952, %v948
        %v977 = vpack.c.bf16 %v953, %v949
        %v978 = vpack.c.bf16 %v954, %v950
        %v979 = vpack.c.bf16 %v955, %v951
        %v980 = vpack.c.bf16 %v956, %v956
        %v981 = vpack.c.bf16 %v957, %v957
        %v982 = vpack.c.bf16 %v958, %v958
        %v983 = vpack.c.bf16 %v959, %v959
        %v984 = vld [vmem:[%s5] sm:$0xff]
        %v985 = vld [vmem:[%s5 + $0x8] sm:$0xff]
        %v986 = vld [vmem:[%s5 + $0x10] sm:$0xff]
        %v987 = vld [vmem:[%s5 + $0x18] sm:$0xff]
        %v988 = vld [vmem:[%s5 + $0x20] sm:$0xff]
        %v989 = vld [vmem:[%s5 + $0x28] sm:$0xff]
        %v990 = vld [vmem:[%s5 + $0x30] sm:$0xff]
        %v991 = vld [vmem:[%s5 + $0x38] sm:$0xff]
        %v992 = vld [vmem:[%s5 + $0x40] sm:$0xff]
        %v993 = vld [vmem:[%s5 + $0x48] sm:$0xff]
        %v994 = vld [vmem:[%s5 + $0x50] sm:$0xff]
        %v995 = vld [vmem:[%s5 + $0x58] sm:$0xff]
        %997 = vset.pattern.permute.xlu0 0
        %998 = vperm.xlu0 %997, %v984
        %v999 = vpop.permute.xlu0 %998
        %1002 = vset.pattern.permute.xlu0 0
        %1003 = vperm.xlu0 %1002, %v985
        %v1004 = vpop.permute.xlu0 %1003
        %1007 = vset.pattern.permute.xlu0 0
        %1008 = vperm.xlu0 %1007, %v986
        %v1009 = vpop.permute.xlu0 %1008
        %1012 = vset.pattern.permute.xlu0 0
        %1013 = vperm.xlu0 %1012, %v987
        %v1014 = vpop.permute.xlu0 %1013
        %1017 = vset.pattern.permute.xlu0 0
        %1018 = vperm.xlu0 %1017, %v988
        %v1019 = vpop.permute.xlu0 %1018
        %1022 = vset.pattern.permute.xlu0 0
        %1023 = vperm.xlu0 %1022, %v989
        %v1024 = vpop.permute.xlu0 %1023
        %1027 = vset.pattern.permute.xlu0 0
        %1028 = vperm.xlu0 %1027, %v990
        %v1029 = vpop.permute.xlu0 %1028
        %1032 = vset.pattern.permute.xlu0 0
        %1033 = vperm.xlu0 %1032, %v991
        %v1034 = vpop.permute.xlu0 %1033
        %1037 = vset.pattern.permute.xlu0 0
        %1038 = vperm.xlu0 %1037, %v992
        %v1039 = vpop.permute.xlu0 %1038
        %1042 = vset.pattern.permute.xlu0 0
        %1043 = vperm.xlu0 %1042, %v993
        %v1044 = vpop.permute.xlu0 %1043
        %1047 = vset.pattern.permute.xlu0 0
        %1048 = vperm.xlu0 %1047, %v994
        %v1049 = vpop.permute.xlu0 %1048
        %1052 = vset.pattern.permute.xlu0 0
        %1053 = vperm.xlu0 %1052, %v995
        %v1054 = vpop.permute.xlu0 %1053
        %v1068 = vunpack.c.l.b16 %v960
        %v1069 = vunpack.c.l.b16 %v961
        %v1070 = vunpack.c.l.b16 %v962
        %v1071 = vunpack.c.l.b16 %v963
        %v1072 = vunpack.c.l.b16 %v964
        %v1073 = vunpack.c.l.b16 %v965
        %v1074 = vunpack.c.l.b16 %v966
        %v1075 = vunpack.c.l.b16 %v967
        %v1076 = vunpack.c.l.b16 %v968
        %v1077 = vunpack.c.l.b16 %v969
        %v1078 = vunpack.c.l.b16 %v970
        %v1079 = vunpack.c.l.b16 %v971
        %v1080 = vpack.c.b16 %v1069, %v1068
        %v1081 = vpack.c.b16 %v1071, %v1070
        %v1082 = vpack.c.b16 %v1073, %v1072
        %v1083 = vpack.c.b16 %v1075, %v1074
        %v1084 = vpack.c.b16 %v1077, %v1076
        %v1085 = vpack.c.b16 %v1079, %v1078
        %vm1086 = vcmask 326656
        %v1088 = vsel %vm1086, %v1080, 0
        %v1091 = vsel %vm1086, %v1081, 0
        %v1094 = vsel %vm1086, %v1082, 0
        %v1097 = vsel %vm1086, %v1083, 0
        %v1100 = vsel %vm1086, %v1084, 0
        %v1103 = vsel %vm1086, %v1085, 0
        %vm1105 = vcmask 1043456
        %v1107 = vsel %vm1105, %v980, 0
        %v1110 = vsel %vm1105, %v981, 0
        %v1113 = vsel %vm1105, %v982, 0
        %v1116 = vsel %vm1105, %v983, 0
        %1118 = vmatprep.subr.bf16.mxu0 0
        %1119 = vmatpush1.bf16.msra.mxu0 0
        %1120 = vmatprep.subr.bf16.mxu0 0
        %1121 = vmatpush1.bf16.msra.mxu0 0
        %1122 = vmatprep.subr.bf16.mxu0 0
        %1123 = vmatpush1.bf16.msra.mxu0 0
        %1124 = vmatprep.subr.bf16.mxu0 0
        %1125 = vmatpush1.bf16.msra.mxu0 0
        %1126 = vmatprep.subr.bf16.mxu0 0
        %1127 = vmatpush1.bf16.msra.mxu0 0
        %1128 = vmatprep.subr.bf16.mxu0 %v1110
        %1129 = vmatpush1.bf16.msra.mxu0 %v1107
        %1130 = vmatprep.subr.bf16.mxu0 %v977
        %1131 = vmatpush1.bf16.msra.mxu0 %v976
        %1132 = vmatprep.subr.bf16.mxu0 %v973
        %1133 = vmatpush1.bf16.msra.mxu0 %v972
        %1134 = vmatprep.subr.bf16.mxu0 0
        %1135 = vmatpush2.bf16.msra.mxu0 0
        %1136 = vmatprep.subr.bf16.mxu0 0
        %1137 = vmatpush2.bf16.msra.mxu0 0
        %1138 = vmatprep.subr.bf16.mxu0 0
        %1139 = vmatpush2.bf16.msra.mxu0 0
        %1140 = vmatprep.subr.bf16.mxu0 0
        %1141 = vmatpush2.bf16.msra.mxu0 0
        %1142 = vmatprep.subr.bf16.mxu0 0
        %1143 = vmatpush2.bf16.msra.mxu0 0
        %1144 = vmatprep.subr.bf16.mxu0 0
        %1145 = vmatpush2.bf16.msra.mxu0 0
        %1146 = vmatprep.subr.bf16.mxu0 0
        %1147 = vmatpush2.bf16.msra.mxu0 0
        %1148 = vmatprep.subr.bf16.mxu0 0
        %1149 = vmatpush2.bf16.msra.mxu0 0
        %1150 = vmatprep.mubr.bf16.mxu0 0
        %1151 = vmatmul.mubr.bf16.gmra.mxu0 %v1088
        %v1152 = vpop.f32.mrf.mxu0
        %v1153 = vadd.f32 %v999, %v1152
        %v1154 = vpop.f32.mrf.mxu0
        %v1155 = vadd.f32 %v999, %v1154
        %v1156 = vpop.f32.mrf.mxu0
        %v1157 = vadd.f32 %v1004, %v1156
        %v1158 = vpop.f32.mrf.mxu0
        %v1159 = vadd.f32 %v1004, %v1158
        %1160 = vmatprep.mubr.bf16.mxu0 0
        %1161 = vmatmul.mubr.bf16.gmra.mxu0 %v1091
        %v1162 = vpop.f32.mrf.mxu0
        %v1163 = vadd.f32 %v1009, %v1162
        %v1164 = vpop.f32.mrf.mxu0
        %v1165 = vadd.f32 %v1009, %v1164
        %v1166 = vpop.f32.mrf.mxu0
        %v1167 = vadd.f32 %v1014, %v1166
        %v1168 = vpop.f32.mrf.mxu0
        %v1169 = vadd.f32 %v1014, %v1168
        %1170 = vmatprep.mubr.bf16.mxu0 0
        %1171 = vmatmul.mubr.bf16.gmra.mxu0 %v1094
        %v1172 = vpop.f32.mrf.mxu0
        %v1173 = vadd.f32 %v1019, %v1172
        %v1174 = vpop.f32.mrf.mxu0
        %v1175 = vadd.f32 %v1019, %v1174
        %v1176 = vpop.f32.mrf.mxu0
        %v1177 = vadd.f32 %v1024, %v1176
        %v1178 = vpop.f32.mrf.mxu0
        %v1179 = vadd.f32 %v1024, %v1178
        %1180 = vmatprep.mubr.bf16.mxu0 0
        %1181 = vmatmul.mubr.bf16.gmra.mxu0 %v1097
        %v1182 = vpop.f32.mrf.mxu0
        %v1183 = vadd.f32 %v1029, %v1182
        %v1184 = vpop.f32.mrf.mxu0
        %v1185 = vadd.f32 %v1029, %v1184
        %v1186 = vpop.f32.mrf.mxu0
        %v1187 = vadd.f32 %v1034, %v1186
        %v1188 = vpop.f32.mrf.mxu0
        %v1189 = vadd.f32 %v1034, %v1188
        %1190 = vmatprep.mubr.bf16.mxu0 0
        %1191 = vmatmul.mubr.bf16.gmra.mxu0 %v1100
        %v1192 = vpop.f32.mrf.mxu0
        %v1193 = vadd.f32 %v1039, %v1192
        %v1194 = vpop.f32.mrf.mxu0
        %v1195 = vadd.f32 %v1039, %v1194
        %v1196 = vpop.f32.mrf.mxu0
        %v1197 = vadd.f32 %v1044, %v1196
        %v1198 = vpop.f32.mrf.mxu0
        %v1199 = vadd.f32 %v1044, %v1198
        %1200 = vmatprep.mubr.bf16.mxu0 0
        %1201 = vmatmul.mubr.bf16.gmra.mxu0 %v1103
        %v1202 = vpop.f32.mrf.mxu0
        %v1203 = vadd.f32 %v1049, %v1202
        %v1204 = vpop.f32.mrf.mxu0
        %v1205 = vadd.f32 %v1049, %v1204
        %v1206 = vpop.f32.mrf.mxu0
        %v1207 = vadd.f32 %v1054, %v1206
        %v1208 = vpop.f32.mrf.mxu0
        %v1209 = vadd.f32 %v1054, %v1208
        %1210 = vdwg.mxu0
        %1211 = vmatprep.subr.bf16.mxu0 0
        %1212 = vmatpush1.bf16.msra.mxu0 0
        %1213 = vmatprep.subr.bf16.mxu0 0
        %1214 = vmatpush1.bf16.msra.mxu0 0
        %1215 = vmatprep.subr.bf16.mxu0 0
        %1216 = vmatpush1.bf16.msra.mxu0 0
        %1217 = vmatprep.subr.bf16.mxu0 0
        %1218 = vmatpush1.bf16.msra.mxu0 0
        %1219 = vmatprep.subr.bf16.mxu0 0
        %1220 = vmatpush1.bf16.msra.mxu0 0
        %1221 = vmatprep.subr.bf16.mxu0 %v1116
        %1222 = vmatpush1.bf16.msra.mxu0 %v1113
        %1223 = vmatprep.subr.bf16.mxu0 %v979
        %1224 = vmatpush1.bf16.msra.mxu0 %v978
        %1225 = vmatprep.subr.bf16.mxu0 %v975
        %1226 = vmatpush1.bf16.msra.mxu0 %v974
        %1227 = vmatprep.subr.bf16.mxu0 0
        %1228 = vmatpush2.bf16.msra.mxu0 0
        %1229 = vmatprep.subr.bf16.mxu0 0
        %1230 = vmatpush2.bf16.msra.mxu0 0
        %1231 = vmatprep.subr.bf16.mxu0 0
        %1232 = vmatpush2.bf16.msra.mxu0 0
        %1233 = vmatprep.subr.bf16.mxu0 0
        %1234 = vmatpush2.bf16.msra.mxu0 0
        %1235 = vmatprep.subr.bf16.mxu0 0
        %1236 = vmatpush2.bf16.msra.mxu0 0
        %1237 = vmatprep.subr.bf16.mxu0 0
        %1238 = vmatpush2.bf16.msra.mxu0 0
        %1239 = vmatprep.subr.bf16.mxu0 0
        %1240 = vmatpush2.bf16.msra.mxu0 0
        %1241 = vmatprep.subr.bf16.mxu0 0
        %1242 = vmatpush2.bf16.msra.mxu0 0
        %1243 = vmatprep.mubr.bf16.mxu0 0
        %1244 = vmatmul.mubr.bf16.gmra.mxu0 %v1088
        %v1245 = vpop.f32.mrf.mxu0
        %v1246 = vadd.f32 %v999, %v1245
        %v1247 = vpop.f32.mrf.mxu0
        %v1248 = vadd.f32 %v999, %v1247
        %v1249 = vpop.f32.mrf.mxu0
        %v1250 = vadd.f32 %v1004, %v1249
        %v1251 = vpop.f32.mrf.mxu0
        %v1252 = vadd.f32 %v1004, %v1251
        %1253 = vmatprep.mubr.bf16.mxu0 0
        %1254 = vmatmul.mubr.bf16.gmra.mxu0 %v1091
        %v1255 = vpop.f32.mrf.mxu0
        %v1256 = vadd.f32 %v1009, %v1255
        %v1257 = vpop.f32.mrf.mxu0
        %v1258 = vadd.f32 %v1009, %v1257
        %v1259 = vpop.f32.mrf.mxu0
        %v1260 = vadd.f32 %v1014, %v1259
        %v1261 = vpop.f32.mrf.mxu0
        %v1262 = vadd.f32 %v1014, %v1261
        %1263 = vmatprep.mubr.bf16.mxu0 0
        %1264 = vmatmul.mubr.bf16.gmra.mxu0 %v1094
        %v1265 = vpop.f32.mrf.mxu0
        %v1266 = vadd.f32 %v1019, %v1265
        %v1267 = vpop.f32.mrf.mxu0
        %v1268 = vadd.f32 %v1019, %v1267
        %v1269 = vpop.f32.mrf.mxu0
        %v1270 = vadd.f32 %v1024, %v1269
        %v1271 = vpop.f32.mrf.mxu0
        %v1272 = vadd.f32 %v1024, %v1271
        %1273 = vmatprep.mubr.bf16.mxu0 0
        %1274 = vmatmul.mubr.bf16.gmra.mxu0 %v1097
        %v1275 = vpop.f32.mrf.mxu0
        %v1276 = vadd.f32 %v1029, %v1275
        %v1277 = vpop.f32.mrf.mxu0
        %v1278 = vadd.f32 %v1029, %v1277
        %v1279 = vpop.f32.mrf.mxu0
        %v1280 = vadd.f32 %v1034, %v1279
        %v1281 = vpop.f32.mrf.mxu0
        %v1282 = vadd.f32 %v1034, %v1281
        %1283 = vmatprep.mubr.bf16.mxu0 0
        %1284 = vmatmul.mubr.bf16.gmra.mxu0 %v1100
        %v1285 = vpop.f32.mrf.mxu0
        %v1286 = vadd.f32 %v1039, %v1285
        %v1287 = vpop.f32.mrf.mxu0
        %v1288 = vadd.f32 %v1039, %v1287
        %v1289 = vpop.f32.mrf.mxu0
        %v1290 = vadd.f32 %v1044, %v1289
        %v1291 = vpop.f32.mrf.mxu0
        %v1292 = vadd.f32 %v1044, %v1291
        %1293 = vmatprep.mubr.bf16.mxu0 0
        %1294 = vmatmul.mubr.bf16.gmra.mxu0 %v1103
        %v1295 = vpop.f32.mrf.mxu0
        %v1296 = vadd.f32 %v1049, %v1295
        %v1297 = vpop.f32.mrf.mxu0
        %v1298 = vadd.f32 %v1049, %v1297
        %v1299 = vpop.f32.mrf.mxu0
        %v1300 = vadd.f32 %v1054, %v1299
        %v1301 = vpop.f32.mrf.mxu0
        %v1302 = vadd.f32 %v1054, %v1301
        %1303 = vdwg.mxu0
        %v1304 = vmul.f32 %v1153, 0.5
        %v1305 = vmul.f32 %v1155, 0.5
        %v1306 = vmul.f32 %v1246, 0.5
        %v1307 = vmul.f32 %v1248, 0.5
        %v1308 = vmul.f32 %v1157, 0.5
        %v1309 = vmul.f32 %v1159, 0.5
        %v1310 = vmul.f32 %v1250, 0.5
        %v1311 = vmul.f32 %v1252, 0.5
        %v1312 = vmul.f32 %v1163, 0.5
        %v1313 = vmul.f32 %v1165, 0.5
        %v1314 = vmul.f32 %v1256, 0.5
        %v1315 = vmul.f32 %v1258, 0.5
        %v1316 = vmul.f32 %v1167, 0.5
        %v1317 = vmul.f32 %v1169, 0.5
        %v1318 = vmul.f32 %v1260, 0.5
        %v1319 = vmul.f32 %v1262, 0.5
        %v1320 = vmul.f32 %v1173, 0.5
        %v1321 = vmul.f32 %v1175, 0.5
        %v1322 = vmul.f32 %v1266, 0.5
        %v1323 = vmul.f32 %v1268, 0.5
        %v1324 = vmul.f32 %v1177, 0.5
        %v1325 = vmul.f32 %v1179, 0.5
        %v1326 = vmul.f32 %v1270, 0.5
        %v1327 = vmul.f32 %v1272, 0.5
        %v1328 = vmul.f32 %v1183, 0.5
        %v1329 = vmul.f32 %v1185, 0.5
        %v1330 = vmul.f32 %v1276, 0.5
        %v1331 = vmul.f32 %v1278, 0.5
        %v1332 = vmul.f32 %v1187, 0.5
        %v1333 = vmul.f32 %v1189, 0.5
        %v1334 = vmul.f32 %v1280, 0.5
        %v1335 = vmul.f32 %v1282, 0.5
        %v1336 = vmul.f32 %v1193, 0.5
        %v1337 = vmul.f32 %v1195, 0.5
        %v1338 = vmul.f32 %v1286, 0.5
        %v1339 = vmul.f32 %v1288, 0.5
        %v1340 = vmul.f32 %v1197, 0.5
        %v1341 = vmul.f32 %v1199, 0.5
        %v1342 = vmul.f32 %v1290, 0.5
        %v1343 = vmul.f32 %v1292, 0.5
        %v1344 = vmul.f32 %v1203, 0.5
        %v1345 = vmul.f32 %v1205, 0.5
        %v1346 = vmul.f32 %v1296, 0.5
        %v1347 = vmul.f32 %v1298, 0.5
        %v1348 = vmul.f32 %v1207, 0.5
        %v1349 = vmul.f32 %v1209, 0.5
        %v1350 = vmul.f32 %v1300, 0.5
        %v1351 = vmul.f32 %v1302, 0.5
        %v1352 = vmul.f32 %v1153, 0.70710677
        %v1353 = vmul.f32 %v1155, 0.70710677
        %v1354 = vmul.f32 %v1246, 0.70710677
        %v1355 = vmul.f32 %v1248, 0.70710677
        %v1356 = vmul.f32 %v1157, 0.70710677
        %v1357 = vmul.f32 %v1159, 0.70710677
        %v1358 = vmul.f32 %v1250, 0.70710677
        %v1359 = vmul.f32 %v1252, 0.70710677
        %v1360 = vmul.f32 %v1163, 0.70710677
        %v1361 = vmul.f32 %v1165, 0.70710677
        %v1362 = vmul.f32 %v1256, 0.70710677
        %v1363 = vmul.f32 %v1258, 0.70710677
        %v1364 = vmul.f32 %v1167, 0.70710677
        %v1365 = vmul.f32 %v1169, 0.70710677
        %v1366 = vmul.f32 %v1260, 0.70710677
        %v1367 = vmul.f32 %v1262, 0.70710677
        %v1368 = vmul.f32 %v1173, 0.70710677
        %v1369 = vmul.f32 %v1175, 0.70710677
        %v1370 = vmul.f32 %v1266, 0.70710677
        %v1371 = vmul.f32 %v1268, 0.70710677
        %v1372 = vmul.f32 %v1177, 0.70710677
        %v1373 = vmul.f32 %v1179, 0.70710677
        %v1374 = vmul.f32 %v1270, 0.70710677
        %v1375 = vmul.f32 %v1272, 0.70710677
        %v1376 = vmul.f32 %v1183, 0.70710677
        %v1377 = vmul.f32 %v1185, 0.70710677
        %v1378 = vmul.f32 %v1276, 0.70710677
        %v1379 = vmul.f32 %v1278, 0.70710677
        %v1380 = vmul.f32 %v1187, 0.70710677
        %v1381 = vmul.f32 %v1189, 0.70710677
        %v1382 = vmul.f32 %v1280, 0.70710677
        %v1383 = vmul.f32 %v1282, 0.70710677
        %v1384 = vmul.f32 %v1193, 0.70710677
        %v1385 = vmul.f32 %v1195, 0.70710677
        %v1386 = vmul.f32 %v1286, 0.70710677
        %v1387 = vmul.f32 %v1288, 0.70710677
        %v1388 = vmul.f32 %v1197, 0.70710677
        %v1389 = vmul.f32 %v1199, 0.70710677
        %v1390 = vmul.f32 %v1290, 0.70710677
        %v1391 = vmul.f32 %v1292, 0.70710677
        %v1392 = vmul.f32 %v1203, 0.70710677
        %v1393 = vmul.f32 %v1205, 0.70710677
        %v1394 = vmul.f32 %v1296, 0.70710677
        %v1395 = vmul.f32 %v1298, 0.70710677
        %v1396 = vmul.f32 %v1207, 0.70710677
        %v1397 = vmul.f32 %v1209, 0.70710677
        %v1398 = vmul.f32 %v1300, 0.70710677
        %v1399 = vmul.f32 %v1302, 0.70710677
        %v1400 = verf.f32.pop %v1352
        %v1401 = verf.f32.pop %v1353
        %v1402 = verf.f32.pop %v1354
        %v1403 = verf.f32.pop %v1355
        %v1404 = verf.f32.pop %v1356
        %v1405 = verf.f32.pop %v1357
        %v1406 = verf.f32.pop %v1358
        %v1407 = verf.f32.pop %v1359
        %v1408 = verf.f32.pop %v1360
        %v1409 = verf.f32.pop %v1361
        %v1410 = verf.f32.pop %v1362
        %v1411 = verf.f32.pop %v1363
        %v1412 = verf.f32.pop %v1364
        %v1413 = verf.f32.pop %v1365
        %v1414 = verf.f32.pop %v1366
        %v1415 = verf.f32.pop %v1367
        %v1416 = verf.f32.pop %v1368
        %v1417 = verf.f32.pop %v1369
        %v1418 = verf.f32.pop %v1370
        %v1419 = verf.f32.pop %v1371
        %v1420 = verf.f32.pop %v1372
        %v1421 = verf.f32.pop %v1373
        %v1422 = verf.f32.pop %v1374
        %v1423 = verf.f32.pop %v1375
        %v1424 = verf.f32.pop %v1376
        %v1425 = verf.f32.pop %v1377
        %v1426 = verf.f32.pop %v1378
        %v1427 = verf.f32.pop %v1379
        %v1428 = verf.f32.pop %v1380
        %v1429 = verf.f32.pop %v1381
        %v1430 = verf.f32.pop %v1382
        %v1431 = verf.f32.pop %v1383
        %v1432 = verf.f32.pop %v1384
        %v1433 = verf.f32.pop %v1385
        %v1434 = verf.f32.pop %v1386
        %v1435 = verf.f32.pop %v1387
        %v1436 = verf.f32.pop %v1388
        %v1437 = verf.f32.pop %v1389
        %v1438 = verf.f32.pop %v1390
        %v1439 = verf.f32.pop %v1391
        %v1440 = verf.f32.pop %v1392
        %v1441 = verf.f32.pop %v1393
        %v1442 = verf.f32.pop %v1394
        %v1443 = verf.f32.pop %v1395
        %v1444 = verf.f32.pop %v1396
        %v1445 = verf.f32.pop %v1397
        %v1446 = verf.f32.pop %v1398
        %v1447 = verf.f32.pop %v1399
        %v1448 = vadd.f32 %v1400, 1.0
        %v1449 = vadd.f32 %v1401, 1.0
        %v1450 = vadd.f32 %v1402, 1.0
        %v1451 = vadd.f32 %v1403, 1.0
        %v1452 = vadd.f32 %v1404, 1.0
        %v1453 = vadd.f32 %v1405, 1.0
        %v1454 = vadd.f32 %v1406, 1.0
        %v1455 = vadd.f32 %v1407, 1.0
        %v1456 = vadd.f32 %v1408, 1.0
        %v1457 = vadd.f32 %v1409, 1.0
        %v1458 = vadd.f32 %v1410, 1.0
        %v1459 = vadd.f32 %v1411, 1.0
        %v1460 = vadd.f32 %v1412, 1.0
        %v1461 = vadd.f32 %v1413, 1.0
        %v1462 = vadd.f32 %v1414, 1.0
        %v1463 = vadd.f32 %v1415, 1.0
        %v1464 = vadd.f32 %v1416, 1.0
        %v1465 = vadd.f32 %v1417, 1.0
        %v1466 = vadd.f32 %v1418, 1.0
        %v1467 = vadd.f32 %v1419, 1.0
        %v1468 = vadd.f32 %v1420, 1.0
        %v1469 = vadd.f32 %v1421, 1.0
        %v1470 = vadd.f32 %v1422, 1.0
        %v1471 = vadd.f32 %v1423, 1.0
        %v1472 = vadd.f32 %v1424, 1.0
        %v1473 = vadd.f32 %v1425, 1.0
        %v1474 = vadd.f32 %v1426, 1.0
        %v1475 = vadd.f32 %v1427, 1.0
        %v1476 = vadd.f32 %v1428, 1.0
        %v1477 = vadd.f32 %v1429, 1.0
        %v1478 = vadd.f32 %v1430, 1.0
        %v1479 = vadd.f32 %v1431, 1.0
        %v1480 = vadd.f32 %v1432, 1.0
        %v1481 = vadd.f32 %v1433, 1.0
        %v1482 = vadd.f32 %v1434, 1.0
        %v1483 = vadd.f32 %v1435, 1.0
        %v1484 = vadd.f32 %v1436, 1.0
        %v1485 = vadd.f32 %v1437, 1.0
        %v1486 = vadd.f32 %v1438, 1.0
        %v1487 = vadd.f32 %v1439, 1.0
        %v1488 = vadd.f32 %v1440, 1.0
        %v1489 = vadd.f32 %v1441, 1.0
        %v1490 = vadd.f32 %v1442, 1.0
        %v1491 = vadd.f32 %v1443, 1.0
        %v1492 = vadd.f32 %v1444, 1.0
        %v1493 = vadd.f32 %v1445, 1.0
        %v1494 = vadd.f32 %v1446, 1.0
        %v1495 = vadd.f32 %v1447, 1.0
        %v1496 = vmul.f32 %v1304, %v1448
        %v1497 = vmul.f32 %v1305, %v1449
        %v1498 = vmul.f32 %v1306, %v1450
        %v1499 = vmul.f32 %v1307, %v1451
        %v1500 = vmul.f32 %v1308, %v1452
        %v1501 = vmul.f32 %v1309, %v1453
        %v1502 = vmul.f32 %v1310, %v1454
        %v1503 = vmul.f32 %v1311, %v1455
        %v1504 = vmul.f32 %v1312, %v1456
        %v1505 = vmul.f32 %v1313, %v1457
        %v1506 = vmul.f32 %v1314, %v1458
        %v1507 = vmul.f32 %v1315, %v1459
        %v1508 = vmul.f32 %v1316, %v1460
        %v1509 = vmul.f32 %v1317, %v1461
        %v1510 = vmul.f32 %v1318, %v1462
        %v1511 = vmul.f32 %v1319, %v1463
        %v1512 = vmul.f32 %v1320, %v1464
        %v1513 = vmul.f32 %v1321, %v1465
        %v1514 = vmul.f32 %v1322, %v1466
        %v1515 = vmul.f32 %v1323, %v1467
        %v1516 = vmul.f32 %v1324, %v1468
        %v1517 = vmul.f32 %v1325, %v1469
        %v1518 = vmul.f32 %v1326, %v1470
        %v1519 = vmul.f32 %v1327, %v1471
        %v1520 = vmul.f32 %v1328, %v1472
        %v1521 = vmul.f32 %v1329, %v1473
        %v1522 = vmul.f32 %v1330, %v1474
        %v1523 = vmul.f32 %v1331, %v1475
        %v1524 = vmul.f32 %v1332, %v1476
        %v1525 = vmul.f32 %v1333, %v1477
        %v1526 = vmul.f32 %v1334, %v1478
        %v1527 = vmul.f32 %v1335, %v1479
        %v1528 = vmul.f32 %v1336, %v1480
        %v1529 = vmul.f32 %v1337, %v1481
        %v1530 = vmul.f32 %v1338, %v1482
        %v1531 = vmul.f32 %v1339, %v1483
        %v1532 = vmul.f32 %v1340, %v1484
        %v1533 = vmul.f32 %v1341, %v1485
        %v1534 = vmul.f32 %v1342, %v1486
        %v1535 = vmul.f32 %v1343, %v1487
        %v1536 = vmul.f32 %v1344, %v1488
        %v1537 = vmul.f32 %v1345, %v1489
        %v1538 = vmul.f32 %v1346, %v1490
        %v1539 = vmul.f32 %v1347, %v1491
        %v1540 = vmul.f32 %v1348, %v1492
        %v1541 = vmul.f32 %v1349, %v1493
        %v1542 = vmul.f32 %v1350, %v1494
        %v1543 = vmul.f32 %v1351, %v1495
        %v1544 = vadd.f32 %v1528, %v419
        %v1545 = vadd.f32 %v1529, %v420
        %v1546 = vadd.f32 %v1530, %v421
        %v1547 = vadd.f32 %v1531, %v422
        %v1548 = vadd.f32 %v1532, %v423
        %v1549 = vadd.f32 %v1533, %v424
        %v1550 = vadd.f32 %v1534, %v425
        %v1551 = vadd.f32 %v1535, %v426
        %v1552 = vadd.f32 %v1536, %v427
        %v1553 = vadd.f32 %v1537, %v428
        %v1554 = vadd.f32 %v1538, %v429
        %v1555 = vadd.f32 %v1539, %v430
        %v1556 = vadd.f32 %v1540, %v431
        %v1557 = vadd.f32 %v1541, %v432
        %v1558 = vadd.f32 %v1542, %v433
        %v1559 = vadd.f32 %v1543, %v434
        %1560 = vrot.lane.b32.xlu0 %v1544, 3
        %v1561 = vpop.permute.xlu0 %1560
        %1562 = vrot.lane.b32.xlu0 %v1548, 3
        %v1563 = vpop.permute.xlu0 %1562
        %1564 = vrot.lane.b32.xlu0 %v1552, 3
        %v1565 = vpop.permute.xlu0 %1564
        %1566 = vrot.lane.b32.xlu0 %v1556, 3
        %v1567 = vpop.permute.xlu0 %1566
        %1568 = vrot.lane.b32.xlu0 %v1545, 3
        %v1569 = vpop.permute.xlu0 %1568
        %1570 = vrot.lane.b32.xlu0 %v1549, 3
        %v1571 = vpop.permute.xlu0 %1570
        %1572 = vrot.lane.b32.xlu0 %v1553, 3
        %v1573 = vpop.permute.xlu0 %1572
        %1574 = vrot.lane.b32.xlu0 %v1557, 3
        %v1575 = vpop.permute.xlu0 %1574
        %1576 = vrot.lane.b32.xlu0 %v1546, 3
        %v1577 = vpop.permute.xlu0 %1576
        %1578 = vrot.lane.b32.xlu0 %v1550, 3
        %v1579 = vpop.permute.xlu0 %1578
        %1580 = vrot.lane.b32.xlu0 %v1554, 3
        %v1581 = vpop.permute.xlu0 %1580
        %1582 = vrot.lane.b32.xlu0 %v1558, 3
        %v1583 = vpop.permute.xlu0 %1582
        %1584 = vrot.lane.b32.xlu0 %v1547, 3
        %v1585 = vpop.permute.xlu0 %1584
        %1586 = vrot.lane.b32.xlu0 %v1551, 3
        %v1587 = vpop.permute.xlu0 %1586
        %1588 = vrot.lane.b32.xlu0 %v1555, 3
        %v1589 = vpop.permute.xlu0 %1588
        %1590 = vrot.lane.b32.xlu0 %v1559, 3
        %v1591 = vpop.permute.xlu0 %1590
        %vm1592 = vcmp.lt.s32.totalorder %v436, 3
        %v1593 = vsel %vm1592, %v1577, %v1585
        %v1594 = vsel %vm1592, %v1579, %v1587
        %v1595 = vsel %vm1592, %v1581, %v1589
        %v1596 = vsel %vm1592, %v1583, %v1591
        %v1597 = vsel %vm1592, %v1569, %v1577
        %v1598 = vsel %vm1592, %v1571, %v1579
        %v1599 = vsel %vm1592, %v1573, %v1581
        %v1600 = vsel %vm1592, %v1575, %v1583
        %v1601 = vsel %vm1592, %v1561, %v1569
        %v1602 = vsel %vm1592, %v1563, %v1571
        %v1603 = vsel %vm1592, %v1565, %v1573
        %v1604 = vsel %vm1592, %v1567, %v1575
        %v1605 = vsel %vm1592, %v1585, %v1561
        %v1606 = vsel %vm1592, %v1587, %v1563
        %v1607 = vsel %vm1592, %v1589, %v1565
        %v1608 = vsel %vm1592, %v1591, %v1567
        %v1609 = vsel %vm492, 1, 0
        %v1610 = vsel %vm493, 1, 0
        %v1611 = vsel %vm494, 1, 0
        %v1612 = vsel %vm495, 1, 0
        %vm1613 = vcmp.eq.s32.totalorder %v1609, 1
        %vm1614 = vcmp.eq.s32.totalorder %v1610, 1
        %vm1615 = vcmp.eq.s32.totalorder %v1611, 1
        %vm1616 = vcmp.eq.s32.totalorder %v1612, 1
        %v1617 = vsel %vm1613, %v1605, 0.0
        %v1618 = vsel %vm1614, %v1601, 0.0
        %v1619 = vsel %vm1615, %v1597, 0.0
        %v1620 = vsel %vm1616, %v1593, 0.0
        %v1621 = vsel %vm1613, %v1606, 0.0
        %v1622 = vsel %vm1614, %v1602, 0.0
        %v1623 = vsel %vm1615, %v1598, 0.0
        %v1624 = vsel %vm1616, %v1594, 0.0
        %v1625 = vsel %vm1613, %v1607, 0.0
        %v1626 = vsel %vm1614, %v1603, 0.0
        %v1627 = vsel %vm1615, %v1599, 0.0
        %v1628 = vsel %vm1616, %v1595, 0.0
        %v1629 = vsel %vm1613, %v1608, 0.0
        %v1630 = vsel %vm1614, %v1604, 0.0
        %v1631 = vsel %vm1615, %v1600, 0.0
        %v1632 = vsel %vm1616, %v1596, 0.0
        %1633 = vrot.lane.b32.xlu0 %v1544, 125
        %v1634 = vpop.permute.xlu0 %1633
        %1635 = vrot.lane.b32.xlu0 %v1548, 125
        %v1636 = vpop.permute.xlu0 %1635
        %1637 = vrot.lane.b32.xlu0 %v1552, 125
        %v1638 = vpop.permute.xlu0 %1637
        %1639 = vrot.lane.b32.xlu0 %v1556, 125
        %v1640 = vpop.permute.xlu0 %1639
        %1641 = vrot.lane.b32.xlu0 %v1545, 125
        %v1642 = vpop.permute.xlu0 %1641
        %1643 = vrot.lane.b32.xlu0 %v1549, 125
        %v1644 = vpop.permute.xlu0 %1643
        %1645 = vrot.lane.b32.xlu0 %v1553, 125
        %v1646 = vpop.permute.xlu0 %1645
        %1647 = vrot.lane.b32.xlu0 %v1557, 125
        %v1648 = vpop.permute.xlu0 %1647
        %1649 = vrot.lane.b32.xlu0 %v1546, 125
        %v1650 = vpop.permute.xlu0 %1649
        %1651 = vrot.lane.b32.xlu0 %v1550, 125
        %v1652 = vpop.permute.xlu0 %1651
        %1653 = vrot.lane.b32.xlu0 %v1554, 125
        %v1654 = vpop.permute.xlu0 %1653
        %1655 = vrot.lane.b32.xlu0 %v1558, 125
        %v1656 = vpop.permute.xlu0 %1655
        %1657 = vrot.lane.b32.xlu0 %v1547, 125
        %v1658 = vpop.permute.xlu0 %1657
        %1659 = vrot.lane.b32.xlu0 %v1551, 125
        %v1660 = vpop.permute.xlu0 %1659
        %1661 = vrot.lane.b32.xlu0 %v1555, 125
        %v1662 = vpop.permute.xlu0 %1661
        %1663 = vrot.lane.b32.xlu0 %v1559, 125
        %v1664 = vpop.permute.xlu0 %1663
        %vm1665 = vcmp.lt.s32.totalorder %v436, 125
        %v1666 = vsel %vm1665, %v1650, %v1658
        %v1667 = vsel %vm1665, %v1652, %v1660
        %v1668 = vsel %vm1665, %v1654, %v1662
        %v1669 = vsel %vm1665, %v1656, %v1664
        %v1670 = vsel %vm1665, %v1642, %v1650
        %v1671 = vsel %vm1665, %v1644, %v1652
        %v1672 = vsel %vm1665, %v1646, %v1654
        %v1673 = vsel %vm1665, %v1648, %v1656
        %v1674 = vsel %vm1665, %v1634, %v1642
        %v1675 = vsel %vm1665, %v1636, %v1644
        %v1676 = vsel %vm1665, %v1638, %v1646
        %v1677 = vsel %vm1665, %v1640, %v1648
        %v1678 = vsel %vm1665, %v1658, %v1634
        %v1679 = vsel %vm1665, %v1660, %v1636
        %v1680 = vsel %vm1665, %v1662, %v1638
        %v1681 = vsel %vm1665, %v1664, %v1640
        %v1682 = vsel %vm508, 1, 0
        %v1683 = vsel %vm509, 1, 0
        %v1684 = vsel %vm510, 1, 0
        %v1685 = vsel %vm511, 1, 0
        %vm1686 = vcmp.eq.s32.totalorder %v1682, 1
        %vm1687 = vcmp.eq.s32.totalorder %v1683, 1
        %vm1688 = vcmp.eq.s32.totalorder %v1684, 1
        %vm1689 = vcmp.eq.s32.totalorder %v1685, 1
        %v1690 = vsel %vm1686, %v1674, 0.0
        %v1691 = vsel %vm1687, %v1670, 0.0
        %v1692 = vsel %vm1688, %v1666, 0.0
        %v1693 = vsel %vm1689, %v1678, 0.0
        %v1694 = vsel %vm1686, %v1675, 0.0
        %v1695 = vsel %vm1687, %v1671, 0.0
        %v1696 = vsel %vm1688, %v1667, 0.0
        %v1697 = vsel %vm1689, %v1679, 0.0
        %v1698 = vsel %vm1686, %v1676, 0.0
        %v1699 = vsel %vm1687, %v1672, 0.0
        %v1700 = vsel %vm1688, %v1668, 0.0
        %v1701 = vsel %vm1689, %v1680, 0.0
        %v1702 = vsel %vm1686, %v1677, 0.0
        %v1703 = vsel %vm1687, %v1673, 0.0
        %v1704 = vsel %vm1688, %v1669, 0.0
        %v1705 = vsel %vm1689, %v1681, 0.0
        %v1706 = vpack.c.bf16 %v1621, %v1617
        %v1707 = vpack.c.bf16 %v1622, %v1618
        %v1708 = vpack.c.bf16 %v1623, %v1619
        %v1709 = vpack.c.bf16 %v1624, %v1620
        %v1710 = vpack.c.bf16 %v1629, %v1625
        %v1711 = vpack.c.bf16 %v1630, %v1626
        %v1712 = vpack.c.bf16 %v1631, %v1627
        %v1713 = vpack.c.bf16 %v1632, %v1628
        %v1714 = vpack.c.bf16 %v1548, %v1544
        %v1715 = vpack.c.bf16 %v1549, %v1545
        %v1716 = vpack.c.bf16 %v1550, %v1546
        %v1717 = vpack.c.bf16 %v1551, %v1547
        %v1718 = vpack.c.bf16 %v1556, %v1552
        %v1719 = vpack.c.bf16 %v1557, %v1553
        %v1720 = vpack.c.bf16 %v1558, %v1554
        %v1721 = vpack.c.bf16 %v1559, %v1555
        %v1722 = vpack.c.bf16 %v1694, %v1690
        %v1723 = vpack.c.bf16 %v1695, %v1691
        %v1724 = vpack.c.bf16 %v1696, %v1692
        %v1725 = vpack.c.bf16 %v1697, %v1693
        %v1726 = vpack.c.bf16 %v1702, %v1698
        %v1727 = vpack.c.bf16 %v1703, %v1699
        %v1728 = vpack.c.bf16 %v1704, %v1700
        %v1729 = vpack.c.bf16 %v1705, %v1701
        %s1730 = scalar_lea.vmem [#allocation3], 20
        %v1731 = vld [vmem:[%s1730] sm:$0xf]
        %v1732 = vld [vmem:[%s1730 + $0x4] sm:$0xf]
        %v1733 = vld [vmem:[%s1730 + $0x8] sm:$0xf]
        %v1734 = vld [vmem:[%s1730 + $0xc] sm:$0xf]
        %v1735 = vld [vmem:[%s1730 + $0x10] sm:$0xf]
        %s1736 = scalar_lea.vmem %s3, 160
        %v1737 = vld [vmem:[%s1736] sm:$0xff]
        %v1738 = vld [vmem:[%s1736 + $0x8] sm:$0xff]
        %v1739 = vld [vmem:[%s1736 + $0x10] sm:$0xff]
        %v1740 = vld [vmem:[%s1736 + $0x18] sm:$0xff]
        %v1741 = vld [vmem:[%s1736 + $0x20] sm:$0xff]
        %v1742 = vld [vmem:[%s1736 + $0x28] sm:$0xff]
        %v1743 = vld [vmem:[%s1736 + $0x30] sm:$0xff]
        %v1744 = vld [vmem:[%s1736 + $0x38] sm:$0xff]
        %v1745 = vld [vmem:[%s1736 + $0x40] sm:$0xff]
        %v1746 = vld [vmem:[%s1736 + $0x48] sm:$0xff]
        %v1747 = vld [vmem:[%s1736 + $0x50] sm:$0xff]
        %v1748 = vld [vmem:[%s1736 + $0x58] sm:$0xff]
        %v1749 = vld [vmem:[%s1736 + $0x60] sm:$0xff]
        %v1750 = vld [vmem:[%s1736 + $0x68] sm:$0xff]
        %v1751 = vld [vmem:[%s1736 + $0x70] sm:$0xff]
        %v1752 = vld [vmem:[%s1736 + $0x78] sm:$0xff]
        %v1753 = vld [vmem:[%s1736 + $0x80] sm:$0xff]
        %v1754 = vld [vmem:[%s1736 + $0x88] sm:$0xff]
        %v1755 = vld [vmem:[%s1736 + $0x90] sm:$0xff]
        %v1756 = vld [vmem:[%s1736 + $0x98] sm:$0xff]
        %v1762 = vunpack.c.l.b16 %v1731
        %v1763 = vunpack.c.l.b16 %v1732
        %v1764 = vunpack.c.l.b16 %v1733
        %v1765 = vunpack.c.l.b16 %v1734
        %v1766 = vunpack.c.l.b16 %v1735
        %v1767 = vpack.c.b16 %v1763, %v1762
        %v1768 = vpack.c.b16 %v1765, %v1764
        %v1769 = vpack.c.b16 %v1766, %v1766
        %v1771 = vsel %vm728, %v1767, 0
        %v1774 = vsel %vm728, %v1768, 0
        %v1777 = vsel %vm728, %v1769, 0
        %1779 = vmatprep.subr.bf16.mxu0 0
        %1780 = vmatpush1.bf16.msra.mxu0 0
        %1781 = vmatprep.subr.bf16.mxu0 0
        %1782 = vmatpush1.bf16.msra.mxu0 0
        %1783 = vmatprep.subr.bf16.mxu0 %v1727
        %1784 = vmatpush1.bf16.msra.mxu0 %v1726
        %1785 = vmatprep.subr.bf16.mxu0 %v1723
        %1786 = vmatpush1.bf16.msra.mxu0 %v1722
        %1787 = vmatprep.subr.bf16.mxu0 %v1719
        %1788 = vmatpush1.bf16.msra.mxu0 %v1718
        %1789 = vmatprep.subr.bf16.mxu0 %v1715
        %1790 = vmatpush1.bf16.msra.mxu0 %v1714
        %1791 = vmatprep.subr.bf16.mxu0 %v1711
        %1792 = vmatpush1.bf16.msra.mxu0 %v1710
        %1793 = vmatprep.subr.bf16.mxu0 %v1707
        %1794 = vmatpush1.bf16.msra.mxu0 %v1706
        %1795 = vmatprep.subr.bf16.mxu0 0
        %1796 = vmatpush2.bf16.msra.mxu0 0
        %1797 = vmatprep.subr.bf16.mxu0 0
        %1798 = vmatpush2.bf16.msra.mxu0 0
        %1799 = vmatprep.subr.bf16.mxu0 0
        %1800 = vmatpush2.bf16.msra.mxu0 0
        %1801 = vmatprep.subr.bf16.mxu0 0
        %1802 = vmatpush2.bf16.msra.mxu0 0
        %1803 = vmatprep.subr.bf16.mxu0 0
        %1804 = vmatpush2.bf16.msra.mxu0 0
        %1805 = vmatprep.subr.bf16.mxu0 0
        %1806 = vmatpush2.bf16.msra.mxu0 0
        %1807 = vmatprep.subr.bf16.mxu0 0
        %1808 = vmatpush2.bf16.msra.mxu0 0
        %1809 = vmatprep.subr.bf16.mxu0 0
        %1810 = vmatpush2.bf16.msra.mxu0 0
        %1811 = vmatprep.mubr.bf16.mxu0 0
        %1812 = vmatmul.mubr.bf16.gmra.mxu0 %v1771
        %v1813 = vpop.f32.mrf.mxu0
        %v1814 = vadd.f32 %v1737, %v1813
        %v1815 = vpop.f32.mrf.mxu0
        %v1816 = vadd.f32 %v1738, %v1815
        %v1817 = vpop.f32.mrf.mxu0
        %v1818 = vadd.f32 %v1741, %v1817
        %v1819 = vpop.f32.mrf.mxu0
        %v1820 = vadd.f32 %v1742, %v1819
        %1821 = vmatprep.mubr.bf16.mxu0 0
        %1822 = vmatmul.mubr.bf16.gmra.mxu0 %v1774
        %v1823 = vpop.f32.mrf.mxu0
        %v1824 = vadd.f32 %v1745, %v1823
        %v1825 = vpop.f32.mrf.mxu0
        %v1826 = vadd.f32 %v1746, %v1825
        %v1827 = vpop.f32.mrf.mxu0
        %v1828 = vadd.f32 %v1749, %v1827
        %v1829 = vpop.f32.mrf.mxu0
        %v1830 = vadd.f32 %v1750, %v1829
        %1831 = vmatprep.mubr.bf16.mxu0 0
        %1832 = vmatmul.mubr.bf16.gmra.mxu0 %v1777
        %v1833 = vpop.f32.mrf.mxu0
        %v1834 = vadd.f32 %v1753, %v1833
        %v1835 = vpop.f32.mrf.mxu0
        %v1836 = vadd.f32 %v1754, %v1835
        %v1837 = vpop.f32.mrf.mxu0
        %v1838 = vpop.f32.mrf.mxu0
        %1839 = vdwg.mxu0
        %1840 = vmatprep.subr.bf16.mxu0 0
        %1841 = vmatpush1.bf16.msra.mxu0 0
        %1842 = vmatprep.subr.bf16.mxu0 0
        %1843 = vmatpush1.bf16.msra.mxu0 0
        %1844 = vmatprep.subr.bf16.mxu0 %v1729
        %1845 = vmatpush1.bf16.msra.mxu0 %v1728
        %1846 = vmatprep.subr.bf16.mxu0 %v1725
        %1847 = vmatpush1.bf16.msra.mxu0 %v1724
        %1848 = vmatprep.subr.bf16.mxu0 %v1721
        %1849 = vmatpush1.bf16.msra.mxu0 %v1720
        %1850 = vmatprep.subr.bf16.mxu0 %v1717
        %1851 = vmatpush1.bf16.msra.mxu0 %v1716
        %1852 = vmatprep.subr.bf16.mxu0 %v1713
        %1853 = vmatpush1.bf16.msra.mxu0 %v1712
        %1854 = vmatprep.subr.bf16.mxu0 %v1709
        %1855 = vmatpush1.bf16.msra.mxu0 %v1708
        %1856 = vmatprep.subr.bf16.mxu0 0
        %1857 = vmatpush2.bf16.msra.mxu0 0
        %1858 = vmatprep.subr.bf16.mxu0 0
        %1859 = vmatpush2.bf16.msra.mxu0 0
        %1860 = vmatprep.subr.bf16.mxu0 0
        %1861 = vmatpush2.bf16.msra.mxu0 0
        %1862 = vmatprep.subr.bf16.mxu0 0
        %1863 = vmatpush2.bf16.msra.mxu0 0
        %1864 = vmatprep.subr.bf16.mxu0 0
        %1865 = vmatpush2.bf16.msra.mxu0 0
        %1866 = vmatprep.subr.bf16.mxu0 0
        %1867 = vmatpush2.bf16.msra.mxu0 0
        %1868 = vmatprep.subr.bf16.mxu0 0
        %1869 = vmatpush2.bf16.msra.mxu0 0
        %1870 = vmatprep.subr.bf16.mxu0 0
        %1871 = vmatpush2.bf16.msra.mxu0 0
        %1872 = vmatprep.mubr.bf16.mxu0 0
        %1873 = vmatmul.mubr.bf16.gmra.mxu0 %v1771
        %v1874 = vpop.f32.mrf.mxu0
        %v1875 = vadd.f32 %v1739, %v1874
        %v1876 = vpop.f32.mrf.mxu0
        %v1877 = vadd.f32 %v1740, %v1876
        %v1878 = vpop.f32.mrf.mxu0
        %v1879 = vadd.f32 %v1743, %v1878
        %v1880 = vpop.f32.mrf.mxu0
        %v1881 = vadd.f32 %v1744, %v1880
        %1882 = vmatprep.mubr.bf16.mxu0 0
        %1883 = vmatmul.mubr.bf16.gmra.mxu0 %v1774
        %v1884 = vpop.f32.mrf.mxu0
        %v1885 = vadd.f32 %v1747, %v1884
        %v1886 = vpop.f32.mrf.mxu0
        %v1887 = vadd.f32 %v1748, %v1886
        %v1888 = vpop.f32.mrf.mxu0
        %v1889 = vadd.f32 %v1751, %v1888
        %v1890 = vpop.f32.mrf.mxu0
        %v1891 = vadd.f32 %v1752, %v1890
        %1892 = vmatprep.mubr.bf16.mxu0 0
        %1893 = vmatmul.mubr.bf16.gmra.mxu0 %v1777
        %v1894 = vpop.f32.mrf.mxu0
        %v1895 = vadd.f32 %v1755, %v1894
        %v1896 = vpop.f32.mrf.mxu0
        %v1897 = vadd.f32 %v1756, %v1896
        %v1898 = vpop.f32.mrf.mxu0
        %v1899 = vpop.f32.mrf.mxu0
        %1900 = vdwg.mxu0
        %v1901 = vmul.f32 %v1814, 0.5
        %v1902 = vmul.f32 %v1816, 0.5
        %v1903 = vmul.f32 %v1875, 0.5
        %v1904 = vmul.f32 %v1877, 0.5
        %v1905 = vmul.f32 %v1818, 0.5
        %v1906 = vmul.f32 %v1820, 0.5
        %v1907 = vmul.f32 %v1879, 0.5
        %v1908 = vmul.f32 %v1881, 0.5
        %v1909 = vmul.f32 %v1824, 0.5
        %v1910 = vmul.f32 %v1826, 0.5
        %v1911 = vmul.f32 %v1885, 0.5
        %v1912 = vmul.f32 %v1887, 0.5
        %v1913 = vmul.f32 %v1828, 0.5
        %v1914 = vmul.f32 %v1830, 0.5
        %v1915 = vmul.f32 %v1889, 0.5
        %v1916 = vmul.f32 %v1891, 0.5
        %v1917 = vmul.f32 %v1834, 0.5
        %v1918 = vmul.f32 %v1836, 0.5
        %v1919 = vmul.f32 %v1895, 0.5
        %v1920 = vmul.f32 %v1897, 0.5
        %v1921 = vmul.f32 %v1814, 0.70710677
        %v1922 = vmul.f32 %v1816, 0.70710677
        %v1923 = vmul.f32 %v1875, 0.70710677
        %v1924 = vmul.f32 %v1877, 0.70710677
        %v1925 = vmul.f32 %v1818, 0.70710677
        %v1926 = vmul.f32 %v1820, 0.70710677
        %v1927 = vmul.f32 %v1879, 0.70710677
        %v1928 = vmul.f32 %v1881, 0.70710677
        %v1929 = vmul.f32 %v1824, 0.70710677
        %v1930 = vmul.f32 %v1826, 0.70710677
        %v1931 = vmul.f32 %v1885, 0.70710677
        %v1932 = vmul.f32 %v1887, 0.70710677
        %v1933 = vmul.f32 %v1828, 0.70710677
        %v1934 = vmul.f32 %v1830, 0.70710677
        %v1935 = vmul.f32 %v1889, 0.70710677
        %v1936 = vmul.f32 %v1891, 0.70710677
        %v1937 = vmul.f32 %v1834, 0.70710677
        %v1938 = vmul.f32 %v1836, 0.70710677
        %v1939 = vmul.f32 %v1895, 0.70710677
        %v1940 = vmul.f32 %v1897, 0.70710677
        %v1941 = verf.f32.pop %v1921
        %v1942 = verf.f32.pop %v1922
        %v1943 = verf.f32.pop %v1923
        %v1944 = verf.f32.pop %v1924
        %v1945 = verf.f32.pop %v1925
        %v1946 = verf.f32.pop %v1926
        %v1947 = verf.f32.pop %v1927
        %v1948 = verf.f32.pop %v1928
        %v1949 = verf.f32.pop %v1929
        %v1950 = verf.f32.pop %v1930
        %v1951 = verf.f32.pop %v1931
        %v1952 = verf.f32.pop %v1932
        %v1953 = verf.f32.pop %v1933
        %v1954 = verf.f32.pop %v1934
        %v1955 = verf.f32.pop %v1935
        %v1956 = verf.f32.pop %v1936
        %v1957 = verf.f32.pop %v1937
        %v1958 = verf.f32.pop %v1938
        %v1959 = verf.f32.pop %v1939
        %v1960 = verf.f32.pop %v1940
        %v1961 = vadd.f32 %v1941, 1.0
        %v1962 = vadd.f32 %v1942, 1.0
        %v1963 = vadd.f32 %v1943, 1.0
        %v1964 = vadd.f32 %v1944, 1.0
        %v1965 = vadd.f32 %v1945, 1.0
        %v1966 = vadd.f32 %v1946, 1.0
        %v1967 = vadd.f32 %v1947, 1.0
        %v1968 = vadd.f32 %v1948, 1.0
        %v1969 = vadd.f32 %v1949, 1.0
        %v1970 = vadd.f32 %v1950, 1.0
        %v1971 = vadd.f32 %v1951, 1.0
        %v1972 = vadd.f32 %v1952, 1.0
        %v1973 = vadd.f32 %v1953, 1.0
        %v1974 = vadd.f32 %v1954, 1.0
        %v1975 = vadd.f32 %v1955, 1.0
        %v1976 = vadd.f32 %v1956, 1.0
        %v1977 = vadd.f32 %v1957, 1.0
        %v1978 = vadd.f32 %v1958, 1.0
        %v1979 = vadd.f32 %v1959, 1.0
        %v1980 = vadd.f32 %v1960, 1.0
        %v1981 = vmul.f32 %v1901, %v1961
        %v1982 = vmul.f32 %v1902, %v1962
        %v1983 = vmul.f32 %v1903, %v1963
        %v1984 = vmul.f32 %v1904, %v1964
        %v1985 = vmul.f32 %v1905, %v1965
        %v1986 = vmul.f32 %v1906, %v1966
        %v1987 = vmul.f32 %v1907, %v1967
        %v1988 = vmul.f32 %v1908, %v1968
        %v1989 = vmul.f32 %v1909, %v1969
        %v1990 = vmul.f32 %v1910, %v1970
        %v1991 = vmul.f32 %v1911, %v1971
        %v1992 = vmul.f32 %v1912, %v1972
        %v1993 = vmul.f32 %v1913, %v1973
        %v1994 = vmul.f32 %v1914, %v1974
        %v1995 = vmul.f32 %v1915, %v1975
        %v1996 = vmul.f32 %v1916, %v1976
        %v1997 = vmul.f32 %v1917, %v1977
        %v1998 = vmul.f32 %v1918, %v1978
        %v1999 = vmul.f32 %v1919, %v1979
        %v2000 = vmul.f32 %v1920, %v1980
        %s2001 = scalar_lea.vmem %s4, 48
        %v2002 = vld [vmem:[%s2001] sm:$0xf]
        %v2003 = vld [vmem:[%s2001 + $0x4] sm:$0xf]
        %v2004 = vld [vmem:[%s2001 + $0x8] sm:$0xf]
        %v2005 = vld [vmem:[%s2001 + $0xc] sm:$0xf]
        %v2006 = vld [vmem:[%s2001 + $0x10] sm:$0xf]
        %v2007 = vld [vmem:[%s2001 + $0x14] sm:$0xf]
        %v2008 = vld [vmem:[%s2001 + $0x18] sm:$0xf]
        %v2009 = vld [vmem:[%s2001 + $0x1c] sm:$0xf]
        %v2010 = vld [vmem:[%s2001 + $0x20] sm:$0xf]
        %v2011 = vld [vmem:[%s2001 + $0x24] sm:$0xf]
        %v2012 = vld [vmem:[%s2001 + $0x28] sm:$0xf]
        %v2013 = vld [vmem:[%s2001 + $0x2c] sm:$0xf]
        %v2014 = vpack.c.bf16 %v1985, %v1981
        %v2015 = vpack.c.bf16 %v1986, %v1982
        %v2016 = vpack.c.bf16 %v1987, %v1983
        %v2017 = vpack.c.bf16 %v1988, %v1984
        %v2018 = vpack.c.bf16 %v1993, %v1989
        %v2019 = vpack.c.bf16 %v1994, %v1990
        %v2020 = vpack.c.bf16 %v1995, %v1991
        %v2021 = vpack.c.bf16 %v1996, %v1992
        %v2022 = vpack.c.bf16 %v1997, %v1997
        %v2023 = vpack.c.bf16 %v1998, %v1998
        %v2024 = vpack.c.bf16 %v1999, %v1999
        %v2025 = vpack.c.bf16 %v2000, %v2000
        %s2026 = scalar_lea.vmem %s5, 96
        %v2027 = vld [vmem:[%s2026] sm:$0xff]
        %v2028 = vld [vmem:[%s2026 + $0x8] sm:$0xff]
        %v2029 = vld [vmem:[%s2026 + $0x10] sm:$0xff]
        %v2030 = vld [vmem:[%s2026 + $0x18] sm:$0xff]
        %v2031 = vld [vmem:[%s2026 + $0x20] sm:$0xff]
        %v2032 = vld [vmem:[%s2026 + $0x28] sm:$0xff]
        %v2033 = vld [vmem:[%s2026 + $0x30] sm:$0xff]
        %v2034 = vld [vmem:[%s2026 + $0x38] sm:$0xff]
        %v2035 = vld [vmem:[%s2026 + $0x40] sm:$0xff]
        %v2036 = vld [vmem:[%s2026 + $0x48] sm:$0xff]
        %v2037 = vld [vmem:[%s2026 + $0x50] sm:$0xff]
        %v2038 = vld [vmem:[%s2026 + $0x58] sm:$0xff]
        %2040 = vset.pattern.permute.xlu0 0
        %2041 = vperm.xlu0 %2040, %v2027
        %v2042 = vpop.permute.xlu0 %2041
        %2045 = vset.pattern.permute.xlu0 0
        %2046 = vperm.xlu0 %2045, %v2028
        %v2047 = vpop.permute.xlu0 %2046
        %2050 = vset.pattern.permute.xlu0 0
        %2051 = vperm.xlu0 %2050, %v2029
        %v2052 = vpop.permute.xlu0 %2051
        %2055 = vset.pattern.permute.xlu0 0
        %2056 = vperm.xlu0 %2055, %v2030
        %v2057 = vpop.permute.xlu0 %2056
        %2060 = vset.pattern.permute.xlu0 0
        %2061 = vperm.xlu0 %2060, %v2031
        %v2062 = vpop.permute.xlu0 %2061
        %2065 = vset.pattern.permute.xlu0 0
        %2066 = vperm.xlu0 %2065, %v2032
        %v2067 = vpop.permute.xlu0 %2066
        %2070 = vset.pattern.permute.xlu0 0
        %2071 = vperm.xlu0 %2070, %v2033
        %v2072 = vpop.permute.xlu0 %2071
        %2075 = vset.pattern.permute.xlu0 0
        %2076 = vperm.xlu0 %2075, %v2034
        %v2077 = vpop.permute.xlu0 %2076
        %2080 = vset.pattern.permute.xlu0 0
        %2081 = vperm.xlu0 %2080, %v2035
        %v2082 = vpop.permute.xlu0 %2081
        %2085 = vset.pattern.permute.xlu0 0
        %2086 = vperm.xlu0 %2085, %v2036
        %v2087 = vpop.permute.xlu0 %2086
        %2090 = vset.pattern.permute.xlu0 0
        %2091 = vperm.xlu0 %2090, %v2037
        %v2092 = vpop.permute.xlu0 %2091
        %2095 = vset.pattern.permute.xlu0 0
        %2096 = vperm.xlu0 %2095, %v2038
        %v2097 = vpop.permute.xlu0 %2096
        %v2111 = vunpack.c.l.b16 %v2002
        %v2112 = vunpack.c.l.b16 %v2003
        %v2113 = vunpack.c.l.b16 %v2004
        %v2114 = vunpack.c.l.b16 %v2005
        %v2115 = vunpack.c.l.b16 %v2006
        %v2116 = vunpack.c.l.b16 %v2007
        %v2117 = vunpack.c.l.b16 %v2008
        %v2118 = vunpack.c.l.b16 %v2009
        %v2119 = vunpack.c.l.b16 %v2010
        %v2120 = vunpack.c.l.b16 %v2011
        %v2121 = vunpack.c.l.b16 %v2012
        %v2122 = vunpack.c.l.b16 %v2013
        %v2123 = vpack.c.b16 %v2112, %v2111
        %v2124 = vpack.c.b16 %v2114, %v2113
        %v2125 = vpack.c.b16 %v2116, %v2115
        %v2126 = vpack.c.b16 %v2118, %v2117
        %v2127 = vpack.c.b16 %v2120, %v2119
        %v2128 = vpack.c.b16 %v2122, %v2121
        %v2130 = vsel %vm1086, %v2123, 0
        %v2133 = vsel %vm1086, %v2124, 0
        %v2136 = vsel %vm1086, %v2125, 0
        %v2139 = vsel %vm1086, %v2126, 0
        %v2142 = vsel %vm1086, %v2127, 0
        %v2145 = vsel %vm1086, %v2128, 0
        %v2148 = vsel %vm1105, %v2022, 0
        %v2151 = vsel %vm1105, %v2023, 0
        %v2154 = vsel %vm1105, %v2024, 0
        %v2157 = vsel %vm1105, %v2025, 0
        %2159 = vmatprep.subr.bf16.mxu0 0
        %2160 = vmatpush1.bf16.msra.mxu0 0
        %2161 = vmatprep.subr.bf16.mxu0 0
        %2162 = vmatpush1.bf16.msra.mxu0 0
        %2163 = vmatprep.subr.bf16.mxu0 0
        %2164 = vmatpush1.bf16.msra.mxu0 0
        %2165 = vmatprep.subr.bf16.mxu0 0
        %2166 = vmatpush1.bf16.msra.mxu0 0
        %2167 = vmatprep.subr.bf16.mxu0 0
        %2168 = vmatpush1.bf16.msra.mxu0 0
        %2169 = vmatprep.subr.bf16.mxu0 %v2151
        %2170 = vmatpush1.bf16.msra.mxu0 %v2148
        %2171 = vmatprep.subr.bf16.mxu0 %v2019
        %2172 = vmatpush1.bf16.msra.mxu0 %v2018
        %2173 = vmatprep.subr.bf16.mxu0 %v2015
        %2174 = vmatpush1.bf16.msra.mxu0 %v2014
        %2175 = vmatprep.subr.bf16.mxu0 0
        %2176 = vmatpush2.bf16.msra.mxu0 0
        %2177 = vmatprep.subr.bf16.mxu0 0
        %2178 = vmatpush2.bf16.msra.mxu0 0
        %2179 = vmatprep.subr.bf16.mxu0 0
        %2180 = vmatpush2.bf16.msra.mxu0 0
        %2181 = vmatprep.subr.bf16.mxu0 0
        %2182 = vmatpush2.bf16.msra.mxu0 0
        %2183 = vmatprep.subr.bf16.mxu0 0
        %2184 = vmatpush2.bf16.msra.mxu0 0
        %2185 = vmatprep.subr.bf16.mxu0 0
        %2186 = vmatpush2.bf16.msra.mxu0 0
        %2187 = vmatprep.subr.bf16.mxu0 0
        %2188 = vmatpush2.bf16.msra.mxu0 0
        %2189 = vmatprep.subr.bf16.mxu0 0
        %2190 = vmatpush2.bf16.msra.mxu0 0
        %2191 = vmatprep.mubr.bf16.mxu0 0
        %2192 = vmatmul.mubr.bf16.gmra.mxu0 %v2130
        %v2193 = vpop.f32.mrf.mxu0
        %v2194 = vadd.f32 %v2042, %v2193
        %v2195 = vpop.f32.mrf.mxu0
        %v2196 = vadd.f32 %v2042, %v2195
        %v2197 = vpop.f32.mrf.mxu0
        %v2198 = vadd.f32 %v2047, %v2197
        %v2199 = vpop.f32.mrf.mxu0
        %v2200 = vadd.f32 %v2047, %v2199
        %2201 = vmatprep.mubr.bf16.mxu0 0
        %2202 = vmatmul.mubr.bf16.gmra.mxu0 %v2133
        %v2203 = vpop.f32.mrf.mxu0
        %v2204 = vadd.f32 %v2052, %v2203
        %v2205 = vpop.f32.mrf.mxu0
        %v2206 = vadd.f32 %v2052, %v2205
        %v2207 = vpop.f32.mrf.mxu0
        %v2208 = vadd.f32 %v2057, %v2207
        %v2209 = vpop.f32.mrf.mxu0
        %v2210 = vadd.f32 %v2057, %v2209
        %2211 = vmatprep.mubr.bf16.mxu0 0
        %2212 = vmatmul.mubr.bf16.gmra.mxu0 %v2136
        %v2213 = vpop.f32.mrf.mxu0
        %v2214 = vadd.f32 %v2062, %v2213
        %v2215 = vpop.f32.mrf.mxu0
        %v2216 = vadd.f32 %v2062, %v2215
        %v2217 = vpop.f32.mrf.mxu0
        %v2218 = vadd.f32 %v2067, %v2217
        %v2219 = vpop.f32.mrf.mxu0
        %v2220 = vadd.f32 %v2067, %v2219
        %2221 = vmatprep.mubr.bf16.mxu0 0
        %2222 = vmatmul.mubr.bf16.gmra.mxu0 %v2139
        %v2223 = vpop.f32.mrf.mxu0
        %v2224 = vadd.f32 %v2072, %v2223
        %v2225 = vpop.f32.mrf.mxu0
        %v2226 = vadd.f32 %v2072, %v2225
        %v2227 = vpop.f32.mrf.mxu0
        %v2228 = vadd.f32 %v2077, %v2227
        %v2229 = vpop.f32.mrf.mxu0
        %v2230 = vadd.f32 %v2077, %v2229
        %2231 = vmatprep.mubr.bf16.mxu0 0
        %2232 = vmatmul.mubr.bf16.gmra.mxu0 %v2142
        %v2233 = vpop.f32.mrf.mxu0
        %v2234 = vadd.f32 %v2082, %v2233
        %v2235 = vpop.f32.mrf.mxu0
        %v2236 = vadd.f32 %v2082, %v2235
        %v2237 = vpop.f32.mrf.mxu0
        %v2238 = vadd.f32 %v2087, %v2237
        %v2239 = vpop.f32.mrf.mxu0
        %v2240 = vadd.f32 %v2087, %v2239
        %2241 = vmatprep.mubr.bf16.mxu0 0
        %2242 = vmatmul.mubr.bf16.gmra.mxu0 %v2145
        %v2243 = vpop.f32.mrf.mxu0
        %v2244 = vadd.f32 %v2092, %v2243
        %v2245 = vpop.f32.mrf.mxu0
        %v2246 = vadd.f32 %v2092, %v2245
        %v2247 = vpop.f32.mrf.mxu0
        %v2248 = vadd.f32 %v2097, %v2247
        %v2249 = vpop.f32.mrf.mxu0
        %v2250 = vadd.f32 %v2097, %v2249
        %2251 = vdwg.mxu0
        %2252 = vmatprep.subr.bf16.mxu0 0
        %2253 = vmatpush1.bf16.msra.mxu0 0
        %2254 = vmatprep.subr.bf16.mxu0 0
        %2255 = vmatpush1.bf16.msra.mxu0 0
        %2256 = vmatprep.subr.bf16.mxu0 0
        %2257 = vmatpush1.bf16.msra.mxu0 0
        %2258 = vmatprep.subr.bf16.mxu0 0
        %2259 = vmatpush1.bf16.msra.mxu0 0
        %2260 = vmatprep.subr.bf16.mxu0 0
        %2261 = vmatpush1.bf16.msra.mxu0 0
        %2262 = vmatprep.subr.bf16.mxu0 %v2157
        %2263 = vmatpush1.bf16.msra.mxu0 %v2154
        %2264 = vmatprep.subr.bf16.mxu0 %v2021
        %2265 = vmatpush1.bf16.msra.mxu0 %v2020
        %2266 = vmatprep.subr.bf16.mxu0 %v2017
        %2267 = vmatpush1.bf16.msra.mxu0 %v2016
        %2268 = vmatprep.subr.bf16.mxu0 0
        %2269 = vmatpush2.bf16.msra.mxu0 0
        %2270 = vmatprep.subr.bf16.mxu0 0
        %2271 = vmatpush2.bf16.msra.mxu0 0
        %2272 = vmatprep.subr.bf16.mxu0 0
        %2273 = vmatpush2.bf16.msra.mxu0 0
        %2274 = vmatprep.subr.bf16.mxu0 0
        %2275 = vmatpush2.bf16.msra.mxu0 0
        %2276 = vmatprep.subr.bf16.mxu0 0
        %2277 = vmatpush2.bf16.msra.mxu0 0
        %2278 = vmatprep.subr.bf16.mxu0 0
        %2279 = vmatpush2.bf16.msra.mxu0 0
        %2280 = vmatprep.subr.bf16.mxu0 0
        %2281 = vmatpush2.bf16.msra.mxu0 0
        %2282 = vmatprep.subr.bf16.mxu0 0
        %2283 = vmatpush2.bf16.msra.mxu0 0
        %2284 = vmatprep.mubr.bf16.mxu0 0
        %2285 = vmatmul.mubr.bf16.gmra.mxu0 %v2130
        %v2286 = vpop.f32.mrf.mxu0
        %v2287 = vadd.f32 %v2042, %v2286
        %v2288 = vpop.f32.mrf.mxu0
        %v2289 = vadd.f32 %v2042, %v2288
        %v2290 = vpop.f32.mrf.mxu0
        %v2291 = vadd.f32 %v2047, %v2290
        %v2292 = vpop.f32.mrf.mxu0
        %v2293 = vadd.f32 %v2047, %v2292
        %2294 = vmatprep.mubr.bf16.mxu0 0
        %2295 = vmatmul.mubr.bf16.gmra.mxu0 %v2133
        %v2296 = vpop.f32.mrf.mxu0
        %v2297 = vadd.f32 %v2052, %v2296
        %v2298 = vpop.f32.mrf.mxu0
        %v2299 = vadd.f32 %v2052, %v2298
        %v2300 = vpop.f32.mrf.mxu0
        %v2301 = vadd.f32 %v2057, %v2300
        %v2302 = vpop.f32.mrf.mxu0
        %v2303 = vadd.f32 %v2057, %v2302
        %2304 = vmatprep.mubr.bf16.mxu0 0
        %2305 = vmatmul.mubr.bf16.gmra.mxu0 %v2136
        %v2306 = vpop.f32.mrf.mxu0
        %v2307 = vadd.f32 %v2062, %v2306
        %v2308 = vpop.f32.mrf.mxu0
        %v2309 = vadd.f32 %v2062, %v2308
        %v2310 = vpop.f32.mrf.mxu0
        %v2311 = vadd.f32 %v2067, %v2310
        %v2312 = vpop.f32.mrf.mxu0
        %v2313 = vadd.f32 %v2067, %v2312
        %2314 = vmatprep.mubr.bf16.mxu0 0
        %2315 = vmatmul.mubr.bf16.gmra.mxu0 %v2139
        %v2316 = vpop.f32.mrf.mxu0
        %v2317 = vadd.f32 %v2072, %v2316
        %v2318 = vpop.f32.mrf.mxu0
        %v2319 = vadd.f32 %v2072, %v2318
        %v2320 = vpop.f32.mrf.mxu0
        %v2321 = vadd.f32 %v2077, %v2320
        %v2322 = vpop.f32.mrf.mxu0
        %v2323 = vadd.f32 %v2077, %v2322
        %2324 = vmatprep.mubr.bf16.mxu0 0
        %2325 = vmatmul.mubr.bf16.gmra.mxu0 %v2142
        %v2326 = vpop.f32.mrf.mxu0
        %v2327 = vadd.f32 %v2082, %v2326
        %v2328 = vpop.f32.mrf.mxu0
        %v2329 = vadd.f32 %v2082, %v2328
        %v2330 = vpop.f32.mrf.mxu0
        %v2331 = vadd.f32 %v2087, %v2330
        %v2332 = vpop.f32.mrf.mxu0
        %v2333 = vadd.f32 %v2087, %v2332
        %2334 = vmatprep.mubr.bf16.mxu0 0
        %2335 = vmatmul.mubr.bf16.gmra.mxu0 %v2145
        %v2336 = vpop.f32.mrf.mxu0
        %v2337 = vadd.f32 %v2092, %v2336
        %v2338 = vpop.f32.mrf.mxu0
        %v2339 = vadd.f32 %v2092, %v2338
        %v2340 = vpop.f32.mrf.mxu0
        %v2341 = vadd.f32 %v2097, %v2340
        %v2342 = vpop.f32.mrf.mxu0
        %v2343 = vadd.f32 %v2097, %v2342
        %2344 = vdwg.mxu0
        %v2345 = vmul.f32 %v2194, 0.5
        %v2346 = vmul.f32 %v2196, 0.5
        %v2347 = vmul.f32 %v2287, 0.5
        %v2348 = vmul.f32 %v2289, 0.5
        %v2349 = vmul.f32 %v2198, 0.5
        %v2350 = vmul.f32 %v2200, 0.5
        %v2351 = vmul.f32 %v2291, 0.5
        %v2352 = vmul.f32 %v2293, 0.5
        %v2353 = vmul.f32 %v2204, 0.5
        %v2354 = vmul.f32 %v2206, 0.5
        %v2355 = vmul.f32 %v2297, 0.5
        %v2356 = vmul.f32 %v2299, 0.5
        %v2357 = vmul.f32 %v2208, 0.5
        %v2358 = vmul.f32 %v2210, 0.5
        %v2359 = vmul.f32 %v2301, 0.5
        %v2360 = vmul.f32 %v2303, 0.5
        %v2361 = vmul.f32 %v2214, 0.5
        %v2362 = vmul.f32 %v2216, 0.5
        %v2363 = vmul.f32 %v2307, 0.5
        %v2364 = vmul.f32 %v2309, 0.5
        %v2365 = vmul.f32 %v2218, 0.5
        %v2366 = vmul.f32 %v2220, 0.5
        %v2367 = vmul.f32 %v2311, 0.5
        %v2368 = vmul.f32 %v2313, 0.5
        %v2369 = vmul.f32 %v2224, 0.5
        %v2370 = vmul.f32 %v2226, 0.5
        %v2371 = vmul.f32 %v2317, 0.5
        %v2372 = vmul.f32 %v2319, 0.5
        %v2373 = vmul.f32 %v2228, 0.5
        %v2374 = vmul.f32 %v2230, 0.5
        %v2375 = vmul.f32 %v2321, 0.5
        %v2376 = vmul.f32 %v2323, 0.5
        %v2377 = vmul.f32 %v2234, 0.5
        %v2378 = vmul.f32 %v2236, 0.5
        %v2379 = vmul.f32 %v2327, 0.5
        %v2380 = vmul.f32 %v2329, 0.5
        %v2381 = vmul.f32 %v2238, 0.5
        %v2382 = vmul.f32 %v2240, 0.5
        %v2383 = vmul.f32 %v2331, 0.5
        %v2384 = vmul.f32 %v2333, 0.5
        %v2385 = vmul.f32 %v2244, 0.5
        %v2386 = vmul.f32 %v2246, 0.5
        %v2387 = vmul.f32 %v2337, 0.5
        %v2388 = vmul.f32 %v2339, 0.5
        %v2389 = vmul.f32 %v2248, 0.5
        %v2390 = vmul.f32 %v2250, 0.5
        %v2391 = vmul.f32 %v2341, 0.5
        %v2392 = vmul.f32 %v2343, 0.5
        %v2393 = vmul.f32 %v2194, 0.70710677
        %v2394 = vmul.f32 %v2196, 0.70710677
        %v2395 = vmul.f32 %v2287, 0.70710677
        %v2396 = vmul.f32 %v2289, 0.70710677
        %v2397 = vmul.f32 %v2198, 0.70710677
        %v2398 = vmul.f32 %v2200, 0.70710677
        %v2399 = vmul.f32 %v2291, 0.70710677
        %v2400 = vmul.f32 %v2293, 0.70710677
        %v2401 = vmul.f32 %v2204, 0.70710677
        %v2402 = vmul.f32 %v2206, 0.70710677
        %v2403 = vmul.f32 %v2297, 0.70710677
        %v2404 = vmul.f32 %v2299, 0.70710677
        %v2405 = vmul.f32 %v2208, 0.70710677
        %v2406 = vmul.f32 %v2210, 0.70710677
        %v2407 = vmul.f32 %v2301, 0.70710677
        %v2408 = vmul.f32 %v2303, 0.70710677
        %v2409 = vmul.f32 %v2214, 0.70710677
        %v2410 = vmul.f32 %v2216, 0.70710677
        %v2411 = vmul.f32 %v2307, 0.70710677
        %v2412 = vmul.f32 %v2309, 0.70710677
        %v2413 = vmul.f32 %v2218, 0.70710677
        %v2414 = vmul.f32 %v2220, 0.70710677
        %v2415 = vmul.f32 %v2311, 0.70710677
        %v2416 = vmul.f32 %v2313, 0.70710677
        %v2417 = vmul.f32 %v2224, 0.70710677
        %v2418 = vmul.f32 %v2226, 0.70710677
        %v2419 = vmul.f32 %v2317, 0.70710677
        %v2420 = vmul.f32 %v2319, 0.70710677
        %v2421 = vmul.f32 %v2228, 0.70710677
        %v2422 = vmul.f32 %v2230, 0.70710677
        %v2423 = vmul.f32 %v2321, 0.70710677
        %v2424 = vmul.f32 %v2323, 0.70710677
        %v2425 = vmul.f32 %v2234, 0.70710677
        %v2426 = vmul.f32 %v2236, 0.70710677
        %v2427 = vmul.f32 %v2327, 0.70710677
        %v2428 = vmul.f32 %v2329, 0.70710677
        %v2429 = vmul.f32 %v2238, 0.70710677
        %v2430 = vmul.f32 %v2240, 0.70710677
        %v2431 = vmul.f32 %v2331, 0.70710677
        %v2432 = vmul.f32 %v2333, 0.70710677
        %v2433 = vmul.f32 %v2244, 0.70710677
        %v2434 = vmul.f32 %v2246, 0.70710677
        %v2435 = vmul.f32 %v2337, 0.70710677
        %v2436 = vmul.f32 %v2339, 0.70710677
        %v2437 = vmul.f32 %v2248, 0.70710677
        %v2438 = vmul.f32 %v2250, 0.70710677
        %v2439 = vmul.f32 %v2341, 0.70710677
        %v2440 = vmul.f32 %v2343, 0.70710677
        %v2441 = verf.f32.pop %v2393
        %v2442 = verf.f32.pop %v2394
        %v2443 = verf.f32.pop %v2395
        %v2444 = verf.f32.pop %v2396
        %v2445 = verf.f32.pop %v2397
        %v2446 = verf.f32.pop %v2398
        %v2447 = verf.f32.pop %v2399
        %v2448 = verf.f32.pop %v2400
        %v2449 = verf.f32.pop %v2401
        %v2450 = verf.f32.pop %v2402
        %v2451 = verf.f32.pop %v2403
        %v2452 = verf.f32.pop %v2404
        %v2453 = verf.f32.pop %v2405
        %v2454 = verf.f32.pop %v2406
        %v2455 = verf.f32.pop %v2407
        %v2456 = verf.f32.pop %v2408
        %v2457 = verf.f32.pop %v2409
        %v2458 = verf.f32.pop %v2410
        %v2459 = verf.f32.pop %v2411
        %v2460 = verf.f32.pop %v2412
        %v2461 = verf.f32.pop %v2413
        %v2462 = verf.f32.pop %v2414
        %v2463 = verf.f32.pop %v2415
        %v2464 = verf.f32.pop %v2416
        %v2465 = verf.f32.pop %v2417
        %v2466 = verf.f32.pop %v2418
        %v2467 = verf.f32.pop %v2419
        %v2468 = verf.f32.pop %v2420
        %v2469 = verf.f32.pop %v2421
        %v2470 = verf.f32.pop %v2422
        %v2471 = verf.f32.pop %v2423
        %v2472 = verf.f32.pop %v2424
        %v2473 = verf.f32.pop %v2425
        %v2474 = verf.f32.pop %v2426
        %v2475 = verf.f32.pop %v2427
        %v2476 = verf.f32.pop %v2428
        %v2477 = verf.f32.pop %v2429
        %v2478 = verf.f32.pop %v2430
        %v2479 = verf.f32.pop %v2431
        %v2480 = verf.f32.pop %v2432
        %v2481 = verf.f32.pop %v2433
        %v2482 = verf.f32.pop %v2434
        %v2483 = verf.f32.pop %v2435
        %v2484 = verf.f32.pop %v2436
        %v2485 = verf.f32.pop %v2437
        %v2486 = verf.f32.pop %v2438
        %v2487 = verf.f32.pop %v2439
        %v2488 = verf.f32.pop %v2440
        %v2489 = vadd.f32 %v2441, 1.0
        %v2490 = vadd.f32 %v2442, 1.0
        %v2491 = vadd.f32 %v2443, 1.0
        %v2492 = vadd.f32 %v2444, 1.0
        %v2493 = vadd.f32 %v2445, 1.0
        %v2494 = vadd.f32 %v2446, 1.0
        %v2495 = vadd.f32 %v2447, 1.0
        %v2496 = vadd.f32 %v2448, 1.0
        %v2497 = vadd.f32 %v2449, 1.0
        %v2498 = vadd.f32 %v2450, 1.0
        %v2499 = vadd.f32 %v2451, 1.0
        %v2500 = vadd.f32 %v2452, 1.0
        %v2501 = vadd.f32 %v2453, 1.0
        %v2502 = vadd.f32 %v2454, 1.0
        %v2503 = vadd.f32 %v2455, 1.0
        %v2504 = vadd.f32 %v2456, 1.0
        %v2505 = vadd.f32 %v2457, 1.0
        %v2506 = vadd.f32 %v2458, 1.0
        %v2507 = vadd.f32 %v2459, 1.0
        %v2508 = vadd.f32 %v2460, 1.0
        %v2509 = vadd.f32 %v2461, 1.0
        %v2510 = vadd.f32 %v2462, 1.0
        %v2511 = vadd.f32 %v2463, 1.0
        %v2512 = vadd.f32 %v2464, 1.0
        %v2513 = vadd.f32 %v2465, 1.0
        %v2514 = vadd.f32 %v2466, 1.0
        %v2515 = vadd.f32 %v2467, 1.0
        %v2516 = vadd.f32 %v2468, 1.0
        %v2517 = vadd.f32 %v2469, 1.0
        %v2518 = vadd.f32 %v2470, 1.0
        %v2519 = vadd.f32 %v2471, 1.0
        %v2520 = vadd.f32 %v2472, 1.0
        %v2521 = vadd.f32 %v2473, 1.0
        %v2522 = vadd.f32 %v2474, 1.0
        %v2523 = vadd.f32 %v2475, 1.0
        %v2524 = vadd.f32 %v2476, 1.0
        %v2525 = vadd.f32 %v2477, 1.0
        %v2526 = vadd.f32 %v2478, 1.0
        %v2527 = vadd.f32 %v2479, 1.0
        %v2528 = vadd.f32 %v2480, 1.0
        %v2529 = vadd.f32 %v2481, 1.0
        %v2530 = vadd.f32 %v2482, 1.0
        %v2531 = vadd.f32 %v2483, 1.0
        %v2532 = vadd.f32 %v2484, 1.0
        %v2533 = vadd.f32 %v2485, 1.0
        %v2534 = vadd.f32 %v2486, 1.0
        %v2535 = vadd.f32 %v2487, 1.0
        %v2536 = vadd.f32 %v2488, 1.0
        %v2537 = vmul.f32 %v2345, %v2489
        %v2538 = vmul.f32 %v2346, %v2490
        %v2539 = vmul.f32 %v2347, %v2491
        %v2540 = vmul.f32 %v2348, %v2492
        %v2541 = vmul.f32 %v2349, %v2493
        %v2542 = vmul.f32 %v2350, %v2494
        %v2543 = vmul.f32 %v2351, %v2495
        %v2544 = vmul.f32 %v2352, %v2496
        %v2545 = vmul.f32 %v2353, %v2497
        %v2546 = vmul.f32 %v2354, %v2498
        %v2547 = vmul.f32 %v2355, %v2499
        %v2548 = vmul.f32 %v2356, %v2500
        %v2549 = vmul.f32 %v2357, %v2501
        %v2550 = vmul.f32 %v2358, %v2502
        %v2551 = vmul.f32 %v2359, %v2503
        %v2552 = vmul.f32 %v2360, %v2504
        %v2553 = vmul.f32 %v2361, %v2505
        %v2554 = vmul.f32 %v2362, %v2506
        %v2555 = vmul.f32 %v2363, %v2507
        %v2556 = vmul.f32 %v2364, %v2508
        %v2557 = vmul.f32 %v2365, %v2509
        %v2558 = vmul.f32 %v2366, %v2510
        %v2559 = vmul.f32 %v2367, %v2511
        %v2560 = vmul.f32 %v2368, %v2512
        %v2561 = vmul.f32 %v2369, %v2513
        %v2562 = vmul.f32 %v2370, %v2514
        %v2563 = vmul.f32 %v2371, %v2515
        %v2564 = vmul.f32 %v2372, %v2516
        %v2565 = vmul.f32 %v2373, %v2517
        %v2566 = vmul.f32 %v2374, %v2518
        %v2567 = vmul.f32 %v2375, %v2519
        %v2568 = vmul.f32 %v2376, %v2520
        %v2569 = vmul.f32 %v2377, %v2521
        %v2570 = vmul.f32 %v2378, %v2522
        %v2571 = vmul.f32 %v2379, %v2523
        %v2572 = vmul.f32 %v2380, %v2524
        %v2573 = vmul.f32 %v2381, %v2525
        %v2574 = vmul.f32 %v2382, %v2526
        %v2575 = vmul.f32 %v2383, %v2527
        %v2576 = vmul.f32 %v2384, %v2528
        %v2577 = vmul.f32 %v2385, %v2529
        %v2578 = vmul.f32 %v2386, %v2530
        %v2579 = vmul.f32 %v2387, %v2531
        %v2580 = vmul.f32 %v2388, %v2532
        %v2581 = vmul.f32 %v2389, %v2533
        %v2582 = vmul.f32 %v2390, %v2534
        %v2583 = vmul.f32 %v2391, %v2535
        %v2584 = vmul.f32 %v2392, %v2536
        %v2585 = vadd.f32 %v1496, %v2537
        %v2586 = vadd.f32 %v1497, %v2538
        %v2587 = vadd.f32 %v1498, %v2539
        %v2588 = vadd.f32 %v1499, %v2540
        %v2589 = vadd.f32 %v1500, %v2541
        %v2590 = vadd.f32 %v1501, %v2542
        %v2591 = vadd.f32 %v1502, %v2543
        %v2592 = vadd.f32 %v1503, %v2544
        %v2593 = vadd.f32 %v1504, %v2545
        %v2594 = vadd.f32 %v1505, %v2546
        %v2595 = vadd.f32 %v1506, %v2547
        %v2596 = vadd.f32 %v1507, %v2548
        %v2597 = vadd.f32 %v1508, %v2549
        %v2598 = vadd.f32 %v1509, %v2550
        %v2599 = vadd.f32 %v1510, %v2551
        %v2600 = vadd.f32 %v1511, %v2552
        %v2601 = vadd.f32 %v1512, %v2553
        %v2602 = vadd.f32 %v1513, %v2554
        %v2603 = vadd.f32 %v1514, %v2555
        %v2604 = vadd.f32 %v1515, %v2556
        %v2605 = vadd.f32 %v1516, %v2557
        %v2606 = vadd.f32 %v1517, %v2558
        %v2607 = vadd.f32 %v1518, %v2559
        %v2608 = vadd.f32 %v1519, %v2560
        %v2609 = vadd.f32 %v1520, %v2561
        %v2610 = vadd.f32 %v1521, %v2562
        %v2611 = vadd.f32 %v1522, %v2563
        %v2612 = vadd.f32 %v1523, %v2564
        %v2613 = vadd.f32 %v1524, %v2565
        %v2614 = vadd.f32 %v1525, %v2566
        %v2615 = vadd.f32 %v1526, %v2567
        %v2616 = vadd.f32 %v1527, %v2568
        %v2617 = vadd.f32 %v2569, %v1544
        %v2618 = vadd.f32 %v2570, %v1545
        %v2619 = vadd.f32 %v2571, %v1546
        %v2620 = vadd.f32 %v2572, %v1547
        %v2621 = vadd.f32 %v2573, %v1548
        %v2622 = vadd.f32 %v2574, %v1549
        %v2623 = vadd.f32 %v2575, %v1550
        %v2624 = vadd.f32 %v2576, %v1551
        %v2625 = vadd.f32 %v2577, %v1552
        %v2626 = vadd.f32 %v2578, %v1553
        %v2627 = vadd.f32 %v2579, %v1554
        %v2628 = vadd.f32 %v2580, %v1555
        %v2629 = vadd.f32 %v2581, %v1556
        %v2630 = vadd.f32 %v2582, %v1557
        %v2631 = vadd.f32 %v2583, %v1558
        %v2632 = vadd.f32 %v2584, %v1559
        %2633 = vrot.lane.b32.xlu0 %v2617, 9
        %v2634 = vpop.permute.xlu0 %2633
        %2635 = vrot.lane.b32.xlu0 %v2621, 9
        %v2636 = vpop.permute.xlu0 %2635
        %2637 = vrot.lane.b32.xlu0 %v2625, 9
        %v2638 = vpop.permute.xlu0 %2637
        %2639 = vrot.lane.b32.xlu0 %v2629, 9
        %v2640 = vpop.permute.xlu0 %2639
        %2641 = vrot.lane.b32.xlu0 %v2618, 9
        %v2642 = vpop.permute.xlu0 %2641
        %2643 = vrot.lane.b32.xlu0 %v2622, 9
        %v2644 = vpop.permute.xlu0 %2643
        %2645 = vrot.lane.b32.xlu0 %v2626, 9
        %v2646 = vpop.permute.xlu0 %2645
        %2647 = vrot.lane.b32.xlu0 %v2630, 9
        %v2648 = vpop.permute.xlu0 %2647
        %2649 = vrot.lane.b32.xlu0 %v2619, 9
        %v2650 = vpop.permute.xlu0 %2649
        %2651 = vrot.lane.b32.xlu0 %v2623, 9
        %v2652 = vpop.permute.xlu0 %2651
        %2653 = vrot.lane.b32.xlu0 %v2627, 9
        %v2654 = vpop.permute.xlu0 %2653
        %2655 = vrot.lane.b32.xlu0 %v2631, 9
        %v2656 = vpop.permute.xlu0 %2655
        %2657 = vrot.lane.b32.xlu0 %v2620, 9
        %v2658 = vpop.permute.xlu0 %2657
        %2659 = vrot.lane.b32.xlu0 %v2624, 9
        %v2660 = vpop.permute.xlu0 %2659
        %2661 = vrot.lane.b32.xlu0 %v2628, 9
        %v2662 = vpop.permute.xlu0 %2661
        %2663 = vrot.lane.b32.xlu0 %v2632, 9
        %v2664 = vpop.permute.xlu0 %2663
        %vm2665 = vcmp.lt.s32.totalorder %v436, 9
        %v2666 = vsel %vm2665, %v2650, %v2658
        %v2667 = vsel %vm2665, %v2652, %v2660
        %v2668 = vsel %vm2665, %v2654, %v2662
        %v2669 = vsel %vm2665, %v2656, %v2664
        %v2670 = vsel %vm2665, %v2642, %v2650
        %v2671 = vsel %vm2665, %v2644, %v2652
        %v2672 = vsel %vm2665, %v2646, %v2654
        %v2673 = vsel %vm2665, %v2648, %v2656
        %v2674 = vsel %vm2665, %v2634, %v2642
        %v2675 = vsel %vm2665, %v2636, %v2644
        %v2676 = vsel %vm2665, %v2638, %v2646
        %v2677 = vsel %vm2665, %v2640, %v2648
        %v2678 = vsel %vm2665, %v2658, %v2634
        %v2679 = vsel %vm2665, %v2660, %v2636
        %v2680 = vsel %vm2665, %v2662, %v2638
        %v2681 = vsel %vm2665, %v2664, %v2640
        %v2682 = vsel %vm496, 1, 0
        %v2683 = vsel %vm497, 1, 0
        %v2684 = vsel %vm498, 1, 0
        %v2685 = vsel %vm499, 1, 0
        %vm2686 = vcmp.eq.s32.totalorder %v2682, 1
        %vm2687 = vcmp.eq.s32.totalorder %v2683, 1
        %vm2688 = vcmp.eq.s32.totalorder %v2684, 1
        %vm2689 = vcmp.eq.s32.totalorder %v2685, 1
        %v2690 = vsel %vm2686, %v2678, 0.0
        %v2691 = vsel %vm2687, %v2674, 0.0
        %v2692 = vsel %vm2688, %v2670, 0.0
        %v2693 = vsel %vm2689, %v2666, 0.0
        %v2694 = vsel %vm2686, %v2679, 0.0
        %v2695 = vsel %vm2687, %v2675, 0.0
        %v2696 = vsel %vm2688, %v2671, 0.0
        %v2697 = vsel %vm2689, %v2667, 0.0
        %v2698 = vsel %vm2686, %v2680, 0.0
        %v2699 = vsel %vm2687, %v2676, 0.0
        %v2700 = vsel %vm2688, %v2672, 0.0
        %v2701 = vsel %vm2689, %v2668, 0.0
        %v2702 = vsel %vm2686, %v2681, 0.0
        %v2703 = vsel %vm2687, %v2677, 0.0
        %v2704 = vsel %vm2688, %v2673, 0.0
        %v2705 = vsel %vm2689, %v2669, 0.0
        %2706 = vrot.lane.b32.xlu0 %v2617, 119
        %v2707 = vpop.permute.xlu0 %2706
        %2708 = vrot.lane.b32.xlu0 %v2621, 119
        %v2709 = vpop.permute.xlu0 %2708
        %2710 = vrot.lane.b32.xlu0 %v2625, 119
        %v2711 = vpop.permute.xlu0 %2710
        %2712 = vrot.lane.b32.xlu0 %v2629, 119
        %v2713 = vpop.permute.xlu0 %2712
        %2714 = vrot.lane.b32.xlu0 %v2618, 119
        %v2715 = vpop.permute.xlu0 %2714
        %2716 = vrot.lane.b32.xlu0 %v2622, 119
        %v2717 = vpop.permute.xlu0 %2716
        %2718 = vrot.lane.b32.xlu0 %v2626, 119
        %v2719 = vpop.permute.xlu0 %2718
        %2720 = vrot.lane.b32.xlu0 %v2630, 119
        %v2721 = vpop.permute.xlu0 %2720
        %2722 = vrot.lane.b32.xlu0 %v2619, 119
        %v2723 = vpop.permute.xlu0 %2722
        %2724 = vrot.lane.b32.xlu0 %v2623, 119
        %v2725 = vpop.permute.xlu0 %2724
        %2726 = vrot.lane.b32.xlu0 %v2627, 119
        %v2727 = vpop.permute.xlu0 %2726
        %2728 = vrot.lane.b32.xlu0 %v2631, 119
        %v2729 = vpop.permute.xlu0 %2728
        %2730 = vrot.lane.b32.xlu0 %v2620, 119
        %v2731 = vpop.permute.xlu0 %2730
        %2732 = vrot.lane.b32.xlu0 %v2624, 119
        %v2733 = vpop.permute.xlu0 %2732
        %2734 = vrot.lane.b32.xlu0 %v2628, 119
        %v2735 = vpop.permute.xlu0 %2734
        %2736 = vrot.lane.b32.xlu0 %v2632, 119
        %v2737 = vpop.permute.xlu0 %2736
        %vm2738 = vcmp.lt.s32.totalorder %v436, 119
        %v2739 = vsel %vm2738, %v2723, %v2731
        %v2740 = vsel %vm2738, %v2725, %v2733
        %v2741 = vsel %vm2738, %v2727, %v2735
        %v2742 = vsel %vm2738, %v2729, %v2737
        %v2743 = vsel %vm2738, %v2715, %v2723
        %v2744 = vsel %vm2738, %v2717, %v2725
        %v2745 = vsel %vm2738, %v2719, %v2727
        %v2746 = vsel %vm2738, %v2721, %v2729
        %v2747 = vsel %vm2738, %v2707, %v2715
        %v2748 = vsel %vm2738, %v2709, %v2717
        %v2749 = vsel %vm2738, %v2711, %v2719
        %v2750 = vsel %vm2738, %v2713, %v2721
        %v2751 = vsel %vm2738, %v2731, %v2707
        %v2752 = vsel %vm2738, %v2733, %v2709
        %v2753 = vsel %vm2738, %v2735, %v2711
        %v2754 = vsel %vm2738, %v2737, %v2713
        %v2755 = vsel %vm512, 1, 0
        %v2756 = vsel %vm513, 1, 0
        %v2757 = vsel %vm514, 1, 0
        %v2758 = vsel %vm515, 1, 0
        %vm2759 = vcmp.eq.s32.totalorder %v2755, 1
        %vm2760 = vcmp.eq.s32.totalorder %v2756, 1
        %vm2761 = vcmp.eq.s32.totalorder %v2757, 1
        %vm2762 = vcmp.eq.s32.totalorder %v2758, 1
        %v2763 = vsel %vm2759, %v2747, 0.0
        %v2764 = vsel %vm2760, %v2743, 0.0
        %v2765 = vsel %vm2761, %v2739, 0.0
        %v2766 = vsel %vm2762, %v2751, 0.0
        %v2767 = vsel %vm2759, %v2748, 0.0
        %v2768 = vsel %vm2760, %v2744, 0.0
        %v2769 = vsel %vm2761, %v2740, 0.0
        %v2770 = vsel %vm2762, %v2752, 0.0
        %v2771 = vsel %vm2759, %v2749, 0.0
        %v2772 = vsel %vm2760, %v2745, 0.0
        %v2773 = vsel %vm2761, %v2741, 0.0
        %v2774 = vsel %vm2762, %v2753, 0.0
        %v2775 = vsel %vm2759, %v2750, 0.0
        %v2776 = vsel %vm2760, %v2746, 0.0
        %v2777 = vsel %vm2761, %v2742, 0.0
        %v2778 = vsel %vm2762, %v2754, 0.0
        %v2779 = vpack.c.bf16 %v2694, %v2690
        %v2780 = vpack.c.bf16 %v2695, %v2691
        %v2781 = vpack.c.bf16 %v2696, %v2692
        %v2782 = vpack.c.bf16 %v2697, %v2693
        %v2783 = vpack.c.bf16 %v2702, %v2698
        %v2784 = vpack.c.bf16 %v2703, %v2699
        %v2785 = vpack.c.bf16 %v2704, %v2700
        %v2786 = vpack.c.bf16 %v2705, %v2701
        %v2787 = vpack.c.bf16 %v2621, %v2617
        %v2788 = vpack.c.bf16 %v2622, %v2618
        %v2789 = vpack.c.bf16 %v2623, %v2619
        %v2790 = vpack.c.bf16 %v2624, %v2620
        %v2791 = vpack.c.bf16 %v2629, %v2625
        %v2792 = vpack.c.bf16 %v2630, %v2626
        %v2793 = vpack.c.bf16 %v2631, %v2627
        %v2794 = vpack.c.bf16 %v2632, %v2628
        %v2795 = vpack.c.bf16 %v2767, %v2763
        %v2796 = vpack.c.bf16 %v2768, %v2764
        %v2797 = vpack.c.bf16 %v2769, %v2765
        %v2798 = vpack.c.bf16 %v2770, %v2766
        %v2799 = vpack.c.bf16 %v2775, %v2771
        %v2800 = vpack.c.bf16 %v2776, %v2772
        %v2801 = vpack.c.bf16 %v2777, %v2773
        %v2802 = vpack.c.bf16 %v2778, %v2774
        %s2803 = scalar_lea.vmem [#allocation3], 40
        %v2804 = vld [vmem:[%s2803] sm:$0xf]
        %v2805 = vld [vmem:[%s2803 + $0x4] sm:$0xf]
        %v2806 = vld [vmem:[%s2803 + $0x8] sm:$0xf]
        %v2807 = vld [vmem:[%s2803 + $0xc] sm:$0xf]
        %v2808 = vld [vmem:[%s2803 + $0x10] sm:$0xf]
        %s2809 = scalar_lea.vmem %s3, 320
        %v2810 = vld [vmem:[%s2809] sm:$0xff]
        %v2811 = vld [vmem:[%s2809 + $0x8] sm:$0xff]
        %v2812 = vld [vmem:[%s2809 + $0x10] sm:$0xff]
        %v2813 = vld [vmem:[%s2809 + $0x18] sm:$0xff]
        %v2814 = vld [vmem:[%s2809 + $0x20] sm:$0xff]
        %v2815 = vld [vmem:[%s2809 + $0x28] sm:$0xff]
        %v2816 = vld [vmem:[%s2809 + $0x30] sm:$0xff]
        %v2817 = vld [vmem:[%s2809 + $0x38] sm:$0xff]
        %v2818 = vld [vmem:[%s2809 + $0x40] sm:$0xff]
        %v2819 = vld [vmem:[%s2809 + $0x48] sm:$0xff]
        %v2820 = vld [vmem:[%s2809 + $0x50] sm:$0xff]
        %v2821 = vld [vmem:[%s2809 + $0x58] sm:$0xff]
        %v2822 = vld [vmem:[%s2809 + $0x60] sm:$0xff]
        %v2823 = vld [vmem:[%s2809 + $0x68] sm:$0xff]
        %v2824 = vld [vmem:[%s2809 + $0x70] sm:$0xff]
        %v2825 = vld [vmem:[%s2809 + $0x78] sm:$0xff]
        %v2826 = vld [vmem:[%s2809 + $0x80] sm:$0xff]
        %v2827 = vld [vmem:[%s2809 + $0x88] sm:$0xff]
        %v2828 = vld [vmem:[%s2809 + $0x90] sm:$0xff]
        %v2829 = vld [vmem:[%s2809 + $0x98] sm:$0xff]
        %v2835 = vunpack.c.l.b16 %v2804
        %v2836 = vunpack.c.l.b16 %v2805
        %v2837 = vunpack.c.l.b16 %v2806
        %v2838 = vunpack.c.l.b16 %v2807
        %v2839 = vunpack.c.l.b16 %v2808
        %v2840 = vpack.c.b16 %v2836, %v2835
        %v2841 = vpack.c.b16 %v2838, %v2837
        %v2842 = vpack.c.b16 %v2839, %v2839
        %v2844 = vsel %vm728, %v2840, 0
        %v2847 = vsel %vm728, %v2841, 0
        %v2850 = vsel %vm728, %v2842, 0
        %2852 = vmatprep.subr.bf16.mxu0 0
        %2853 = vmatpush1.bf16.msra.mxu0 0
        %2854 = vmatprep.subr.bf16.mxu0 0
        %2855 = vmatpush1.bf16.msra.mxu0 0
        %2856 = vmatprep.subr.bf16.mxu0 %v2800
        %2857 = vmatpush1.bf16.msra.mxu0 %v2799
        %2858 = vmatprep.subr.bf16.mxu0 %v2796
        %2859 = vmatpush1.bf16.msra.mxu0 %v2795
        %2860 = vmatprep.subr.bf16.mxu0 %v2792
        %2861 = vmatpush1.bf16.msra.mxu0 %v2791
        %2862 = vmatprep.subr.bf16.mxu0 %v2788
        %2863 = vmatpush1.bf16.msra.mxu0 %v2787
        %2864 = vmatprep.subr.bf16.mxu0 %v2784
        %2865 = vmatpush1.bf16.msra.mxu0 %v2783
        %2866 = vmatprep.subr.bf16.mxu0 %v2780
        %2867 = vmatpush1.bf16.msra.mxu0 %v2779
        %2868 = vmatprep.subr.bf16.mxu0 0
        %2869 = vmatpush2.bf16.msra.mxu0 0
        %2870 = vmatprep.subr.bf16.mxu0 0
        %2871 = vmatpush2.bf16.msra.mxu0 0
        %2872 = vmatprep.subr.bf16.mxu0 0
        %2873 = vmatpush2.bf16.msra.mxu0 0
        %2874 = vmatprep.subr.bf16.mxu0 0
        %2875 = vmatpush2.bf16.msra.mxu0 0
        %2876 = vmatprep.subr.bf16.mxu0 0
        %2877 = vmatpush2.bf16.msra.mxu0 0
        %2878 = vmatprep.subr.bf16.mxu0 0
        %2879 = vmatpush2.bf16.msra.mxu0 0
        %2880 = vmatprep.subr.bf16.mxu0 0
        %2881 = vmatpush2.bf16.msra.mxu0 0
        %2882 = vmatprep.subr.bf16.mxu0 0
        %2883 = vmatpush2.bf16.msra.mxu0 0
        %2884 = vmatprep.mubr.bf16.mxu0 0
        %2885 = vmatmul.mubr.bf16.gmra.mxu0 %v2844
        %v2886 = vpop.f32.mrf.mxu0
        %v2887 = vadd.f32 %v2810, %v2886
        %v2888 = vpop.f32.mrf.mxu0
        %v2889 = vadd.f32 %v2811, %v2888
        %v2890 = vpop.f32.mrf.mxu0
        %v2891 = vadd.f32 %v2814, %v2890
        %v2892 = vpop.f32.mrf.mxu0
        %v2893 = vadd.f32 %v2815, %v2892
        %2894 = vmatprep.mubr.bf16.mxu0 0
        %2895 = vmatmul.mubr.bf16.gmra.mxu0 %v2847
        %v2896 = vpop.f32.mrf.mxu0
        %v2897 = vadd.f32 %v2818, %v2896
        %v2898 = vpop.f32.mrf.mxu0
        %v2899 = vadd.f32 %v2819, %v2898
        %v2900 = vpop.f32.mrf.mxu0
        %v2901 = vadd.f32 %v2822, %v2900
        %v2902 = vpop.f32.mrf.mxu0
        %v2903 = vadd.f32 %v2823, %v2902
        %2904 = vmatprep.mubr.bf16.mxu0 0
        %2905 = vmatmul.mubr.bf16.gmra.mxu0 %v2850
        %v2906 = vpop.f32.mrf.mxu0
        %v2907 = vadd.f32 %v2826, %v2906
        %v2908 = vpop.f32.mrf.mxu0
        %v2909 = vadd.f32 %v2827, %v2908
        %v2910 = vpop.f32.mrf.mxu0
        %v2911 = vpop.f32.mrf.mxu0
        %2912 = vdwg.mxu0
        %2913 = vmatprep.subr.bf16.mxu0 0
        %2914 = vmatpush1.bf16.msra.mxu0 0
        %2915 = vmatprep.subr.bf16.mxu0 0
        %2916 = vmatpush1.bf16.msra.mxu0 0
        %2917 = vmatprep.subr.bf16.mxu0 %v2802
        %2918 = vmatpush1.bf16.msra.mxu0 %v2801
        %2919 = vmatprep.subr.bf16.mxu0 %v2798
        %2920 = vmatpush1.bf16.msra.mxu0 %v2797
        %2921 = vmatprep.subr.bf16.mxu0 %v2794
        %2922 = vmatpush1.bf16.msra.mxu0 %v2793
        %2923 = vmatprep.subr.bf16.mxu0 %v2790
        %2924 = vmatpush1.bf16.msra.mxu0 %v2789
        %2925 = vmatprep.subr.bf16.mxu0 %v2786
        %2926 = vmatpush1.bf16.msra.mxu0 %v2785
        %2927 = vmatprep.subr.bf16.mxu0 %v2782
        %2928 = vmatpush1.bf16.msra.mxu0 %v2781
        %2929 = vmatprep.subr.bf16.mxu0 0
        %2930 = vmatpush2.bf16.msra.mxu0 0
        %2931 = vmatprep.subr.bf16.mxu0 0
        %2932 = vmatpush2.bf16.msra.mxu0 0
        %2933 = vmatprep.subr.bf16.mxu0 0
        %2934 = vmatpush2.bf16.msra.mxu0 0
        %2935 = vmatprep.subr.bf16.mxu0 0
        %2936 = vmatpush2.bf16.msra.mxu0 0
        %2937 = vmatprep.subr.bf16.mxu0 0
        %2938 = vmatpush2.bf16.msra.mxu0 0
        %2939 = vmatprep.subr.bf16.mxu0 0
        %2940 = vmatpush2.bf16.msra.mxu0 0
        %2941 = vmatprep.subr.bf16.mxu0 0
        %2942 = vmatpush2.bf16.msra.mxu0 0
        %2943 = vmatprep.subr.bf16.mxu0 0
        %2944 = vmatpush2.bf16.msra.mxu0 0
        %2945 = vmatprep.mubr.bf16.mxu0 0
        %2946 = vmatmul.mubr.bf16.gmra.mxu0 %v2844
        %v2947 = vpop.f32.mrf.mxu0
        %v2948 = vadd.f32 %v2812, %v2947
        %v2949 = vpop.f32.mrf.mxu0
        %v2950 = vadd.f32 %v2813, %v2949
        %v2951 = vpop.f32.mrf.mxu0
        %v2952 = vadd.f32 %v2816, %v2951
        %v2953 = vpop.f32.mrf.mxu0
        %v2954 = vadd.f32 %v2817, %v2953
        %2955 = vmatprep.mubr.bf16.mxu0 0
        %2956 = vmatmul.mubr.bf16.gmra.mxu0 %v2847
        %v2957 = vpop.f32.mrf.mxu0
        %v2958 = vadd.f32 %v2820, %v2957
        %v2959 = vpop.f32.mrf.mxu0
        %v2960 = vadd.f32 %v2821, %v2959
        %v2961 = vpop.f32.mrf.mxu0
        %v2962 = vadd.f32 %v2824, %v2961
        %v2963 = vpop.f32.mrf.mxu0
        %v2964 = vadd.f32 %v2825, %v2963
        %2965 = vmatprep.mubr.bf16.mxu0 0
        %2966 = vmatmul.mubr.bf16.gmra.mxu0 %v2850
        %v2967 = vpop.f32.mrf.mxu0
        %v2968 = vadd.f32 %v2828, %v2967
        %v2969 = vpop.f32.mrf.mxu0
        %v2970 = vadd.f32 %v2829, %v2969
        %v2971 = vpop.f32.mrf.mxu0
        %v2972 = vpop.f32.mrf.mxu0
        %2973 = vdwg.mxu0
        %v2974 = vmul.f32 %v2887, 0.5
        %v2975 = vmul.f32 %v2889, 0.5
        %v2976 = vmul.f32 %v2948, 0.5
        %v2977 = vmul.f32 %v2950, 0.5
        %v2978 = vmul.f32 %v2891, 0.5
        %v2979 = vmul.f32 %v2893, 0.5
        %v2980 = vmul.f32 %v2952, 0.5
        %v2981 = vmul.f32 %v2954, 0.5
        %v2982 = vmul.f32 %v2897, 0.5
        %v2983 = vmul.f32 %v2899, 0.5
        %v2984 = vmul.f32 %v2958, 0.5
        %v2985 = vmul.f32 %v2960, 0.5
        %v2986 = vmul.f32 %v2901, 0.5
        %v2987 = vmul.f32 %v2903, 0.5
        %v2988 = vmul.f32 %v2962, 0.5
        %v2989 = vmul.f32 %v2964, 0.5
        %v2990 = vmul.f32 %v2907, 0.5
        %v2991 = vmul.f32 %v2909, 0.5
        %v2992 = vmul.f32 %v2968, 0.5
        %v2993 = vmul.f32 %v2970, 0.5
        %v2994 = vmul.f32 %v2887, 0.70710677
        %v2995 = vmul.f32 %v2889, 0.70710677
        %v2996 = vmul.f32 %v2948, 0.70710677
        %v2997 = vmul.f32 %v2950, 0.70710677
        %v2998 = vmul.f32 %v2891, 0.70710677
        %v2999 = vmul.f32 %v2893, 0.70710677
        %v3000 = vmul.f32 %v2952, 0.70710677
        %v3001 = vmul.f32 %v2954, 0.70710677
        %v3002 = vmul.f32 %v2897, 0.70710677
        %v3003 = vmul.f32 %v2899, 0.70710677
        %v3004 = vmul.f32 %v2958, 0.70710677
        %v3005 = vmul.f32 %v2960, 0.70710677
        %v3006 = vmul.f32 %v2901, 0.70710677
        %v3007 = vmul.f32 %v2903, 0.70710677
        %v3008 = vmul.f32 %v2962, 0.70710677
        %v3009 = vmul.f32 %v2964, 0.70710677
        %v3010 = vmul.f32 %v2907, 0.70710677
        %v3011 = vmul.f32 %v2909, 0.70710677
        %v3012 = vmul.f32 %v2968, 0.70710677
        %v3013 = vmul.f32 %v2970, 0.70710677
        %v3014 = verf.f32.pop %v2994
        %v3015 = verf.f32.pop %v2995
        %v3016 = verf.f32.pop %v2996
        %v3017 = verf.f32.pop %v2997
        %v3018 = verf.f32.pop %v2998
        %v3019 = verf.f32.pop %v2999
        %v3020 = verf.f32.pop %v3000
        %v3021 = verf.f32.pop %v3001
        %v3022 = verf.f32.pop %v3002
        %v3023 = verf.f32.pop %v3003
        %v3024 = verf.f32.pop %v3004
        %v3025 = verf.f32.pop %v3005
        %v3026 = verf.f32.pop %v3006
        %v3027 = verf.f32.pop %v3007
        %v3028 = verf.f32.pop %v3008
        %v3029 = verf.f32.pop %v3009
        %v3030 = verf.f32.pop %v3010
        %v3031 = verf.f32.pop %v3011
        %v3032 = verf.f32.pop %v3012
        %v3033 = verf.f32.pop %v3013
        %v3034 = vadd.f32 %v3014, 1.0
        %v3035 = vadd.f32 %v3015, 1.0
        %v3036 = vadd.f32 %v3016, 1.0
        %v3037 = vadd.f32 %v3017, 1.0
        %v3038 = vadd.f32 %v3018, 1.0
        %v3039 = vadd.f32 %v3019, 1.0
        %v3040 = vadd.f32 %v3020, 1.0
        %v3041 = vadd.f32 %v3021, 1.0
        %v3042 = vadd.f32 %v3022, 1.0
        %v3043 = vadd.f32 %v3023, 1.0
        %v3044 = vadd.f32 %v3024, 1.0
        %v3045 = vadd.f32 %v3025, 1.0
        %v3046 = vadd.f32 %v3026, 1.0
        %v3047 = vadd.f32 %v3027, 1.0
        %v3048 = vadd.f32 %v3028, 1.0
        %v3049 = vadd.f32 %v3029, 1.0
        %v3050 = vadd.f32 %v3030, 1.0
        %v3051 = vadd.f32 %v3031, 1.0
        %v3052 = vadd.f32 %v3032, 1.0
        %v3053 = vadd.f32 %v3033, 1.0
        %v3054 = vmul.f32 %v2974, %v3034
        %v3055 = vmul.f32 %v2975, %v3035
        %v3056 = vmul.f32 %v2976, %v3036
        %v3057 = vmul.f32 %v2977, %v3037
        %v3058 = vmul.f32 %v2978, %v3038
        %v3059 = vmul.f32 %v2979, %v3039
        %v3060 = vmul.f32 %v2980, %v3040
        %v3061 = vmul.f32 %v2981, %v3041
        %v3062 = vmul.f32 %v2982, %v3042
        %v3063 = vmul.f32 %v2983, %v3043
        %v3064 = vmul.f32 %v2984, %v3044
        %v3065 = vmul.f32 %v2985, %v3045
        %v3066 = vmul.f32 %v2986, %v3046
        %v3067 = vmul.f32 %v2987, %v3047
        %v3068 = vmul.f32 %v2988, %v3048
        %v3069 = vmul.f32 %v2989, %v3049
        %v3070 = vmul.f32 %v2990, %v3050
        %v3071 = vmul.f32 %v2991, %v3051
        %v3072 = vmul.f32 %v2992, %v3052
        %v3073 = vmul.f32 %v2993, %v3053
        %s3074 = scalar_lea.vmem %s4, 96
        %v3075 = vld [vmem:[%s3074] sm:$0xf]
        %v3076 = vld [vmem:[%s3074 + $0x4] sm:$0xf]
        %v3077 = vld [vmem:[%s3074 + $0x8] sm:$0xf]
        %v3078 = vld [vmem:[%s3074 + $0xc] sm:$0xf]
        %v3079 = vld [vmem:[%s3074 + $0x10] sm:$0xf]
        %v3080 = vld [vmem:[%s3074 + $0x14] sm:$0xf]
        %v3081 = vld [vmem:[%s3074 + $0x18] sm:$0xf]
        %v3082 = vld [vmem:[%s3074 + $0x1c] sm:$0xf]
        %v3083 = vld [vmem:[%s3074 + $0x20] sm:$0xf]
        %v3084 = vld [vmem:[%s3074 + $0x24] sm:$0xf]
        %v3085 = vld [vmem:[%s3074 + $0x28] sm:$0xf]
        %v3086 = vld [vmem:[%s3074 + $0x2c] sm:$0xf]
        %v3087 = vpack.c.bf16 %v3058, %v3054
        %v3088 = vpack.c.bf16 %v3059, %v3055
        %v3089 = vpack.c.bf16 %v3060, %v3056
        %v3090 = vpack.c.bf16 %v3061, %v3057
        %v3091 = vpack.c.bf16 %v3066, %v3062
        %v3092 = vpack.c.bf16 %v3067, %v3063
        %v3093 = vpack.c.bf16 %v3068, %v3064
        %v3094 = vpack.c.bf16 %v3069, %v3065
        %v3095 = vpack.c.bf16 %v3070, %v3070
        %v3096 = vpack.c.bf16 %v3071, %v3071
        %v3097 = vpack.c.bf16 %v3072, %v3072
        %v3098 = vpack.c.bf16 %v3073, %v3073
        %s3099 = scalar_lea.vmem %s5, 192
        %v3100 = vld [vmem:[%s3099] sm:$0xff]
        %v3101 = vld [vmem:[%s3099 + $0x8] sm:$0xff]
        %v3102 = vld [vmem:[%s3099 + $0x10] sm:$0xff]
        %v3103 = vld [vmem:[%s3099 + $0x18] sm:$0xff]
        %v3104 = vld [vmem:[%s3099 + $0x20] sm:$0xff]
        %v3105 = vld [vmem:[%s3099 + $0x28] sm:$0xff]
        %v3106 = vld [vmem:[%s3099 + $0x30] sm:$0xff]
        %v3107 = vld [vmem:[%s3099 + $0x38] sm:$0xff]
        %v3108 = vld [vmem:[%s3099 + $0x40] sm:$0xff]
        %v3109 = vld [vmem:[%s3099 + $0x48] sm:$0xff]
        %v3110 = vld [vmem:[%s3099 + $0x50] sm:$0xff]
        %v3111 = vld [vmem:[%s3099 + $0x58] sm:$0xff]
        %3113 = vset.pattern.permute.xlu0 0
        %3114 = vperm.xlu0 %3113, %v3100
        %v3115 = vpop.permute.xlu0 %3114
        %3118 = vset.pattern.permute.xlu0 0
        %3119 = vperm.xlu0 %3118, %v3101
        %v3120 = vpop.permute.xlu0 %3119
        %3123 = vset.pattern.permute.xlu0 0
        %3124 = vperm.xlu0 %3123, %v3102
        %v3125 = vpop.permute.xlu0 %3124
        %3128 = vset.pattern.permute.xlu0 0
        %3129 = vperm.xlu0 %3128, %v3103
        %v3130 = vpop.permute.xlu0 %3129
        %3133 = vset.pattern.permute.xlu0 0
        %3134 = vperm.xlu0 %3133, %v3104
        %v3135 = vpop.permute.xlu0 %3134
        %3138 = vset.pattern.permute.xlu0 0
        %3139 = vperm.xlu0 %3138, %v3105
        %v3140 = vpop.permute.xlu0 %3139
        %3143 = vset.pattern.permute.xlu0 0
        %3144 = vperm.xlu0 %3143, %v3106
        %v3145 = vpop.permute.xlu0 %3144
        %3148 = vset.pattern.permute.xlu0 0
        %3149 = vperm.xlu0 %3148, %v3107
        %v3150 = vpop.permute.xlu0 %3149
        %3153 = vset.pattern.permute.xlu0 0
        %3154 = vperm.xlu0 %3153, %v3108
        %v3155 = vpop.permute.xlu0 %3154
        %3158 = vset.pattern.permute.xlu0 0
        %3159 = vperm.xlu0 %3158, %v3109
        %v3160 = vpop.permute.xlu0 %3159
        %3163 = vset.pattern.permute.xlu0 0
        %3164 = vperm.xlu0 %3163, %v3110
        %v3165 = vpop.permute.xlu0 %3164
        %3168 = vset.pattern.permute.xlu0 0
        %3169 = vperm.xlu0 %3168, %v3111
        %v3170 = vpop.permute.xlu0 %3169
        %v3184 = vunpack.c.l.b16 %v3075
        %v3185 = vunpack.c.l.b16 %v3076
        %v3186 = vunpack.c.l.b16 %v3077
        %v3187 = vunpack.c.l.b16 %v3078
        %v3188 = vunpack.c.l.b16 %v3079
        %v3189 = vunpack.c.l.b16 %v3080
        %v3190 = vunpack.c.l.b16 %v3081
        %v3191 = vunpack.c.l.b16 %v3082
        %v3192 = vunpack.c.l.b16 %v3083
        %v3193 = vunpack.c.l.b16 %v3084
        %v3194 = vunpack.c.l.b16 %v3085
        %v3195 = vunpack.c.l.b16 %v3086
        %v3196 = vpack.c.b16 %v3185, %v3184
        %v3197 = vpack.c.b16 %v3187, %v3186
        %v3198 = vpack.c.b16 %v3189, %v3188
        %v3199 = vpack.c.b16 %v3191, %v3190
        %v3200 = vpack.c.b16 %v3193, %v3192
        %v3201 = vpack.c.b16 %v3195, %v3194
        %v3203 = vsel %vm1086, %v3196, 0
        %v3206 = vsel %vm1086, %v3197, 0
        %v3209 = vsel %vm1086, %v3198, 0
        %v3212 = vsel %vm1086, %v3199, 0
        %v3215 = vsel %vm1086, %v3200, 0
        %v3218 = vsel %vm1086, %v3201, 0
        %v3221 = vsel %vm1105, %v3095, 0
        %v3224 = vsel %vm1105, %v3096, 0
        %v3227 = vsel %vm1105, %v3097, 0
        %v3230 = vsel %vm1105, %v3098, 0
        %3232 = vmatprep.subr.bf16.mxu0 0
        %3233 = vmatpush1.bf16.msra.mxu0 0
        %3234 = vmatprep.subr.bf16.mxu0 0
        %3235 = vmatpush1.bf16.msra.mxu0 0
        %3236 = vmatprep.subr.bf16.mxu0 0
        %3237 = vmatpush1.bf16.msra.mxu0 0
        %3238 = vmatprep.subr.bf16.mxu0 0
        %3239 = vmatpush1.bf16.msra.mxu0 0
        %3240 = vmatprep.subr.bf16.mxu0 0
        %3241 = vmatpush1.bf16.msra.mxu0 0
        %3242 = vmatprep.subr.bf16.mxu0 %v3224
        %3243 = vmatpush1.bf16.msra.mxu0 %v3221
        %3244 = vmatprep.subr.bf16.mxu0 %v3092
        %3245 = vmatpush1.bf16.msra.mxu0 %v3091
        %3246 = vmatprep.subr.bf16.mxu0 %v3088
        %3247 = vmatpush1.bf16.msra.mxu0 %v3087
        %3248 = vmatprep.subr.bf16.mxu0 0
        %3249 = vmatpush2.bf16.msra.mxu0 0
        %3250 = vmatprep.subr.bf16.mxu0 0
        %3251 = vmatpush2.bf16.msra.mxu0 0
        %3252 = vmatprep.subr.bf16.mxu0 0
        %3253 = vmatpush2.bf16.msra.mxu0 0
        %3254 = vmatprep.subr.bf16.mxu0 0
        %3255 = vmatpush2.bf16.msra.mxu0 0
        %3256 = vmatprep.subr.bf16.mxu0 0
        %3257 = vmatpush2.bf16.msra.mxu0 0
        %3258 = vmatprep.subr.bf16.mxu0 0
        %3259 = vmatpush2.bf16.msra.mxu0 0
        %3260 = vmatprep.subr.bf16.mxu0 0
        %3261 = vmatpush2.bf16.msra.mxu0 0
        %3262 = vmatprep.subr.bf16.mxu0 0
        %3263 = vmatpush2.bf16.msra.mxu0 0
        %3264 = vmatprep.mubr.bf16.mxu0 0
        %3265 = vmatmul.mubr.bf16.gmra.mxu0 %v3203
        %v3266 = vpop.f32.mrf.mxu0
        %v3267 = vadd.f32 %v3115, %v3266
        %v3268 = vpop.f32.mrf.mxu0
        %v3269 = vadd.f32 %v3115, %v3268
        %v3270 = vpop.f32.mrf.mxu0
        %v3271 = vadd.f32 %v3120, %v3270
        %v3272 = vpop.f32.mrf.mxu0
        %v3273 = vadd.f32 %v3120, %v3272
        %3274 = vmatprep.mubr.bf16.mxu0 0
        %3275 = vmatmul.mubr.bf16.gmra.mxu0 %v3206
        %v3276 = vpop.f32.mrf.mxu0
        %v3277 = vadd.f32 %v3125, %v3276
        %v3278 = vpop.f32.mrf.mxu0
        %v3279 = vadd.f32 %v3125, %v3278
        %v3280 = vpop.f32.mrf.mxu0
        %v3281 = vadd.f32 %v3130, %v3280
        %v3282 = vpop.f32.mrf.mxu0
        %v3283 = vadd.f32 %v3130, %v3282
        %3284 = vmatprep.mubr.bf16.mxu0 0
        %3285 = vmatmul.mubr.bf16.gmra.mxu0 %v3209
        %v3286 = vpop.f32.mrf.mxu0
        %v3287 = vadd.f32 %v3135, %v3286
        %v3288 = vpop.f32.mrf.mxu0
        %v3289 = vadd.f32 %v3135, %v3288
        %v3290 = vpop.f32.mrf.mxu0
        %v3291 = vadd.f32 %v3140, %v3290
        %v3292 = vpop.f32.mrf.mxu0
        %v3293 = vadd.f32 %v3140, %v3292
        %3294 = vmatprep.mubr.bf16.mxu0 0
        %3295 = vmatmul.mubr.bf16.gmra.mxu0 %v3212
        %v3296 = vpop.f32.mrf.mxu0
        %v3297 = vadd.f32 %v3145, %v3296
        %v3298 = vpop.f32.mrf.mxu0
        %v3299 = vadd.f32 %v3145, %v3298
        %v3300 = vpop.f32.mrf.mxu0
        %v3301 = vadd.f32 %v3150, %v3300
        %v3302 = vpop.f32.mrf.mxu0
        %v3303 = vadd.f32 %v3150, %v3302
        %3304 = vmatprep.mubr.bf16.mxu0 0
        %3305 = vmatmul.mubr.bf16.gmra.mxu0 %v3215
        %v3306 = vpop.f32.mrf.mxu0
        %v3307 = vadd.f32 %v3155, %v3306
        %v3308 = vpop.f32.mrf.mxu0
        %v3309 = vadd.f32 %v3155, %v3308
        %v3310 = vpop.f32.mrf.mxu0
        %v3311 = vadd.f32 %v3160, %v3310
        %v3312 = vpop.f32.mrf.mxu0
        %v3313 = vadd.f32 %v3160, %v3312
        %3314 = vmatprep.mubr.bf16.mxu0 0
        %3315 = vmatmul.mubr.bf16.gmra.mxu0 %v3218
        %v3316 = vpop.f32.mrf.mxu0
        %v3317 = vadd.f32 %v3165, %v3316
        %v3318 = vpop.f32.mrf.mxu0
        %v3319 = vadd.f32 %v3165, %v3318
        %v3320 = vpop.f32.mrf.mxu0
        %v3321 = vadd.f32 %v3170, %v3320
        %v3322 = vpop.f32.mrf.mxu0
        %v3323 = vadd.f32 %v3170, %v3322
        %3324 = vdwg.mxu0
        %3325 = vmatprep.subr.bf16.mxu0 0
        %3326 = vmatpush1.bf16.msra.mxu0 0
        %3327 = vmatprep.subr.bf16.mxu0 0
        %3328 = vmatpush1.bf16.msra.mxu0 0
        %3329 = vmatprep.subr.bf16.mxu0 0
        %3330 = vmatpush1.bf16.msra.mxu0 0
        %3331 = vmatprep.subr.bf16.mxu0 0
        %3332 = vmatpush1.bf16.msra.mxu0 0
        %3333 = vmatprep.subr.bf16.mxu0 0
        %3334 = vmatpush1.bf16.msra.mxu0 0
        %3335 = vmatprep.subr.bf16.mxu0 %v3230
        %3336 = vmatpush1.bf16.msra.mxu0 %v3227
        %3337 = vmatprep.subr.bf16.mxu0 %v3094
        %3338 = vmatpush1.bf16.msra.mxu0 %v3093
        %3339 = vmatprep.subr.bf16.mxu0 %v3090
        %3340 = vmatpush1.bf16.msra.mxu0 %v3089
        %3341 = vmatprep.subr.bf16.mxu0 0
        %3342 = vmatpush2.bf16.msra.mxu0 0
        %3343 = vmatprep.subr.bf16.mxu0 0
        %3344 = vmatpush2.bf16.msra.mxu0 0
        %3345 = vmatprep.subr.bf16.mxu0 0
        %3346 = vmatpush2.bf16.msra.mxu0 0
        %3347 = vmatprep.subr.bf16.mxu0 0
        %3348 = vmatpush2.bf16.msra.mxu0 0
        %3349 = vmatprep.subr.bf16.mxu0 0
        %3350 = vmatpush2.bf16.msra.mxu0 0
        %3351 = vmatprep.subr.bf16.mxu0 0
        %3352 = vmatpush2.bf16.msra.mxu0 0
        %3353 = vmatprep.subr.bf16.mxu0 0
        %3354 = vmatpush2.bf16.msra.mxu0 0
        %3355 = vmatprep.subr.bf16.mxu0 0
        %3356 = vmatpush2.bf16.msra.mxu0 0
        %3357 = vmatprep.mubr.bf16.mxu0 0
        %3358 = vmatmul.mubr.bf16.gmra.mxu0 %v3203
        %v3359 = vpop.f32.mrf.mxu0
        %v3360 = vadd.f32 %v3115, %v3359
        %v3361 = vpop.f32.mrf.mxu0
        %v3362 = vadd.f32 %v3115, %v3361
        %v3363 = vpop.f32.mrf.mxu0
        %v3364 = vadd.f32 %v3120, %v3363
        %v3365 = vpop.f32.mrf.mxu0
        %v3366 = vadd.f32 %v3120, %v3365
        %3367 = vmatprep.mubr.bf16.mxu0 0
        %3368 = vmatmul.mubr.bf16.gmra.mxu0 %v3206
        %v3369 = vpop.f32.mrf.mxu0
        %v3370 = vadd.f32 %v3125, %v3369
        %v3371 = vpop.f32.mrf.mxu0
        %v3372 = vadd.f32 %v3125, %v3371
        %v3373 = vpop.f32.mrf.mxu0
        %v3374 = vadd.f32 %v3130, %v3373
        %v3375 = vpop.f32.mrf.mxu0
        %v3376 = vadd.f32 %v3130, %v3375
        %3377 = vmatprep.mubr.bf16.mxu0 0
        %3378 = vmatmul.mubr.bf16.gmra.mxu0 %v3209
        %v3379 = vpop.f32.mrf.mxu0
        %v3380 = vadd.f32 %v3135, %v3379
        %v3381 = vpop.f32.mrf.mxu0
        %v3382 = vadd.f32 %v3135, %v3381
        %v3383 = vpop.f32.mrf.mxu0
        %v3384 = vadd.f32 %v3140, %v3383
        %v3385 = vpop.f32.mrf.mxu0
        %v3386 = vadd.f32 %v3140, %v3385
        %3387 = vmatprep.mubr.bf16.mxu0 0
        %3388 = vmatmul.mubr.bf16.gmra.mxu0 %v3212
        %v3389 = vpop.f32.mrf.mxu0
        %v3390 = vadd.f32 %v3145, %v3389
        %v3391 = vpop.f32.mrf.mxu0
        %v3392 = vadd.f32 %v3145, %v3391
        %v3393 = vpop.f32.mrf.mxu0
        %v3394 = vadd.f32 %v3150, %v3393
        %v3395 = vpop.f32.mrf.mxu0
        %v3396 = vadd.f32 %v3150, %v3395
        %3397 = vmatprep.mubr.bf16.mxu0 0
        %3398 = vmatmul.mubr.bf16.gmra.mxu0 %v3215
        %v3399 = vpop.f32.mrf.mxu0
        %v3400 = vadd.f32 %v3155, %v3399
        %v3401 = vpop.f32.mrf.mxu0
        %v3402 = vadd.f32 %v3155, %v3401
        %v3403 = vpop.f32.mrf.mxu0
        %v3404 = vadd.f32 %v3160, %v3403
        %v3405 = vpop.f32.mrf.mxu0
        %v3406 = vadd.f32 %v3160, %v3405
        %3407 = vmatprep.mubr.bf16.mxu0 0
        %3408 = vmatmul.mubr.bf16.gmra.mxu0 %v3218
        %v3409 = vpop.f32.mrf.mxu0
        %v3410 = vadd.f32 %v3165, %v3409
        %v3411 = vpop.f32.mrf.mxu0
        %v3412 = vadd.f32 %v3165, %v3411
        %v3413 = vpop.f32.mrf.mxu0
        %v3414 = vadd.f32 %v3170, %v3413
        %v3415 = vpop.f32.mrf.mxu0
        %v3416 = vadd.f32 %v3170, %v3415
        %3417 = vdwg.mxu0
        %v3418 = vmul.f32 %v3267, 0.5
        %v3419 = vmul.f32 %v3269, 0.5
        %v3420 = vmul.f32 %v3360, 0.5
        %v3421 = vmul.f32 %v3362, 0.5
        %v3422 = vmul.f32 %v3271, 0.5
        %v3423 = vmul.f32 %v3273, 0.5
        %v3424 = vmul.f32 %v3364, 0.5
        %v3425 = vmul.f32 %v3366, 0.5
        %v3426 = vmul.f32 %v3277, 0.5
        %v3427 = vmul.f32 %v3279, 0.5
        %v3428 = vmul.f32 %v3370, 0.5
        %v3429 = vmul.f32 %v3372, 0.5
        %v3430 = vmul.f32 %v3281, 0.5
        %v3431 = vmul.f32 %v3283, 0.5
        %v3432 = vmul.f32 %v3374, 0.5
        %v3433 = vmul.f32 %v3376, 0.5
        %v3434 = vmul.f32 %v3287, 0.5
        %v3435 = vmul.f32 %v3289, 0.5
        %v3436 = vmul.f32 %v3380, 0.5
        %v3437 = vmul.f32 %v3382, 0.5
        %v3438 = vmul.f32 %v3291, 0.5
        %v3439 = vmul.f32 %v3293, 0.5
        %v3440 = vmul.f32 %v3384, 0.5
        %v3441 = vmul.f32 %v3386, 0.5
        %v3442 = vmul.f32 %v3297, 0.5
        %v3443 = vmul.f32 %v3299, 0.5
        %v3444 = vmul.f32 %v3390, 0.5
        %v3445 = vmul.f32 %v3392, 0.5
        %v3446 = vmul.f32 %v3301, 0.5
        %v3447 = vmul.f32 %v3303, 0.5
        %v3448 = vmul.f32 %v3394, 0.5
        %v3449 = vmul.f32 %v3396, 0.5
        %v3450 = vmul.f32 %v3307, 0.5
        %v3451 = vmul.f32 %v3309, 0.5
        %v3452 = vmul.f32 %v3400, 0.5
        %v3453 = vmul.f32 %v3402, 0.5
        %v3454 = vmul.f32 %v3311, 0.5
        %v3455 = vmul.f32 %v3313, 0.5
        %v3456 = vmul.f32 %v3404, 0.5
        %v3457 = vmul.f32 %v3406, 0.5
        %v3458 = vmul.f32 %v3317, 0.5
        %v3459 = vmul.f32 %v3319, 0.5
        %v3460 = vmul.f32 %v3410, 0.5
        %v3461 = vmul.f32 %v3412, 0.5
        %v3462 = vmul.f32 %v3321, 0.5
        %v3463 = vmul.f32 %v3323, 0.5
        %v3464 = vmul.f32 %v3414, 0.5
        %v3465 = vmul.f32 %v3416, 0.5
        %v3466 = vmul.f32 %v3267, 0.70710677
        %v3467 = vmul.f32 %v3269, 0.70710677
        %v3468 = vmul.f32 %v3360, 0.70710677
        %v3469 = vmul.f32 %v3362, 0.70710677
        %v3470 = vmul.f32 %v3271, 0.70710677
        %v3471 = vmul.f32 %v3273, 0.70710677
        %v3472 = vmul.f32 %v3364, 0.70710677
        %v3473 = vmul.f32 %v3366, 0.70710677
        %v3474 = vmul.f32 %v3277, 0.70710677
        %v3475 = vmul.f32 %v3279, 0.70710677
        %v3476 = vmul.f32 %v3370, 0.70710677
        %v3477 = vmul.f32 %v3372, 0.70710677
        %v3478 = vmul.f32 %v3281, 0.70710677
        %v3479 = vmul.f32 %v3283, 0.70710677
        %v3480 = vmul.f32 %v3374, 0.70710677
        %v3481 = vmul.f32 %v3376, 0.70710677
        %v3482 = vmul.f32 %v3287, 0.70710677
        %v3483 = vmul.f32 %v3289, 0.70710677
        %v3484 = vmul.f32 %v3380, 0.70710677
        %v3485 = vmul.f32 %v3382, 0.70710677
        %v3486 = vmul.f32 %v3291, 0.70710677
        %v3487 = vmul.f32 %v3293, 0.70710677
        %v3488 = vmul.f32 %v3384, 0.70710677
        %v3489 = vmul.f32 %v3386, 0.70710677
        %v3490 = vmul.f32 %v3297, 0.70710677
        %v3491 = vmul.f32 %v3299, 0.70710677
        %v3492 = vmul.f32 %v3390, 0.70710677
        %v3493 = vmul.f32 %v3392, 0.70710677
        %v3494 = vmul.f32 %v3301, 0.70710677
        %v3495 = vmul.f32 %v3303, 0.70710677
        %v3496 = vmul.f32 %v3394, 0.70710677
        %v3497 = vmul.f32 %v3396, 0.70710677
        %v3498 = vmul.f32 %v3307, 0.70710677
        %v3499 = vmul.f32 %v3309, 0.70710677
        %v3500 = vmul.f32 %v3400, 0.70710677
        %v3501 = vmul.f32 %v3402, 0.70710677
        %v3502 = vmul.f32 %v3311, 0.70710677
        %v3503 = vmul.f32 %v3313, 0.70710677
        %v3504 = vmul.f32 %v3404, 0.70710677
        %v3505 = vmul.f32 %v3406, 0.70710677
        %v3506 = vmul.f32 %v3317, 0.70710677
        %v3507 = vmul.f32 %v3319, 0.70710677
        %v3508 = vmul.f32 %v3410, 0.70710677
        %v3509 = vmul.f32 %v3412, 0.70710677
        %v3510 = vmul.f32 %v3321, 0.70710677
        %v3511 = vmul.f32 %v3323, 0.70710677
        %v3512 = vmul.f32 %v3414, 0.70710677
        %v3513 = vmul.f32 %v3416, 0.70710677
        %v3514 = verf.f32.pop %v3466
        %v3515 = verf.f32.pop %v3467
        %v3516 = verf.f32.pop %v3468
        %v3517 = verf.f32.pop %v3469
        %v3518 = verf.f32.pop %v3470
        %v3519 = verf.f32.pop %v3471
        %v3520 = verf.f32.pop %v3472
        %v3521 = verf.f32.pop %v3473
        %v3522 = verf.f32.pop %v3474
        %v3523 = verf.f32.pop %v3475
        %v3524 = verf.f32.pop %v3476
        %v3525 = verf.f32.pop %v3477
        %v3526 = verf.f32.pop %v3478
        %v3527 = verf.f32.pop %v3479
        %v3528 = verf.f32.pop %v3480
        %v3529 = verf.f32.pop %v3481
        %v3530 = verf.f32.pop %v3482
        %v3531 = verf.f32.pop %v3483
        %v3532 = verf.f32.pop %v3484
        %v3533 = verf.f32.pop %v3485
        %v3534 = verf.f32.pop %v3486
        %v3535 = verf.f32.pop %v3487
        %v3536 = verf.f32.pop %v3488
        %v3537 = verf.f32.pop %v3489
        %v3538 = verf.f32.pop %v3490
        %v3539 = verf.f32.pop %v3491
        %v3540 = verf.f32.pop %v3492
        %v3541 = verf.f32.pop %v3493
        %v3542 = verf.f32.pop %v3494
        %v3543 = verf.f32.pop %v3495
        %v3544 = verf.f32.pop %v3496
        %v3545 = verf.f32.pop %v3497
        %v3546 = verf.f32.pop %v3498
        %v3547 = verf.f32.pop %v3499
        %v3548 = verf.f32.pop %v3500
        %v3549 = verf.f32.pop %v3501
        %v3550 = verf.f32.pop %v3502
        %v3551 = verf.f32.pop %v3503
        %v3552 = verf.f32.pop %v3504
        %v3553 = verf.f32.pop %v3505
        %v3554 = verf.f32.pop %v3506
        %v3555 = verf.f32.pop %v3507
        %v3556 = verf.f32.pop %v3508
        %v3557 = verf.f32.pop %v3509
        %v3558 = verf.f32.pop %v3510
        %v3559 = verf.f32.pop %v3511
        %v3560 = verf.f32.pop %v3512
        %v3561 = verf.f32.pop %v3513
        %v3562 = vadd.f32 %v3514, 1.0
        %v3563 = vadd.f32 %v3515, 1.0
        %v3564 = vadd.f32 %v3516, 1.0
        %v3565 = vadd.f32 %v3517, 1.0
        %v3566 = vadd.f32 %v3518, 1.0
        %v3567 = vadd.f32 %v3519, 1.0
        %v3568 = vadd.f32 %v3520, 1.0
        %v3569 = vadd.f32 %v3521, 1.0
        %v3570 = vadd.f32 %v3522, 1.0
        %v3571 = vadd.f32 %v3523, 1.0
        %v3572 = vadd.f32 %v3524, 1.0
        %v3573 = vadd.f32 %v3525, 1.0
        %v3574 = vadd.f32 %v3526, 1.0
        %v3575 = vadd.f32 %v3527, 1.0
        %v3576 = vadd.f32 %v3528, 1.0
        %v3577 = vadd.f32 %v3529, 1.0
        %v3578 = vadd.f32 %v3530, 1.0
        %v3579 = vadd.f32 %v3531, 1.0
        %v3580 = vadd.f32 %v3532, 1.0
        %v3581 = vadd.f32 %v3533, 1.0
        %v3582 = vadd.f32 %v3534, 1.0
        %v3583 = vadd.f32 %v3535, 1.0
        %v3584 = vadd.f32 %v3536, 1.0
        %v3585 = vadd.f32 %v3537, 1.0
        %v3586 = vadd.f32 %v3538, 1.0
        %v3587 = vadd.f32 %v3539, 1.0
        %v3588 = vadd.f32 %v3540, 1.0
        %v3589 = vadd.f32 %v3541, 1.0
        %v3590 = vadd.f32 %v3542, 1.0
        %v3591 = vadd.f32 %v3543, 1.0
        %v3592 = vadd.f32 %v3544, 1.0
        %v3593 = vadd.f32 %v3545, 1.0
        %v3594 = vadd.f32 %v3546, 1.0
        %v3595 = vadd.f32 %v3547, 1.0
        %v3596 = vadd.f32 %v3548, 1.0
        %v3597 = vadd.f32 %v3549, 1.0
        %v3598 = vadd.f32 %v3550, 1.0
        %v3599 = vadd.f32 %v3551, 1.0
        %v3600 = vadd.f32 %v3552, 1.0
        %v3601 = vadd.f32 %v3553, 1.0
        %v3602 = vadd.f32 %v3554, 1.0
        %v3603 = vadd.f32 %v3555, 1.0
        %v3604 = vadd.f32 %v3556, 1.0
        %v3605 = vadd.f32 %v3557, 1.0
        %v3606 = vadd.f32 %v3558, 1.0
        %v3607 = vadd.f32 %v3559, 1.0
        %v3608 = vadd.f32 %v3560, 1.0
        %v3609 = vadd.f32 %v3561, 1.0
        %v3610 = vmul.f32 %v3418, %v3562
        %v3611 = vmul.f32 %v3419, %v3563
        %v3612 = vmul.f32 %v3420, %v3564
        %v3613 = vmul.f32 %v3421, %v3565
        %v3614 = vmul.f32 %v3422, %v3566
        %v3615 = vmul.f32 %v3423, %v3567
        %v3616 = vmul.f32 %v3424, %v3568
        %v3617 = vmul.f32 %v3425, %v3569
        %v3618 = vmul.f32 %v3426, %v3570
        %v3619 = vmul.f32 %v3427, %v3571
        %v3620 = vmul.f32 %v3428, %v3572
        %v3621 = vmul.f32 %v3429, %v3573
        %v3622 = vmul.f32 %v3430, %v3574
        %v3623 = vmul.f32 %v3431, %v3575
        %v3624 = vmul.f32 %v3432, %v3576
        %v3625 = vmul.f32 %v3433, %v3577
        %v3626 = vmul.f32 %v3434, %v3578
        %v3627 = vmul.f32 %v3435, %v3579
        %v3628 = vmul.f32 %v3436, %v3580
        %v3629 = vmul.f32 %v3437, %v3581
        %v3630 = vmul.f32 %v3438, %v3582
        %v3631 = vmul.f32 %v3439, %v3583
        %v3632 = vmul.f32 %v3440, %v3584
        %v3633 = vmul.f32 %v3441, %v3585
        %v3634 = vmul.f32 %v3442, %v3586
        %v3635 = vmul.f32 %v3443, %v3587
        %v3636 = vmul.f32 %v3444, %v3588
        %v3637 = vmul.f32 %v3445, %v3589
        %v3638 = vmul.f32 %v3446, %v3590
        %v3639 = vmul.f32 %v3447, %v3591
        %v3640 = vmul.f32 %v3448, %v3592
        %v3641 = vmul.f32 %v3449, %v3593
        %v3642 = vmul.f32 %v3450, %v3594
        %v3643 = vmul.f32 %v3451, %v3595
        %v3644 = vmul.f32 %v3452, %v3596
        %v3645 = vmul.f32 %v3453, %v3597
        %v3646 = vmul.f32 %v3454, %v3598
        %v3647 = vmul.f32 %v3455, %v3599
        %v3648 = vmul.f32 %v3456, %v3600
        %v3649 = vmul.f32 %v3457, %v3601
        %v3650 = vmul.f32 %v3458, %v3602
        %v3651 = vmul.f32 %v3459, %v3603
        %v3652 = vmul.f32 %v3460, %v3604
        %v3653 = vmul.f32 %v3461, %v3605
        %v3654 = vmul.f32 %v3462, %v3606
        %v3655 = vmul.f32 %v3463, %v3607
        %v3656 = vmul.f32 %v3464, %v3608
        %v3657 = vmul.f32 %v3465, %v3609
        %v3658 = vadd.f32 %v2585, %v3610
        %v3659 = vadd.f32 %v2586, %v3611
        %v3660 = vadd.f32 %v2587, %v3612
        %v3661 = vadd.f32 %v2588, %v3613
        %v3662 = vadd.f32 %v2589, %v3614
        %v3663 = vadd.f32 %v2590, %v3615
        %v3664 = vadd.f32 %v2591, %v3616
        %v3665 = vadd.f32 %v2592, %v3617
        %v3666 = vadd.f32 %v2593, %v3618
        %v3667 = vadd.f32 %v2594, %v3619
        %v3668 = vadd.f32 %v2595, %v3620
        %v3669 = vadd.f32 %v2596, %v3621
        %v3670 = vadd.f32 %v2597, %v3622
        %v3671 = vadd.f32 %v2598, %v3623
        %v3672 = vadd.f32 %v2599, %v3624
        %v3673 = vadd.f32 %v2600, %v3625
        %v3674 = vadd.f32 %v2601, %v3626
        %v3675 = vadd.f32 %v2602, %v3627
        %v3676 = vadd.f32 %v2603, %v3628
        %v3677 = vadd.f32 %v2604, %v3629
        %v3678 = vadd.f32 %v2605, %v3630
        %v3679 = vadd.f32 %v2606, %v3631
        %v3680 = vadd.f32 %v2607, %v3632
        %v3681 = vadd.f32 %v2608, %v3633
        %v3682 = vadd.f32 %v2609, %v3634
        %v3683 = vadd.f32 %v2610, %v3635
        %v3684 = vadd.f32 %v2611, %v3636
        %v3685 = vadd.f32 %v2612, %v3637
        %v3686 = vadd.f32 %v2613, %v3638
        %v3687 = vadd.f32 %v2614, %v3639
        %v3688 = vadd.f32 %v2615, %v3640
        %v3689 = vadd.f32 %v2616, %v3641
        %v3690 = vadd.f32 %v3642, %v2617
        %v3691 = vadd.f32 %v3643, %v2618
        %v3692 = vadd.f32 %v3644, %v2619
        %v3693 = vadd.f32 %v3645, %v2620
        %v3694 = vadd.f32 %v3646, %v2621
        %v3695 = vadd.f32 %v3647, %v2622
        %v3696 = vadd.f32 %v3648, %v2623
        %v3697 = vadd.f32 %v3649, %v2624
        %v3698 = vadd.f32 %v3650, %v2625
        %v3699 = vadd.f32 %v3651, %v2626
        %v3700 = vadd.f32 %v3652, %v2627
        %v3701 = vadd.f32 %v3653, %v2628
        %v3702 = vadd.f32 %v3654, %v2629
        %v3703 = vadd.f32 %v3655, %v2630
        %v3704 = vadd.f32 %v3656, %v2631
        %v3705 = vadd.f32 %v3657, %v2632
        %3706 = vrot.lane.b32.xlu0 %v3690, 27
        %v3707 = vpop.permute.xlu0 %3706
        %3708 = vrot.lane.b32.xlu0 %v3694, 27
        %v3709 = vpop.permute.xlu0 %3708
        %3710 = vrot.lane.b32.xlu0 %v3698, 27
        %v3711 = vpop.permute.xlu0 %3710
        %3712 = vrot.lane.b32.xlu0 %v3702, 27
        %v3713 = vpop.permute.xlu0 %3712
        %3714 = vrot.lane.b32.xlu0 %v3691, 27
        %v3715 = vpop.permute.xlu0 %3714
        %3716 = vrot.lane.b32.xlu0 %v3695, 27
        %v3717 = vpop.permute.xlu0 %3716
        %3718 = vrot.lane.b32.xlu0 %v3699, 27
        %v3719 = vpop.permute.xlu0 %3718
        %3720 = vrot.lane.b32.xlu0 %v3703, 27
        %v3721 = vpop.permute.xlu0 %3720
        %3722 = vrot.lane.b32.xlu0 %v3692, 27
        %v3723 = vpop.permute.xlu0 %3722
        %3724 = vrot.lane.b32.xlu0 %v3696, 27
        %v3725 = vpop.permute.xlu0 %3724
        %3726 = vrot.lane.b32.xlu0 %v3700, 27
        %v3727 = vpop.permute.xlu0 %3726
        %3728 = vrot.lane.b32.xlu0 %v3704, 27
        %v3729 = vpop.permute.xlu0 %3728
        %3730 = vrot.lane.b32.xlu0 %v3693, 27
        %v3731 = vpop.permute.xlu0 %3730
        %3732 = vrot.lane.b32.xlu0 %v3697, 27
        %v3733 = vpop.permute.xlu0 %3732
        %3734 = vrot.lane.b32.xlu0 %v3701, 27
        %v3735 = vpop.permute.xlu0 %3734
        %3736 = vrot.lane.b32.xlu0 %v3705, 27
        %v3737 = vpop.permute.xlu0 %3736
        %vm3738 = vcmp.lt.s32.totalorder %v436, 27
        %v3739 = vsel %vm3738, %v3723, %v3731
        %v3740 = vsel %vm3738, %v3725, %v3733
        %v3741 = vsel %vm3738, %v3727, %v3735
        %v3742 = vsel %vm3738, %v3729, %v3737
        %v3743 = vsel %vm3738, %v3715, %v3723
        %v3744 = vsel %vm3738, %v3717, %v3725
        %v3745 = vsel %vm3738, %v3719, %v3727
        %v3746 = vsel %vm3738, %v3721, %v3729
        %v3747 = vsel %vm3738, %v3707, %v3715
        %v3748 = vsel %vm3738, %v3709, %v3717
        %v3749 = vsel %vm3738, %v3711, %v3719
        %v3750 = vsel %vm3738, %v3713, %v3721
        %v3751 = vsel %vm3738, %v3731, %v3707
        %v3752 = vsel %vm3738, %v3733, %v3709
        %v3753 = vsel %vm3738, %v3735, %v3711
        %v3754 = vsel %vm3738, %v3737, %v3713
        %v3755 = vsel %vm500, 1, 0
        %v3756 = vsel %vm501, 1, 0
        %v3757 = vsel %vm502, 1, 0
        %v3758 = vsel %vm503, 1, 0
        %vm3759 = vcmp.eq.s32.totalorder %v3755, 1
        %vm3760 = vcmp.eq.s32.totalorder %v3756, 1
        %vm3761 = vcmp.eq.s32.totalorder %v3757, 1
        %vm3762 = vcmp.eq.s32.totalorder %v3758, 1
        %v3763 = vsel %vm3759, %v3751, 0.0
        %v3764 = vsel %vm3760, %v3747, 0.0
        %v3765 = vsel %vm3761, %v3743, 0.0
        %v3766 = vsel %vm3762, %v3739, 0.0
        %v3767 = vsel %vm3759, %v3752, 0.0
        %v3768 = vsel %vm3760, %v3748, 0.0
        %v3769 = vsel %vm3761, %v3744, 0.0
        %v3770 = vsel %vm3762, %v3740, 0.0
        %v3771 = vsel %vm3759, %v3753, 0.0
        %v3772 = vsel %vm3760, %v3749, 0.0
        %v3773 = vsel %vm3761, %v3745, 0.0
        %v3774 = vsel %vm3762, %v3741, 0.0
        %v3775 = vsel %vm3759, %v3754, 0.0
        %v3776 = vsel %vm3760, %v3750, 0.0
        %v3777 = vsel %vm3761, %v3746, 0.0
        %v3778 = vsel %vm3762, %v3742, 0.0
        %3779 = vrot.lane.b32.xlu0 %v3690, 101
        %v3780 = vpop.permute.xlu0 %3779
        %3781 = vrot.lane.b32.xlu0 %v3694, 101
        %v3782 = vpop.permute.xlu0 %3781
        %3783 = vrot.lane.b32.xlu0 %v3698, 101
        %v3784 = vpop.permute.xlu0 %3783
        %3785 = vrot.lane.b32.xlu0 %v3702, 101
        %v3786 = vpop.permute.xlu0 %3785
        %3787 = vrot.lane.b32.xlu0 %v3691, 101
        %v3788 = vpop.permute.xlu0 %3787
        %3789 = vrot.lane.b32.xlu0 %v3695, 101
        %v3790 = vpop.permute.xlu0 %3789
        %3791 = vrot.lane.b32.xlu0 %v3699, 101
        %v3792 = vpop.permute.xlu0 %3791
        %3793 = vrot.lane.b32.xlu0 %v3703, 101
        %v3794 = vpop.permute.xlu0 %3793
        %3795 = vrot.lane.b32.xlu0 %v3692, 101
        %v3796 = vpop.permute.xlu0 %3795
        %3797 = vrot.lane.b32.xlu0 %v3696, 101
        %v3798 = vpop.permute.xlu0 %3797
        %3799 = vrot.lane.b32.xlu0 %v3700, 101
        %v3800 = vpop.permute.xlu0 %3799
        %3801 = vrot.lane.b32.xlu0 %v3704, 101
        %v3802 = vpop.permute.xlu0 %3801
        %3803 = vrot.lane.b32.xlu0 %v3693, 101
        %v3804 = vpop.permute.xlu0 %3803
        %3805 = vrot.lane.b32.xlu0 %v3697, 101
        %v3806 = vpop.permute.xlu0 %3805
        %3807 = vrot.lane.b32.xlu0 %v3701, 101
        %v3808 = vpop.permute.xlu0 %3807
        %3809 = vrot.lane.b32.xlu0 %v3705, 101
        %v3810 = vpop.permute.xlu0 %3809
        %vm3811 = vcmp.lt.s32.totalorder %v436, 101
        %v3812 = vsel %vm3811, %v3796, %v3804
        %v3813 = vsel %vm3811, %v3798, %v3806
        %v3814 = vsel %vm3811, %v3800, %v3808
        %v3815 = vsel %vm3811, %v3802, %v3810
        %v3816 = vsel %vm3811, %v3788, %v3796
        %v3817 = vsel %vm3811, %v3790, %v3798
        %v3818 = vsel %vm3811, %v3792, %v3800
        %v3819 = vsel %vm3811, %v3794, %v3802
        %v3820 = vsel %vm3811, %v3780, %v3788
        %v3821 = vsel %vm3811, %v3782, %v3790
        %v3822 = vsel %vm3811, %v3784, %v3792
        %v3823 = vsel %vm3811, %v3786, %v3794
        %v3824 = vsel %vm3811, %v3804, %v3780
        %v3825 = vsel %vm3811, %v3806, %v3782
        %v3826 = vsel %vm3811, %v3808, %v3784
        %v3827 = vsel %vm3811, %v3810, %v3786
        %v3828 = vsel %vm516, 1, 0
        %v3829 = vsel %vm517, 1, 0
        %v3830 = vsel %vm518, 1, 0
        %v3831 = vsel %vm519, 1, 0
        %vm3832 = vcmp.eq.s32.totalorder %v3828, 1
        %vm3833 = vcmp.eq.s32.totalorder %v3829, 1
        %vm3834 = vcmp.eq.s32.totalorder %v3830, 1
        %vm3835 = vcmp.eq.s32.totalorder %v3831, 1
        %v3836 = vsel %vm3832, %v3820, 0.0
        %v3837 = vsel %vm3833, %v3816, 0.0
        %v3838 = vsel %vm3834, %v3812, 0.0
        %v3839 = vsel %vm3835, %v3824, 0.0
        %v3840 = vsel %vm3832, %v3821, 0.0
        %v3841 = vsel %vm3833, %v3817, 0.0
        %v3842 = vsel %vm3834, %v3813, 0.0
        %v3843 = vsel %vm3835, %v3825, 0.0
        %v3844 = vsel %vm3832, %v3822, 0.0
        %v3845 = vsel %vm3833, %v3818, 0.0
        %v3846 = vsel %vm3834, %v3814, 0.0
        %v3847 = vsel %vm3835, %v3826, 0.0
        %v3848 = vsel %vm3832, %v3823, 0.0
        %v3849 = vsel %vm3833, %v3819, 0.0
        %v3850 = vsel %vm3834, %v3815, 0.0
        %v3851 = vsel %vm3835, %v3827, 0.0
        %v3852 = vpack.c.bf16 %v3767, %v3763
        %v3853 = vpack.c.bf16 %v3768, %v3764
        %v3854 = vpack.c.bf16 %v3769, %v3765
        %v3855 = vpack.c.bf16 %v3770, %v3766
        %v3856 = vpack.c.bf16 %v3775, %v3771
        %v3857 = vpack.c.bf16 %v3776, %v3772
        %v3858 = vpack.c.bf16 %v3777, %v3773
        %v3859 = vpack.c.bf16 %v3778, %v3774
        %v3860 = vpack.c.bf16 %v3694, %v3690
        %v3861 = vpack.c.bf16 %v3695, %v3691
        %v3862 = vpack.c.bf16 %v3696, %v3692
        %v3863 = vpack.c.bf16 %v3697, %v3693
        %v3864 = vpack.c.bf16 %v3702, %v3698
        %v3865 = vpack.c.bf16 %v3703, %v3699
        %v3866 = vpack.c.bf16 %v3704, %v3700
        %v3867 = vpack.c.bf16 %v3705, %v3701
        %v3868 = vpack.c.bf16 %v3840, %v3836
        %v3869 = vpack.c.bf16 %v3841, %v3837
        %v3870 = vpack.c.bf16 %v3842, %v3838
        %v3871 = vpack.c.bf16 %v3843, %v3839
        %v3872 = vpack.c.bf16 %v3848, %v3844
        %v3873 = vpack.c.bf16 %v3849, %v3845
        %v3874 = vpack.c.bf16 %v3850, %v3846
        %v3875 = vpack.c.bf16 %v3851, %v3847
        %s3876 = scalar_lea.vmem [#allocation3], 60
        %v3877 = vld [vmem:[%s3876] sm:$0xf]
        %v3878 = vld [vmem:[%s3876 + $0x4] sm:$0xf]
        %v3879 = vld [vmem:[%s3876 + $0x8] sm:$0xf]
        %v3880 = vld [vmem:[%s3876 + $0xc] sm:$0xf]
        %v3881 = vld [vmem:[%s3876 + $0x10] sm:$0xf]
        %s3882 = scalar_lea.vmem %s3, 480
        %v3883 = vld [vmem:[%s3882] sm:$0xff]
        %v3884 = vld [vmem:[%s3882 + $0x8] sm:$0xff]
        %v3885 = vld [vmem:[%s3882 + $0x10] sm:$0xff]
        %v3886 = vld [vmem:[%s3882 + $0x18] sm:$0xff]
        %v3887 = vld [vmem:[%s3882 + $0x20] sm:$0xff]
        %v3888 = vld [vmem:[%s3882 + $0x28] sm:$0xff]
        %v3889 = vld [vmem:[%s3882 + $0x30] sm:$0xff]
        %v3890 = vld [vmem:[%s3882 + $0x38] sm:$0xff]
        %v3891 = vld [vmem:[%s3882 + $0x40] sm:$0xff]
        %v3892 = vld [vmem:[%s3882 + $0x48] sm:$0xff]
        %v3893 = vld [vmem:[%s3882 + $0x50] sm:$0xff]
        %v3894 = vld [vmem:[%s3882 + $0x58] sm:$0xff]
        %v3895 = vld [vmem:[%s3882 + $0x60] sm:$0xff]
        %v3896 = vld [vmem:[%s3882 + $0x68] sm:$0xff]
        %v3897 = vld [vmem:[%s3882 + $0x70] sm:$0xff]
        %v3898 = vld [vmem:[%s3882 + $0x78] sm:$0xff]
        %v3899 = vld [vmem:[%s3882 + $0x80] sm:$0xff]
        %v3900 = vld [vmem:[%s3882 + $0x88] sm:$0xff]
        %v3901 = vld [vmem:[%s3882 + $0x90] sm:$0xff]
        %v3902 = vld [vmem:[%s3882 + $0x98] sm:$0xff]
        %v3908 = vunpack.c.l.b16 %v3877
        %v3909 = vunpack.c.l.b16 %v3878
        %v3910 = vunpack.c.l.b16 %v3879
        %v3911 = vunpack.c.l.b16 %v3880
        %v3912 = vunpack.c.l.b16 %v3881
        %v3913 = vpack.c.b16 %v3909, %v3908
        %v3914 = vpack.c.b16 %v3911, %v3910
        %v3915 = vpack.c.b16 %v3912, %v3912
        %v3917 = vsel %vm728, %v3913, 0
        %v3920 = vsel %vm728, %v3914, 0
        %v3923 = vsel %vm728, %v3915, 0
        %3925 = vmatprep.subr.bf16.mxu0 0
        %3926 = vmatpush1.bf16.msra.mxu0 0
        %3927 = vmatprep.subr.bf16.mxu0 0
        %3928 = vmatpush1.bf16.msra.mxu0 0
        %3929 = vmatprep.subr.bf16.mxu0 %v3873
        %3930 = vmatpush1.bf16.msra.mxu0 %v3872
        %3931 = vmatprep.subr.bf16.mxu0 %v3869
        %3932 = vmatpush1.bf16.msra.mxu0 %v3868
        %3933 = vmatprep.subr.bf16.mxu0 %v3865
        %3934 = vmatpush1.bf16.msra.mxu0 %v3864
        %3935 = vmatprep.subr.bf16.mxu0 %v3861
        %3936 = vmatpush1.bf16.msra.mxu0 %v3860
        %3937 = vmatprep.subr.bf16.mxu0 %v3857
        %3938 = vmatpush1.bf16.msra.mxu0 %v3856
        %3939 = vmatprep.subr.bf16.mxu0 %v3853
        %3940 = vmatpush1.bf16.msra.mxu0 %v3852
        %3941 = vmatprep.subr.bf16.mxu0 0
        %3942 = vmatpush2.bf16.msra.mxu0 0
        %3943 = vmatprep.subr.bf16.mxu0 0
        %3944 = vmatpush2.bf16.msra.mxu0 0
        %3945 = vmatprep.subr.bf16.mxu0 0
        %3946 = vmatpush2.bf16.msra.mxu0 0
        %3947 = vmatprep.subr.bf16.mxu0 0
        %3948 = vmatpush2.bf16.msra.mxu0 0
        %3949 = vmatprep.subr.bf16.mxu0 0
        %3950 = vmatpush2.bf16.msra.mxu0 0
        %3951 = vmatprep.subr.bf16.mxu0 0
        %3952 = vmatpush2.bf16.msra.mxu0 0
        %3953 = vmatprep.subr.bf16.mxu0 0
        %3954 = vmatpush2.bf16.msra.mxu0 0
        %3955 = vmatprep.subr.bf16.mxu0 0
        %3956 = vmatpush2.bf16.msra.mxu0 0
        %3957 = vmatprep.mubr.bf16.mxu0 0
        %3958 = vmatmul.mubr.bf16.gmra.mxu0 %v3917
        %v3959 = vpop.f32.mrf.mxu0
        %v3960 = vadd.f32 %v3883, %v3959
        %v3961 = vpop.f32.mrf.mxu0
        %v3962 = vadd.f32 %v3884, %v3961
        %v3963 = vpop.f32.mrf.mxu0
        %v3964 = vadd.f32 %v3887, %v3963
        %v3965 = vpop.f32.mrf.mxu0
        %v3966 = vadd.f32 %v3888, %v3965
        %3967 = vmatprep.mubr.bf16.mxu0 0
        %3968 = vmatmul.mubr.bf16.gmra.mxu0 %v3920
        %v3969 = vpop.f32.mrf.mxu0
        %v3970 = vadd.f32 %v3891, %v3969
        %v3971 = vpop.f32.mrf.mxu0
        %v3972 = vadd.f32 %v3892, %v3971
        %v3973 = vpop.f32.mrf.mxu0
        %v3974 = vadd.f32 %v3895, %v3973
        %v3975 = vpop.f32.mrf.mxu0
        %v3976 = vadd.f32 %v3896, %v3975
        %3977 = vmatprep.mubr.bf16.mxu0 0
        %3978 = vmatmul.mubr.bf16.gmra.mxu0 %v3923
        %v3979 = vpop.f32.mrf.mxu0
        %v3980 = vadd.f32 %v3899, %v3979
        %v3981 = vpop.f32.mrf.mxu0
        %v3982 = vadd.f32 %v3900, %v3981
        %v3983 = vpop.f32.mrf.mxu0
        %v3984 = vpop.f32.mrf.mxu0
        %3985 = vdwg.mxu0
        %3986 = vmatprep.subr.bf16.mxu0 0
        %3987 = vmatpush1.bf16.msra.mxu0 0
        %3988 = vmatprep.subr.bf16.mxu0 0
        %3989 = vmatpush1.bf16.msra.mxu0 0
        %3990 = vmatprep.subr.bf16.mxu0 %v3875
        %3991 = vmatpush1.bf16.msra.mxu0 %v3874
        %3992 = vmatprep.subr.bf16.mxu0 %v3871
        %3993 = vmatpush1.bf16.msra.mxu0 %v3870
        %3994 = vmatprep.subr.bf16.mxu0 %v3867
        %3995 = vmatpush1.bf16.msra.mxu0 %v3866
        %3996 = vmatprep.subr.bf16.mxu0 %v3863
        %3997 = vmatpush1.bf16.msra.mxu0 %v3862
        %3998 = vmatprep.subr.bf16.mxu0 %v3859
        %3999 = vmatpush1.bf16.msra.mxu0 %v3858
        %4000 = vmatprep.subr.bf16.mxu0 %v3855
        %4001 = vmatpush1.bf16.msra.mxu0 %v3854
        %4002 = vmatprep.subr.bf16.mxu0 0
        %4003 = vmatpush2.bf16.msra.mxu0 0
        %4004 = vmatprep.subr.bf16.mxu0 0
        %4005 = vmatpush2.bf16.msra.mxu0 0
        %4006 = vmatprep.subr.bf16.mxu0 0
        %4007 = vmatpush2.bf16.msra.mxu0 0
        %4008 = vmatprep.subr.bf16.mxu0 0
        %4009 = vmatpush2.bf16.msra.mxu0 0
        %4010 = vmatprep.subr.bf16.mxu0 0
        %4011 = vmatpush2.bf16.msra.mxu0 0
        %4012 = vmatprep.subr.bf16.mxu0 0
        %4013 = vmatpush2.bf16.msra.mxu0 0
        %4014 = vmatprep.subr.bf16.mxu0 0
        %4015 = vmatpush2.bf16.msra.mxu0 0
        %4016 = vmatprep.subr.bf16.mxu0 0
        %4017 = vmatpush2.bf16.msra.mxu0 0
        %4018 = vmatprep.mubr.bf16.mxu0 0
        %4019 = vmatmul.mubr.bf16.gmra.mxu0 %v3917
        %v4020 = vpop.f32.mrf.mxu0
        %v4021 = vadd.f32 %v3885, %v4020
        %v4022 = vpop.f32.mrf.mxu0
        %v4023 = vadd.f32 %v3886, %v4022
        %v4024 = vpop.f32.mrf.mxu0
        %v4025 = vadd.f32 %v3889, %v4024
        %v4026 = vpop.f32.mrf.mxu0
        %v4027 = vadd.f32 %v3890, %v4026
        %4028 = vmatprep.mubr.bf16.mxu0 0
        %4029 = vmatmul.mubr.bf16.gmra.mxu0 %v3920
        %v4030 = vpop.f32.mrf.mxu0
        %v4031 = vadd.f32 %v3893, %v4030
        %v4032 = vpop.f32.mrf.mxu0
        %v4033 = vadd.f32 %v3894, %v4032
        %v4034 = vpop.f32.mrf.mxu0
        %v4035 = vadd.f32 %v3897, %v4034
        %v4036 = vpop.f32.mrf.mxu0
        %v4037 = vadd.f32 %v3898, %v4036
        %4038 = vmatprep.mubr.bf16.mxu0 0
        %4039 = vmatmul.mubr.bf16.gmra.mxu0 %v3923
        %v4040 = vpop.f32.mrf.mxu0
        %v4041 = vadd.f32 %v3901, %v4040
        %v4042 = vpop.f32.mrf.mxu0
        %v4043 = vadd.f32 %v3902, %v4042
        %v4044 = vpop.f32.mrf.mxu0
        %v4045 = vpop.f32.mrf.mxu0
        %4046 = vdwg.mxu0
        %v4047 = vmul.f32 %v3960, 0.5
        %v4048 = vmul.f32 %v3962, 0.5
        %v4049 = vmul.f32 %v4021, 0.5
        %v4050 = vmul.f32 %v4023, 0.5
        %v4051 = vmul.f32 %v3964, 0.5
        %v4052 = vmul.f32 %v3966, 0.5
        %v4053 = vmul.f32 %v4025, 0.5
        %v4054 = vmul.f32 %v4027, 0.5
        %v4055 = vmul.f32 %v3970, 0.5
        %v4056 = vmul.f32 %v3972, 0.5
        %v4057 = vmul.f32 %v4031, 0.5
        %v4058 = vmul.f32 %v4033, 0.5
        %v4059 = vmul.f32 %v3974, 0.5
        %v4060 = vmul.f32 %v3976, 0.5
        %v4061 = vmul.f32 %v4035, 0.5
        %v4062 = vmul.f32 %v4037, 0.5
        %v4063 = vmul.f32 %v3980, 0.5
        %v4064 = vmul.f32 %v3982, 0.5
        %v4065 = vmul.f32 %v4041, 0.5
        %v4066 = vmul.f32 %v4043, 0.5
        %v4067 = vmul.f32 %v3960, 0.70710677
        %v4068 = vmul.f32 %v3962, 0.70710677
        %v4069 = vmul.f32 %v4021, 0.70710677
        %v4070 = vmul.f32 %v4023, 0.70710677
        %v4071 = vmul.f32 %v3964, 0.70710677
        %v4072 = vmul.f32 %v3966, 0.70710677
        %v4073 = vmul.f32 %v4025, 0.70710677
        %v4074 = vmul.f32 %v4027, 0.70710677
        %v4075 = vmul.f32 %v3970, 0.70710677
        %v4076 = vmul.f32 %v3972, 0.70710677
        %v4077 = vmul.f32 %v4031, 0.70710677
        %v4078 = vmul.f32 %v4033, 0.70710677
        %v4079 = vmul.f32 %v3974, 0.70710677
        %v4080 = vmul.f32 %v3976, 0.70710677
        %v4081 = vmul.f32 %v4035, 0.70710677
        %v4082 = vmul.f32 %v4037, 0.70710677
        %v4083 = vmul.f32 %v3980, 0.70710677
        %v4084 = vmul.f32 %v3982, 0.70710677
        %v4085 = vmul.f32 %v4041, 0.70710677
        %v4086 = vmul.f32 %v4043, 0.70710677
        %v4087 = verf.f32.pop %v4067
        %v4088 = verf.f32.pop %v4068
        %v4089 = verf.f32.pop %v4069
        %v4090 = verf.f32.pop %v4070
        %v4091 = verf.f32.pop %v4071
        %v4092 = verf.f32.pop %v4072
        %v4093 = verf.f32.pop %v4073
        %v4094 = verf.f32.pop %v4074
        %v4095 = verf.f32.pop %v4075
        %v4096 = verf.f32.pop %v4076
        %v4097 = verf.f32.pop %v4077
        %v4098 = verf.f32.pop %v4078
        %v4099 = verf.f32.pop %v4079
        %v4100 = verf.f32.pop %v4080
        %v4101 = verf.f32.pop %v4081
        %v4102 = verf.f32.pop %v4082
        %v4103 = verf.f32.pop %v4083
        %v4104 = verf.f32.pop %v4084
        %v4105 = verf.f32.pop %v4085
        %v4106 = verf.f32.pop %v4086
        %v4107 = vadd.f32 %v4087, 1.0
        %v4108 = vadd.f32 %v4088, 1.0
        %v4109 = vadd.f32 %v4089, 1.0
        %v4110 = vadd.f32 %v4090, 1.0
        %v4111 = vadd.f32 %v4091, 1.0
        %v4112 = vadd.f32 %v4092, 1.0
        %v4113 = vadd.f32 %v4093, 1.0
        %v4114 = vadd.f32 %v4094, 1.0
        %v4115 = vadd.f32 %v4095, 1.0
        %v4116 = vadd.f32 %v4096, 1.0
        %v4117 = vadd.f32 %v4097, 1.0
        %v4118 = vadd.f32 %v4098, 1.0
        %v4119 = vadd.f32 %v4099, 1.0
        %v4120 = vadd.f32 %v4100, 1.0
        %v4121 = vadd.f32 %v4101, 1.0
        %v4122 = vadd.f32 %v4102, 1.0
        %v4123 = vadd.f32 %v4103, 1.0
        %v4124 = vadd.f32 %v4104, 1.0
        %v4125 = vadd.f32 %v4105, 1.0
        %v4126 = vadd.f32 %v4106, 1.0
        %v4127 = vmul.f32 %v4047, %v4107
        %v4128 = vmul.f32 %v4048, %v4108
        %v4129 = vmul.f32 %v4049, %v4109
        %v4130 = vmul.f32 %v4050, %v4110
        %v4131 = vmul.f32 %v4051, %v4111
        %v4132 = vmul.f32 %v4052, %v4112
        %v4133 = vmul.f32 %v4053, %v4113
        %v4134 = vmul.f32 %v4054, %v4114
        %v4135 = vmul.f32 %v4055, %v4115
        %v4136 = vmul.f32 %v4056, %v4116
        %v4137 = vmul.f32 %v4057, %v4117
        %v4138 = vmul.f32 %v4058, %v4118
        %v4139 = vmul.f32 %v4059, %v4119
        %v4140 = vmul.f32 %v4060, %v4120
        %v4141 = vmul.f32 %v4061, %v4121
        %v4142 = vmul.f32 %v4062, %v4122
        %v4143 = vmul.f32 %v4063, %v4123
        %v4144 = vmul.f32 %v4064, %v4124
        %v4145 = vmul.f32 %v4065, %v4125
        %v4146 = vmul.f32 %v4066, %v4126
        %s4147 = scalar_lea.vmem %s4, 144
        %v4148 = vld [vmem:[%s4147] sm:$0xf]
        %v4149 = vld [vmem:[%s4147 + $0x4] sm:$0xf]
        %v4150 = vld [vmem:[%s4147 + $0x8] sm:$0xf]
        %v4151 = vld [vmem:[%s4147 + $0xc] sm:$0xf]
        %v4152 = vld [vmem:[%s4147 + $0x10] sm:$0xf]
        %v4153 = vld [vmem:[%s4147 + $0x14] sm:$0xf]
        %v4154 = vld [vmem:[%s4147 + $0x18] sm:$0xf]
        %v4155 = vld [vmem:[%s4147 + $0x1c] sm:$0xf]
        %v4156 = vld [vmem:[%s4147 + $0x20] sm:$0xf]
        %v4157 = vld [vmem:[%s4147 + $0x24] sm:$0xf]
        %v4158 = vld [vmem:[%s4147 + $0x28] sm:$0xf]
        %v4159 = vld [vmem:[%s4147 + $0x2c] sm:$0xf]
        %v4160 = vpack.c.bf16 %v4131, %v4127
        %v4161 = vpack.c.bf16 %v4132, %v4128
        %v4162 = vpack.c.bf16 %v4133, %v4129
        %v4163 = vpack.c.bf16 %v4134, %v4130
        %v4164 = vpack.c.bf16 %v4139, %v4135
        %v4165 = vpack.c.bf16 %v4140, %v4136
        %v4166 = vpack.c.bf16 %v4141, %v4137
        %v4167 = vpack.c.bf16 %v4142, %v4138
        %v4168 = vpack.c.bf16 %v4143, %v4143
        %v4169 = vpack.c.bf16 %v4144, %v4144
        %v4170 = vpack.c.bf16 %v4145, %v4145
        %v4171 = vpack.c.bf16 %v4146, %v4146
        %s4172 = scalar_lea.vmem %s5, 288
        %v4173 = vld [vmem:[%s4172] sm:$0xff]
        %v4174 = vld [vmem:[%s4172 + $0x8] sm:$0xff]
        %v4175 = vld [vmem:[%s4172 + $0x10] sm:$0xff]
        %v4176 = vld [vmem:[%s4172 + $0x18] sm:$0xff]
        %v4177 = vld [vmem:[%s4172 + $0x20] sm:$0xff]
        %v4178 = vld [vmem:[%s4172 + $0x28] sm:$0xff]
        %v4179 = vld [vmem:[%s4172 + $0x30] sm:$0xff]
        %v4180 = vld [vmem:[%s4172 + $0x38] sm:$0xff]
        %v4181 = vld [vmem:[%s4172 + $0x40] sm:$0xff]
        %v4182 = vld [vmem:[%s4172 + $0x48] sm:$0xff]
        %v4183 = vld [vmem:[%s4172 + $0x50] sm:$0xff]
        %v4184 = vld [vmem:[%s4172 + $0x58] sm:$0xff]
        %4186 = vset.pattern.permute.xlu0 0
        %4187 = vperm.xlu0 %4186, %v4173
        %v4188 = vpop.permute.xlu0 %4187
        %4191 = vset.pattern.permute.xlu0 0
        %4192 = vperm.xlu0 %4191, %v4174
        %v4193 = vpop.permute.xlu0 %4192
        %4196 = vset.pattern.permute.xlu0 0
        %4197 = vperm.xlu0 %4196, %v4175
        %v4198 = vpop.permute.xlu0 %4197
        %4201 = vset.pattern.permute.xlu0 0
        %4202 = vperm.xlu0 %4201, %v4176
        %v4203 = vpop.permute.xlu0 %4202
        %4206 = vset.pattern.permute.xlu0 0
        %4207 = vperm.xlu0 %4206, %v4177
        %v4208 = vpop.permute.xlu0 %4207
        %4211 = vset.pattern.permute.xlu0 0
        %4212 = vperm.xlu0 %4211, %v4178
        %v4213 = vpop.permute.xlu0 %4212
        %4216 = vset.pattern.permute.xlu0 0
        %4217 = vperm.xlu0 %4216, %v4179
        %v4218 = vpop.permute.xlu0 %4217
        %4221 = vset.pattern.permute.xlu0 0
        %4222 = vperm.xlu0 %4221, %v4180
        %v4223 = vpop.permute.xlu0 %4222
        %4226 = vset.pattern.permute.xlu0 0
        %4227 = vperm.xlu0 %4226, %v4181
        %v4228 = vpop.permute.xlu0 %4227
        %4231 = vset.pattern.permute.xlu0 0
        %4232 = vperm.xlu0 %4231, %v4182
        %v4233 = vpop.permute.xlu0 %4232
        %4236 = vset.pattern.permute.xlu0 0
        %4237 = vperm.xlu0 %4236, %v4183
        %v4238 = vpop.permute.xlu0 %4237
        %4241 = vset.pattern.permute.xlu0 0
        %4242 = vperm.xlu0 %4241, %v4184
        %v4243 = vpop.permute.xlu0 %4242
        %v4257 = vunpack.c.l.b16 %v4148
        %v4258 = vunpack.c.l.b16 %v4149
        %v4259 = vunpack.c.l.b16 %v4150
        %v4260 = vunpack.c.l.b16 %v4151
        %v4261 = vunpack.c.l.b16 %v4152
        %v4262 = vunpack.c.l.b16 %v4153
        %v4263 = vunpack.c.l.b16 %v4154
        %v4264 = vunpack.c.l.b16 %v4155
        %v4265 = vunpack.c.l.b16 %v4156
        %v4266 = vunpack.c.l.b16 %v4157
        %v4267 = vunpack.c.l.b16 %v4158
        %v4268 = vunpack.c.l.b16 %v4159
        %v4269 = vpack.c.b16 %v4258, %v4257
        %v4270 = vpack.c.b16 %v4260, %v4259
        %v4271 = vpack.c.b16 %v4262, %v4261
        %v4272 = vpack.c.b16 %v4264, %v4263
        %v4273 = vpack.c.b16 %v4266, %v4265
        %v4274 = vpack.c.b16 %v4268, %v4267
        %v4276 = vsel %vm1086, %v4269, 0
        %v4279 = vsel %vm1086, %v4270, 0
        %v4282 = vsel %vm1086, %v4271, 0
        %v4285 = vsel %vm1086, %v4272, 0
        %v4288 = vsel %vm1086, %v4273, 0
        %v4291 = vsel %vm1086, %v4274, 0
        %v4294 = vsel %vm1105, %v4168, 0
        %v4297 = vsel %vm1105, %v4169, 0
        %v4300 = vsel %vm1105, %v4170, 0
        %v4303 = vsel %vm1105, %v4171, 0
        %4305 = vmatprep.subr.bf16.mxu0 0
        %4306 = vmatpush1.bf16.msra.mxu0 0
        %4307 = vmatprep.subr.bf16.mxu0 0
        %4308 = vmatpush1.bf16.msra.mxu0 0
        %4309 = vmatprep.subr.bf16.mxu0 0
        %4310 = vmatpush1.bf16.msra.mxu0 0
        %4311 = vmatprep.subr.bf16.mxu0 0
        %4312 = vmatpush1.bf16.msra.mxu0 0
        %4313 = vmatprep.subr.bf16.mxu0 0
        %4314 = vmatpush1.bf16.msra.mxu0 0
        %4315 = vmatprep.subr.bf16.mxu0 %v4297
        %4316 = vmatpush1.bf16.msra.mxu0 %v4294
        %4317 = vmatprep.subr.bf16.mxu0 %v4165
        %4318 = vmatpush1.bf16.msra.mxu0 %v4164
        %4319 = vmatprep.subr.bf16.mxu0 %v4161
        %4320 = vmatpush1.bf16.msra.mxu0 %v4160
        %4321 = vmatprep.subr.bf16.mxu0 0
        %4322 = vmatpush2.bf16.msra.mxu0 0
        %4323 = vmatprep.subr.bf16.mxu0 0
        %4324 = vmatpush2.bf16.msra.mxu0 0
        %4325 = vmatprep.subr.bf16.mxu0 0
        %4326 = vmatpush2.bf16.msra.mxu0 0
        %4327 = vmatprep.subr.bf16.mxu0 0
        %4328 = vmatpush2.bf16.msra.mxu0 0
        %4329 = vmatprep.subr.bf16.mxu0 0
        %4330 = vmatpush2.bf16.msra.mxu0 0
        %4331 = vmatprep.subr.bf16.mxu0 0
        %4332 = vmatpush2.bf16.msra.mxu0 0
        %4333 = vmatprep.subr.bf16.mxu0 0
        %4334 = vmatpush2.bf16.msra.mxu0 0
        %4335 = vmatprep.subr.bf16.mxu0 0
        %4336 = vmatpush2.bf16.msra.mxu0 0
        %4337 = vmatprep.mubr.bf16.mxu0 0
        %4338 = vmatmul.mubr.bf16.gmra.mxu0 %v4276
        %v4339 = vpop.f32.mrf.mxu0
        %v4340 = vadd.f32 %v4188, %v4339
        %v4341 = vpop.f32.mrf.mxu0
        %v4342 = vadd.f32 %v4188, %v4341
        %v4343 = vpop.f32.mrf.mxu0
        %v4344 = vadd.f32 %v4193, %v4343
        %v4345 = vpop.f32.mrf.mxu0
        %v4346 = vadd.f32 %v4193, %v4345
        %4347 = vmatprep.mubr.bf16.mxu0 0
        %4348 = vmatmul.mubr.bf16.gmra.mxu0 %v4279
        %v4349 = vpop.f32.mrf.mxu0
        %v4350 = vadd.f32 %v4198, %v4349
        %v4351 = vpop.f32.mrf.mxu0
        %v4352 = vadd.f32 %v4198, %v4351
        %v4353 = vpop.f32.mrf.mxu0
        %v4354 = vadd.f32 %v4203, %v4353
        %v4355 = vpop.f32.mrf.mxu0
        %v4356 = vadd.f32 %v4203, %v4355
        %4357 = vmatprep.mubr.bf16.mxu0 0
        %4358 = vmatmul.mubr.bf16.gmra.mxu0 %v4282
        %v4359 = vpop.f32.mrf.mxu0
        %v4360 = vadd.f32 %v4208, %v4359
        %v4361 = vpop.f32.mrf.mxu0
        %v4362 = vadd.f32 %v4208, %v4361
        %v4363 = vpop.f32.mrf.mxu0
        %v4364 = vadd.f32 %v4213, %v4363
        %v4365 = vpop.f32.mrf.mxu0
        %v4366 = vadd.f32 %v4213, %v4365
        %4367 = vmatprep.mubr.bf16.mxu0 0
        %4368 = vmatmul.mubr.bf16.gmra.mxu0 %v4285
        %v4369 = vpop.f32.mrf.mxu0
        %v4370 = vadd.f32 %v4218, %v4369
        %v4371 = vpop.f32.mrf.mxu0
        %v4372 = vadd.f32 %v4218, %v4371
        %v4373 = vpop.f32.mrf.mxu0
        %v4374 = vadd.f32 %v4223, %v4373
        %v4375 = vpop.f32.mrf.mxu0
        %v4376 = vadd.f32 %v4223, %v4375
        %4377 = vmatprep.mubr.bf16.mxu0 0
        %4378 = vmatmul.mubr.bf16.gmra.mxu0 %v4288
        %v4379 = vpop.f32.mrf.mxu0
        %v4380 = vadd.f32 %v4228, %v4379
        %v4381 = vpop.f32.mrf.mxu0
        %v4382 = vadd.f32 %v4228, %v4381
        %v4383 = vpop.f32.mrf.mxu0
        %v4384 = vadd.f32 %v4233, %v4383
        %v4385 = vpop.f32.mrf.mxu0
        %v4386 = vadd.f32 %v4233, %v4385
        %4387 = vmatprep.mubr.bf16.mxu0 0
        %4388 = vmatmul.mubr.bf16.gmra.mxu0 %v4291
        %v4389 = vpop.f32.mrf.mxu0
        %v4390 = vadd.f32 %v4238, %v4389
        %v4391 = vpop.f32.mrf.mxu0
        %v4392 = vadd.f32 %v4238, %v4391
        %v4393 = vpop.f32.mrf.mxu0
        %v4394 = vadd.f32 %v4243, %v4393
        %v4395 = vpop.f32.mrf.mxu0
        %v4396 = vadd.f32 %v4243, %v4395
        %4397 = vdwg.mxu0
        %4398 = vmatprep.subr.bf16.mxu0 0
        %4399 = vmatpush1.bf16.msra.mxu0 0
        %4400 = vmatprep.subr.bf16.mxu0 0
        %4401 = vmatpush1.bf16.msra.mxu0 0
        %4402 = vmatprep.subr.bf16.mxu0 0
        %4403 = vmatpush1.bf16.msra.mxu0 0
        %4404 = vmatprep.subr.bf16.mxu0 0
        %4405 = vmatpush1.bf16.msra.mxu0 0
        %4406 = vmatprep.subr.bf16.mxu0 0
        %4407 = vmatpush1.bf16.msra.mxu0 0
        %4408 = vmatprep.subr.bf16.mxu0 %v4303
        %4409 = vmatpush1.bf16.msra.mxu0 %v4300
        %4410 = vmatprep.subr.bf16.mxu0 %v4167
        %4411 = vmatpush1.bf16.msra.mxu0 %v4166
        %4412 = vmatprep.subr.bf16.mxu0 %v4163
        %4413 = vmatpush1.bf16.msra.mxu0 %v4162
        %4414 = vmatprep.subr.bf16.mxu0 0
        %4415 = vmatpush2.bf16.msra.mxu0 0
        %4416 = vmatprep.subr.bf16.mxu0 0
        %4417 = vmatpush2.bf16.msra.mxu0 0
        %4418 = vmatprep.subr.bf16.mxu0 0
        %4419 = vmatpush2.bf16.msra.mxu0 0
        %4420 = vmatprep.subr.bf16.mxu0 0
        %4421 = vmatpush2.bf16.msra.mxu0 0
        %4422 = vmatprep.subr.bf16.mxu0 0
        %4423 = vmatpush2.bf16.msra.mxu0 0
        %4424 = vmatprep.subr.bf16.mxu0 0
        %4425 = vmatpush2.bf16.msra.mxu0 0
        %4426 = vmatprep.subr.bf16.mxu0 0
        %4427 = vmatpush2.bf16.msra.mxu0 0
        %4428 = vmatprep.subr.bf16.mxu0 0
        %4429 = vmatpush2.bf16.msra.mxu0 0
        %4430 = vmatprep.mubr.bf16.mxu0 0
        %4431 = vmatmul.mubr.bf16.gmra.mxu0 %v4276
        %v4432 = vpop.f32.mrf.mxu0
        %v4433 = vadd.f32 %v4188, %v4432
        %v4434 = vpop.f32.mrf.mxu0
        %v4435 = vadd.f32 %v4188, %v4434
        %v4436 = vpop.f32.mrf.mxu0
        %v4437 = vadd.f32 %v4193, %v4436
        %v4438 = vpop.f32.mrf.mxu0
        %v4439 = vadd.f32 %v4193, %v4438
        %4440 = vmatprep.mubr.bf16.mxu0 0
        %4441 = vmatmul.mubr.bf16.gmra.mxu0 %v4279
        %v4442 = vpop.f32.mrf.mxu0
        %v4443 = vadd.f32 %v4198, %v4442
        %v4444 = vpop.f32.mrf.mxu0
        %v4445 = vadd.f32 %v4198, %v4444
        %v4446 = vpop.f32.mrf.mxu0
        %v4447 = vadd.f32 %v4203, %v4446
        %v4448 = vpop.f32.mrf.mxu0
        %v4449 = vadd.f32 %v4203, %v4448
        %4450 = vmatprep.mubr.bf16.mxu0 0
        %4451 = vmatmul.mubr.bf16.gmra.mxu0 %v4282
        %v4452 = vpop.f32.mrf.mxu0
        %v4453 = vadd.f32 %v4208, %v4452
        %v4454 = vpop.f32.mrf.mxu0
        %v4455 = vadd.f32 %v4208, %v4454
        %v4456 = vpop.f32.mrf.mxu0
        %v4457 = vadd.f32 %v4213, %v4456
        %v4458 = vpop.f32.mrf.mxu0
        %v4459 = vadd.f32 %v4213, %v4458
        %4460 = vmatprep.mubr.bf16.mxu0 0
        %4461 = vmatmul.mubr.bf16.gmra.mxu0 %v4285
        %v4462 = vpop.f32.mrf.mxu0
        %v4463 = vadd.f32 %v4218, %v4462
        %v4464 = vpop.f32.mrf.mxu0
        %v4465 = vadd.f32 %v4218, %v4464
        %v4466 = vpop.f32.mrf.mxu0
        %v4467 = vadd.f32 %v4223, %v4466
        %v4468 = vpop.f32.mrf.mxu0
        %v4469 = vadd.f32 %v4223, %v4468
        %4470 = vmatprep.mubr.bf16.mxu0 0
        %4471 = vmatmul.mubr.bf16.gmra.mxu0 %v4288
        %v4472 = vpop.f32.mrf.mxu0
        %v4473 = vadd.f32 %v4228, %v4472
        %v4474 = vpop.f32.mrf.mxu0
        %v4475 = vadd.f32 %v4228, %v4474
        %v4476 = vpop.f32.mrf.mxu0
        %v4477 = vadd.f32 %v4233, %v4476
        %v4478 = vpop.f32.mrf.mxu0
        %v4479 = vadd.f32 %v4233, %v4478
        %4480 = vmatprep.mubr.bf16.mxu0 0
        %4481 = vmatmul.mubr.bf16.gmra.mxu0 %v4291
        %v4482 = vpop.f32.mrf.mxu0
        %v4483 = vadd.f32 %v4238, %v4482
        %v4484 = vpop.f32.mrf.mxu0
        %v4485 = vadd.f32 %v4238, %v4484
        %v4486 = vpop.f32.mrf.mxu0
        %v4487 = vadd.f32 %v4243, %v4486
        %v4488 = vpop.f32.mrf.mxu0
        %v4489 = vadd.f32 %v4243, %v4488
        %4490 = vdwg.mxu0
        %v4491 = vmul.f32 %v4340, 0.5
        %v4492 = vmul.f32 %v4342, 0.5
        %v4493 = vmul.f32 %v4433, 0.5
        %v4494 = vmul.f32 %v4435, 0.5
        %v4495 = vmul.f32 %v4344, 0.5
        %v4496 = vmul.f32 %v4346, 0.5
        %v4497 = vmul.f32 %v4437, 0.5
        %v4498 = vmul.f32 %v4439, 0.5
        %v4499 = vmul.f32 %v4350, 0.5
        %v4500 = vmul.f32 %v4352, 0.5
        %v4501 = vmul.f32 %v4443, 0.5
        %v4502 = vmul.f32 %v4445, 0.5
        %v4503 = vmul.f32 %v4354, 0.5
        %v4504 = vmul.f32 %v4356, 0.5
        %v4505 = vmul.f32 %v4447, 0.5
        %v4506 = vmul.f32 %v4449, 0.5
        %v4507 = vmul.f32 %v4360, 0.5
        %v4508 = vmul.f32 %v4362, 0.5
        %v4509 = vmul.f32 %v4453, 0.5
        %v4510 = vmul.f32 %v4455, 0.5
        %v4511 = vmul.f32 %v4364, 0.5
        %v4512 = vmul.f32 %v4366, 0.5
        %v4513 = vmul.f32 %v4457, 0.5
        %v4514 = vmul.f32 %v4459, 0.5
        %v4515 = vmul.f32 %v4370, 0.5
        %v4516 = vmul.f32 %v4372, 0.5
        %v4517 = vmul.f32 %v4463, 0.5
        %v4518 = vmul.f32 %v4465, 0.5
        %v4519 = vmul.f32 %v4374, 0.5
        %v4520 = vmul.f32 %v4376, 0.5
        %v4521 = vmul.f32 %v4467, 0.5
        %v4522 = vmul.f32 %v4469, 0.5
        %v4523 = vmul.f32 %v4380, 0.5
        %v4524 = vmul.f32 %v4382, 0.5
        %v4525 = vmul.f32 %v4473, 0.5
        %v4526 = vmul.f32 %v4475, 0.5
        %v4527 = vmul.f32 %v4384, 0.5
        %v4528 = vmul.f32 %v4386, 0.5
        %v4529 = vmul.f32 %v4477, 0.5
        %v4530 = vmul.f32 %v4479, 0.5
        %v4531 = vmul.f32 %v4390, 0.5
        %v4532 = vmul.f32 %v4392, 0.5
        %v4533 = vmul.f32 %v4483, 0.5
        %v4534 = vmul.f32 %v4485, 0.5
        %v4535 = vmul.f32 %v4394, 0.5
        %v4536 = vmul.f32 %v4396, 0.5
        %v4537 = vmul.f32 %v4487, 0.5
        %v4538 = vmul.f32 %v4489, 0.5
        %v4539 = vmul.f32 %v4340, 0.70710677
        %v4540 = vmul.f32 %v4342, 0.70710677
        %v4541 = vmul.f32 %v4433, 0.70710677
        %v4542 = vmul.f32 %v4435, 0.70710677
        %v4543 = vmul.f32 %v4344, 0.70710677
        %v4544 = vmul.f32 %v4346, 0.70710677
        %v4545 = vmul.f32 %v4437, 0.70710677
        %v4546 = vmul.f32 %v4439, 0.70710677
        %v4547 = vmul.f32 %v4350, 0.70710677
        %v4548 = vmul.f32 %v4352, 0.70710677
        %v4549 = vmul.f32 %v4443, 0.70710677
        %v4550 = vmul.f32 %v4445, 0.70710677
        %v4551 = vmul.f32 %v4354, 0.70710677
        %v4552 = vmul.f32 %v4356, 0.70710677
        %v4553 = vmul.f32 %v4447, 0.70710677
        %v4554 = vmul.f32 %v4449, 0.70710677
        %v4555 = vmul.f32 %v4360, 0.70710677
        %v4556 = vmul.f32 %v4362, 0.70710677
        %v4557 = vmul.f32 %v4453, 0.70710677
        %v4558 = vmul.f32 %v4455, 0.70710677
        %v4559 = vmul.f32 %v4364, 0.70710677
        %v4560 = vmul.f32 %v4366, 0.70710677
        %v4561 = vmul.f32 %v4457, 0.70710677
        %v4562 = vmul.f32 %v4459, 0.70710677
        %v4563 = vmul.f32 %v4370, 0.70710677
        %v4564 = vmul.f32 %v4372, 0.70710677
        %v4565 = vmul.f32 %v4463, 0.70710677
        %v4566 = vmul.f32 %v4465, 0.70710677
        %v4567 = vmul.f32 %v4374, 0.70710677
        %v4568 = vmul.f32 %v4376, 0.70710677
        %v4569 = vmul.f32 %v4467, 0.70710677
        %v4570 = vmul.f32 %v4469, 0.70710677
        %v4571 = vmul.f32 %v4380, 0.70710677
        %v4572 = vmul.f32 %v4382, 0.70710677
        %v4573 = vmul.f32 %v4473, 0.70710677
        %v4574 = vmul.f32 %v4475, 0.70710677
        %v4575 = vmul.f32 %v4384, 0.70710677
        %v4576 = vmul.f32 %v4386, 0.70710677
        %v4577 = vmul.f32 %v4477, 0.70710677
        %v4578 = vmul.f32 %v4479, 0.70710677
        %v4579 = vmul.f32 %v4390, 0.70710677
        %v4580 = vmul.f32 %v4392, 0.70710677
        %v4581 = vmul.f32 %v4483, 0.70710677
        %v4582 = vmul.f32 %v4485, 0.70710677
        %v4583 = vmul.f32 %v4394, 0.70710677
        %v4584 = vmul.f32 %v4396, 0.70710677
        %v4585 = vmul.f32 %v4487, 0.70710677
        %v4586 = vmul.f32 %v4489, 0.70710677
        %v4587 = verf.f32.pop %v4539
        %v4588 = verf.f32.pop %v4540
        %v4589 = verf.f32.pop %v4541
        %v4590 = verf.f32.pop %v4542
        %v4591 = verf.f32.pop %v4543
        %v4592 = verf.f32.pop %v4544
        %v4593 = verf.f32.pop %v4545
        %v4594 = verf.f32.pop %v4546
        %v4595 = verf.f32.pop %v4547
        %v4596 = verf.f32.pop %v4548
        %v4597 = verf.f32.pop %v4549
        %v4598 = verf.f32.pop %v4550
        %v4599 = verf.f32.pop %v4551
        %v4600 = verf.f32.pop %v4552
        %v4601 = verf.f32.pop %v4553
        %v4602 = verf.f32.pop %v4554
        %v4603 = verf.f32.pop %v4555
        %v4604 = verf.f32.pop %v4556
        %v4605 = verf.f32.pop %v4557
        %v4606 = verf.f32.pop %v4558
        %v4607 = verf.f32.pop %v4559
        %v4608 = verf.f32.pop %v4560
        %v4609 = verf.f32.pop %v4561
        %v4610 = verf.f32.pop %v4562
        %v4611 = verf.f32.pop %v4563
        %v4612 = verf.f32.pop %v4564
        %v4613 = verf.f32.pop %v4565
        %v4614 = verf.f32.pop %v4566
        %v4615 = verf.f32.pop %v4567
        %v4616 = verf.f32.pop %v4568
        %v4617 = verf.f32.pop %v4569
        %v4618 = verf.f32.pop %v4570
        %v4619 = verf.f32.pop %v4571
        %v4620 = verf.f32.pop %v4572
        %v4621 = verf.f32.pop %v4573
        %v4622 = verf.f32.pop %v4574
        %v4623 = verf.f32.pop %v4575
        %v4624 = verf.f32.pop %v4576
        %v4625 = verf.f32.pop %v4577
        %v4626 = verf.f32.pop %v4578
        %v4627 = verf.f32.pop %v4579
        %v4628 = verf.f32.pop %v4580
        %v4629 = verf.f32.pop %v4581
        %v4630 = verf.f32.pop %v4582
        %v4631 = verf.f32.pop %v4583
        %v4632 = verf.f32.pop %v4584
        %v4633 = verf.f32.pop %v4585
        %v4634 = verf.f32.pop %v4586
        %v4635 = vadd.f32 %v4587, 1.0
        %v4636 = vadd.f32 %v4588, 1.0
        %v4637 = vadd.f32 %v4589, 1.0
        %v4638 = vadd.f32 %v4590, 1.0
        %v4639 = vadd.f32 %v4591, 1.0
        %v4640 = vadd.f32 %v4592, 1.0
        %v4641 = vadd.f32 %v4593, 1.0
        %v4642 = vadd.f32 %v4594, 1.0
        %v4643 = vadd.f32 %v4595, 1.0
        %v4644 = vadd.f32 %v4596, 1.0
        %v4645 = vadd.f32 %v4597, 1.0
        %v4646 = vadd.f32 %v4598, 1.0
        %v4647 = vadd.f32 %v4599, 1.0
        %v4648 = vadd.f32 %v4600, 1.0
        %v4649 = vadd.f32 %v4601, 1.0
        %v4650 = vadd.f32 %v4602, 1.0
        %v4651 = vadd.f32 %v4603, 1.0
        %v4652 = vadd.f32 %v4604, 1.0
        %v4653 = vadd.f32 %v4605, 1.0
        %v4654 = vadd.f32 %v4606, 1.0
        %v4655 = vadd.f32 %v4607, 1.0
        %v4656 = vadd.f32 %v4608, 1.0
        %v4657 = vadd.f32 %v4609, 1.0
        %v4658 = vadd.f32 %v4610, 1.0
        %v4659 = vadd.f32 %v4611, 1.0
        %v4660 = vadd.f32 %v4612, 1.0
        %v4661 = vadd.f32 %v4613, 1.0
        %v4662 = vadd.f32 %v4614, 1.0
        %v4663 = vadd.f32 %v4615, 1.0
        %v4664 = vadd.f32 %v4616, 1.0
        %v4665 = vadd.f32 %v4617, 1.0
        %v4666 = vadd.f32 %v4618, 1.0
        %v4667 = vadd.f32 %v4619, 1.0
        %v4668 = vadd.f32 %v4620, 1.0
        %v4669 = vadd.f32 %v4621, 1.0
        %v4670 = vadd.f32 %v4622, 1.0
        %v4671 = vadd.f32 %v4623, 1.0
        %v4672 = vadd.f32 %v4624, 1.0
        %v4673 = vadd.f32 %v4625, 1.0
        %v4674 = vadd.f32 %v4626, 1.0
        %v4675 = vadd.f32 %v4627, 1.0
        %v4676 = vadd.f32 %v4628, 1.0
        %v4677 = vadd.f32 %v4629, 1.0
        %v4678 = vadd.f32 %v4630, 1.0
        %v4679 = vadd.f32 %v4631, 1.0
        %v4680 = vadd.f32 %v4632, 1.0
        %v4681 = vadd.f32 %v4633, 1.0
        %v4682 = vadd.f32 %v4634, 1.0
        %v4683 = vmul.f32 %v4491, %v4635
        %v4684 = vmul.f32 %v4492, %v4636
        %v4685 = vmul.f32 %v4493, %v4637
        %v4686 = vmul.f32 %v4494, %v4638
        %v4687 = vmul.f32 %v4495, %v4639
        %v4688 = vmul.f32 %v4496, %v4640
        %v4689 = vmul.f32 %v4497, %v4641
        %v4690 = vmul.f32 %v4498, %v4642
        %v4691 = vmul.f32 %v4499, %v4643
        %v4692 = vmul.f32 %v4500, %v4644
        %v4693 = vmul.f32 %v4501, %v4645
        %v4694 = vmul.f32 %v4502, %v4646
        %v4695 = vmul.f32 %v4503, %v4647
        %v4696 = vmul.f32 %v4504, %v4648
        %v4697 = vmul.f32 %v4505, %v4649
        %v4698 = vmul.f32 %v4506, %v4650
        %v4699 = vmul.f32 %v4507, %v4651
        %v4700 = vmul.f32 %v4508, %v4652
        %v4701 = vmul.f32 %v4509, %v4653
        %v4702 = vmul.f32 %v4510, %v4654
        %v4703 = vmul.f32 %v4511, %v4655
        %v4704 = vmul.f32 %v4512, %v4656
        %v4705 = vmul.f32 %v4513, %v4657
        %v4706 = vmul.f32 %v4514, %v4658
        %v4707 = vmul.f32 %v4515, %v4659
        %v4708 = vmul.f32 %v4516, %v4660
        %v4709 = vmul.f32 %v4517, %v4661
        %v4710 = vmul.f32 %v4518, %v4662
        %v4711 = vmul.f32 %v4519, %v4663
        %v4712 = vmul.f32 %v4520, %v4664
        %v4713 = vmul.f32 %v4521, %v4665
        %v4714 = vmul.f32 %v4522, %v4666
        %v4715 = vmul.f32 %v4523, %v4667
        %v4716 = vmul.f32 %v4524, %v4668
        %v4717 = vmul.f32 %v4525, %v4669
        %v4718 = vmul.f32 %v4526, %v4670
        %v4719 = vmul.f32 %v4527, %v4671
        %v4720 = vmul.f32 %v4528, %v4672
        %v4721 = vmul.f32 %v4529, %v4673
        %v4722 = vmul.f32 %v4530, %v4674
        %v4723 = vmul.f32 %v4531, %v4675
        %v4724 = vmul.f32 %v4532, %v4676
        %v4725 = vmul.f32 %v4533, %v4677
        %v4726 = vmul.f32 %v4534, %v4678
        %v4727 = vmul.f32 %v4535, %v4679
        %v4728 = vmul.f32 %v4536, %v4680
        %v4729 = vmul.f32 %v4537, %v4681
        %v4730 = vmul.f32 %v4538, %v4682
        %v4731 = vadd.f32 %v3658, %v4683
        %v4732 = vadd.f32 %v3659, %v4684
        %v4733 = vadd.f32 %v3660, %v4685
        %v4734 = vadd.f32 %v3661, %v4686
        %v4735 = vadd.f32 %v3662, %v4687
        %v4736 = vadd.f32 %v3663, %v4688
        %v4737 = vadd.f32 %v3664, %v4689
        %v4738 = vadd.f32 %v3665, %v4690
        %v4739 = vadd.f32 %v3666, %v4691
        %v4740 = vadd.f32 %v3667, %v4692
        %v4741 = vadd.f32 %v3668, %v4693
        %v4742 = vadd.f32 %v3669, %v4694
        %v4743 = vadd.f32 %v3670, %v4695
        %v4744 = vadd.f32 %v3671, %v4696
        %v4745 = vadd.f32 %v3672, %v4697
        %v4746 = vadd.f32 %v3673, %v4698
        %v4747 = vadd.f32 %v3674, %v4699
        %v4748 = vadd.f32 %v3675, %v4700
        %v4749 = vadd.f32 %v3676, %v4701
        %v4750 = vadd.f32 %v3677, %v4702
        %v4751 = vadd.f32 %v3678, %v4703
        %v4752 = vadd.f32 %v3679, %v4704
        %v4753 = vadd.f32 %v3680, %v4705
        %v4754 = vadd.f32 %v3681, %v4706
        %v4755 = vadd.f32 %v3682, %v4707
        %v4756 = vadd.f32 %v3683, %v4708
        %v4757 = vadd.f32 %v3684, %v4709
        %v4758 = vadd.f32 %v3685, %v4710
        %v4759 = vadd.f32 %v3686, %v4711
        %v4760 = vadd.f32 %v3687, %v4712
        %v4761 = vadd.f32 %v3688, %v4713
        %v4762 = vadd.f32 %v3689, %v4714
        %v4763 = vadd.f32 %v4715, %v3690
        %v4764 = vadd.f32 %v4716, %v3691
        %v4765 = vadd.f32 %v4717, %v3692
        %v4766 = vadd.f32 %v4718, %v3693
        %v4767 = vadd.f32 %v4719, %v3694
        %v4768 = vadd.f32 %v4720, %v3695
        %v4769 = vadd.f32 %v4721, %v3696
        %v4770 = vadd.f32 %v4722, %v3697
        %v4771 = vadd.f32 %v4723, %v3698
        %v4772 = vadd.f32 %v4724, %v3699
        %v4773 = vadd.f32 %v4725, %v3700
        %v4774 = vadd.f32 %v4726, %v3701
        %v4775 = vadd.f32 %v4727, %v3702
        %v4776 = vadd.f32 %v4728, %v3703
        %v4777 = vadd.f32 %v4729, %v3704
        %v4778 = vadd.f32 %v4730, %v3705
        %4779 = vrot.lane.b32.xlu0 %v4763, 1
        %v4780 = vpop.permute.xlu0 %4779
        %4781 = vrot.lane.b32.xlu0 %v4767, 1
        %v4782 = vpop.permute.xlu0 %4781
        %4783 = vrot.lane.b32.xlu0 %v4771, 1
        %v4784 = vpop.permute.xlu0 %4783
        %4785 = vrot.lane.b32.xlu0 %v4775, 1
        %v4786 = vpop.permute.xlu0 %4785
        %4787 = vrot.lane.b32.xlu0 %v4764, 1
        %v4788 = vpop.permute.xlu0 %4787
        %4789 = vrot.lane.b32.xlu0 %v4768, 1
        %v4790 = vpop.permute.xlu0 %4789
        %4791 = vrot.lane.b32.xlu0 %v4772, 1
        %v4792 = vpop.permute.xlu0 %4791
        %4793 = vrot.lane.b32.xlu0 %v4776, 1
        %v4794 = vpop.permute.xlu0 %4793
        %4795 = vrot.lane.b32.xlu0 %v4765, 1
        %v4796 = vpop.permute.xlu0 %4795
        %4797 = vrot.lane.b32.xlu0 %v4769, 1
        %v4798 = vpop.permute.xlu0 %4797
        %4799 = vrot.lane.b32.xlu0 %v4773, 1
        %v4800 = vpop.permute.xlu0 %4799
        %4801 = vrot.lane.b32.xlu0 %v4777, 1
        %v4802 = vpop.permute.xlu0 %4801
        %4803 = vrot.lane.b32.xlu0 %v4766, 1
        %v4804 = vpop.permute.xlu0 %4803
        %4805 = vrot.lane.b32.xlu0 %v4770, 1
        %v4806 = vpop.permute.xlu0 %4805
        %4807 = vrot.lane.b32.xlu0 %v4774, 1
        %v4808 = vpop.permute.xlu0 %4807
        %4809 = vrot.lane.b32.xlu0 %v4778, 1
        %v4810 = vpop.permute.xlu0 %4809
        %v4811 = vsel %vm552, %v4796, %v4804
        %v4812 = vsel %vm552, %v4798, %v4806
        %v4813 = vsel %vm552, %v4800, %v4808
        %v4814 = vsel %vm552, %v4802, %v4810
        %v4815 = vsel %vm552, %v4788, %v4796
        %v4816 = vsel %vm552, %v4790, %v4798
        %v4817 = vsel %vm552, %v4792, %v4800
        %v4818 = vsel %vm552, %v4794, %v4802
        %v4819 = vsel %vm552, %v4780, %v4788
        %v4820 = vsel %vm552, %v4782, %v4790
        %v4821 = vsel %vm552, %v4784, %v4792
        %v4822 = vsel %vm552, %v4786, %v4794
        %v4823 = vsel %vm552, %v4804, %v4780
        %v4824 = vsel %vm552, %v4806, %v4782
        %v4825 = vsel %vm552, %v4808, %v4784
        %v4826 = vsel %vm552, %v4810, %v4786
        %v4827 = vsel %vm573, %v4823, 0.0
        %v4828 = vsel %vm574, %v4819, 0.0
        %v4829 = vsel %vm575, %v4815, 0.0
        %v4830 = vsel %vm576, %v4811, 0.0
        %v4831 = vsel %vm573, %v4824, 0.0
        %v4832 = vsel %vm574, %v4820, 0.0
        %v4833 = vsel %vm575, %v4816, 0.0
        %v4834 = vsel %vm576, %v4812, 0.0
        %v4835 = vsel %vm573, %v4825, 0.0
        %v4836 = vsel %vm574, %v4821, 0.0
        %v4837 = vsel %vm575, %v4817, 0.0
        %v4838 = vsel %vm576, %v4813, 0.0
        %v4839 = vsel %vm573, %v4826, 0.0
        %v4840 = vsel %vm574, %v4822, 0.0
        %v4841 = vsel %vm575, %v4818, 0.0
        %v4842 = vsel %vm576, %v4814, 0.0
        %4843 = vrot.lane.b32.xlu0 %v4763, 127
        %v4844 = vpop.permute.xlu0 %4843
        %4845 = vrot.lane.b32.xlu0 %v4767, 127
        %v4846 = vpop.permute.xlu0 %4845
        %4847 = vrot.lane.b32.xlu0 %v4771, 127
        %v4848 = vpop.permute.xlu0 %4847
        %4849 = vrot.lane.b32.xlu0 %v4775, 127
        %v4850 = vpop.permute.xlu0 %4849
        %4851 = vrot.lane.b32.xlu0 %v4764, 127
        %v4852 = vpop.permute.xlu0 %4851
        %4853 = vrot.lane.b32.xlu0 %v4768, 127
        %v4854 = vpop.permute.xlu0 %4853
        %4855 = vrot.lane.b32.xlu0 %v4772, 127
        %v4856 = vpop.permute.xlu0 %4855
        %4857 = vrot.lane.b32.xlu0 %v4776, 127
        %v4858 = vpop.permute.xlu0 %4857
        %4859 = vrot.lane.b32.xlu0 %v4765, 127
        %v4860 = vpop.permute.xlu0 %4859
        %4861 = vrot.lane.b32.xlu0 %v4769, 127
        %v4862 = vpop.permute.xlu0 %4861
        %4863 = vrot.lane.b32.xlu0 %v4773, 127
        %v4864 = vpop.permute.xlu0 %4863
        %4865 = vrot.lane.b32.xlu0 %v4777, 127
        %v4866 = vpop.permute.xlu0 %4865
        %4867 = vrot.lane.b32.xlu0 %v4766, 127
        %v4868 = vpop.permute.xlu0 %4867
        %4869 = vrot.lane.b32.xlu0 %v4770, 127
        %v4870 = vpop.permute.xlu0 %4869
        %4871 = vrot.lane.b32.xlu0 %v4774, 127
        %v4872 = vpop.permute.xlu0 %4871
        %4873 = vrot.lane.b32.xlu0 %v4778, 127
        %v4874 = vpop.permute.xlu0 %4873
        %v4875 = vsel %vm625, %v4860, %v4868
        %v4876 = vsel %vm625, %v4862, %v4870
        %v4877 = vsel %vm625, %v4864, %v4872
        %v4878 = vsel %vm625, %v4866, %v4874
        %v4879 = vsel %vm625, %v4852, %v4860
        %v4880 = vsel %vm625, %v4854, %v4862
        %v4881 = vsel %vm625, %v4856, %v4864
        %v4882 = vsel %vm625, %v4858, %v4866
        %v4883 = vsel %vm625, %v4844, %v4852
        %v4884 = vsel %vm625, %v4846, %v4854
        %v4885 = vsel %vm625, %v4848, %v4856
        %v4886 = vsel %vm625, %v4850, %v4858
        %v4887 = vsel %vm625, %v4868, %v4844
        %v4888 = vsel %vm625, %v4870, %v4846
        %v4889 = vsel %vm625, %v4872, %v4848
        %v4890 = vsel %vm625, %v4874, %v4850
        %v4891 = vsel %vm646, %v4883, 0.0
        %v4892 = vsel %vm647, %v4879, 0.0
        %v4893 = vsel %vm648, %v4875, 0.0
        %v4894 = vsel %vm649, %v4887, 0.0
        %v4895 = vsel %vm646, %v4884, 0.0
        %v4896 = vsel %vm647, %v4880, 0.0
        %v4897 = vsel %vm648, %v4876, 0.0
        %v4898 = vsel %vm649, %v4888, 0.0
        %v4899 = vsel %vm646, %v4885, 0.0
        %v4900 = vsel %vm647, %v4881, 0.0
        %v4901 = vsel %vm648, %v4877, 0.0
        %v4902 = vsel %vm649, %v4889, 0.0
        %v4903 = vsel %vm646, %v4886, 0.0
        %v4904 = vsel %vm647, %v4882, 0.0
        %v4905 = vsel %vm648, %v4878, 0.0
        %v4906 = vsel %vm649, %v4890, 0.0
        %v4907 = vpack.c.bf16 %v4831, %v4827
        %v4908 = vpack.c.bf16 %v4832, %v4828
        %v4909 = vpack.c.bf16 %v4833, %v4829
        %v4910 = vpack.c.bf16 %v4834, %v4830
        %v4911 = vpack.c.bf16 %v4839, %v4835
        %v4912 = vpack.c.bf16 %v4840, %v4836
        %v4913 = vpack.c.bf16 %v4841, %v4837
        %v4914 = vpack.c.bf16 %v4842, %v4838
        %v4915 = vpack.c.bf16 %v4767, %v4763
        %v4916 = vpack.c.bf16 %v4768, %v4764
        %v4917 = vpack.c.bf16 %v4769, %v4765
        %v4918 = vpack.c.bf16 %v4770, %v4766
        %v4919 = vpack.c.bf16 %v4775, %v4771
        %v4920 = vpack.c.bf16 %v4776, %v4772
        %v4921 = vpack.c.bf16 %v4777, %v4773
        %v4922 = vpack.c.bf16 %v4778, %v4774
        %v4923 = vpack.c.bf16 %v4895, %v4891
        %v4924 = vpack.c.bf16 %v4896, %v4892
        %v4925 = vpack.c.bf16 %v4897, %v4893
        %v4926 = vpack.c.bf16 %v4898, %v4894
        %v4927 = vpack.c.bf16 %v4903, %v4899
        %v4928 = vpack.c.bf16 %v4904, %v4900
        %v4929 = vpack.c.bf16 %v4905, %v4901
        %v4930 = vpack.c.bf16 %v4906, %v4902
        %s4931 = scalar_lea.vmem [#allocation3], 80
        %v4932 = vld [vmem:[%s4931] sm:$0xf]
        %v4933 = vld [vmem:[%s4931 + $0x4] sm:$0xf]
        %v4934 = vld [vmem:[%s4931 + $0x8] sm:$0xf]
        %v4935 = vld [vmem:[%s4931 + $0xc] sm:$0xf]
        %v4936 = vld [vmem:[%s4931 + $0x10] sm:$0xf]
        %s4937 = scalar_lea.vmem %s3, 640
        %v4938 = vld [vmem:[%s4937] sm:$0xff]
        %v4939 = vld [vmem:[%s4937 + $0x8] sm:$0xff]
        %v4940 = vld [vmem:[%s4937 + $0x10] sm:$0xff]
        %v4941 = vld [vmem:[%s4937 + $0x18] sm:$0xff]
        %v4942 = vld [vmem:[%s4937 + $0x20] sm:$0xff]
        %v4943 = vld [vmem:[%s4937 + $0x28] sm:$0xff]
        %v4944 = vld [vmem:[%s4937 + $0x30] sm:$0xff]
        %v4945 = vld [vmem:[%s4937 + $0x38] sm:$0xff]
        %v4946 = vld [vmem:[%s4937 + $0x40] sm:$0xff]
        %v4947 = vld [vmem:[%s4937 + $0x48] sm:$0xff]
        %v4948 = vld [vmem:[%s4937 + $0x50] sm:$0xff]
        %v4949 = vld [vmem:[%s4937 + $0x58] sm:$0xff]
        %v4950 = vld [vmem:[%s4937 + $0x60] sm:$0xff]
        %v4951 = vld [vmem:[%s4937 + $0x68] sm:$0xff]
        %v4952 = vld [vmem:[%s4937 + $0x70] sm:$0xff]
        %v4953 = vld [vmem:[%s4937 + $0x78] sm:$0xff]
        %v4954 = vld [vmem:[%s4937 + $0x80] sm:$0xff]
        %v4955 = vld [vmem:[%s4937 + $0x88] sm:$0xff]
        %v4956 = vld [vmem:[%s4937 + $0x90] sm:$0xff]
        %v4957 = vld [vmem:[%s4937 + $0x98] sm:$0xff]
        %v4963 = vunpack.c.l.b16 %v4932
        %v4964 = vunpack.c.l.b16 %v4933
        %v4965 = vunpack.c.l.b16 %v4934
        %v4966 = vunpack.c.l.b16 %v4935
        %v4967 = vunpack.c.l.b16 %v4936
        %v4968 = vpack.c.b16 %v4964, %v4963
        %v4969 = vpack.c.b16 %v4966, %v4965
        %v4970 = vpack.c.b16 %v4967, %v4967
        %v4972 = vsel %vm728, %v4968, 0
        %v4975 = vsel %vm728, %v4969, 0
        %v4978 = vsel %vm728, %v4970, 0
        %4980 = vmatprep.subr.bf16.mxu0 0
        %4981 = vmatpush1.bf16.msra.mxu0 0
        %4982 = vmatprep.subr.bf16.mxu0 0
        %4983 = vmatpush1.bf16.msra.mxu0 0
        %4984 = vmatprep.subr.bf16.mxu0 %v4928
        %4985 = vmatpush1.bf16.msra.mxu0 %v4927
        %4986 = vmatprep.subr.bf16.mxu0 %v4924
        %4987 = vmatpush1.bf16.msra.mxu0 %v4923
        %4988 = vmatprep.subr.bf16.mxu0 %v4920
        %4989 = vmatpush1.bf16.msra.mxu0 %v4919
        %4990 = vmatprep.subr.bf16.mxu0 %v4916
        %4991 = vmatpush1.bf16.msra.mxu0 %v4915
        %4992 = vmatprep.subr.bf16.mxu0 %v4912
        %4993 = vmatpush1.bf16.msra.mxu0 %v4911
        %4994 = vmatprep.subr.bf16.mxu0 %v4908
        %4995 = vmatpush1.bf16.msra.mxu0 %v4907
        %4996 = vmatprep.subr.bf16.mxu0 0
        %4997 = vmatpush2.bf16.msra.mxu0 0
        %4998 = vmatprep.subr.bf16.mxu0 0
        %4999 = vmatpush2.bf16.msra.mxu0 0
        %5000 = vmatprep.subr.bf16.mxu0 0
        %5001 = vmatpush2.bf16.msra.mxu0 0
        %5002 = vmatprep.subr.bf16.mxu0 0
        %5003 = vmatpush2.bf16.msra.mxu0 0
        %5004 = vmatprep.subr.bf16.mxu0 0
        %5005 = vmatpush2.bf16.msra.mxu0 0
        %5006 = vmatprep.subr.bf16.mxu0 0
        %5007 = vmatpush2.bf16.msra.mxu0 0
        %5008 = vmatprep.subr.bf16.mxu0 0
        %5009 = vmatpush2.bf16.msra.mxu0 0
        %5010 = vmatprep.subr.bf16.mxu0 0
        %5011 = vmatpush2.bf16.msra.mxu0 0
        %5012 = vmatprep.mubr.bf16.mxu0 0
        %5013 = vmatmul.mubr.bf16.gmra.mxu0 %v4972
        %v5014 = vpop.f32.mrf.mxu0
        %v5015 = vadd.f32 %v4938, %v5014
        %v5016 = vpop.f32.mrf.mxu0
        %v5017 = vadd.f32 %v4939, %v5016
        %v5018 = vpop.f32.mrf.mxu0
        %v5019 = vadd.f32 %v4942, %v5018
        %v5020 = vpop.f32.mrf.mxu0
        %v5021 = vadd.f32 %v4943, %v5020
        %5022 = vmatprep.mubr.bf16.mxu0 0
        %5023 = vmatmul.mubr.bf16.gmra.mxu0 %v4975
        %v5024 = vpop.f32.mrf.mxu0
        %v5025 = vadd.f32 %v4946, %v5024
        %v5026 = vpop.f32.mrf.mxu0
        %v5027 = vadd.f32 %v4947, %v5026
        %v5028 = vpop.f32.mrf.mxu0
        %v5029 = vadd.f32 %v4950, %v5028
        %v5030 = vpop.f32.mrf.mxu0
        %v5031 = vadd.f32 %v4951, %v5030
        %5032 = vmatprep.mubr.bf16.mxu0 0
        %5033 = vmatmul.mubr.bf16.gmra.mxu0 %v4978
        %v5034 = vpop.f32.mrf.mxu0
        %v5035 = vadd.f32 %v4954, %v5034
        %v5036 = vpop.f32.mrf.mxu0
        %v5037 = vadd.f32 %v4955, %v5036
        %v5038 = vpop.f32.mrf.mxu0
        %v5039 = vpop.f32.mrf.mxu0
        %5040 = vdwg.mxu0
        %5041 = vmatprep.subr.bf16.mxu0 0
        %5042 = vmatpush1.bf16.msra.mxu0 0
        %5043 = vmatprep.subr.bf16.mxu0 0
        %5044 = vmatpush1.bf16.msra.mxu0 0
        %5045 = vmatprep.subr.bf16.mxu0 %v4930
        %5046 = vmatpush1.bf16.msra.mxu0 %v4929
        %5047 = vmatprep.subr.bf16.mxu0 %v4926
        %5048 = vmatpush1.bf16.msra.mxu0 %v4925
        %5049 = vmatprep.subr.bf16.mxu0 %v4922
        %5050 = vmatpush1.bf16.msra.mxu0 %v4921
        %5051 = vmatprep.subr.bf16.mxu0 %v4918
        %5052 = vmatpush1.bf16.msra.mxu0 %v4917
        %5053 = vmatprep.subr.bf16.mxu0 %v4914
        %5054 = vmatpush1.bf16.msra.mxu0 %v4913
        %5055 = vmatprep.subr.bf16.mxu0 %v4910
        %5056 = vmatpush1.bf16.msra.mxu0 %v4909
        %5057 = vmatprep.subr.bf16.mxu0 0
        %5058 = vmatpush2.bf16.msra.mxu0 0
        %5059 = vmatprep.subr.bf16.mxu0 0
        %5060 = vmatpush2.bf16.msra.mxu0 0
        %5061 = vmatprep.subr.bf16.mxu0 0
        %5062 = vmatpush2.bf16.msra.mxu0 0
        %5063 = vmatprep.subr.bf16.mxu0 0
        %5064 = vmatpush2.bf16.msra.mxu0 0
        %5065 = vmatprep.subr.bf16.mxu0 0
        %5066 = vmatpush2.bf16.msra.mxu0 0
        %5067 = vmatprep.subr.bf16.mxu0 0
        %5068 = vmatpush2.bf16.msra.mxu0 0
        %5069 = vmatprep.subr.bf16.mxu0 0
        %5070 = vmatpush2.bf16.msra.mxu0 0
        %5071 = vmatprep.subr.bf16.mxu0 0
        %5072 = vmatpush2.bf16.msra.mxu0 0
        %5073 = vmatprep.mubr.bf16.mxu0 0
        %5074 = vmatmul.mubr.bf16.gmra.mxu0 %v4972
        %v5075 = vpop.f32.mrf.mxu0
        %v5076 = vadd.f32 %v4940, %v5075
        %v5077 = vpop.f32.mrf.mxu0
        %v5078 = vadd.f32 %v4941, %v5077
        %v5079 = vpop.f32.mrf.mxu0
        %v5080 = vadd.f32 %v4944, %v5079
        %v5081 = vpop.f32.mrf.mxu0
        %v5082 = vadd.f32 %v4945, %v5081
        %5083 = vmatprep.mubr.bf16.mxu0 0
        %5084 = vmatmul.mubr.bf16.gmra.mxu0 %v4975
        %v5085 = vpop.f32.mrf.mxu0
        %v5086 = vadd.f32 %v4948, %v5085
        %v5087 = vpop.f32.mrf.mxu0
        %v5088 = vadd.f32 %v4949, %v5087
        %v5089 = vpop.f32.mrf.mxu0
        %v5090 = vadd.f32 %v4952, %v5089
        %v5091 = vpop.f32.mrf.mxu0
        %v5092 = vadd.f32 %v4953, %v5091
        %5093 = vmatprep.mubr.bf16.mxu0 0
        %5094 = vmatmul.mubr.bf16.gmra.mxu0 %v4978
        %v5095 = vpop.f32.mrf.mxu0
        %v5096 = vadd.f32 %v4956, %v5095
        %v5097 = vpop.f32.mrf.mxu0
        %v5098 = vadd.f32 %v4957, %v5097
        %v5099 = vpop.f32.mrf.mxu0
        %v5100 = vpop.f32.mrf.mxu0
        %5101 = vdwg.mxu0
        %v5102 = vmul.f32 %v5015, 0.5
        %v5103 = vmul.f32 %v5017, 0.5
        %v5104 = vmul.f32 %v5076, 0.5
        %v5105 = vmul.f32 %v5078, 0.5
        %v5106 = vmul.f32 %v5019, 0.5
        %v5107 = vmul.f32 %v5021, 0.5
        %v5108 = vmul.f32 %v5080, 0.5
        %v5109 = vmul.f32 %v5082, 0.5
        %v5110 = vmul.f32 %v5025, 0.5
        %v5111 = vmul.f32 %v5027, 0.5
        %v5112 = vmul.f32 %v5086, 0.5
        %v5113 = vmul.f32 %v5088, 0.5
        %v5114 = vmul.f32 %v5029, 0.5
        %v5115 = vmul.f32 %v5031, 0.5
        %v5116 = vmul.f32 %v5090, 0.5
        %v5117 = vmul.f32 %v5092, 0.5
        %v5118 = vmul.f32 %v5035, 0.5
        %v5119 = vmul.f32 %v5037, 0.5
        %v5120 = vmul.f32 %v5096, 0.5
        %v5121 = vmul.f32 %v5098, 0.5
        %v5122 = vmul.f32 %v5015, 0.70710677
        %v5123 = vmul.f32 %v5017, 0.70710677
        %v5124 = vmul.f32 %v5076, 0.70710677
        %v5125 = vmul.f32 %v5078, 0.70710677
        %v5126 = vmul.f32 %v5019, 0.70710677
        %v5127 = vmul.f32 %v5021, 0.70710677
        %v5128 = vmul.f32 %v5080, 0.70710677
        %v5129 = vmul.f32 %v5082, 0.70710677
        %v5130 = vmul.f32 %v5025, 0.70710677
        %v5131 = vmul.f32 %v5027, 0.70710677
        %v5132 = vmul.f32 %v5086, 0.70710677
        %v5133 = vmul.f32 %v5088, 0.70710677
        %v5134 = vmul.f32 %v5029, 0.70710677
        %v5135 = vmul.f32 %v5031, 0.70710677
        %v5136 = vmul.f32 %v5090, 0.70710677
        %v5137 = vmul.f32 %v5092, 0.70710677
        %v5138 = vmul.f32 %v5035, 0.70710677
        %v5139 = vmul.f32 %v5037, 0.70710677
        %v5140 = vmul.f32 %v5096, 0.70710677
        %v5141 = vmul.f32 %v5098, 0.70710677
        %v5142 = verf.f32.pop %v5122
        %v5143 = verf.f32.pop %v5123
        %v5144 = verf.f32.pop %v5124
        %v5145 = verf.f32.pop %v5125
        %v5146 = verf.f32.pop %v5126
        %v5147 = verf.f32.pop %v5127
        %v5148 = verf.f32.pop %v5128
        %v5149 = verf.f32.pop %v5129
        %v5150 = verf.f32.pop %v5130
        %v5151 = verf.f32.pop %v5131
        %v5152 = verf.f32.pop %v5132
        %v5153 = verf.f32.pop %v5133
        %v5154 = verf.f32.pop %v5134
        %v5155 = verf.f32.pop %v5135
        %v5156 = verf.f32.pop %v5136
        %v5157 = verf.f32.pop %v5137
        %v5158 = verf.f32.pop %v5138
        %v5159 = verf.f32.pop %v5139
        %v5160 = verf.f32.pop %v5140
        %v5161 = verf.f32.pop %v5141
        %v5162 = vadd.f32 %v5142, 1.0
        %v5163 = vadd.f32 %v5143, 1.0
        %v5164 = vadd.f32 %v5144, 1.0
        %v5165 = vadd.f32 %v5145, 1.0
        %v5166 = vadd.f32 %v5146, 1.0
        %v5167 = vadd.f32 %v5147, 1.0
        %v5168 = vadd.f32 %v5148, 1.0
        %v5169 = vadd.f32 %v5149, 1.0
        %v5170 = vadd.f32 %v5150, 1.0
        %v5171 = vadd.f32 %v5151, 1.0
        %v5172 = vadd.f32 %v5152, 1.0
        %v5173 = vadd.f32 %v5153, 1.0
        %v5174 = vadd.f32 %v5154, 1.0
        %v5175 = vadd.f32 %v5155, 1.0
        %v5176 = vadd.f32 %v5156, 1.0
        %v5177 = vadd.f32 %v5157, 1.0
        %v5178 = vadd.f32 %v5158, 1.0
        %v5179 = vadd.f32 %v5159, 1.0
        %v5180 = vadd.f32 %v5160, 1.0
        %v5181 = vadd.f32 %v5161, 1.0
        %v5182 = vmul.f32 %v5102, %v5162
        %v5183 = vmul.f32 %v5103, %v5163
        %v5184 = vmul.f32 %v5104, %v5164
        %v5185 = vmul.f32 %v5105, %v5165
        %v5186 = vmul.f32 %v5106, %v5166
        %v5187 = vmul.f32 %v5107, %v5167
        %v5188 = vmul.f32 %v5108, %v5168
        %v5189 = vmul.f32 %v5109, %v5169
        %v5190 = vmul.f32 %v5110, %v5170
        %v5191 = vmul.f32 %v5111, %v5171
        %v5192 = vmul.f32 %v5112, %v5172
        %v5193 = vmul.f32 %v5113, %v5173
        %v5194 = vmul.f32 %v5114, %v5174
        %v5195 = vmul.f32 %v5115, %v5175
        %v5196 = vmul.f32 %v5116, %v5176
        %v5197 = vmul.f32 %v5117, %v5177
        %v5198 = vmul.f32 %v5118, %v5178
        %v5199 = vmul.f32 %v5119, %v5179
        %v5200 = vmul.f32 %v5120, %v5180
        %v5201 = vmul.f32 %v5121, %v5181
        %s5202 = scalar_lea.vmem %s4, 192
        %v5203 = vld [vmem:[%s5202] sm:$0xf]
        %v5204 = vld [vmem:[%s5202 + $0x4] sm:$0xf]
        %v5205 = vld [vmem:[%s5202 + $0x8] sm:$0xf]
        %v5206 = vld [vmem:[%s5202 + $0xc] sm:$0xf]
        %v5207 = vld [vmem:[%s5202 + $0x10] sm:$0xf]
        %v5208 = vld [vmem:[%s5202 + $0x14] sm:$0xf]
        %v5209 = vld [vmem:[%s5202 + $0x18] sm:$0xf]
        %v5210 = vld [vmem:[%s5202 + $0x1c] sm:$0xf]
        %v5211 = vld [vmem:[%s5202 + $0x20] sm:$0xf]
        %v5212 = vld [vmem:[%s5202 + $0x24] sm:$0xf]
        %v5213 = vld [vmem:[%s5202 + $0x28] sm:$0xf]
        %v5214 = vld [vmem:[%s5202 + $0x2c] sm:$0xf]
        %v5215 = vpack.c.bf16 %v5186, %v5182
        %v5216 = vpack.c.bf16 %v5187, %v5183
        %v5217 = vpack.c.bf16 %v5188, %v5184
        %v5218 = vpack.c.bf16 %v5189, %v5185
        %v5219 = vpack.c.bf16 %v5194, %v5190
        %v5220 = vpack.c.bf16 %v5195, %v5191
        %v5221 = vpack.c.bf16 %v5196, %v5192
        %v5222 = vpack.c.bf16 %v5197, %v5193
        %v5223 = vpack.c.bf16 %v5198, %v5198
        %v5224 = vpack.c.bf16 %v5199, %v5199
        %v5225 = vpack.c.bf16 %v5200, %v5200
        %v5226 = vpack.c.bf16 %v5201, %v5201
        %s5227 = scalar_lea.vmem %s5, 384
        %v5228 = vld [vmem:[%s5227] sm:$0xff]
        %v5229 = vld [vmem:[%s5227 + $0x8] sm:$0xff]
        %v5230 = vld [vmem:[%s5227 + $0x10] sm:$0xff]
        %v5231 = vld [vmem:[%s5227 + $0x18] sm:$0xff]
        %v5232 = vld [vmem:[%s5227 + $0x20] sm:$0xff]
        %v5233 = vld [vmem:[%s5227 + $0x28] sm:$0xff]
        %v5234 = vld [vmem:[%s5227 + $0x30] sm:$0xff]
        %v5235 = vld [vmem:[%s5227 + $0x38] sm:$0xff]
        %v5236 = vld [vmem:[%s5227 + $0x40] sm:$0xff]
        %v5237 = vld [vmem:[%s5227 + $0x48] sm:$0xff]
        %v5238 = vld [vmem:[%s5227 + $0x50] sm:$0xff]
        %v5239 = vld [vmem:[%s5227 + $0x58] sm:$0xff]
        %5241 = vset.pattern.permute.xlu0 0
        %5242 = vperm.xlu0 %5241, %v5228
        %v5243 = vpop.permute.xlu0 %5242
        %5246 = vset.pattern.permute.xlu0 0
        %5247 = vperm.xlu0 %5246, %v5229
        %v5248 = vpop.permute.xlu0 %5247
        %5251 = vset.pattern.permute.xlu0 0
        %5252 = vperm.xlu0 %5251, %v5230
        %v5253 = vpop.permute.xlu0 %5252
        %5256 = vset.pattern.permute.xlu0 0
        %5257 = vperm.xlu0 %5256, %v5231
        %v5258 = vpop.permute.xlu0 %5257
        %5261 = vset.pattern.permute.xlu0 0
        %5262 = vperm.xlu0 %5261, %v5232
        %v5263 = vpop.permute.xlu0 %5262
        %5266 = vset.pattern.permute.xlu0 0
        %5267 = vperm.xlu0 %5266, %v5233
        %v5268 = vpop.permute.xlu0 %5267
        %5271 = vset.pattern.permute.xlu0 0
        %5272 = vperm.xlu0 %5271, %v5234
        %v5273 = vpop.permute.xlu0 %5272
        %5276 = vset.pattern.permute.xlu0 0
        %5277 = vperm.xlu0 %5276, %v5235
        %v5278 = vpop.permute.xlu0 %5277
        %5281 = vset.pattern.permute.xlu0 0
        %5282 = vperm.xlu0 %5281, %v5236
        %v5283 = vpop.permute.xlu0 %5282
        %5286 = vset.pattern.permute.xlu0 0
        %5287 = vperm.xlu0 %5286, %v5237
        %v5288 = vpop.permute.xlu0 %5287
        %5291 = vset.pattern.permute.xlu0 0
        %5292 = vperm.xlu0 %5291, %v5238
        %v5293 = vpop.permute.xlu0 %5292
        %5296 = vset.pattern.permute.xlu0 0
        %5297 = vperm.xlu0 %5296, %v5239
        %v5298 = vpop.permute.xlu0 %5297
        %v5312 = vunpack.c.l.b16 %v5203
        %v5313 = vunpack.c.l.b16 %v5204
        %v5314 = vunpack.c.l.b16 %v5205
        %v5315 = vunpack.c.l.b16 %v5206
        %v5316 = vunpack.c.l.b16 %v5207
        %v5317 = vunpack.c.l.b16 %v5208
        %v5318 = vunpack.c.l.b16 %v5209
        %v5319 = vunpack.c.l.b16 %v5210
        %v5320 = vunpack.c.l.b16 %v5211
        %v5321 = vunpack.c.l.b16 %v5212
        %v5322 = vunpack.c.l.b16 %v5213
        %v5323 = vunpack.c.l.b16 %v5214
        %v5324 = vpack.c.b16 %v5313, %v5312
        %v5325 = vpack.c.b16 %v5315, %v5314
        %v5326 = vpack.c.b16 %v5317, %v5316
        %v5327 = vpack.c.b16 %v5319, %v5318
        %v5328 = vpack.c.b16 %v5321, %v5320
        %v5329 = vpack.c.b16 %v5323, %v5322
        %v5331 = vsel %vm1086, %v5324, 0
        %v5334 = vsel %vm1086, %v5325, 0
        %v5337 = vsel %vm1086, %v5326, 0
        %v5340 = vsel %vm1086, %v5327, 0
        %v5343 = vsel %vm1086, %v5328, 0
        %v5346 = vsel %vm1086, %v5329, 0
        %v5349 = vsel %vm1105, %v5223, 0
        %v5352 = vsel %vm1105, %v5224, 0
        %v5355 = vsel %vm1105, %v5225, 0
        %v5358 = vsel %vm1105, %v5226, 0
        %5360 = vmatprep.subr.bf16.mxu0 0
        %5361 = vmatpush1.bf16.msra.mxu0 0
        %5362 = vmatprep.subr.bf16.mxu0 0
        %5363 = vmatpush1.bf16.msra.mxu0 0
        %5364 = vmatprep.subr.bf16.mxu0 0
        %5365 = vmatpush1.bf16.msra.mxu0 0
        %5366 = vmatprep.subr.bf16.mxu0 0
        %5367 = vmatpush1.bf16.msra.mxu0 0
        %5368 = vmatprep.subr.bf16.mxu0 0
        %5369 = vmatpush1.bf16.msra.mxu0 0
        %5370 = vmatprep.subr.bf16.mxu0 %v5352
        %5371 = vmatpush1.bf16.msra.mxu0 %v5349
        %5372 = vmatprep.subr.bf16.mxu0 %v5220
        %5373 = vmatpush1.bf16.msra.mxu0 %v5219
        %5374 = vmatprep.subr.bf16.mxu0 %v5216
        %5375 = vmatpush1.bf16.msra.mxu0 %v5215
        %5376 = vmatprep.subr.bf16.mxu0 0
        %5377 = vmatpush2.bf16.msra.mxu0 0
        %5378 = vmatprep.subr.bf16.mxu0 0
        %5379 = vmatpush2.bf16.msra.mxu0 0
        %5380 = vmatprep.subr.bf16.mxu0 0
        %5381 = vmatpush2.bf16.msra.mxu0 0
        %5382 = vmatprep.subr.bf16.mxu0 0
        %5383 = vmatpush2.bf16.msra.mxu0 0
        %5384 = vmatprep.subr.bf16.mxu0 0
        %5385 = vmatpush2.bf16.msra.mxu0 0
        %5386 = vmatprep.subr.bf16.mxu0 0
        %5387 = vmatpush2.bf16.msra.mxu0 0
        %5388 = vmatprep.subr.bf16.mxu0 0
        %5389 = vmatpush2.bf16.msra.mxu0 0
        %5390 = vmatprep.subr.bf16.mxu0 0
        %5391 = vmatpush2.bf16.msra.mxu0 0
        %5392 = vmatprep.mubr.bf16.mxu0 0
        %5393 = vmatmul.mubr.bf16.gmra.mxu0 %v5331
        %v5394 = vpop.f32.mrf.mxu0
        %v5395 = vadd.f32 %v5243, %v5394
        %v5396 = vpop.f32.mrf.mxu0
        %v5397 = vadd.f32 %v5243, %v5396
        %v5398 = vpop.f32.mrf.mxu0
        %v5399 = vadd.f32 %v5248, %v5398
        %v5400 = vpop.f32.mrf.mxu0
        %v5401 = vadd.f32 %v5248, %v5400
        %5402 = vmatprep.mubr.bf16.mxu0 0
        %5403 = vmatmul.mubr.bf16.gmra.mxu0 %v5334
        %v5404 = vpop.f32.mrf.mxu0
        %v5405 = vadd.f32 %v5253, %v5404
        %v5406 = vpop.f32.mrf.mxu0
        %v5407 = vadd.f32 %v5253, %v5406
        %v5408 = vpop.f32.mrf.mxu0
        %v5409 = vadd.f32 %v5258, %v5408
        %v5410 = vpop.f32.mrf.mxu0
        %v5411 = vadd.f32 %v5258, %v5410
        %5412 = vmatprep.mubr.bf16.mxu0 0
        %5413 = vmatmul.mubr.bf16.gmra.mxu0 %v5337
        %v5414 = vpop.f32.mrf.mxu0
        %v5415 = vadd.f32 %v5263, %v5414
        %v5416 = vpop.f32.mrf.mxu0
        %v5417 = vadd.f32 %v5263, %v5416
        %v5418 = vpop.f32.mrf.mxu0
        %v5419 = vadd.f32 %v5268, %v5418
        %v5420 = vpop.f32.mrf.mxu0
        %v5421 = vadd.f32 %v5268, %v5420
        %5422 = vmatprep.mubr.bf16.mxu0 0
        %5423 = vmatmul.mubr.bf16.gmra.mxu0 %v5340
        %v5424 = vpop.f32.mrf.mxu0
        %v5425 = vadd.f32 %v5273, %v5424
        %v5426 = vpop.f32.mrf.mxu0
        %v5427 = vadd.f32 %v5273, %v5426
        %v5428 = vpop.f32.mrf.mxu0
        %v5429 = vadd.f32 %v5278, %v5428
        %v5430 = vpop.f32.mrf.mxu0
        %v5431 = vadd.f32 %v5278, %v5430
        %5432 = vmatprep.mubr.bf16.mxu0 0
        %5433 = vmatmul.mubr.bf16.gmra.mxu0 %v5343
        %v5434 = vpop.f32.mrf.mxu0
        %v5435 = vadd.f32 %v5283, %v5434
        %v5436 = vpop.f32.mrf.mxu0
        %v5437 = vadd.f32 %v5283, %v5436
        %v5438 = vpop.f32.mrf.mxu0
        %v5439 = vadd.f32 %v5288, %v5438
        %v5440 = vpop.f32.mrf.mxu0
        %v5441 = vadd.f32 %v5288, %v5440
        %5442 = vmatprep.mubr.bf16.mxu0 0
        %5443 = vmatmul.mubr.bf16.gmra.mxu0 %v5346
        %v5444 = vpop.f32.mrf.mxu0
        %v5445 = vadd.f32 %v5293, %v5444
        %v5446 = vpop.f32.mrf.mxu0
        %v5447 = vadd.f32 %v5293, %v5446
        %v5448 = vpop.f32.mrf.mxu0
        %v5449 = vadd.f32 %v5298, %v5448
        %v5450 = vpop.f32.mrf.mxu0
        %v5451 = vadd.f32 %v5298, %v5450
        %5452 = vdwg.mxu0
        %5453 = vmatprep.subr.bf16.mxu0 0
        %5454 = vmatpush1.bf16.msra.mxu0 0
        %5455 = vmatprep.subr.bf16.mxu0 0
        %5456 = vmatpush1.bf16.msra.mxu0 0
        %5457 = vmatprep.subr.bf16.mxu0 0
        %5458 = vmatpush1.bf16.msra.mxu0 0
        %5459 = vmatprep.subr.bf16.mxu0 0
        %5460 = vmatpush1.bf16.msra.mxu0 0
        %5461 = vmatprep.subr.bf16.mxu0 0
        %5462 = vmatpush1.bf16.msra.mxu0 0
        %5463 = vmatprep.subr.bf16.mxu0 %v5358
        %5464 = vmatpush1.bf16.msra.mxu0 %v5355
        %5465 = vmatprep.subr.bf16.mxu0 %v5222
        %5466 = vmatpush1.bf16.msra.mxu0 %v5221
        %5467 = vmatprep.subr.bf16.mxu0 %v5218
        %5468 = vmatpush1.bf16.msra.mxu0 %v5217
        %5469 = vmatprep.subr.bf16.mxu0 0
        %5470 = vmatpush2.bf16.msra.mxu0 0
        %5471 = vmatprep.subr.bf16.mxu0 0
        %5472 = vmatpush2.bf16.msra.mxu0 0
        %5473 = vmatprep.subr.bf16.mxu0 0
        %5474 = vmatpush2.bf16.msra.mxu0 0
        %5475 = vmatprep.subr.bf16.mxu0 0
        %5476 = vmatpush2.bf16.msra.mxu0 0
        %5477 = vmatprep.subr.bf16.mxu0 0
        %5478 = vmatpush2.bf16.msra.mxu0 0
        %5479 = vmatprep.subr.bf16.mxu0 0
        %5480 = vmatpush2.bf16.msra.mxu0 0
        %5481 = vmatprep.subr.bf16.mxu0 0
        %5482 = vmatpush2.bf16.msra.mxu0 0
        %5483 = vmatprep.subr.bf16.mxu0 0
        %5484 = vmatpush2.bf16.msra.mxu0 0
        %5485 = vmatprep.mubr.bf16.mxu0 0
        %5486 = vmatmul.mubr.bf16.gmra.mxu0 %v5331
        %v5487 = vpop.f32.mrf.mxu0
        %v5488 = vadd.f32 %v5243, %v5487
        %v5489 = vpop.f32.mrf.mxu0
        %v5490 = vadd.f32 %v5243, %v5489
        %v5491 = vpop.f32.mrf.mxu0
        %v5492 = vadd.f32 %v5248, %v5491
        %v5493 = vpop.f32.mrf.mxu0
        %v5494 = vadd.f32 %v5248, %v5493
        %5495 = vmatprep.mubr.bf16.mxu0 0
        %5496 = vmatmul.mubr.bf16.gmra.mxu0 %v5334
        %v5497 = vpop.f32.mrf.mxu0
        %v5498 = vadd.f32 %v5253, %v5497
        %v5499 = vpop.f32.mrf.mxu0
        %v5500 = vadd.f32 %v5253, %v5499
        %v5501 = vpop.f32.mrf.mxu0
        %v5502 = vadd.f32 %v5258, %v5501
        %v5503 = vpop.f32.mrf.mxu0
        %v5504 = vadd.f32 %v5258, %v5503
        %5505 = vmatprep.mubr.bf16.mxu0 0
        %5506 = vmatmul.mubr.bf16.gmra.mxu0 %v5337
        %v5507 = vpop.f32.mrf.mxu0
        %v5508 = vadd.f32 %v5263, %v5507
        %v5509 = vpop.f32.mrf.mxu0
        %v5510 = vadd.f32 %v5263, %v5509
        %v5511 = vpop.f32.mrf.mxu0
        %v5512 = vadd.f32 %v5268, %v5511
        %v5513 = vpop.f32.mrf.mxu0
        %v5514 = vadd.f32 %v5268, %v5513
        %5515 = vmatprep.mubr.bf16.mxu0 0
        %5516 = vmatmul.mubr.bf16.gmra.mxu0 %v5340
        %v5517 = vpop.f32.mrf.mxu0
        %v5518 = vadd.f32 %v5273, %v5517
        %v5519 = vpop.f32.mrf.mxu0
        %v5520 = vadd.f32 %v5273, %v5519
        %v5521 = vpop.f32.mrf.mxu0
        %v5522 = vadd.f32 %v5278, %v5521
        %v5523 = vpop.f32.mrf.mxu0
        %v5524 = vadd.f32 %v5278, %v5523
        %5525 = vmatprep.mubr.bf16.mxu0 0
        %5526 = vmatmul.mubr.bf16.gmra.mxu0 %v5343
        %v5527 = vpop.f32.mrf.mxu0
        %v5528 = vadd.f32 %v5283, %v5527
        %v5529 = vpop.f32.mrf.mxu0
        %v5530 = vadd.f32 %v5283, %v5529
        %v5531 = vpop.f32.mrf.mxu0
        %v5532 = vadd.f32 %v5288, %v5531
        %v5533 = vpop.f32.mrf.mxu0
        %v5534 = vadd.f32 %v5288, %v5533
        %5535 = vmatprep.mubr.bf16.mxu0 0
        %5536 = vmatmul.mubr.bf16.gmra.mxu0 %v5346
        %v5537 = vpop.f32.mrf.mxu0
        %v5538 = vadd.f32 %v5293, %v5537
        %v5539 = vpop.f32.mrf.mxu0
        %v5540 = vadd.f32 %v5293, %v5539
        %v5541 = vpop.f32.mrf.mxu0
        %v5542 = vadd.f32 %v5298, %v5541
        %v5543 = vpop.f32.mrf.mxu0
        %v5544 = vadd.f32 %v5298, %v5543
        %5545 = vdwg.mxu0
        %v5546 = vmul.f32 %v5395, 0.5
        %v5547 = vmul.f32 %v5397, 0.5
        %v5548 = vmul.f32 %v5488, 0.5
        %v5549 = vmul.f32 %v5490, 0.5
        %v5550 = vmul.f32 %v5399, 0.5
        %v5551 = vmul.f32 %v5401, 0.5
        %v5552 = vmul.f32 %v5492, 0.5
        %v5553 = vmul.f32 %v5494, 0.5
        %v5554 = vmul.f32 %v5405, 0.5
        %v5555 = vmul.f32 %v5407, 0.5
        %v5556 = vmul.f32 %v5498, 0.5
        %v5557 = vmul.f32 %v5500, 0.5
        %v5558 = vmul.f32 %v5409, 0.5
        %v5559 = vmul.f32 %v5411, 0.5
        %v5560 = vmul.f32 %v5502, 0.5
        %v5561 = vmul.f32 %v5504, 0.5
        %v5562 = vmul.f32 %v5415, 0.5
        %v5563 = vmul.f32 %v5417, 0.5
        %v5564 = vmul.f32 %v5508, 0.5
        %v5565 = vmul.f32 %v5510, 0.5
        %v5566 = vmul.f32 %v5419, 0.5
        %v5567 = vmul.f32 %v5421, 0.5
        %v5568 = vmul.f32 %v5512, 0.5
        %v5569 = vmul.f32 %v5514, 0.5
        %v5570 = vmul.f32 %v5425, 0.5
        %v5571 = vmul.f32 %v5427, 0.5
        %v5572 = vmul.f32 %v5518, 0.5
        %v5573 = vmul.f32 %v5520, 0.5
        %v5574 = vmul.f32 %v5429, 0.5
        %v5575 = vmul.f32 %v5431, 0.5
        %v5576 = vmul.f32 %v5522, 0.5
        %v5577 = vmul.f32 %v5524, 0.5
        %v5578 = vmul.f32 %v5435, 0.5
        %v5579 = vmul.f32 %v5437, 0.5
        %v5580 = vmul.f32 %v5528, 0.5
        %v5581 = vmul.f32 %v5530, 0.5
        %v5582 = vmul.f32 %v5439, 0.5
        %v5583 = vmul.f32 %v5441, 0.5
        %v5584 = vmul.f32 %v5532, 0.5
        %v5585 = vmul.f32 %v5534, 0.5
        %v5586 = vmul.f32 %v5445, 0.5
        %v5587 = vmul.f32 %v5447, 0.5
        %v5588 = vmul.f32 %v5538, 0.5
        %v5589 = vmul.f32 %v5540, 0.5
        %v5590 = vmul.f32 %v5449, 0.5
        %v5591 = vmul.f32 %v5451, 0.5
        %v5592 = vmul.f32 %v5542, 0.5
        %v5593 = vmul.f32 %v5544, 0.5
        %v5594 = vmul.f32 %v5395, 0.70710677
        %v5595 = vmul.f32 %v5397, 0.70710677
        %v5596 = vmul.f32 %v5488, 0.70710677
        %v5597 = vmul.f32 %v5490, 0.70710677
        %v5598 = vmul.f32 %v5399, 0.70710677
        %v5599 = vmul.f32 %v5401, 0.70710677
        %v5600 = vmul.f32 %v5492, 0.70710677
        %v5601 = vmul.f32 %v5494, 0.70710677
        %v5602 = vmul.f32 %v5405, 0.70710677
        %v5603 = vmul.f32 %v5407, 0.70710677
        %v5604 = vmul.f32 %v5498, 0.70710677
        %v5605 = vmul.f32 %v5500, 0.70710677
        %v5606 = vmul.f32 %v5409, 0.70710677
        %v5607 = vmul.f32 %v5411, 0.70710677
        %v5608 = vmul.f32 %v5502, 0.70710677
        %v5609 = vmul.f32 %v5504, 0.70710677
        %v5610 = vmul.f32 %v5415, 0.70710677
        %v5611 = vmul.f32 %v5417, 0.70710677
        %v5612 = vmul.f32 %v5508, 0.70710677
        %v5613 = vmul.f32 %v5510, 0.70710677
        %v5614 = vmul.f32 %v5419, 0.70710677
        %v5615 = vmul.f32 %v5421, 0.70710677
        %v5616 = vmul.f32 %v5512, 0.70710677
        %v5617 = vmul.f32 %v5514, 0.70710677
        %v5618 = vmul.f32 %v5425, 0.70710677
        %v5619 = vmul.f32 %v5427, 0.70710677
        %v5620 = vmul.f32 %v5518, 0.70710677
        %v5621 = vmul.f32 %v5520, 0.70710677
        %v5622 = vmul.f32 %v5429, 0.70710677
        %v5623 = vmul.f32 %v5431, 0.70710677
        %v5624 = vmul.f32 %v5522, 0.70710677
        %v5625 = vmul.f32 %v5524, 0.70710677
        %v5626 = vmul.f32 %v5435, 0.70710677
        %v5627 = vmul.f32 %v5437, 0.70710677
        %v5628 = vmul.f32 %v5528, 0.70710677
        %v5629 = vmul.f32 %v5530, 0.70710677
        %v5630 = vmul.f32 %v5439, 0.70710677
        %v5631 = vmul.f32 %v5441, 0.70710677
        %v5632 = vmul.f32 %v5532, 0.70710677
        %v5633 = vmul.f32 %v5534, 0.70710677
        %v5634 = vmul.f32 %v5445, 0.70710677
        %v5635 = vmul.f32 %v5447, 0.70710677
        %v5636 = vmul.f32 %v5538, 0.70710677
        %v5637 = vmul.f32 %v5540, 0.70710677
        %v5638 = vmul.f32 %v5449, 0.70710677
        %v5639 = vmul.f32 %v5451, 0.70710677
        %v5640 = vmul.f32 %v5542, 0.70710677
        %v5641 = vmul.f32 %v5544, 0.70710677
        %v5642 = verf.f32.pop %v5594
        %v5643 = verf.f32.pop %v5595
        %v5644 = verf.f32.pop %v5596
        %v5645 = verf.f32.pop %v5597
        %v5646 = verf.f32.pop %v5598
        %v5647 = verf.f32.pop %v5599
        %v5648 = verf.f32.pop %v5600
        %v5649 = verf.f32.pop %v5601
        %v5650 = verf.f32.pop %v5602
        %v5651 = verf.f32.pop %v5603
        %v5652 = verf.f32.pop %v5604
        %v5653 = verf.f32.pop %v5605
        %v5654 = verf.f32.pop %v5606
        %v5655 = verf.f32.pop %v5607
        %v5656 = verf.f32.pop %v5608
        %v5657 = verf.f32.pop %v5609
        %v5658 = verf.f32.pop %v5610
        %v5659 = verf.f32.pop %v5611
        %v5660 = verf.f32.pop %v5612
        %v5661 = verf.f32.pop %v5613
        %v5662 = verf.f32.pop %v5614
        %v5663 = verf.f32.pop %v5615
        %v5664 = verf.f32.pop %v5616
        %v5665 = verf.f32.pop %v5617
        %v5666 = verf.f32.pop %v5618
        %v5667 = verf.f32.pop %v5619
        %v5668 = verf.f32.pop %v5620
        %v5669 = verf.f32.pop %v5621
        %v5670 = verf.f32.pop %v5622
        %v5671 = verf.f32.pop %v5623
        %v5672 = verf.f32.pop %v5624
        %v5673 = verf.f32.pop %v5625
        %v5674 = verf.f32.pop %v5626
        %v5675 = verf.f32.pop %v5627
        %v5676 = verf.f32.pop %v5628
        %v5677 = verf.f32.pop %v5629
        %v5678 = verf.f32.pop %v5630
        %v5679 = verf.f32.pop %v5631
        %v5680 = verf.f32.pop %v5632
        %v5681 = verf.f32.pop %v5633
        %v5682 = verf.f32.pop %v5634
        %v5683 = verf.f32.pop %v5635
        %v5684 = verf.f32.pop %v5636
        %v5685 = verf.f32.pop %v5637
        %v5686 = verf.f32.pop %v5638
        %v5687 = verf.f32.pop %v5639
        %v5688 = verf.f32.pop %v5640
        %v5689 = verf.f32.pop %v5641
        %v5690 = vadd.f32 %v5642, 1.0
        %v5691 = vadd.f32 %v5643, 1.0
        %v5692 = vadd.f32 %v5644, 1.0
        %v5693 = vadd.f32 %v5645, 1.0
        %v5694 = vadd.f32 %v5646, 1.0
        %v5695 = vadd.f32 %v5647, 1.0
        %v5696 = vadd.f32 %v5648, 1.0
        %v5697 = vadd.f32 %v5649, 1.0
        %v5698 = vadd.f32 %v5650, 1.0
        %v5699 = vadd.f32 %v5651, 1.0
        %v5700 = vadd.f32 %v5652, 1.0
        %v5701 = vadd.f32 %v5653, 1.0
        %v5702 = vadd.f32 %v5654, 1.0
        %v5703 = vadd.f32 %v5655, 1.0
        %v5704 = vadd.f32 %v5656, 1.0
        %v5705 = vadd.f32 %v5657, 1.0
        %v5706 = vadd.f32 %v5658, 1.0
        %v5707 = vadd.f32 %v5659, 1.0
        %v5708 = vadd.f32 %v5660, 1.0
        %v5709 = vadd.f32 %v5661, 1.0
        %v5710 = vadd.f32 %v5662, 1.0
        %v5711 = vadd.f32 %v5663, 1.0
        %v5712 = vadd.f32 %v5664, 1.0
        %v5713 = vadd.f32 %v5665, 1.0
        %v5714 = vadd.f32 %v5666, 1.0
        %v5715 = vadd.f32 %v5667, 1.0
        %v5716 = vadd.f32 %v5668, 1.0
        %v5717 = vadd.f32 %v5669, 1.0
        %v5718 = vadd.f32 %v5670, 1.0
        %v5719 = vadd.f32 %v5671, 1.0
        %v5720 = vadd.f32 %v5672, 1.0
        %v5721 = vadd.f32 %v5673, 1.0
        %v5722 = vadd.f32 %v5674, 1.0
        %v5723 = vadd.f32 %v5675, 1.0
        %v5724 = vadd.f32 %v5676, 1.0
        %v5725 = vadd.f32 %v5677, 1.0
        %v5726 = vadd.f32 %v5678, 1.0
        %v5727 = vadd.f32 %v5679, 1.0
        %v5728 = vadd.f32 %v5680, 1.0
        %v5729 = vadd.f32 %v5681, 1.0
        %v5730 = vadd.f32 %v5682, 1.0
        %v5731 = vadd.f32 %v5683, 1.0
        %v5732 = vadd.f32 %v5684, 1.0
        %v5733 = vadd.f32 %v5685, 1.0
        %v5734 = vadd.f32 %v5686, 1.0
        %v5735 = vadd.f32 %v5687, 1.0
        %v5736 = vadd.f32 %v5688, 1.0
        %v5737 = vadd.f32 %v5689, 1.0
        %v5738 = vmul.f32 %v5546, %v5690
        %v5739 = vmul.f32 %v5547, %v5691
        %v5740 = vmul.f32 %v5548, %v5692
        %v5741 = vmul.f32 %v5549, %v5693
        %v5742 = vmul.f32 %v5550, %v5694
        %v5743 = vmul.f32 %v5551, %v5695
        %v5744 = vmul.f32 %v5552, %v5696
        %v5745 = vmul.f32 %v5553, %v5697
        %v5746 = vmul.f32 %v5554, %v5698
        %v5747 = vmul.f32 %v5555, %v5699
        %v5748 = vmul.f32 %v5556, %v5700
        %v5749 = vmul.f32 %v5557, %v5701
        %v5750 = vmul.f32 %v5558, %v5702
        %v5751 = vmul.f32 %v5559, %v5703
        %v5752 = vmul.f32 %v5560, %v5704
        %v5753 = vmul.f32 %v5561, %v5705
        %v5754 = vmul.f32 %v5562, %v5706
        %v5755 = vmul.f32 %v5563, %v5707
        %v5756 = vmul.f32 %v5564, %v5708
        %v5757 = vmul.f32 %v5565, %v5709
        %v5758 = vmul.f32 %v5566, %v5710
        %v5759 = vmul.f32 %v5567, %v5711
        %v5760 = vmul.f32 %v5568, %v5712
        %v5761 = vmul.f32 %v5569, %v5713
        %v5762 = vmul.f32 %v5570, %v5714
        %v5763 = vmul.f32 %v5571, %v5715
        %v5764 = vmul.f32 %v5572, %v5716
        %v5765 = vmul.f32 %v5573, %v5717
        %v5766 = vmul.f32 %v5574, %v5718
        %v5767 = vmul.f32 %v5575, %v5719
        %v5768 = vmul.f32 %v5576, %v5720
        %v5769 = vmul.f32 %v5577, %v5721
        %v5770 = vmul.f32 %v5578, %v5722
        %v5771 = vmul.f32 %v5579, %v5723
        %v5772 = vmul.f32 %v5580, %v5724
        %v5773 = vmul.f32 %v5581, %v5725
        %v5774 = vmul.f32 %v5582, %v5726
        %v5775 = vmul.f32 %v5583, %v5727
        %v5776 = vmul.f32 %v5584, %v5728
        %v5777 = vmul.f32 %v5585, %v5729
        %v5778 = vmul.f32 %v5586, %v5730
        %v5779 = vmul.f32 %v5587, %v5731
        %v5780 = vmul.f32 %v5588, %v5732
        %v5781 = vmul.f32 %v5589, %v5733
        %v5782 = vmul.f32 %v5590, %v5734
        %v5783 = vmul.f32 %v5591, %v5735
        %v5784 = vmul.f32 %v5592, %v5736
        %v5785 = vmul.f32 %v5593, %v5737
        %v5786 = vadd.f32 %v4731, %v5738
        %v5787 = vadd.f32 %v4732, %v5739
        %v5788 = vadd.f32 %v4733, %v5740
        %v5789 = vadd.f32 %v4734, %v5741
        %v5790 = vadd.f32 %v4735, %v5742
        %v5791 = vadd.f32 %v4736, %v5743
        %v5792 = vadd.f32 %v4737, %v5744
        %v5793 = vadd.f32 %v4738, %v5745
        %v5794 = vadd.f32 %v4739, %v5746
        %v5795 = vadd.f32 %v4740, %v5747
        %v5796 = vadd.f32 %v4741, %v5748
        %v5797 = vadd.f32 %v4742, %v5749
        %v5798 = vadd.f32 %v4743, %v5750
        %v5799 = vadd.f32 %v4744, %v5751
        %v5800 = vadd.f32 %v4745, %v5752
        %v5801 = vadd.f32 %v4746, %v5753
        %v5802 = vadd.f32 %v4747, %v5754
        %v5803 = vadd.f32 %v4748, %v5755
        %v5804 = vadd.f32 %v4749, %v5756
        %v5805 = vadd.f32 %v4750, %v5757
        %v5806 = vadd.f32 %v4751, %v5758
        %v5807 = vadd.f32 %v4752, %v5759
        %v5808 = vadd.f32 %v4753, %v5760
        %v5809 = vadd.f32 %v4754, %v5761
        %v5810 = vadd.f32 %v4755, %v5762
        %v5811 = vadd.f32 %v4756, %v5763
        %v5812 = vadd.f32 %v4757, %v5764
        %v5813 = vadd.f32 %v4758, %v5765
        %v5814 = vadd.f32 %v4759, %v5766
        %v5815 = vadd.f32 %v4760, %v5767
        %v5816 = vadd.f32 %v4761, %v5768
        %v5817 = vadd.f32 %v4762, %v5769
        %v5818 = vadd.f32 %v5770, %v4763
        %v5819 = vadd.f32 %v5771, %v4764
        %v5820 = vadd.f32 %v5772, %v4765
        %v5821 = vadd.f32 %v5773, %v4766
        %v5822 = vadd.f32 %v5774, %v4767
        %v5823 = vadd.f32 %v5775, %v4768
        %v5824 = vadd.f32 %v5776, %v4769
        %v5825 = vadd.f32 %v5777, %v4770
        %v5826 = vadd.f32 %v5778, %v4771
        %v5827 = vadd.f32 %v5779, %v4772
        %v5828 = vadd.f32 %v5780, %v4773
        %v5829 = vadd.f32 %v5781, %v4774
        %v5830 = vadd.f32 %v5782, %v4775
        %v5831 = vadd.f32 %v5783, %v4776
        %v5832 = vadd.f32 %v5784, %v4777
        %v5833 = vadd.f32 %v5785, %v4778
        %5834 = vrot.lane.b32.xlu0 %v5818, 3
        %v5835 = vpop.permute.xlu0 %5834
        %5836 = vrot.lane.b32.xlu0 %v5822, 3
        %v5837 = vpop.permute.xlu0 %5836
        %5838 = vrot.lane.b32.xlu0 %v5826, 3
        %v5839 = vpop.permute.xlu0 %5838
        %5840 = vrot.lane.b32.xlu0 %v5830, 3
        %v5841 = vpop.permute.xlu0 %5840
        %5842 = vrot.lane.b32.xlu0 %v5819, 3
        %v5843 = vpop.permute.xlu0 %5842
        %5844 = vrot.lane.b32.xlu0 %v5823, 3
        %v5845 = vpop.permute.xlu0 %5844
        %5846 = vrot.lane.b32.xlu0 %v5827, 3
        %v5847 = vpop.permute.xlu0 %5846
        %5848 = vrot.lane.b32.xlu0 %v5831, 3
        %v5849 = vpop.permute.xlu0 %5848
        %5850 = vrot.lane.b32.xlu0 %v5820, 3
        %v5851 = vpop.permute.xlu0 %5850
        %5852 = vrot.lane.b32.xlu0 %v5824, 3
        %v5853 = vpop.permute.xlu0 %5852
        %5854 = vrot.lane.b32.xlu0 %v5828, 3
        %v5855 = vpop.permute.xlu0 %5854
        %5856 = vrot.lane.b32.xlu0 %v5832, 3
        %v5857 = vpop.permute.xlu0 %5856
        %5858 = vrot.lane.b32.xlu0 %v5821, 3
        %v5859 = vpop.permute.xlu0 %5858
        %5860 = vrot.lane.b32.xlu0 %v5825, 3
        %v5861 = vpop.permute.xlu0 %5860
        %5862 = vrot.lane.b32.xlu0 %v5829, 3
        %v5863 = vpop.permute.xlu0 %5862
        %5864 = vrot.lane.b32.xlu0 %v5833, 3
        %v5865 = vpop.permute.xlu0 %5864
        %v5866 = vsel %vm1592, %v5851, %v5859
        %v5867 = vsel %vm1592, %v5853, %v5861
        %v5868 = vsel %vm1592, %v5855, %v5863
        %v5869 = vsel %vm1592, %v5857, %v5865
        %v5870 = vsel %vm1592, %v5843, %v5851
        %v5871 = vsel %vm1592, %v5845, %v5853
        %v5872 = vsel %vm1592, %v5847, %v5855
        %v5873 = vsel %vm1592, %v5849, %v5857
        %v5874 = vsel %vm1592, %v5835, %v5843
        %v5875 = vsel %vm1592, %v5837, %v5845
        %v5876 = vsel %vm1592, %v5839, %v5847
        %v5877 = vsel %vm1592, %v5841, %v5849
        %v5878 = vsel %vm1592, %v5859, %v5835
        %v5879 = vsel %vm1592, %v5861, %v5837
        %v5880 = vsel %vm1592, %v5863, %v5839
        %v5881 = vsel %vm1592, %v5865, %v5841
        %v5882 = vsel %vm1613, %v5878, 0.0
        %v5883 = vsel %vm1614, %v5874, 0.0
        %v5884 = vsel %vm1615, %v5870, 0.0
        %v5885 = vsel %vm1616, %v5866, 0.0
        %v5886 = vsel %vm1613, %v5879, 0.0
        %v5887 = vsel %vm1614, %v5875, 0.0
        %v5888 = vsel %vm1615, %v5871, 0.0
        %v5889 = vsel %vm1616, %v5867, 0.0
        %v5890 = vsel %vm1613, %v5880, 0.0
        %v5891 = vsel %vm1614, %v5876, 0.0
        %v5892 = vsel %vm1615, %v5872, 0.0
        %v5893 = vsel %vm1616, %v5868, 0.0
        %v5894 = vsel %vm1613, %v5881, 0.0
        %v5895 = vsel %vm1614, %v5877, 0.0
        %v5896 = vsel %vm1615, %v5873, 0.0
        %v5897 = vsel %vm1616, %v5869, 0.0
        %5898 = vrot.lane.b32.xlu0 %v5818, 125
        %v5899 = vpop.permute.xlu0 %5898
        %5900 = vrot.lane.b32.xlu0 %v5822, 125
        %v5901 = vpop.permute.xlu0 %5900
        %5902 = vrot.lane.b32.xlu0 %v5826, 125
        %v5903 = vpop.permute.xlu0 %5902
        %5904 = vrot.lane.b32.xlu0 %v5830, 125
        %v5905 = vpop.permute.xlu0 %5904
        %5906 = vrot.lane.b32.xlu0 %v5819, 125
        %v5907 = vpop.permute.xlu0 %5906
        %5908 = vrot.lane.b32.xlu0 %v5823, 125
        %v5909 = vpop.permute.xlu0 %5908
        %5910 = vrot.lane.b32.xlu0 %v5827, 125
        %v5911 = vpop.permute.xlu0 %5910
        %5912 = vrot.lane.b32.xlu0 %v5831, 125
        %v5913 = vpop.permute.xlu0 %5912
        %5914 = vrot.lane.b32.xlu0 %v5820, 125
        %v5915 = vpop.permute.xlu0 %5914
        %5916 = vrot.lane.b32.xlu0 %v5824, 125
        %v5917 = vpop.permute.xlu0 %5916
        %5918 = vrot.lane.b32.xlu0 %v5828, 125
        %v5919 = vpop.permute.xlu0 %5918
        %5920 = vrot.lane.b32.xlu0 %v5832, 125
        %v5921 = vpop.permute.xlu0 %5920
        %5922 = vrot.lane.b32.xlu0 %v5821, 125
        %v5923 = vpop.permute.xlu0 %5922
        %5924 = vrot.lane.b32.xlu0 %v5825, 125
        %v5925 = vpop.permute.xlu0 %5924
        %5926 = vrot.lane.b32.xlu0 %v5829, 125
        %v5927 = vpop.permute.xlu0 %5926
        %5928 = vrot.lane.b32.xlu0 %v5833, 125
        %v5929 = vpop.permute.xlu0 %5928
        %v5930 = vsel %vm1665, %v5915, %v5923
        %v5931 = vsel %vm1665, %v5917, %v5925
        %v5932 = vsel %vm1665, %v5919, %v5927
        %v5933 = vsel %vm1665, %v5921, %v5929
        %v5934 = vsel %vm1665, %v5907, %v5915
        %v5935 = vsel %vm1665, %v5909, %v5917
        %v5936 = vsel %vm1665, %v5911, %v5919
        %v5937 = vsel %vm1665, %v5913, %v5921
        %v5938 = vsel %vm1665, %v5899, %v5907
        %v5939 = vsel %vm1665, %v5901, %v5909
        %v5940 = vsel %vm1665, %v5903, %v5911
        %v5941 = vsel %vm1665, %v5905, %v5913
        %v5942 = vsel %vm1665, %v5923, %v5899
        %v5943 = vsel %vm1665, %v5925, %v5901
        %v5944 = vsel %vm1665, %v5927, %v5903
        %v5945 = vsel %vm1665, %v5929, %v5905
        %v5946 = vsel %vm1686, %v5938, 0.0
        %v5947 = vsel %vm1687, %v5934, 0.0
        %v5948 = vsel %vm1688, %v5930, 0.0
        %v5949 = vsel %vm1689, %v5942, 0.0
        %v5950 = vsel %vm1686, %v5939, 0.0
        %v5951 = vsel %vm1687, %v5935, 0.0
        %v5952 = vsel %vm1688, %v5931, 0.0
        %v5953 = vsel %vm1689, %v5943, 0.0
        %v5954 = vsel %vm1686, %v5940, 0.0
        %v5955 = vsel %vm1687, %v5936, 0.0
        %v5956 = vsel %vm1688, %v5932, 0.0
        %v5957 = vsel %vm1689, %v5944, 0.0
        %v5958 = vsel %vm1686, %v5941, 0.0
        %v5959 = vsel %vm1687, %v5937, 0.0
        %v5960 = vsel %vm1688, %v5933, 0.0
        %v5961 = vsel %vm1689, %v5945, 0.0
        %v5962 = vpack.c.bf16 %v5886, %v5882
        %v5963 = vpack.c.bf16 %v5887, %v5883
        %v5964 = vpack.c.bf16 %v5888, %v5884
        %v5965 = vpack.c.bf16 %v5889, %v5885
        %v5966 = vpack.c.bf16 %v5894, %v5890
        %v5967 = vpack.c.bf16 %v5895, %v5891
        %v5968 = vpack.c.bf16 %v5896, %v5892
        %v5969 = vpack.c.bf16 %v5897, %v5893
        %v5970 = vpack.c.bf16 %v5822, %v5818
        %v5971 = vpack.c.bf16 %v5823, %v5819
        %v5972 = vpack.c.bf16 %v5824, %v5820
        %v5973 = vpack.c.bf16 %v5825, %v5821
        %v5974 = vpack.c.bf16 %v5830, %v5826
        %v5975 = vpack.c.bf16 %v5831, %v5827
        %v5976 = vpack.c.bf16 %v5832, %v5828
        %v5977 = vpack.c.bf16 %v5833, %v5829
        %v5978 = vpack.c.bf16 %v5950, %v5946
        %v5979 = vpack.c.bf16 %v5951, %v5947
        %v5980 = vpack.c.bf16 %v5952, %v5948
        %v5981 = vpack.c.bf16 %v5953, %v5949
        %v5982 = vpack.c.bf16 %v5958, %v5954
        %v5983 = vpack.c.bf16 %v5959, %v5955
        %v5984 = vpack.c.bf16 %v5960, %v5956
        %v5985 = vpack.c.bf16 %v5961, %v5957
        %s5986 = scalar_lea.vmem [#allocation3], 100
        %v5987 = vld [vmem:[%s5986] sm:$0xf]
        %v5988 = vld [vmem:[%s5986 + $0x4] sm:$0xf]
        %v5989 = vld [vmem:[%s5986 + $0x8] sm:$0xf]
        %v5990 = vld [vmem:[%s5986 + $0xc] sm:$0xf]
        %v5991 = vld [vmem:[%s5986 + $0x10] sm:$0xf]
        %s5992 = scalar_lea.vmem %s3, 800
        %v5993 = vld [vmem:[%s5992] sm:$0xff]
        %v5994 = vld [vmem:[%s5992 + $0x8] sm:$0xff]
        %v5995 = vld [vmem:[%s5992 + $0x10] sm:$0xff]
        %v5996 = vld [vmem:[%s5992 + $0x18] sm:$0xff]
        %v5997 = vld [vmem:[%s5992 + $0x20] sm:$0xff]
        %v5998 = vld [vmem:[%s5992 + $0x28] sm:$0xff]
        %v5999 = vld [vmem:[%s5992 + $0x30] sm:$0xff]
        %v6000 = vld [vmem:[%s5992 + $0x38] sm:$0xff]
        %v6001 = vld [vmem:[%s5992 + $0x40] sm:$0xff]
        %v6002 = vld [vmem:[%s5992 + $0x48] sm:$0xff]
        %v6003 = vld [vmem:[%s5992 + $0x50] sm:$0xff]
        %v6004 = vld [vmem:[%s5992 + $0x58] sm:$0xff]
        %v6005 = vld [vmem:[%s5992 + $0x60] sm:$0xff]
        %v6006 = vld [vmem:[%s5992 + $0x68] sm:$0xff]
        %v6007 = vld [vmem:[%s5992 + $0x70] sm:$0xff]
        %v6008 = vld [vmem:[%s5992 + $0x78] sm:$0xff]
        %v6009 = vld [vmem:[%s5992 + $0x80] sm:$0xff]
        %v6010 = vld [vmem:[%s5992 + $0x88] sm:$0xff]
        %v6011 = vld [vmem:[%s5992 + $0x90] sm:$0xff]
        %v6012 = vld [vmem:[%s5992 + $0x98] sm:$0xff]
        %v6018 = vunpack.c.l.b16 %v5987
        %v6019 = vunpack.c.l.b16 %v5988
        %v6020 = vunpack.c.l.b16 %v5989
        %v6021 = vunpack.c.l.b16 %v5990
        %v6022 = vunpack.c.l.b16 %v5991
        %v6023 = vpack.c.b16 %v6019, %v6018
        %v6024 = vpack.c.b16 %v6021, %v6020
        %v6025 = vpack.c.b16 %v6022, %v6022
        %v6027 = vsel %vm728, %v6023, 0
        %v6030 = vsel %vm728, %v6024, 0
        %v6033 = vsel %vm728, %v6025, 0
        %6035 = vmatprep.subr.bf16.mxu0 0
        %6036 = vmatpush1.bf16.msra.mxu0 0
        %6037 = vmatprep.subr.bf16.mxu0 0
        %6038 = vmatpush1.bf16.msra.mxu0 0
        %6039 = vmatprep.subr.bf16.mxu0 %v5983
        %6040 = vmatpush1.bf16.msra.mxu0 %v5982
        %6041 = vmatprep.subr.bf16.mxu0 %v5979
        %6042 = vmatpush1.bf16.msra.mxu0 %v5978
        %6043 = vmatprep.subr.bf16.mxu0 %v5975
        %6044 = vmatpush1.bf16.msra.mxu0 %v5974
        %6045 = vmatprep.subr.bf16.mxu0 %v5971
        %6046 = vmatpush1.bf16.msra.mxu0 %v5970
        %6047 = vmatprep.subr.bf16.mxu0 %v5967
        %6048 = vmatpush1.bf16.msra.mxu0 %v5966
        %6049 = vmatprep.subr.bf16.mxu0 %v5963
        %6050 = vmatpush1.bf16.msra.mxu0 %v5962
        %6051 = vmatprep.subr.bf16.mxu0 0
        %6052 = vmatpush2.bf16.msra.mxu0 0
        %6053 = vmatprep.subr.bf16.mxu0 0
        %6054 = vmatpush2.bf16.msra.mxu0 0
        %6055 = vmatprep.subr.bf16.mxu0 0
        %6056 = vmatpush2.bf16.msra.mxu0 0
        %6057 = vmatprep.subr.bf16.mxu0 0
        %6058 = vmatpush2.bf16.msra.mxu0 0
        %6059 = vmatprep.subr.bf16.mxu0 0
        %6060 = vmatpush2.bf16.msra.mxu0 0
        %6061 = vmatprep.subr.bf16.mxu0 0
        %6062 = vmatpush2.bf16.msra.mxu0 0
        %6063 = vmatprep.subr.bf16.mxu0 0
        %6064 = vmatpush2.bf16.msra.mxu0 0
        %6065 = vmatprep.subr.bf16.mxu0 0
        %6066 = vmatpush2.bf16.msra.mxu0 0
        %6067 = vmatprep.mubr.bf16.mxu0 0
        %6068 = vmatmul.mubr.bf16.gmra.mxu0 %v6027
        %v6069 = vpop.f32.mrf.mxu0
        %v6070 = vadd.f32 %v5993, %v6069
        %v6071 = vpop.f32.mrf.mxu0
        %v6072 = vadd.f32 %v5994, %v6071
        %v6073 = vpop.f32.mrf.mxu0
        %v6074 = vadd.f32 %v5997, %v6073
        %v6075 = vpop.f32.mrf.mxu0
        %v6076 = vadd.f32 %v5998, %v6075
        %6077 = vmatprep.mubr.bf16.mxu0 0
        %6078 = vmatmul.mubr.bf16.gmra.mxu0 %v6030
        %v6079 = vpop.f32.mrf.mxu0
        %v6080 = vadd.f32 %v6001, %v6079
        %v6081 = vpop.f32.mrf.mxu0
        %v6082 = vadd.f32 %v6002, %v6081
        %v6083 = vpop.f32.mrf.mxu0
        %v6084 = vadd.f32 %v6005, %v6083
        %v6085 = vpop.f32.mrf.mxu0
        %v6086 = vadd.f32 %v6006, %v6085
        %6087 = vmatprep.mubr.bf16.mxu0 0
        %6088 = vmatmul.mubr.bf16.gmra.mxu0 %v6033
        %v6089 = vpop.f32.mrf.mxu0
        %v6090 = vadd.f32 %v6009, %v6089
        %v6091 = vpop.f32.mrf.mxu0
        %v6092 = vadd.f32 %v6010, %v6091
        %v6093 = vpop.f32.mrf.mxu0
        %v6094 = vpop.f32.mrf.mxu0
        %6095 = vdwg.mxu0
        %6096 = vmatprep.subr.bf16.mxu0 0
        %6097 = vmatpush1.bf16.msra.mxu0 0
        %6098 = vmatprep.subr.bf16.mxu0 0
        %6099 = vmatpush1.bf16.msra.mxu0 0
        %6100 = vmatprep.subr.bf16.mxu0 %v5985
        %6101 = vmatpush1.bf16.msra.mxu0 %v5984
        %6102 = vmatprep.subr.bf16.mxu0 %v5981
        %6103 = vmatpush1.bf16.msra.mxu0 %v5980
        %6104 = vmatprep.subr.bf16.mxu0 %v5977
        %6105 = vmatpush1.bf16.msra.mxu0 %v5976
        %6106 = vmatprep.subr.bf16.mxu0 %v5973
        %6107 = vmatpush1.bf16.msra.mxu0 %v5972
        %6108 = vmatprep.subr.bf16.mxu0 %v5969
        %6109 = vmatpush1.bf16.msra.mxu0 %v5968
        %6110 = vmatprep.subr.bf16.mxu0 %v5965
        %6111 = vmatpush1.bf16.msra.mxu0 %v5964
        %6112 = vmatprep.subr.bf16.mxu0 0
        %6113 = vmatpush2.bf16.msra.mxu0 0
        %6114 = vmatprep.subr.bf16.mxu0 0
        %6115 = vmatpush2.bf16.msra.mxu0 0
        %6116 = vmatprep.subr.bf16.mxu0 0
        %6117 = vmatpush2.bf16.msra.mxu0 0
        %6118 = vmatprep.subr.bf16.mxu0 0
        %6119 = vmatpush2.bf16.msra.mxu0 0
        %6120 = vmatprep.subr.bf16.mxu0 0
        %6121 = vmatpush2.bf16.msra.mxu0 0
        %6122 = vmatprep.subr.bf16.mxu0 0
        %6123 = vmatpush2.bf16.msra.mxu0 0
        %6124 = vmatprep.subr.bf16.mxu0 0
        %6125 = vmatpush2.bf16.msra.mxu0 0
        %6126 = vmatprep.subr.bf16.mxu0 0
        %6127 = vmatpush2.bf16.msra.mxu0 0
        %6128 = vmatprep.mubr.bf16.mxu0 0
        %6129 = vmatmul.mubr.bf16.gmra.mxu0 %v6027
        %v6130 = vpop.f32.mrf.mxu0
        %v6131 = vadd.f32 %v5995, %v6130
        %v6132 = vpop.f32.mrf.mxu0
        %v6133 = vadd.f32 %v5996, %v6132
        %v6134 = vpop.f32.mrf.mxu0
        %v6135 = vadd.f32 %v5999, %v6134
        %v6136 = vpop.f32.mrf.mxu0
        %v6137 = vadd.f32 %v6000, %v6136
        %6138 = vmatprep.mubr.bf16.mxu0 0
        %6139 = vmatmul.mubr.bf16.gmra.mxu0 %v6030
        %v6140 = vpop.f32.mrf.mxu0
        %v6141 = vadd.f32 %v6003, %v6140
        %v6142 = vpop.f32.mrf.mxu0
        %v6143 = vadd.f32 %v6004, %v6142
        %v6144 = vpop.f32.mrf.mxu0
        %v6145 = vadd.f32 %v6007, %v6144
        %v6146 = vpop.f32.mrf.mxu0
        %v6147 = vadd.f32 %v6008, %v6146
        %6148 = vmatprep.mubr.bf16.mxu0 0
        %6149 = vmatmul.mubr.bf16.gmra.mxu0 %v6033
        %v6150 = vpop.f32.mrf.mxu0
        %v6151 = vadd.f32 %v6011, %v6150
        %v6152 = vpop.f32.mrf.mxu0
        %v6153 = vadd.f32 %v6012, %v6152
        %v6154 = vpop.f32.mrf.mxu0
        %v6155 = vpop.f32.mrf.mxu0
        %6156 = vdwg.mxu0
        %v6157 = vmul.f32 %v6070, 0.5
        %v6158 = vmul.f32 %v6072, 0.5
        %v6159 = vmul.f32 %v6131, 0.5
        %v6160 = vmul.f32 %v6133, 0.5
        %v6161 = vmul.f32 %v6074, 0.5
        %v6162 = vmul.f32 %v6076, 0.5
        %v6163 = vmul.f32 %v6135, 0.5
        %v6164 = vmul.f32 %v6137, 0.5
        %v6165 = vmul.f32 %v6080, 0.5
        %v6166 = vmul.f32 %v6082, 0.5
        %v6167 = vmul.f32 %v6141, 0.5
        %v6168 = vmul.f32 %v6143, 0.5
        %v6169 = vmul.f32 %v6084, 0.5
        %v6170 = vmul.f32 %v6086, 0.5
        %v6171 = vmul.f32 %v6145, 0.5
        %v6172 = vmul.f32 %v6147, 0.5
        %v6173 = vmul.f32 %v6090, 0.5
        %v6174 = vmul.f32 %v6092, 0.5
        %v6175 = vmul.f32 %v6151, 0.5
        %v6176 = vmul.f32 %v6153, 0.5
        %v6177 = vmul.f32 %v6070, 0.70710677
        %v6178 = vmul.f32 %v6072, 0.70710677
        %v6179 = vmul.f32 %v6131, 0.70710677
        %v6180 = vmul.f32 %v6133, 0.70710677
        %v6181 = vmul.f32 %v6074, 0.70710677
        %v6182 = vmul.f32 %v6076, 0.70710677
        %v6183 = vmul.f32 %v6135, 0.70710677
        %v6184 = vmul.f32 %v6137, 0.70710677
        %v6185 = vmul.f32 %v6080, 0.70710677
        %v6186 = vmul.f32 %v6082, 0.70710677
        %v6187 = vmul.f32 %v6141, 0.70710677
        %v6188 = vmul.f32 %v6143, 0.70710677
        %v6189 = vmul.f32 %v6084, 0.70710677
        %v6190 = vmul.f32 %v6086, 0.70710677
        %v6191 = vmul.f32 %v6145, 0.70710677
        %v6192 = vmul.f32 %v6147, 0.70710677
        %v6193 = vmul.f32 %v6090, 0.70710677
        %v6194 = vmul.f32 %v6092, 0.70710677
        %v6195 = vmul.f32 %v6151, 0.70710677
        %v6196 = vmul.f32 %v6153, 0.70710677
        %v6197 = verf.f32.pop %v6177
        %v6198 = verf.f32.pop %v6178
        %v6199 = verf.f32.pop %v6179
        %v6200 = verf.f32.pop %v6180
        %v6201 = verf.f32.pop %v6181
        %v6202 = verf.f32.pop %v6182
        %v6203 = verf.f32.pop %v6183
        %v6204 = verf.f32.pop %v6184
        %v6205 = verf.f32.pop %v6185
        %v6206 = verf.f32.pop %v6186
        %v6207 = verf.f32.pop %v6187
        %v6208 = verf.f32.pop %v6188
        %v6209 = verf.f32.pop %v6189
        %v6210 = verf.f32.pop %v6190
        %v6211 = verf.f32.pop %v6191
        %v6212 = verf.f32.pop %v6192
        %v6213 = verf.f32.pop %v6193
        %v6214 = verf.f32.pop %v6194
        %v6215 = verf.f32.pop %v6195
        %v6216 = verf.f32.pop %v6196
        %v6217 = vadd.f32 %v6197, 1.0
        %v6218 = vadd.f32 %v6198, 1.0
        %v6219 = vadd.f32 %v6199, 1.0
        %v6220 = vadd.f32 %v6200, 1.0
        %v6221 = vadd.f32 %v6201, 1.0
        %v6222 = vadd.f32 %v6202, 1.0
        %v6223 = vadd.f32 %v6203, 1.0
        %v6224 = vadd.f32 %v6204, 1.0
        %v6225 = vadd.f32 %v6205, 1.0
        %v6226 = vadd.f32 %v6206, 1.0
        %v6227 = vadd.f32 %v6207, 1.0
        %v6228 = vadd.f32 %v6208, 1.0
        %v6229 = vadd.f32 %v6209, 1.0
        %v6230 = vadd.f32 %v6210, 1.0
        %v6231 = vadd.f32 %v6211, 1.0
        %v6232 = vadd.f32 %v6212, 1.0
        %v6233 = vadd.f32 %v6213, 1.0
        %v6234 = vadd.f32 %v6214, 1.0
        %v6235 = vadd.f32 %v6215, 1.0
        %v6236 = vadd.f32 %v6216, 1.0
        %v6237 = vmul.f32 %v6157, %v6217
        %v6238 = vmul.f32 %v6158, %v6218
        %v6239 = vmul.f32 %v6159, %v6219
        %v6240 = vmul.f32 %v6160, %v6220
        %v6241 = vmul.f32 %v6161, %v6221
        %v6242 = vmul.f32 %v6162, %v6222
        %v6243 = vmul.f32 %v6163, %v6223
        %v6244 = vmul.f32 %v6164, %v6224
        %v6245 = vmul.f32 %v6165, %v6225
        %v6246 = vmul.f32 %v6166, %v6226
        %v6247 = vmul.f32 %v6167, %v6227
        %v6248 = vmul.f32 %v6168, %v6228
        %v6249 = vmul.f32 %v6169, %v6229
        %v6250 = vmul.f32 %v6170, %v6230
        %v6251 = vmul.f32 %v6171, %v6231
        %v6252 = vmul.f32 %v6172, %v6232
        %v6253 = vmul.f32 %v6173, %v6233
        %v6254 = vmul.f32 %v6174, %v6234
        %v6255 = vmul.f32 %v6175, %v6235
        %v6256 = vmul.f32 %v6176, %v6236
        %s6257 = scalar_lea.vmem %s4, 240
        %v6258 = vld [vmem:[%s6257] sm:$0xf]
        %v6259 = vld [vmem:[%s6257 + $0x4] sm:$0xf]
        %v6260 = vld [vmem:[%s6257 + $0x8] sm:$0xf]
        %v6261 = vld [vmem:[%s6257 + $0xc] sm:$0xf]
        %v6262 = vld [vmem:[%s6257 + $0x10] sm:$0xf]
        %v6263 = vld [vmem:[%s6257 + $0x14] sm:$0xf]
        %v6264 = vld [vmem:[%s6257 + $0x18] sm:$0xf]
        %v6265 = vld [vmem:[%s6257 + $0x1c] sm:$0xf]
        %v6266 = vld [vmem:[%s6257 + $0x20] sm:$0xf]
        %v6267 = vld [vmem:[%s6257 + $0x24] sm:$0xf]
        %v6268 = vld [vmem:[%s6257 + $0x28] sm:$0xf]
        %v6269 = vld [vmem:[%s6257 + $0x2c] sm:$0xf]
        %v6270 = vpack.c.bf16 %v6241, %v6237
        %v6271 = vpack.c.bf16 %v6242, %v6238
        %v6272 = vpack.c.bf16 %v6243, %v6239
        %v6273 = vpack.c.bf16 %v6244, %v6240
        %v6274 = vpack.c.bf16 %v6249, %v6245
        %v6275 = vpack.c.bf16 %v6250, %v6246
        %v6276 = vpack.c.bf16 %v6251, %v6247
        %v6277 = vpack.c.bf16 %v6252, %v6248
        %v6278 = vpack.c.bf16 %v6253, %v6253
        %v6279 = vpack.c.bf16 %v6254, %v6254
        %v6280 = vpack.c.bf16 %v6255, %v6255
        %v6281 = vpack.c.bf16 %v6256, %v6256
        %s6282 = scalar_lea.vmem %s5, 480
        %v6283 = vld [vmem:[%s6282] sm:$0xff]
        %v6284 = vld [vmem:[%s6282 + $0x8] sm:$0xff]
        %v6285 = vld [vmem:[%s6282 + $0x10] sm:$0xff]
        %v6286 = vld [vmem:[%s6282 + $0x18] sm:$0xff]
        %v6287 = vld [vmem:[%s6282 + $0x20] sm:$0xff]
        %v6288 = vld [vmem:[%s6282 + $0x28] sm:$0xff]
        %v6289 = vld [vmem:[%s6282 + $0x30] sm:$0xff]
        %v6290 = vld [vmem:[%s6282 + $0x38] sm:$0xff]
        %v6291 = vld [vmem:[%s6282 + $0x40] sm:$0xff]
        %v6292 = vld [vmem:[%s6282 + $0x48] sm:$0xff]
        %v6293 = vld [vmem:[%s6282 + $0x50] sm:$0xff]
        %v6294 = vld [vmem:[%s6282 + $0x58] sm:$0xff]
        %6296 = vset.pattern.permute.xlu0 0
        %6297 = vperm.xlu0 %6296, %v6283
        %v6298 = vpop.permute.xlu0 %6297
        %6301 = vset.pattern.permute.xlu0 0
        %6302 = vperm.xlu0 %6301, %v6284
        %v6303 = vpop.permute.xlu0 %6302
        %6306 = vset.pattern.permute.xlu0 0
        %6307 = vperm.xlu0 %6306, %v6285
        %v6308 = vpop.permute.xlu0 %6307
        %6311 = vset.pattern.permute.xlu0 0
        %6312 = vperm.xlu0 %6311, %v6286
        %v6313 = vpop.permute.xlu0 %6312
        %6316 = vset.pattern.permute.xlu0 0
        %6317 = vperm.xlu0 %6316, %v6287
        %v6318 = vpop.permute.xlu0 %6317
        %6321 = vset.pattern.permute.xlu0 0
        %6322 = vperm.xlu0 %6321, %v6288
        %v6323 = vpop.permute.xlu0 %6322
        %6326 = vset.pattern.permute.xlu0 0
        %6327 = vperm.xlu0 %6326, %v6289
        %v6328 = vpop.permute.xlu0 %6327
        %6331 = vset.pattern.permute.xlu0 0
        %6332 = vperm.xlu0 %6331, %v6290
        %v6333 = vpop.permute.xlu0 %6332
        %6336 = vset.pattern.permute.xlu0 0
        %6337 = vperm.xlu0 %6336, %v6291
        %v6338 = vpop.permute.xlu0 %6337
        %6341 = vset.pattern.permute.xlu0 0
        %6342 = vperm.xlu0 %6341, %v6292
        %v6343 = vpop.permute.xlu0 %6342
        %6346 = vset.pattern.permute.xlu0 0
        %6347 = vperm.xlu0 %6346, %v6293
        %v6348 = vpop.permute.xlu0 %6347
        %6351 = vset.pattern.permute.xlu0 0
        %6352 = vperm.xlu0 %6351, %v6294
        %v6353 = vpop.permute.xlu0 %6352
        %v6367 = vunpack.c.l.b16 %v6258
        %v6368 = vunpack.c.l.b16 %v6259
        %v6369 = vunpack.c.l.b16 %v6260
        %v6370 = vunpack.c.l.b16 %v6261
        %v6371 = vunpack.c.l.b16 %v6262
        %v6372 = vunpack.c.l.b16 %v6263
        %v6373 = vunpack.c.l.b16 %v6264
        %v6374 = vunpack.c.l.b16 %v6265
        %v6375 = vunpack.c.l.b16 %v6266
        %v6376 = vunpack.c.l.b16 %v6267
        %v6377 = vunpack.c.l.b16 %v6268
        %v6378 = vunpack.c.l.b16 %v6269
        %v6379 = vpack.c.b16 %v6368, %v6367
        %v6380 = vpack.c.b16 %v6370, %v6369
        %v6381 = vpack.c.b16 %v6372, %v6371
        %v6382 = vpack.c.b16 %v6374, %v6373
        %v6383 = vpack.c.b16 %v6376, %v6375
        %v6384 = vpack.c.b16 %v6378, %v6377
        %v6386 = vsel %vm1086, %v6379, 0
        %v6389 = vsel %vm1086, %v6380, 0
        %v6392 = vsel %vm1086, %v6381, 0
        %v6395 = vsel %vm1086, %v6382, 0
        %v6398 = vsel %vm1086, %v6383, 0
        %v6401 = vsel %vm1086, %v6384, 0
        %v6404 = vsel %vm1105, %v6278, 0
        %v6407 = vsel %vm1105, %v6279, 0
        %v6410 = vsel %vm1105, %v6280, 0
        %v6413 = vsel %vm1105, %v6281, 0
        %6415 = vmatprep.subr.bf16.mxu0 0
        %6416 = vmatpush1.bf16.msra.mxu0 0
        %6417 = vmatprep.subr.bf16.mxu0 0
        %6418 = vmatpush1.bf16.msra.mxu0 0
        %6419 = vmatprep.subr.bf16.mxu0 0
        %6420 = vmatpush1.bf16.msra.mxu0 0
        %6421 = vmatprep.subr.bf16.mxu0 0
        %6422 = vmatpush1.bf16.msra.mxu0 0
        %6423 = vmatprep.subr.bf16.mxu0 0
        %6424 = vmatpush1.bf16.msra.mxu0 0
        %6425 = vmatprep.subr.bf16.mxu0 %v6407
        %6426 = vmatpush1.bf16.msra.mxu0 %v6404
        %6427 = vmatprep.subr.bf16.mxu0 %v6275
        %6428 = vmatpush1.bf16.msra.mxu0 %v6274
        %6429 = vmatprep.subr.bf16.mxu0 %v6271
        %6430 = vmatpush1.bf16.msra.mxu0 %v6270
        %6431 = vmatprep.subr.bf16.mxu0 0
        %6432 = vmatpush2.bf16.msra.mxu0 0
        %6433 = vmatprep.subr.bf16.mxu0 0
        %6434 = vmatpush2.bf16.msra.mxu0 0
        %6435 = vmatprep.subr.bf16.mxu0 0
        %6436 = vmatpush2.bf16.msra.mxu0 0
        %6437 = vmatprep.subr.bf16.mxu0 0
        %6438 = vmatpush2.bf16.msra.mxu0 0
        %6439 = vmatprep.subr.bf16.mxu0 0
        %6440 = vmatpush2.bf16.msra.mxu0 0
        %6441 = vmatprep.subr.bf16.mxu0 0
        %6442 = vmatpush2.bf16.msra.mxu0 0
        %6443 = vmatprep.subr.bf16.mxu0 0
        %6444 = vmatpush2.bf16.msra.mxu0 0
        %6445 = vmatprep.subr.bf16.mxu0 0
        %6446 = vmatpush2.bf16.msra.mxu0 0
        %6447 = vmatprep.mubr.bf16.mxu0 0
        %6448 = vmatmul.mubr.bf16.gmra.mxu0 %v6386
        %v6449 = vpop.f32.mrf.mxu0
        %v6450 = vadd.f32 %v6298, %v6449
        %v6451 = vpop.f32.mrf.mxu0
        %v6452 = vadd.f32 %v6298, %v6451
        %v6453 = vpop.f32.mrf.mxu0
        %v6454 = vadd.f32 %v6303, %v6453
        %v6455 = vpop.f32.mrf.mxu0
        %v6456 = vadd.f32 %v6303, %v6455
        %6457 = vmatprep.mubr.bf16.mxu0 0
        %6458 = vmatmul.mubr.bf16.gmra.mxu0 %v6389
        %v6459 = vpop.f32.mrf.mxu0
        %v6460 = vadd.f32 %v6308, %v6459
        %v6461 = vpop.f32.mrf.mxu0
        %v6462 = vadd.f32 %v6308, %v6461
        %v6463 = vpop.f32.mrf.mxu0
        %v6464 = vadd.f32 %v6313, %v6463
        %v6465 = vpop.f32.mrf.mxu0
        %v6466 = vadd.f32 %v6313, %v6465
        %6467 = vmatprep.mubr.bf16.mxu0 0
        %6468 = vmatmul.mubr.bf16.gmra.mxu0 %v6392
        %v6469 = vpop.f32.mrf.mxu0
        %v6470 = vadd.f32 %v6318, %v6469
        %v6471 = vpop.f32.mrf.mxu0
        %v6472 = vadd.f32 %v6318, %v6471
        %v6473 = vpop.f32.mrf.mxu0
        %v6474 = vadd.f32 %v6323, %v6473
        %v6475 = vpop.f32.mrf.mxu0
        %v6476 = vadd.f32 %v6323, %v6475
        %6477 = vmatprep.mubr.bf16.mxu0 0
        %6478 = vmatmul.mubr.bf16.gmra.mxu0 %v6395
        %v6479 = vpop.f32.mrf.mxu0
        %v6480 = vadd.f32 %v6328, %v6479
        %v6481 = vpop.f32.mrf.mxu0
        %v6482 = vadd.f32 %v6328, %v6481
        %v6483 = vpop.f32.mrf.mxu0
        %v6484 = vadd.f32 %v6333, %v6483
        %v6485 = vpop.f32.mrf.mxu0
        %v6486 = vadd.f32 %v6333, %v6485
        %6487 = vmatprep.mubr.bf16.mxu0 0
        %6488 = vmatmul.mubr.bf16.gmra.mxu0 %v6398
        %v6489 = vpop.f32.mrf.mxu0
        %v6490 = vadd.f32 %v6338, %v6489
        %v6491 = vpop.f32.mrf.mxu0
        %v6492 = vadd.f32 %v6338, %v6491
        %v6493 = vpop.f32.mrf.mxu0
        %v6494 = vadd.f32 %v6343, %v6493
        %v6495 = vpop.f32.mrf.mxu0
        %v6496 = vadd.f32 %v6343, %v6495
        %6497 = vmatprep.mubr.bf16.mxu0 0
        %6498 = vmatmul.mubr.bf16.gmra.mxu0 %v6401
        %v6499 = vpop.f32.mrf.mxu0
        %v6500 = vadd.f32 %v6348, %v6499
        %v6501 = vpop.f32.mrf.mxu0
        %v6502 = vadd.f32 %v6348, %v6501
        %v6503 = vpop.f32.mrf.mxu0
        %v6504 = vadd.f32 %v6353, %v6503
        %v6505 = vpop.f32.mrf.mxu0
        %v6506 = vadd.f32 %v6353, %v6505
        %6507 = vdwg.mxu0
        %6508 = vmatprep.subr.bf16.mxu0 0
        %6509 = vmatpush1.bf16.msra.mxu0 0
        %6510 = vmatprep.subr.bf16.mxu0 0
        %6511 = vmatpush1.bf16.msra.mxu0 0
        %6512 = vmatprep.subr.bf16.mxu0 0
        %6513 = vmatpush1.bf16.msra.mxu0 0
        %6514 = vmatprep.subr.bf16.mxu0 0
        %6515 = vmatpush1.bf16.msra.mxu0 0
        %6516 = vmatprep.subr.bf16.mxu0 0
        %6517 = vmatpush1.bf16.msra.mxu0 0
        %6518 = vmatprep.subr.bf16.mxu0 %v6413
        %6519 = vmatpush1.bf16.msra.mxu0 %v6410
        %6520 = vmatprep.subr.bf16.mxu0 %v6277
        %6521 = vmatpush1.bf16.msra.mxu0 %v6276
        %6522 = vmatprep.subr.bf16.mxu0 %v6273
        %6523 = vmatpush1.bf16.msra.mxu0 %v6272
        %6524 = vmatprep.subr.bf16.mxu0 0
        %6525 = vmatpush2.bf16.msra.mxu0 0
        %6526 = vmatprep.subr.bf16.mxu0 0
        %6527 = vmatpush2.bf16.msra.mxu0 0
        %6528 = vmatprep.subr.bf16.mxu0 0
        %6529 = vmatpush2.bf16.msra.mxu0 0
        %6530 = vmatprep.subr.bf16.mxu0 0
        %6531 = vmatpush2.bf16.msra.mxu0 0
        %6532 = vmatprep.subr.bf16.mxu0 0
        %6533 = vmatpush2.bf16.msra.mxu0 0
        %6534 = vmatprep.subr.bf16.mxu0 0
        %6535 = vmatpush2.bf16.msra.mxu0 0
        %6536 = vmatprep.subr.bf16.mxu0 0
        %6537 = vmatpush2.bf16.msra.mxu0 0
        %6538 = vmatprep.subr.bf16.mxu0 0
        %6539 = vmatpush2.bf16.msra.mxu0 0
        %6540 = vmatprep.mubr.bf16.mxu0 0
        %6541 = vmatmul.mubr.bf16.gmra.mxu0 %v6386
        %v6542 = vpop.f32.mrf.mxu0
        %v6543 = vadd.f32 %v6298, %v6542
        %v6544 = vpop.f32.mrf.mxu0
        %v6545 = vadd.f32 %v6298, %v6544
        %v6546 = vpop.f32.mrf.mxu0
        %v6547 = vadd.f32 %v6303, %v6546
        %v6548 = vpop.f32.mrf.mxu0
        %v6549 = vadd.f32 %v6303, %v6548
        %6550 = vmatprep.mubr.bf16.mxu0 0
        %6551 = vmatmul.mubr.bf16.gmra.mxu0 %v6389
        %v6552 = vpop.f32.mrf.mxu0
        %v6553 = vadd.f32 %v6308, %v6552
        %v6554 = vpop.f32.mrf.mxu0
        %v6555 = vadd.f32 %v6308, %v6554
        %v6556 = vpop.f32.mrf.mxu0
        %v6557 = vadd.f32 %v6313, %v6556
        %v6558 = vpop.f32.mrf.mxu0
        %v6559 = vadd.f32 %v6313, %v6558
        %6560 = vmatprep.mubr.bf16.mxu0 0
        %6561 = vmatmul.mubr.bf16.gmra.mxu0 %v6392
        %v6562 = vpop.f32.mrf.mxu0
        %v6563 = vadd.f32 %v6318, %v6562
        %v6564 = vpop.f32.mrf.mxu0
        %v6565 = vadd.f32 %v6318, %v6564
        %v6566 = vpop.f32.mrf.mxu0
        %v6567 = vadd.f32 %v6323, %v6566
        %v6568 = vpop.f32.mrf.mxu0
        %v6569 = vadd.f32 %v6323, %v6568
        %6570 = vmatprep.mubr.bf16.mxu0 0
        %6571 = vmatmul.mubr.bf16.gmra.mxu0 %v6395
        %v6572 = vpop.f32.mrf.mxu0
        %v6573 = vadd.f32 %v6328, %v6572
        %v6574 = vpop.f32.mrf.mxu0
        %v6575 = vadd.f32 %v6328, %v6574
        %v6576 = vpop.f32.mrf.mxu0
        %v6577 = vadd.f32 %v6333, %v6576
        %v6578 = vpop.f32.mrf.mxu0
        %v6579 = vadd.f32 %v6333, %v6578
        %6580 = vmatprep.mubr.bf16.mxu0 0
        %6581 = vmatmul.mubr.bf16.gmra.mxu0 %v6398
        %v6582 = vpop.f32.mrf.mxu0
        %v6583 = vadd.f32 %v6338, %v6582
        %v6584 = vpop.f32.mrf.mxu0
        %v6585 = vadd.f32 %v6338, %v6584
        %v6586 = vpop.f32.mrf.mxu0
        %v6587 = vadd.f32 %v6343, %v6586
        %v6588 = vpop.f32.mrf.mxu0
        %v6589 = vadd.f32 %v6343, %v6588
        %6590 = vmatprep.mubr.bf16.mxu0 0
        %6591 = vmatmul.mubr.bf16.gmra.mxu0 %v6401
        %v6592 = vpop.f32.mrf.mxu0
        %v6593 = vadd.f32 %v6348, %v6592
        %v6594 = vpop.f32.mrf.mxu0
        %v6595 = vadd.f32 %v6348, %v6594
        %v6596 = vpop.f32.mrf.mxu0
        %v6597 = vadd.f32 %v6353, %v6596
        %v6598 = vpop.f32.mrf.mxu0
        %v6599 = vadd.f32 %v6353, %v6598
        %6600 = vdwg.mxu0
        %v6601 = vmul.f32 %v6450, 0.5
        %v6602 = vmul.f32 %v6452, 0.5
        %v6603 = vmul.f32 %v6543, 0.5
        %v6604 = vmul.f32 %v6545, 0.5
        %v6605 = vmul.f32 %v6454, 0.5
        %v6606 = vmul.f32 %v6456, 0.5
        %v6607 = vmul.f32 %v6547, 0.5
        %v6608 = vmul.f32 %v6549, 0.5
        %v6609 = vmul.f32 %v6460, 0.5
        %v6610 = vmul.f32 %v6462, 0.5
        %v6611 = vmul.f32 %v6553, 0.5
        %v6612 = vmul.f32 %v6555, 0.5
        %v6613 = vmul.f32 %v6464, 0.5
        %v6614 = vmul.f32 %v6466, 0.5
        %v6615 = vmul.f32 %v6557, 0.5
        %v6616 = vmul.f32 %v6559, 0.5
        %v6617 = vmul.f32 %v6470, 0.5
        %v6618 = vmul.f32 %v6472, 0.5
        %v6619 = vmul.f32 %v6563, 0.5
        %v6620 = vmul.f32 %v6565, 0.5
        %v6621 = vmul.f32 %v6474, 0.5
        %v6622 = vmul.f32 %v6476, 0.5
        %v6623 = vmul.f32 %v6567, 0.5
        %v6624 = vmul.f32 %v6569, 0.5
        %v6625 = vmul.f32 %v6480, 0.5
        %v6626 = vmul.f32 %v6482, 0.5
        %v6627 = vmul.f32 %v6573, 0.5
        %v6628 = vmul.f32 %v6575, 0.5
        %v6629 = vmul.f32 %v6484, 0.5
        %v6630 = vmul.f32 %v6486, 0.5
        %v6631 = vmul.f32 %v6577, 0.5
        %v6632 = vmul.f32 %v6579, 0.5
        %v6633 = vmul.f32 %v6490, 0.5
        %v6634 = vmul.f32 %v6492, 0.5
        %v6635 = vmul.f32 %v6583, 0.5
        %v6636 = vmul.f32 %v6585, 0.5
        %v6637 = vmul.f32 %v6494, 0.5
        %v6638 = vmul.f32 %v6496, 0.5
        %v6639 = vmul.f32 %v6587, 0.5
        %v6640 = vmul.f32 %v6589, 0.5
        %v6641 = vmul.f32 %v6500, 0.5
        %v6642 = vmul.f32 %v6502, 0.5
        %v6643 = vmul.f32 %v6593, 0.5
        %v6644 = vmul.f32 %v6595, 0.5
        %v6645 = vmul.f32 %v6504, 0.5
        %v6646 = vmul.f32 %v6506, 0.5
        %v6647 = vmul.f32 %v6597, 0.5
        %v6648 = vmul.f32 %v6599, 0.5
        %v6649 = vmul.f32 %v6450, 0.70710677
        %v6650 = vmul.f32 %v6452, 0.70710677
        %v6651 = vmul.f32 %v6543, 0.70710677
        %v6652 = vmul.f32 %v6545, 0.70710677
        %v6653 = vmul.f32 %v6454, 0.70710677
        %v6654 = vmul.f32 %v6456, 0.70710677
        %v6655 = vmul.f32 %v6547, 0.70710677
        %v6656 = vmul.f32 %v6549, 0.70710677
        %v6657 = vmul.f32 %v6460, 0.70710677
        %v6658 = vmul.f32 %v6462, 0.70710677
        %v6659 = vmul.f32 %v6553, 0.70710677
        %v6660 = vmul.f32 %v6555, 0.70710677
        %v6661 = vmul.f32 %v6464, 0.70710677
        %v6662 = vmul.f32 %v6466, 0.70710677
        %v6663 = vmul.f32 %v6557, 0.70710677
        %v6664 = vmul.f32 %v6559, 0.70710677
        %v6665 = vmul.f32 %v6470, 0.70710677
        %v6666 = vmul.f32 %v6472, 0.70710677
        %v6667 = vmul.f32 %v6563, 0.70710677
        %v6668 = vmul.f32 %v6565, 0.70710677
        %v6669 = vmul.f32 %v6474, 0.70710677
        %v6670 = vmul.f32 %v6476, 0.70710677
        %v6671 = vmul.f32 %v6567, 0.70710677
        %v6672 = vmul.f32 %v6569, 0.70710677
        %v6673 = vmul.f32 %v6480, 0.70710677
        %v6674 = vmul.f32 %v6482, 0.70710677
        %v6675 = vmul.f32 %v6573, 0.70710677
        %v6676 = vmul.f32 %v6575, 0.70710677
        %v6677 = vmul.f32 %v6484, 0.70710677
        %v6678 = vmul.f32 %v6486, 0.70710677
        %v6679 = vmul.f32 %v6577, 0.70710677
        %v6680 = vmul.f32 %v6579, 0.70710677
        %v6681 = vmul.f32 %v6490, 0.70710677
        %v6682 = vmul.f32 %v6492, 0.70710677
        %v6683 = vmul.f32 %v6583, 0.70710677
        %v6684 = vmul.f32 %v6585, 0.70710677
        %v6685 = vmul.f32 %v6494, 0.70710677
        %v6686 = vmul.f32 %v6496, 0.70710677
        %v6687 = vmul.f32 %v6587, 0.70710677
        %v6688 = vmul.f32 %v6589, 0.70710677
        %v6689 = vmul.f32 %v6500, 0.70710677
        %v6690 = vmul.f32 %v6502, 0.70710677
        %v6691 = vmul.f32 %v6593, 0.70710677
        %v6692 = vmul.f32 %v6595, 0.70710677
        %v6693 = vmul.f32 %v6504, 0.70710677
        %v6694 = vmul.f32 %v6506, 0.70710677
        %v6695 = vmul.f32 %v6597, 0.70710677
        %v6696 = vmul.f32 %v6599, 0.70710677
        %v6697 = verf.f32.pop %v6649
        %v6698 = verf.f32.pop %v6650
        %v6699 = verf.f32.pop %v6651
        %v6700 = verf.f32.pop %v6652
        %v6701 = verf.f32.pop %v6653
        %v6702 = verf.f32.pop %v6654
        %v6703 = verf.f32.pop %v6655
        %v6704 = verf.f32.pop %v6656
        %v6705 = verf.f32.pop %v6657
        %v6706 = verf.f32.pop %v6658
        %v6707 = verf.f32.pop %v6659
        %v6708 = verf.f32.pop %v6660
        %v6709 = verf.f32.pop %v6661
        %v6710 = verf.f32.pop %v6662
        %v6711 = verf.f32.pop %v6663
        %v6712 = verf.f32.pop %v6664
        %v6713 = verf.f32.pop %v6665
        %v6714 = verf.f32.pop %v6666
        %v6715 = verf.f32.pop %v6667
        %v6716 = verf.f32.pop %v6668
        %v6717 = verf.f32.pop %v6669
        %v6718 = verf.f32.pop %v6670
        %v6719 = verf.f32.pop %v6671
        %v6720 = verf.f32.pop %v6672
        %v6721 = verf.f32.pop %v6673
        %v6722 = verf.f32.pop %v6674
        %v6723 = verf.f32.pop %v6675
        %v6724 = verf.f32.pop %v6676
        %v6725 = verf.f32.pop %v6677
        %v6726 = verf.f32.pop %v6678
        %v6727 = verf.f32.pop %v6679
        %v6728 = verf.f32.pop %v6680
        %v6729 = verf.f32.pop %v6681
        %v6730 = verf.f32.pop %v6682
        %v6731 = verf.f32.pop %v6683
        %v6732 = verf.f32.pop %v6684
        %v6733 = verf.f32.pop %v6685
        %v6734 = verf.f32.pop %v6686
        %v6735 = verf.f32.pop %v6687
        %v6736 = verf.f32.pop %v6688
        %v6737 = verf.f32.pop %v6689
        %v6738 = verf.f32.pop %v6690
        %v6739 = verf.f32.pop %v6691
        %v6740 = verf.f32.pop %v6692
        %v6741 = verf.f32.pop %v6693
        %v6742 = verf.f32.pop %v6694
        %v6743 = verf.f32.pop %v6695
        %v6744 = verf.f32.pop %v6696
        %v6745 = vadd.f32 %v6697, 1.0
        %v6746 = vadd.f32 %v6698, 1.0
        %v6747 = vadd.f32 %v6699, 1.0
        %v6748 = vadd.f32 %v6700, 1.0
        %v6749 = vadd.f32 %v6701, 1.0
        %v6750 = vadd.f32 %v6702, 1.0
        %v6751 = vadd.f32 %v6703, 1.0
        %v6752 = vadd.f32 %v6704, 1.0
        %v6753 = vadd.f32 %v6705, 1.0
        %v6754 = vadd.f32 %v6706, 1.0
        %v6755 = vadd.f32 %v6707, 1.0
        %v6756 = vadd.f32 %v6708, 1.0
        %v6757 = vadd.f32 %v6709, 1.0
        %v6758 = vadd.f32 %v6710, 1.0
        %v6759 = vadd.f32 %v6711, 1.0
        %v6760 = vadd.f32 %v6712, 1.0
        %v6761 = vadd.f32 %v6713, 1.0
        %v6762 = vadd.f32 %v6714, 1.0
        %v6763 = vadd.f32 %v6715, 1.0
        %v6764 = vadd.f32 %v6716, 1.0
        %v6765 = vadd.f32 %v6717, 1.0
        %v6766 = vadd.f32 %v6718, 1.0
        %v6767 = vadd.f32 %v6719, 1.0
        %v6768 = vadd.f32 %v6720, 1.0
        %v6769 = vadd.f32 %v6721, 1.0
        %v6770 = vadd.f32 %v6722, 1.0
        %v6771 = vadd.f32 %v6723, 1.0
        %v6772 = vadd.f32 %v6724, 1.0
        %v6773 = vadd.f32 %v6725, 1.0
        %v6774 = vadd.f32 %v6726, 1.0
        %v6775 = vadd.f32 %v6727, 1.0
        %v6776 = vadd.f32 %v6728, 1.0
        %v6777 = vadd.f32 %v6729, 1.0
        %v6778 = vadd.f32 %v6730, 1.0
        %v6779 = vadd.f32 %v6731, 1.0
        %v6780 = vadd.f32 %v6732, 1.0
        %v6781 = vadd.f32 %v6733, 1.0
        %v6782 = vadd.f32 %v6734, 1.0
        %v6783 = vadd.f32 %v6735, 1.0
        %v6784 = vadd.f32 %v6736, 1.0
        %v6785 = vadd.f32 %v6737, 1.0
        %v6786 = vadd.f32 %v6738, 1.0
        %v6787 = vadd.f32 %v6739, 1.0
        %v6788 = vadd.f32 %v6740, 1.0
        %v6789 = vadd.f32 %v6741, 1.0
        %v6790 = vadd.f32 %v6742, 1.0
        %v6791 = vadd.f32 %v6743, 1.0
        %v6792 = vadd.f32 %v6744, 1.0
        %v6793 = vmul.f32 %v6601, %v6745
        %v6794 = vmul.f32 %v6602, %v6746
        %v6795 = vmul.f32 %v6603, %v6747
        %v6796 = vmul.f32 %v6604, %v6748
        %v6797 = vmul.f32 %v6605, %v6749
        %v6798 = vmul.f32 %v6606, %v6750
        %v6799 = vmul.f32 %v6607, %v6751
        %v6800 = vmul.f32 %v6608, %v6752
        %v6801 = vmul.f32 %v6609, %v6753
        %v6802 = vmul.f32 %v6610, %v6754
        %v6803 = vmul.f32 %v6611, %v6755
        %v6804 = vmul.f32 %v6612, %v6756
        %v6805 = vmul.f32 %v6613, %v6757
        %v6806 = vmul.f32 %v6614, %v6758
        %v6807 = vmul.f32 %v6615, %v6759
        %v6808 = vmul.f32 %v6616, %v6760
        %v6809 = vmul.f32 %v6617, %v6761
        %v6810 = vmul.f32 %v6618, %v6762
        %v6811 = vmul.f32 %v6619, %v6763
        %v6812 = vmul.f32 %v6620, %v6764
        %v6813 = vmul.f32 %v6621, %v6765
        %v6814 = vmul.f32 %v6622, %v6766
        %v6815 = vmul.f32 %v6623, %v6767
        %v6816 = vmul.f32 %v6624, %v6768
        %v6817 = vmul.f32 %v6625, %v6769
        %v6818 = vmul.f32 %v6626, %v6770
        %v6819 = vmul.f32 %v6627, %v6771
        %v6820 = vmul.f32 %v6628, %v6772
        %v6821 = vmul.f32 %v6629, %v6773
        %v6822 = vmul.f32 %v6630, %v6774
        %v6823 = vmul.f32 %v6631, %v6775
        %v6824 = vmul.f32 %v6632, %v6776
        %v6825 = vmul.f32 %v6633, %v6777
        %v6826 = vmul.f32 %v6634, %v6778
        %v6827 = vmul.f32 %v6635, %v6779
        %v6828 = vmul.f32 %v6636, %v6780
        %v6829 = vmul.f32 %v6637, %v6781
        %v6830 = vmul.f32 %v6638, %v6782
        %v6831 = vmul.f32 %v6639, %v6783
        %v6832 = vmul.f32 %v6640, %v6784
        %v6833 = vmul.f32 %v6641, %v6785
        %v6834 = vmul.f32 %v6642, %v6786
        %v6835 = vmul.f32 %v6643, %v6787
        %v6836 = vmul.f32 %v6644, %v6788
        %v6837 = vmul.f32 %v6645, %v6789
        %v6838 = vmul.f32 %v6646, %v6790
        %v6839 = vmul.f32 %v6647, %v6791
        %v6840 = vmul.f32 %v6648, %v6792
        %v6841 = vadd.f32 %v5786, %v6793
        %v6842 = vadd.f32 %v5787, %v6794
        %v6843 = vadd.f32 %v5788, %v6795
        %v6844 = vadd.f32 %v5789, %v6796
        %v6845 = vadd.f32 %v5790, %v6797
        %v6846 = vadd.f32 %v5791, %v6798
        %v6847 = vadd.f32 %v5792, %v6799
        %v6848 = vadd.f32 %v5793, %v6800
        %v6849 = vadd.f32 %v5794, %v6801
        %v6850 = vadd.f32 %v5795, %v6802
        %v6851 = vadd.f32 %v5796, %v6803
        %v6852 = vadd.f32 %v5797, %v6804
        %v6853 = vadd.f32 %v5798, %v6805
        %v6854 = vadd.f32 %v5799, %v6806
        %v6855 = vadd.f32 %v5800, %v6807
        %v6856 = vadd.f32 %v5801, %v6808
        %v6857 = vadd.f32 %v5802, %v6809
        %v6858 = vadd.f32 %v5803, %v6810
        %v6859 = vadd.f32 %v5804, %v6811
        %v6860 = vadd.f32 %v5805, %v6812
        %v6861 = vadd.f32 %v5806, %v6813
        %v6862 = vadd.f32 %v5807, %v6814
        %v6863 = vadd.f32 %v5808, %v6815
        %v6864 = vadd.f32 %v5809, %v6816
        %v6865 = vadd.f32 %v5810, %v6817
        %v6866 = vadd.f32 %v5811, %v6818
        %v6867 = vadd.f32 %v5812, %v6819
        %v6868 = vadd.f32 %v5813, %v6820
        %v6869 = vadd.f32 %v5814, %v6821
        %v6870 = vadd.f32 %v5815, %v6822
        %v6871 = vadd.f32 %v5816, %v6823
        %v6872 = vadd.f32 %v5817, %v6824
        %v6873 = vadd.f32 %v6825, %v5818
        %v6874 = vadd.f32 %v6826, %v5819
        %v6875 = vadd.f32 %v6827, %v5820
        %v6876 = vadd.f32 %v6828, %v5821
        %v6877 = vadd.f32 %v6829, %v5822
        %v6878 = vadd.f32 %v6830, %v5823
        %v6879 = vadd.f32 %v6831, %v5824
        %v6880 = vadd.f32 %v6832, %v5825
        %v6881 = vadd.f32 %v6833, %v5826
        %v6882 = vadd.f32 %v6834, %v5827
        %v6883 = vadd.f32 %v6835, %v5828
        %v6884 = vadd.f32 %v6836, %v5829
        %v6885 = vadd.f32 %v6837, %v5830
        %v6886 = vadd.f32 %v6838, %v5831
        %v6887 = vadd.f32 %v6839, %v5832
        %v6888 = vadd.f32 %v6840, %v5833
        %6889 = vrot.lane.b32.xlu0 %v6873, 9
        %v6890 = vpop.permute.xlu0 %6889
        %6891 = vrot.lane.b32.xlu0 %v6877, 9
        %v6892 = vpop.permute.xlu0 %6891
        %6893 = vrot.lane.b32.xlu0 %v6881, 9
        %v6894 = vpop.permute.xlu0 %6893
        %6895 = vrot.lane.b32.xlu0 %v6885, 9
        %v6896 = vpop.permute.xlu0 %6895
        %6897 = vrot.lane.b32.xlu0 %v6874, 9
        %v6898 = vpop.permute.xlu0 %6897
        %6899 = vrot.lane.b32.xlu0 %v6878, 9
        %v6900 = vpop.permute.xlu0 %6899
        %6901 = vrot.lane.b32.xlu0 %v6882, 9
        %v6902 = vpop.permute.xlu0 %6901
        %6903 = vrot.lane.b32.xlu0 %v6886, 9
        %v6904 = vpop.permute.xlu0 %6903
        %6905 = vrot.lane.b32.xlu0 %v6875, 9
        %v6906 = vpop.permute.xlu0 %6905
        %6907 = vrot.lane.b32.xlu0 %v6879, 9
        %v6908 = vpop.permute.xlu0 %6907
        %6909 = vrot.lane.b32.xlu0 %v6883, 9
        %v6910 = vpop.permute.xlu0 %6909
        %6911 = vrot.lane.b32.xlu0 %v6887, 9
        %v6912 = vpop.permute.xlu0 %6911
        %6913 = vrot.lane.b32.xlu0 %v6876, 9
        %v6914 = vpop.permute.xlu0 %6913
        %6915 = vrot.lane.b32.xlu0 %v6880, 9
        %v6916 = vpop.permute.xlu0 %6915
        %6917 = vrot.lane.b32.xlu0 %v6884, 9
        %v6918 = vpop.permute.xlu0 %6917
        %6919 = vrot.lane.b32.xlu0 %v6888, 9
        %v6920 = vpop.permute.xlu0 %6919
        %v6921 = vsel %vm2665, %v6906, %v6914
        %v6922 = vsel %vm2665, %v6908, %v6916
        %v6923 = vsel %vm2665, %v6910, %v6918
        %v6924 = vsel %vm2665, %v6912, %v6920
        %v6925 = vsel %vm2665, %v6898, %v6906
        %v6926 = vsel %vm2665, %v6900, %v6908
        %v6927 = vsel %vm2665, %v6902, %v6910
        %v6928 = vsel %vm2665, %v6904, %v6912
        %v6929 = vsel %vm2665, %v6890, %v6898
        %v6930 = vsel %vm2665, %v6892, %v6900
        %v6931 = vsel %vm2665, %v6894, %v6902
        %v6932 = vsel %vm2665, %v6896, %v6904
        %v6933 = vsel %vm2665, %v6914, %v6890
        %v6934 = vsel %vm2665, %v6916, %v6892
        %v6935 = vsel %vm2665, %v6918, %v6894
        %v6936 = vsel %vm2665, %v6920, %v6896
        %v6937 = vsel %vm2686, %v6933, 0.0
        %v6938 = vsel %vm2687, %v6929, 0.0
        %v6939 = vsel %vm2688, %v6925, 0.0
        %v6940 = vsel %vm2689, %v6921, 0.0
        %v6941 = vsel %vm2686, %v6934, 0.0
        %v6942 = vsel %vm2687, %v6930, 0.0
        %v6943 = vsel %vm2688, %v6926, 0.0
        %v6944 = vsel %vm2689, %v6922, 0.0
        %v6945 = vsel %vm2686, %v6935, 0.0
        %v6946 = vsel %vm2687, %v6931, 0.0
        %v6947 = vsel %vm2688, %v6927, 0.0
        %v6948 = vsel %vm2689, %v6923, 0.0
        %v6949 = vsel %vm2686, %v6936, 0.0
        %v6950 = vsel %vm2687, %v6932, 0.0
        %v6951 = vsel %vm2688, %v6928, 0.0
        %v6952 = vsel %vm2689, %v6924, 0.0
        %6953 = vrot.lane.b32.xlu0 %v6873, 119
        %v6954 = vpop.permute.xlu0 %6953
        %6955 = vrot.lane.b32.xlu0 %v6877, 119
        %v6956 = vpop.permute.xlu0 %6955
        %6957 = vrot.lane.b32.xlu0 %v6881, 119
        %v6958 = vpop.permute.xlu0 %6957
        %6959 = vrot.lane.b32.xlu0 %v6885, 119
        %v6960 = vpop.permute.xlu0 %6959
        %6961 = vrot.lane.b32.xlu0 %v6874, 119
        %v6962 = vpop.permute.xlu0 %6961
        %6963 = vrot.lane.b32.xlu0 %v6878, 119
        %v6964 = vpop.permute.xlu0 %6963
        %6965 = vrot.lane.b32.xlu0 %v6882, 119
        %v6966 = vpop.permute.xlu0 %6965
        %6967 = vrot.lane.b32.xlu0 %v6886, 119
        %v6968 = vpop.permute.xlu0 %6967
        %6969 = vrot.lane.b32.xlu0 %v6875, 119
        %v6970 = vpop.permute.xlu0 %6969
        %6971 = vrot.lane.b32.xlu0 %v6879, 119
        %v6972 = vpop.permute.xlu0 %6971
        %6973 = vrot.lane.b32.xlu0 %v6883, 119
        %v6974 = vpop.permute.xlu0 %6973
        %6975 = vrot.lane.b32.xlu0 %v6887, 119
        %v6976 = vpop.permute.xlu0 %6975
        %6977 = vrot.lane.b32.xlu0 %v6876, 119
        %v6978 = vpop.permute.xlu0 %6977
        %6979 = vrot.lane.b32.xlu0 %v6880, 119
        %v6980 = vpop.permute.xlu0 %6979
        %6981 = vrot.lane.b32.xlu0 %v6884, 119
        %v6982 = vpop.permute.xlu0 %6981
        %6983 = vrot.lane.b32.xlu0 %v6888, 119
        %v6984 = vpop.permute.xlu0 %6983
        %v6985 = vsel %vm2738, %v6970, %v6978
        %v6986 = vsel %vm2738, %v6972, %v6980
        %v6987 = vsel %vm2738, %v6974, %v6982
        %v6988 = vsel %vm2738, %v6976, %v6984
        %v6989 = vsel %vm2738, %v6962, %v6970
        %v6990 = vsel %vm2738, %v6964, %v6972
        %v6991 = vsel %vm2738, %v6966, %v6974
        %v6992 = vsel %vm2738, %v6968, %v6976
        %v6993 = vsel %vm2738, %v6954, %v6962
        %v6994 = vsel %vm2738, %v6956, %v6964
        %v6995 = vsel %vm2738, %v6958, %v6966
        %v6996 = vsel %vm2738, %v6960, %v6968
        %v6997 = vsel %vm2738, %v6978, %v6954
        %v6998 = vsel %vm2738, %v6980, %v6956
        %v6999 = vsel %vm2738, %v6982, %v6958
        %v7000 = vsel %vm2738, %v6984, %v6960
        %v7001 = vsel %vm2759, %v6993, 0.0
        %v7002 = vsel %vm2760, %v6989, 0.0
        %v7003 = vsel %vm2761, %v6985, 0.0
        %v7004 = vsel %vm2762, %v6997, 0.0
        %v7005 = vsel %vm2759, %v6994, 0.0
        %v7006 = vsel %vm2760, %v6990, 0.0
        %v7007 = vsel %vm2761, %v6986, 0.0
        %v7008 = vsel %vm2762, %v6998, 0.0
        %v7009 = vsel %vm2759, %v6995, 0.0
        %v7010 = vsel %vm2760, %v6991, 0.0
        %v7011 = vsel %vm2761, %v6987, 0.0
        %v7012 = vsel %vm2762, %v6999, 0.0
        %v7013 = vsel %vm2759, %v6996, 0.0
        %v7014 = vsel %vm2760, %v6992, 0.0
        %v7015 = vsel %vm2761, %v6988, 0.0
        %v7016 = vsel %vm2762, %v7000, 0.0
        %v7017 = vpack.c.bf16 %v6941, %v6937
        %v7018 = vpack.c.bf16 %v6942, %v6938
        %v7019 = vpack.c.bf16 %v6943, %v6939
        %v7020 = vpack.c.bf16 %v6944, %v6940
        %v7021 = vpack.c.bf16 %v6949, %v6945
        %v7022 = vpack.c.bf16 %v6950, %v6946
        %v7023 = vpack.c.bf16 %v6951, %v6947
        %v7024 = vpack.c.bf16 %v6952, %v6948
        %v7025 = vpack.c.bf16 %v6877, %v6873
        %v7026 = vpack.c.bf16 %v6878, %v6874
        %v7027 = vpack.c.bf16 %v6879, %v6875
        %v7028 = vpack.c.bf16 %v6880, %v6876
        %v7029 = vpack.c.bf16 %v6885, %v6881
        %v7030 = vpack.c.bf16 %v6886, %v6882
        %v7031 = vpack.c.bf16 %v6887, %v6883
        %v7032 = vpack.c.bf16 %v6888, %v6884
        %v7033 = vpack.c.bf16 %v7005, %v7001
        %v7034 = vpack.c.bf16 %v7006, %v7002
        %v7035 = vpack.c.bf16 %v7007, %v7003
        %v7036 = vpack.c.bf16 %v7008, %v7004
        %v7037 = vpack.c.bf16 %v7013, %v7009
        %v7038 = vpack.c.bf16 %v7014, %v7010
        %v7039 = vpack.c.bf16 %v7015, %v7011
        %v7040 = vpack.c.bf16 %v7016, %v7012
        %s7041 = scalar_lea.vmem [#allocation3], 120
        %v7042 = vld [vmem:[%s7041] sm:$0xf]
        %v7043 = vld [vmem:[%s7041 + $0x4] sm:$0xf]
        %v7044 = vld [vmem:[%s7041 + $0x8] sm:$0xf]
        %v7045 = vld [vmem:[%s7041 + $0xc] sm:$0xf]
        %v7046 = vld [vmem:[%s7041 + $0x10] sm:$0xf]
        %s7047 = scalar_lea.vmem %s3, 960
        %v7048 = vld [vmem:[%s7047] sm:$0xff]
        %v7049 = vld [vmem:[%s7047 + $0x8] sm:$0xff]
        %v7050 = vld [vmem:[%s7047 + $0x10] sm:$0xff]
        %v7051 = vld [vmem:[%s7047 + $0x18] sm:$0xff]
        %v7052 = vld [vmem:[%s7047 + $0x20] sm:$0xff]
        %v7053 = vld [vmem:[%s7047 + $0x28] sm:$0xff]
        %v7054 = vld [vmem:[%s7047 + $0x30] sm:$0xff]
        %v7055 = vld [vmem:[%s7047 + $0x38] sm:$0xff]
        %v7056 = vld [vmem:[%s7047 + $0x40] sm:$0xff]
        %v7057 = vld [vmem:[%s7047 + $0x48] sm:$0xff]
        %v7058 = vld [vmem:[%s7047 + $0x50] sm:$0xff]
        %v7059 = vld [vmem:[%s7047 + $0x58] sm:$0xff]
        %v7060 = vld [vmem:[%s7047 + $0x60] sm:$0xff]
        %v7061 = vld [vmem:[%s7047 + $0x68] sm:$0xff]
        %v7062 = vld [vmem:[%s7047 + $0x70] sm:$0xff]
        %v7063 = vld [vmem:[%s7047 + $0x78] sm:$0xff]
        %v7064 = vld [vmem:[%s7047 + $0x80] sm:$0xff]
        %v7065 = vld [vmem:[%s7047 + $0x88] sm:$0xff]
        %v7066 = vld [vmem:[%s7047 + $0x90] sm:$0xff]
        %v7067 = vld [vmem:[%s7047 + $0x98] sm:$0xff]
        %v7073 = vunpack.c.l.b16 %v7042
        %v7074 = vunpack.c.l.b16 %v7043
        %v7075 = vunpack.c.l.b16 %v7044
        %v7076 = vunpack.c.l.b16 %v7045
        %v7077 = vunpack.c.l.b16 %v7046
        %v7078 = vpack.c.b16 %v7074, %v7073
        %v7079 = vpack.c.b16 %v7076, %v7075
        %v7080 = vpack.c.b16 %v7077, %v7077
        %v7082 = vsel %vm728, %v7078, 0
        %v7085 = vsel %vm728, %v7079, 0
        %v7088 = vsel %vm728, %v7080, 0
        %7090 = vmatprep.subr.bf16.mxu0 0
        %7091 = vmatpush1.bf16.msra.mxu0 0
        %7092 = vmatprep.subr.bf16.mxu0 0
        %7093 = vmatpush1.bf16.msra.mxu0 0
        %7094 = vmatprep.subr.bf16.mxu0 %v7038
        %7095 = vmatpush1.bf16.msra.mxu0 %v7037
        %7096 = vmatprep.subr.bf16.mxu0 %v7034
        %7097 = vmatpush1.bf16.msra.mxu0 %v7033
        %7098 = vmatprep.subr.bf16.mxu0 %v7030
        %7099 = vmatpush1.bf16.msra.mxu0 %v7029
        %7100 = vmatprep.subr.bf16.mxu0 %v7026
        %7101 = vmatpush1.bf16.msra.mxu0 %v7025
        %7102 = vmatprep.subr.bf16.mxu0 %v7022
        %7103 = vmatpush1.bf16.msra.mxu0 %v7021
        %7104 = vmatprep.subr.bf16.mxu0 %v7018
        %7105 = vmatpush1.bf16.msra.mxu0 %v7017
        %7106 = vmatprep.subr.bf16.mxu0 0
        %7107 = vmatpush2.bf16.msra.mxu0 0
        %7108 = vmatprep.subr.bf16.mxu0 0
        %7109 = vmatpush2.bf16.msra.mxu0 0
        %7110 = vmatprep.subr.bf16.mxu0 0
        %7111 = vmatpush2.bf16.msra.mxu0 0
        %7112 = vmatprep.subr.bf16.mxu0 0
        %7113 = vmatpush2.bf16.msra.mxu0 0
        %7114 = vmatprep.subr.bf16.mxu0 0
        %7115 = vmatpush2.bf16.msra.mxu0 0
        %7116 = vmatprep.subr.bf16.mxu0 0
        %7117 = vmatpush2.bf16.msra.mxu0 0
        %7118 = vmatprep.subr.bf16.mxu0 0
        %7119 = vmatpush2.bf16.msra.mxu0 0
        %7120 = vmatprep.subr.bf16.mxu0 0
        %7121 = vmatpush2.bf16.msra.mxu0 0
        %7122 = vmatprep.mubr.bf16.mxu0 0
        %7123 = vmatmul.mubr.bf16.gmra.mxu0 %v7082
        %v7124 = vpop.f32.mrf.mxu0
        %v7125 = vadd.f32 %v7048, %v7124
        %v7126 = vpop.f32.mrf.mxu0
        %v7127 = vadd.f32 %v7049, %v7126
        %v7128 = vpop.f32.mrf.mxu0
        %v7129 = vadd.f32 %v7052, %v7128
        %v7130 = vpop.f32.mrf.mxu0
        %v7131 = vadd.f32 %v7053, %v7130
        %7132 = vmatprep.mubr.bf16.mxu0 0
        %7133 = vmatmul.mubr.bf16.gmra.mxu0 %v7085
        %v7134 = vpop.f32.mrf.mxu0
        %v7135 = vadd.f32 %v7056, %v7134
        %v7136 = vpop.f32.mrf.mxu0
        %v7137 = vadd.f32 %v7057, %v7136
        %v7138 = vpop.f32.mrf.mxu0
        %v7139 = vadd.f32 %v7060, %v7138
        %v7140 = vpop.f32.mrf.mxu0
        %v7141 = vadd.f32 %v7061, %v7140
        %7142 = vmatprep.mubr.bf16.mxu0 0
        %7143 = vmatmul.mubr.bf16.gmra.mxu0 %v7088
        %v7144 = vpop.f32.mrf.mxu0
        %v7145 = vadd.f32 %v7064, %v7144
        %v7146 = vpop.f32.mrf.mxu0
        %v7147 = vadd.f32 %v7065, %v7146
        %v7148 = vpop.f32.mrf.mxu0
        %v7149 = vpop.f32.mrf.mxu0
        %7150 = vdwg.mxu0
        %7151 = vmatprep.subr.bf16.mxu0 0
        %7152 = vmatpush1.bf16.msra.mxu0 0
        %7153 = vmatprep.subr.bf16.mxu0 0
        %7154 = vmatpush1.bf16.msra.mxu0 0
        %7155 = vmatprep.subr.bf16.mxu0 %v7040
        %7156 = vmatpush1.bf16.msra.mxu0 %v7039
        %7157 = vmatprep.subr.bf16.mxu0 %v7036
        %7158 = vmatpush1.bf16.msra.mxu0 %v7035
        %7159 = vmatprep.subr.bf16.mxu0 %v7032
        %7160 = vmatpush1.bf16.msra.mxu0 %v7031
        %7161 = vmatprep.subr.bf16.mxu0 %v7028
        %7162 = vmatpush1.bf16.msra.mxu0 %v7027
        %7163 = vmatprep.subr.bf16.mxu0 %v7024
        %7164 = vmatpush1.bf16.msra.mxu0 %v7023
        %7165 = vmatprep.subr.bf16.mxu0 %v7020
        %7166 = vmatpush1.bf16.msra.mxu0 %v7019
        %7167 = vmatprep.subr.bf16.mxu0 0
        %7168 = vmatpush2.bf16.msra.mxu0 0
        %7169 = vmatprep.subr.bf16.mxu0 0
        %7170 = vmatpush2.bf16.msra.mxu0 0
        %7171 = vmatprep.subr.bf16.mxu0 0
        %7172 = vmatpush2.bf16.msra.mxu0 0
        %7173 = vmatprep.subr.bf16.mxu0 0
        %7174 = vmatpush2.bf16.msra.mxu0 0
        %7175 = vmatprep.subr.bf16.mxu0 0
        %7176 = vmatpush2.bf16.msra.mxu0 0
        %7177 = vmatprep.subr.bf16.mxu0 0
        %7178 = vmatpush2.bf16.msra.mxu0 0
        %7179 = vmatprep.subr.bf16.mxu0 0
        %7180 = vmatpush2.bf16.msra.mxu0 0
        %7181 = vmatprep.subr.bf16.mxu0 0
        %7182 = vmatpush2.bf16.msra.mxu0 0
        %7183 = vmatprep.mubr.bf16.mxu0 0
        %7184 = vmatmul.mubr.bf16.gmra.mxu0 %v7082
        %v7185 = vpop.f32.mrf.mxu0
        %v7186 = vadd.f32 %v7050, %v7185
        %v7187 = vpop.f32.mrf.mxu0
        %v7188 = vadd.f32 %v7051, %v7187
        %v7189 = vpop.f32.mrf.mxu0
        %v7190 = vadd.f32 %v7054, %v7189
        %v7191 = vpop.f32.mrf.mxu0
        %v7192 = vadd.f32 %v7055, %v7191
        %7193 = vmatprep.mubr.bf16.mxu0 0
        %7194 = vmatmul.mubr.bf16.gmra.mxu0 %v7085
        %v7195 = vpop.f32.mrf.mxu0
        %v7196 = vadd.f32 %v7058, %v7195
        %v7197 = vpop.f32.mrf.mxu0
        %v7198 = vadd.f32 %v7059, %v7197
        %v7199 = vpop.f32.mrf.mxu0
        %v7200 = vadd.f32 %v7062, %v7199
        %v7201 = vpop.f32.mrf.mxu0
        %v7202 = vadd.f32 %v7063, %v7201
        %7203 = vmatprep.mubr.bf16.mxu0 0
        %7204 = vmatmul.mubr.bf16.gmra.mxu0 %v7088
        %v7205 = vpop.f32.mrf.mxu0
        %v7206 = vadd.f32 %v7066, %v7205
        %v7207 = vpop.f32.mrf.mxu0
        %v7208 = vadd.f32 %v7067, %v7207
        %v7209 = vpop.f32.mrf.mxu0
        %v7210 = vpop.f32.mrf.mxu0
        %7211 = vdwg.mxu0
        %v7212 = vmul.f32 %v7125, 0.5
        %v7213 = vmul.f32 %v7127, 0.5
        %v7214 = vmul.f32 %v7186, 0.5
        %v7215 = vmul.f32 %v7188, 0.5
        %v7216 = vmul.f32 %v7129, 0.5
        %v7217 = vmul.f32 %v7131, 0.5
        %v7218 = vmul.f32 %v7190, 0.5
        %v7219 = vmul.f32 %v7192, 0.5
        %v7220 = vmul.f32 %v7135, 0.5
        %v7221 = vmul.f32 %v7137, 0.5
        %v7222 = vmul.f32 %v7196, 0.5
        %v7223 = vmul.f32 %v7198, 0.5
        %v7224 = vmul.f32 %v7139, 0.5
        %v7225 = vmul.f32 %v7141, 0.5
        %v7226 = vmul.f32 %v7200, 0.5
        %v7227 = vmul.f32 %v7202, 0.5
        %v7228 = vmul.f32 %v7145, 0.5
        %v7229 = vmul.f32 %v7147, 0.5
        %v7230 = vmul.f32 %v7206, 0.5
        %v7231 = vmul.f32 %v7208, 0.5
        %v7232 = vmul.f32 %v7125, 0.70710677
        %v7233 = vmul.f32 %v7127, 0.70710677
        %v7234 = vmul.f32 %v7186, 0.70710677
        %v7235 = vmul.f32 %v7188, 0.70710677
        %v7236 = vmul.f32 %v7129, 0.70710677
        %v7237 = vmul.f32 %v7131, 0.70710677
        %v7238 = vmul.f32 %v7190, 0.70710677
        %v7239 = vmul.f32 %v7192, 0.70710677
        %v7240 = vmul.f32 %v7135, 0.70710677
        %v7241 = vmul.f32 %v7137, 0.70710677
        %v7242 = vmul.f32 %v7196, 0.70710677
        %v7243 = vmul.f32 %v7198, 0.70710677
        %v7244 = vmul.f32 %v7139, 0.70710677
        %v7245 = vmul.f32 %v7141, 0.70710677
        %v7246 = vmul.f32 %v7200, 0.70710677
        %v7247 = vmul.f32 %v7202, 0.70710677
        %v7248 = vmul.f32 %v7145, 0.70710677
        %v7249 = vmul.f32 %v7147, 0.70710677
        %v7250 = vmul.f32 %v7206, 0.70710677
        %v7251 = vmul.f32 %v7208, 0.70710677
        %v7252 = verf.f32.pop %v7232
        %v7253 = verf.f32.pop %v7233
        %v7254 = verf.f32.pop %v7234
        %v7255 = verf.f32.pop %v7235
        %v7256 = verf.f32.pop %v7236
        %v7257 = verf.f32.pop %v7237
        %v7258 = verf.f32.pop %v7238
        %v7259 = verf.f32.pop %v7239
        %v7260 = verf.f32.pop %v7240
        %v7261 = verf.f32.pop %v7241
        %v7262 = verf.f32.pop %v7242
        %v7263 = verf.f32.pop %v7243
        %v7264 = verf.f32.pop %v7244
        %v7265 = verf.f32.pop %v7245
        %v7266 = verf.f32.pop %v7246
        %v7267 = verf.f32.pop %v7247
        %v7268 = verf.f32.pop %v7248
        %v7269 = verf.f32.pop %v7249
        %v7270 = verf.f32.pop %v7250
        %v7271 = verf.f32.pop %v7251
        %v7272 = vadd.f32 %v7252, 1.0
        %v7273 = vadd.f32 %v7253, 1.0
        %v7274 = vadd.f32 %v7254, 1.0
        %v7275 = vadd.f32 %v7255, 1.0
        %v7276 = vadd.f32 %v7256, 1.0
        %v7277 = vadd.f32 %v7257, 1.0
        %v7278 = vadd.f32 %v7258, 1.0
        %v7279 = vadd.f32 %v7259, 1.0
        %v7280 = vadd.f32 %v7260, 1.0
        %v7281 = vadd.f32 %v7261, 1.0
        %v7282 = vadd.f32 %v7262, 1.0
        %v7283 = vadd.f32 %v7263, 1.0
        %v7284 = vadd.f32 %v7264, 1.0
        %v7285 = vadd.f32 %v7265, 1.0
        %v7286 = vadd.f32 %v7266, 1.0
        %v7287 = vadd.f32 %v7267, 1.0
        %v7288 = vadd.f32 %v7268, 1.0
        %v7289 = vadd.f32 %v7269, 1.0
        %v7290 = vadd.f32 %v7270, 1.0
        %v7291 = vadd.f32 %v7271, 1.0
        %v7292 = vmul.f32 %v7212, %v7272
        %v7293 = vmul.f32 %v7213, %v7273
        %v7294 = vmul.f32 %v7214, %v7274
        %v7295 = vmul.f32 %v7215, %v7275
        %v7296 = vmul.f32 %v7216, %v7276
        %v7297 = vmul.f32 %v7217, %v7277
        %v7298 = vmul.f32 %v7218, %v7278
        %v7299 = vmul.f32 %v7219, %v7279
        %v7300 = vmul.f32 %v7220, %v7280
        %v7301 = vmul.f32 %v7221, %v7281
        %v7302 = vmul.f32 %v7222, %v7282
        %v7303 = vmul.f32 %v7223, %v7283
        %v7304 = vmul.f32 %v7224, %v7284
        %v7305 = vmul.f32 %v7225, %v7285
        %v7306 = vmul.f32 %v7226, %v7286
        %v7307 = vmul.f32 %v7227, %v7287
        %v7308 = vmul.f32 %v7228, %v7288
        %v7309 = vmul.f32 %v7229, %v7289
        %v7310 = vmul.f32 %v7230, %v7290
        %v7311 = vmul.f32 %v7231, %v7291
        %s7312 = scalar_lea.vmem %s4, 288
        %v7313 = vld [vmem:[%s7312] sm:$0xf]
        %v7314 = vld [vmem:[%s7312 + $0x4] sm:$0xf]
        %v7315 = vld [vmem:[%s7312 + $0x8] sm:$0xf]
        %v7316 = vld [vmem:[%s7312 + $0xc] sm:$0xf]
        %v7317 = vld [vmem:[%s7312 + $0x10] sm:$0xf]
        %v7318 = vld [vmem:[%s7312 + $0x14] sm:$0xf]
        %v7319 = vld [vmem:[%s7312 + $0x18] sm:$0xf]
        %v7320 = vld [vmem:[%s7312 + $0x1c] sm:$0xf]
        %v7321 = vld [vmem:[%s7312 + $0x20] sm:$0xf]
        %v7322 = vld [vmem:[%s7312 + $0x24] sm:$0xf]
        %v7323 = vld [vmem:[%s7312 + $0x28] sm:$0xf]
        %v7324 = vld [vmem:[%s7312 + $0x2c] sm:$0xf]
        %v7325 = vpack.c.bf16 %v7296, %v7292
        %v7326 = vpack.c.bf16 %v7297, %v7293
        %v7327 = vpack.c.bf16 %v7298, %v7294
        %v7328 = vpack.c.bf16 %v7299, %v7295
        %v7329 = vpack.c.bf16 %v7304, %v7300
        %v7330 = vpack.c.bf16 %v7305, %v7301
        %v7331 = vpack.c.bf16 %v7306, %v7302
        %v7332 = vpack.c.bf16 %v7307, %v7303
        %v7333 = vpack.c.bf16 %v7308, %v7308
        %v7334 = vpack.c.bf16 %v7309, %v7309
        %v7335 = vpack.c.bf16 %v7310, %v7310
        %v7336 = vpack.c.bf16 %v7311, %v7311
        %s7337 = scalar_lea.vmem %s5, 576
        %v7338 = vld [vmem:[%s7337] sm:$0xff]
        %v7339 = vld [vmem:[%s7337 + $0x8] sm:$0xff]
        %v7340 = vld [vmem:[%s7337 + $0x10] sm:$0xff]
        %v7341 = vld [vmem:[%s7337 + $0x18] sm:$0xff]
        %v7342 = vld [vmem:[%s7337 + $0x20] sm:$0xff]
        %v7343 = vld [vmem:[%s7337 + $0x28] sm:$0xff]
        %v7344 = vld [vmem:[%s7337 + $0x30] sm:$0xff]
        %v7345 = vld [vmem:[%s7337 + $0x38] sm:$0xff]
        %v7346 = vld [vmem:[%s7337 + $0x40] sm:$0xff]
        %v7347 = vld [vmem:[%s7337 + $0x48] sm:$0xff]
        %v7348 = vld [vmem:[%s7337 + $0x50] sm:$0xff]
        %v7349 = vld [vmem:[%s7337 + $0x58] sm:$0xff]
        %7351 = vset.pattern.permute.xlu0 0
        %7352 = vperm.xlu0 %7351, %v7338
        %v7353 = vpop.permute.xlu0 %7352
        %7356 = vset.pattern.permute.xlu0 0
        %7357 = vperm.xlu0 %7356, %v7339
        %v7358 = vpop.permute.xlu0 %7357
        %7361 = vset.pattern.permute.xlu0 0
        %7362 = vperm.xlu0 %7361, %v7340
        %v7363 = vpop.permute.xlu0 %7362
        %7366 = vset.pattern.permute.xlu0 0
        %7367 = vperm.xlu0 %7366, %v7341
        %v7368 = vpop.permute.xlu0 %7367
        %7371 = vset.pattern.permute.xlu0 0
        %7372 = vperm.xlu0 %7371, %v7342
        %v7373 = vpop.permute.xlu0 %7372
        %7376 = vset.pattern.permute.xlu0 0
        %7377 = vperm.xlu0 %7376, %v7343
        %v7378 = vpop.permute.xlu0 %7377
        %7381 = vset.pattern.permute.xlu0 0
        %7382 = vperm.xlu0 %7381, %v7344
        %v7383 = vpop.permute.xlu0 %7382
        %7386 = vset.pattern.permute.xlu0 0
        %7387 = vperm.xlu0 %7386, %v7345
        %v7388 = vpop.permute.xlu0 %7387
        %7391 = vset.pattern.permute.xlu0 0
        %7392 = vperm.xlu0 %7391, %v7346
        %v7393 = vpop.permute.xlu0 %7392
        %7396 = vset.pattern.permute.xlu0 0
        %7397 = vperm.xlu0 %7396, %v7347
        %v7398 = vpop.permute.xlu0 %7397
        %7401 = vset.pattern.permute.xlu0 0
        %7402 = vperm.xlu0 %7401, %v7348
        %v7403 = vpop.permute.xlu0 %7402
        %7406 = vset.pattern.permute.xlu0 0
        %7407 = vperm.xlu0 %7406, %v7349
        %v7408 = vpop.permute.xlu0 %7407
        %v7422 = vunpack.c.l.b16 %v7313
        %v7423 = vunpack.c.l.b16 %v7314
        %v7424 = vunpack.c.l.b16 %v7315
        %v7425 = vunpack.c.l.b16 %v7316
        %v7426 = vunpack.c.l.b16 %v7317
        %v7427 = vunpack.c.l.b16 %v7318
        %v7428 = vunpack.c.l.b16 %v7319
        %v7429 = vunpack.c.l.b16 %v7320
        %v7430 = vunpack.c.l.b16 %v7321
        %v7431 = vunpack.c.l.b16 %v7322
        %v7432 = vunpack.c.l.b16 %v7323
        %v7433 = vunpack.c.l.b16 %v7324
        %v7434 = vpack.c.b16 %v7423, %v7422
        %v7435 = vpack.c.b16 %v7425, %v7424
        %v7436 = vpack.c.b16 %v7427, %v7426
        %v7437 = vpack.c.b16 %v7429, %v7428
        %v7438 = vpack.c.b16 %v7431, %v7430
        %v7439 = vpack.c.b16 %v7433, %v7432
        %v7441 = vsel %vm1086, %v7434, 0
        %v7444 = vsel %vm1086, %v7435, 0
        %v7447 = vsel %vm1086, %v7436, 0
        %v7450 = vsel %vm1086, %v7437, 0
        %v7453 = vsel %vm1086, %v7438, 0
        %v7456 = vsel %vm1086, %v7439, 0
        %v7459 = vsel %vm1105, %v7333, 0
        %v7462 = vsel %vm1105, %v7334, 0
        %v7465 = vsel %vm1105, %v7335, 0
        %v7468 = vsel %vm1105, %v7336, 0
        %7470 = vmatprep.subr.bf16.mxu0 0
        %7471 = vmatpush1.bf16.msra.mxu0 0
        %7472 = vmatprep.subr.bf16.mxu0 0
        %7473 = vmatpush1.bf16.msra.mxu0 0
        %7474 = vmatprep.subr.bf16.mxu0 0
        %7475 = vmatpush1.bf16.msra.mxu0 0
        %7476 = vmatprep.subr.bf16.mxu0 0
        %7477 = vmatpush1.bf16.msra.mxu0 0
        %7478 = vmatprep.subr.bf16.mxu0 0
        %7479 = vmatpush1.bf16.msra.mxu0 0
        %7480 = vmatprep.subr.bf16.mxu0 %v7462
        %7481 = vmatpush1.bf16.msra.mxu0 %v7459
        %7482 = vmatprep.subr.bf16.mxu0 %v7330
        %7483 = vmatpush1.bf16.msra.mxu0 %v7329
        %7484 = vmatprep.subr.bf16.mxu0 %v7326
        %7485 = vmatpush1.bf16.msra.mxu0 %v7325
        %7486 = vmatprep.subr.bf16.mxu0 0
        %7487 = vmatpush2.bf16.msra.mxu0 0
        %7488 = vmatprep.subr.bf16.mxu0 0
        %7489 = vmatpush2.bf16.msra.mxu0 0
        %7490 = vmatprep.subr.bf16.mxu0 0
        %7491 = vmatpush2.bf16.msra.mxu0 0
        %7492 = vmatprep.subr.bf16.mxu0 0
        %7493 = vmatpush2.bf16.msra.mxu0 0
        %7494 = vmatprep.subr.bf16.mxu0 0
        %7495 = vmatpush2.bf16.msra.mxu0 0
        %7496 = vmatprep.subr.bf16.mxu0 0
        %7497 = vmatpush2.bf16.msra.mxu0 0
        %7498 = vmatprep.subr.bf16.mxu0 0
        %7499 = vmatpush2.bf16.msra.mxu0 0
        %7500 = vmatprep.subr.bf16.mxu0 0
        %7501 = vmatpush2.bf16.msra.mxu0 0
        %7502 = vmatprep.mubr.bf16.mxu0 0
        %7503 = vmatmul.mubr.bf16.gmra.mxu0 %v7441
        %v7504 = vpop.f32.mrf.mxu0
        %v7505 = vadd.f32 %v7353, %v7504
        %v7506 = vpop.f32.mrf.mxu0
        %v7507 = vadd.f32 %v7353, %v7506
        %v7508 = vpop.f32.mrf.mxu0
        %v7509 = vadd.f32 %v7358, %v7508
        %v7510 = vpop.f32.mrf.mxu0
        %v7511 = vadd.f32 %v7358, %v7510
        %7512 = vmatprep.mubr.bf16.mxu0 0
        %7513 = vmatmul.mubr.bf16.gmra.mxu0 %v7444
        %v7514 = vpop.f32.mrf.mxu0
        %v7515 = vadd.f32 %v7363, %v7514
        %v7516 = vpop.f32.mrf.mxu0
        %v7517 = vadd.f32 %v7363, %v7516
        %v7518 = vpop.f32.mrf.mxu0
        %v7519 = vadd.f32 %v7368, %v7518
        %v7520 = vpop.f32.mrf.mxu0
        %v7521 = vadd.f32 %v7368, %v7520
        %7522 = vmatprep.mubr.bf16.mxu0 0
        %7523 = vmatmul.mubr.bf16.gmra.mxu0 %v7447
        %v7524 = vpop.f32.mrf.mxu0
        %v7525 = vadd.f32 %v7373, %v7524
        %v7526 = vpop.f32.mrf.mxu0
        %v7527 = vadd.f32 %v7373, %v7526
        %v7528 = vpop.f32.mrf.mxu0
        %v7529 = vadd.f32 %v7378, %v7528
        %v7530 = vpop.f32.mrf.mxu0
        %v7531 = vadd.f32 %v7378, %v7530
        %7532 = vmatprep.mubr.bf16.mxu0 0
        %7533 = vmatmul.mubr.bf16.gmra.mxu0 %v7450
        %v7534 = vpop.f32.mrf.mxu0
        %v7535 = vadd.f32 %v7383, %v7534
        %v7536 = vpop.f32.mrf.mxu0
        %v7537 = vadd.f32 %v7383, %v7536
        %v7538 = vpop.f32.mrf.mxu0
        %v7539 = vadd.f32 %v7388, %v7538
        %v7540 = vpop.f32.mrf.mxu0
        %v7541 = vadd.f32 %v7388, %v7540
        %7542 = vmatprep.mubr.bf16.mxu0 0
        %7543 = vmatmul.mubr.bf16.gmra.mxu0 %v7453
        %v7544 = vpop.f32.mrf.mxu0
        %v7545 = vadd.f32 %v7393, %v7544
        %v7546 = vpop.f32.mrf.mxu0
        %v7547 = vadd.f32 %v7393, %v7546
        %v7548 = vpop.f32.mrf.mxu0
        %v7549 = vadd.f32 %v7398, %v7548
        %v7550 = vpop.f32.mrf.mxu0
        %v7551 = vadd.f32 %v7398, %v7550
        %7552 = vmatprep.mubr.bf16.mxu0 0
        %7553 = vmatmul.mubr.bf16.gmra.mxu0 %v7456
        %v7554 = vpop.f32.mrf.mxu0
        %v7555 = vadd.f32 %v7403, %v7554
        %v7556 = vpop.f32.mrf.mxu0
        %v7557 = vadd.f32 %v7403, %v7556
        %v7558 = vpop.f32.mrf.mxu0
        %v7559 = vadd.f32 %v7408, %v7558
        %v7560 = vpop.f32.mrf.mxu0
        %v7561 = vadd.f32 %v7408, %v7560
        %7562 = vdwg.mxu0
        %7563 = vmatprep.subr.bf16.mxu0 0
        %7564 = vmatpush1.bf16.msra.mxu0 0
        %7565 = vmatprep.subr.bf16.mxu0 0
        %7566 = vmatpush1.bf16.msra.mxu0 0
        %7567 = vmatprep.subr.bf16.mxu0 0
        %7568 = vmatpush1.bf16.msra.mxu0 0
        %7569 = vmatprep.subr.bf16.mxu0 0
        %7570 = vmatpush1.bf16.msra.mxu0 0
        %7571 = vmatprep.subr.bf16.mxu0 0
        %7572 = vmatpush1.bf16.msra.mxu0 0
        %7573 = vmatprep.subr.bf16.mxu0 %v7468
        %7574 = vmatpush1.bf16.msra.mxu0 %v7465
        %7575 = vmatprep.subr.bf16.mxu0 %v7332
        %7576 = vmatpush1.bf16.msra.mxu0 %v7331
        %7577 = vmatprep.subr.bf16.mxu0 %v7328
        %7578 = vmatpush1.bf16.msra.mxu0 %v7327
        %7579 = vmatprep.subr.bf16.mxu0 0
        %7580 = vmatpush2.bf16.msra.mxu0 0
        %7581 = vmatprep.subr.bf16.mxu0 0
        %7582 = vmatpush2.bf16.msra.mxu0 0
        %7583 = vmatprep.subr.bf16.mxu0 0
        %7584 = vmatpush2.bf16.msra.mxu0 0
        %7585 = vmatprep.subr.bf16.mxu0 0
        %7586 = vmatpush2.bf16.msra.mxu0 0
        %7587 = vmatprep.subr.bf16.mxu0 0
        %7588 = vmatpush2.bf16.msra.mxu0 0
        %7589 = vmatprep.subr.bf16.mxu0 0
        %7590 = vmatpush2.bf16.msra.mxu0 0
        %7591 = vmatprep.subr.bf16.mxu0 0
        %7592 = vmatpush2.bf16.msra.mxu0 0
        %7593 = vmatprep.subr.bf16.mxu0 0
        %7594 = vmatpush2.bf16.msra.mxu0 0
        %7595 = vmatprep.mubr.bf16.mxu0 0
        %7596 = vmatmul.mubr.bf16.gmra.mxu0 %v7441
        %v7597 = vpop.f32.mrf.mxu0
        %v7598 = vadd.f32 %v7353, %v7597
        %v7599 = vpop.f32.mrf.mxu0
        %v7600 = vadd.f32 %v7353, %v7599
        %v7601 = vpop.f32.mrf.mxu0
        %v7602 = vadd.f32 %v7358, %v7601
        %v7603 = vpop.f32.mrf.mxu0
        %v7604 = vadd.f32 %v7358, %v7603
        %7605 = vmatprep.mubr.bf16.mxu0 0
        %7606 = vmatmul.mubr.bf16.gmra.mxu0 %v7444
        %v7607 = vpop.f32.mrf.mxu0
        %v7608 = vadd.f32 %v7363, %v7607
        %v7609 = vpop.f32.mrf.mxu0
        %v7610 = vadd.f32 %v7363, %v7609
        %v7611 = vpop.f32.mrf.mxu0
        %v7612 = vadd.f32 %v7368, %v7611
        %v7613 = vpop.f32.mrf.mxu0
        %v7614 = vadd.f32 %v7368, %v7613
        %7615 = vmatprep.mubr.bf16.mxu0 0
        %7616 = vmatmul.mubr.bf16.gmra.mxu0 %v7447
        %v7617 = vpop.f32.mrf.mxu0
        %v7618 = vadd.f32 %v7373, %v7617
        %v7619 = vpop.f32.mrf.mxu0
        %v7620 = vadd.f32 %v7373, %v7619
        %v7621 = vpop.f32.mrf.mxu0
        %v7622 = vadd.f32 %v7378, %v7621
        %v7623 = vpop.f32.mrf.mxu0
        %v7624 = vadd.f32 %v7378, %v7623
        %7625 = vmatprep.mubr.bf16.mxu0 0
        %7626 = vmatmul.mubr.bf16.gmra.mxu0 %v7450
        %v7627 = vpop.f32.mrf.mxu0
        %v7628 = vadd.f32 %v7383, %v7627
        %v7629 = vpop.f32.mrf.mxu0
        %v7630 = vadd.f32 %v7383, %v7629
        %v7631 = vpop.f32.mrf.mxu0
        %v7632 = vadd.f32 %v7388, %v7631
        %v7633 = vpop.f32.mrf.mxu0
        %v7634 = vadd.f32 %v7388, %v7633
        %7635 = vmatprep.mubr.bf16.mxu0 0
        %7636 = vmatmul.mubr.bf16.gmra.mxu0 %v7453
        %v7637 = vpop.f32.mrf.mxu0
        %v7638 = vadd.f32 %v7393, %v7637
        %v7639 = vpop.f32.mrf.mxu0
        %v7640 = vadd.f32 %v7393, %v7639
        %v7641 = vpop.f32.mrf.mxu0
        %v7642 = vadd.f32 %v7398, %v7641
        %v7643 = vpop.f32.mrf.mxu0
        %v7644 = vadd.f32 %v7398, %v7643
        %7645 = vmatprep.mubr.bf16.mxu0 0
        %7646 = vmatmul.mubr.bf16.gmra.mxu0 %v7456
        %v7647 = vpop.f32.mrf.mxu0
        %v7648 = vadd.f32 %v7403, %v7647
        %v7649 = vpop.f32.mrf.mxu0
        %v7650 = vadd.f32 %v7403, %v7649
        %v7651 = vpop.f32.mrf.mxu0
        %v7652 = vadd.f32 %v7408, %v7651
        %v7653 = vpop.f32.mrf.mxu0
        %v7654 = vadd.f32 %v7408, %v7653
        %7655 = vdwg.mxu0
        %v7656 = vmul.f32 %v7505, 0.5
        %v7657 = vmul.f32 %v7507, 0.5
        %v7658 = vmul.f32 %v7598, 0.5
        %v7659 = vmul.f32 %v7600, 0.5
        %v7660 = vmul.f32 %v7509, 0.5
        %v7661 = vmul.f32 %v7511, 0.5
        %v7662 = vmul.f32 %v7602, 0.5
        %v7663 = vmul.f32 %v7604, 0.5
        %v7664 = vmul.f32 %v7515, 0.5
        %v7665 = vmul.f32 %v7517, 0.5
        %v7666 = vmul.f32 %v7608, 0.5
        %v7667 = vmul.f32 %v7610, 0.5
        %v7668 = vmul.f32 %v7519, 0.5
        %v7669 = vmul.f32 %v7521, 0.5
        %v7670 = vmul.f32 %v7612, 0.5
        %v7671 = vmul.f32 %v7614, 0.5
        %v7672 = vmul.f32 %v7525, 0.5
        %v7673 = vmul.f32 %v7527, 0.5
        %v7674 = vmul.f32 %v7618, 0.5
        %v7675 = vmul.f32 %v7620, 0.5
        %v7676 = vmul.f32 %v7529, 0.5
        %v7677 = vmul.f32 %v7531, 0.5
        %v7678 = vmul.f32 %v7622, 0.5
        %v7679 = vmul.f32 %v7624, 0.5
        %v7680 = vmul.f32 %v7535, 0.5
        %v7681 = vmul.f32 %v7537, 0.5
        %v7682 = vmul.f32 %v7628, 0.5
        %v7683 = vmul.f32 %v7630, 0.5
        %v7684 = vmul.f32 %v7539, 0.5
        %v7685 = vmul.f32 %v7541, 0.5
        %v7686 = vmul.f32 %v7632, 0.5
        %v7687 = vmul.f32 %v7634, 0.5
        %v7688 = vmul.f32 %v7545, 0.5
        %v7689 = vmul.f32 %v7547, 0.5
        %v7690 = vmul.f32 %v7638, 0.5
        %v7691 = vmul.f32 %v7640, 0.5
        %v7692 = vmul.f32 %v7549, 0.5
        %v7693 = vmul.f32 %v7551, 0.5
        %v7694 = vmul.f32 %v7642, 0.5
        %v7695 = vmul.f32 %v7644, 0.5
        %v7696 = vmul.f32 %v7555, 0.5
        %v7697 = vmul.f32 %v7557, 0.5
        %v7698 = vmul.f32 %v7648, 0.5
        %v7699 = vmul.f32 %v7650, 0.5
        %v7700 = vmul.f32 %v7559, 0.5
        %v7701 = vmul.f32 %v7561, 0.5
        %v7702 = vmul.f32 %v7652, 0.5
        %v7703 = vmul.f32 %v7654, 0.5
        %v7704 = vmul.f32 %v7505, 0.70710677
        %v7705 = vmul.f32 %v7507, 0.70710677
        %v7706 = vmul.f32 %v7598, 0.70710677
        %v7707 = vmul.f32 %v7600, 0.70710677
        %v7708 = vmul.f32 %v7509, 0.70710677
        %v7709 = vmul.f32 %v7511, 0.70710677
        %v7710 = vmul.f32 %v7602, 0.70710677
        %v7711 = vmul.f32 %v7604, 0.70710677
        %v7712 = vmul.f32 %v7515, 0.70710677
        %v7713 = vmul.f32 %v7517, 0.70710677
        %v7714 = vmul.f32 %v7608, 0.70710677
        %v7715 = vmul.f32 %v7610, 0.70710677
        %v7716 = vmul.f32 %v7519, 0.70710677
        %v7717 = vmul.f32 %v7521, 0.70710677
        %v7718 = vmul.f32 %v7612, 0.70710677
        %v7719 = vmul.f32 %v7614, 0.70710677
        %v7720 = vmul.f32 %v7525, 0.70710677
        %v7721 = vmul.f32 %v7527, 0.70710677
        %v7722 = vmul.f32 %v7618, 0.70710677
        %v7723 = vmul.f32 %v7620, 0.70710677
        %v7724 = vmul.f32 %v7529, 0.70710677
        %v7725 = vmul.f32 %v7531, 0.70710677
        %v7726 = vmul.f32 %v7622, 0.70710677
        %v7727 = vmul.f32 %v7624, 0.70710677
        %v7728 = vmul.f32 %v7535, 0.70710677
        %v7729 = vmul.f32 %v7537, 0.70710677
        %v7730 = vmul.f32 %v7628, 0.70710677
        %v7731 = vmul.f32 %v7630, 0.70710677
        %v7732 = vmul.f32 %v7539, 0.70710677
        %v7733 = vmul.f32 %v7541, 0.70710677
        %v7734 = vmul.f32 %v7632, 0.70710677
        %v7735 = vmul.f32 %v7634, 0.70710677
        %v7736 = vmul.f32 %v7545, 0.70710677
        %v7737 = vmul.f32 %v7547, 0.70710677
        %v7738 = vmul.f32 %v7638, 0.70710677
        %v7739 = vmul.f32 %v7640, 0.70710677
        %v7740 = vmul.f32 %v7549, 0.70710677
        %v7741 = vmul.f32 %v7551, 0.70710677
        %v7742 = vmul.f32 %v7642, 0.70710677
        %v7743 = vmul.f32 %v7644, 0.70710677
        %v7744 = vmul.f32 %v7555, 0.70710677
        %v7745 = vmul.f32 %v7557, 0.70710677
        %v7746 = vmul.f32 %v7648, 0.70710677
        %v7747 = vmul.f32 %v7650, 0.70710677
        %v7748 = vmul.f32 %v7559, 0.70710677
        %v7749 = vmul.f32 %v7561, 0.70710677
        %v7750 = vmul.f32 %v7652, 0.70710677
        %v7751 = vmul.f32 %v7654, 0.70710677
        %v7752 = verf.f32.pop %v7704
        %v7753 = verf.f32.pop %v7705
        %v7754 = verf.f32.pop %v7706
        %v7755 = verf.f32.pop %v7707
        %v7756 = verf.f32.pop %v7708
        %v7757 = verf.f32.pop %v7709
        %v7758 = verf.f32.pop %v7710
        %v7759 = verf.f32.pop %v7711
        %v7760 = verf.f32.pop %v7712
        %v7761 = verf.f32.pop %v7713
        %v7762 = verf.f32.pop %v7714
        %v7763 = verf.f32.pop %v7715
        %v7764 = verf.f32.pop %v7716
        %v7765 = verf.f32.pop %v7717
        %v7766 = verf.f32.pop %v7718
        %v7767 = verf.f32.pop %v7719
        %v7768 = verf.f32.pop %v7720
        %v7769 = verf.f32.pop %v7721
        %v7770 = verf.f32.pop %v7722
        %v7771 = verf.f32.pop %v7723
        %v7772 = verf.f32.pop %v7724
        %v7773 = verf.f32.pop %v7725
        %v7774 = verf.f32.pop %v7726
        %v7775 = verf.f32.pop %v7727
        %v7776 = verf.f32.pop %v7728
        %v7777 = verf.f32.pop %v7729
        %v7778 = verf.f32.pop %v7730
        %v7779 = verf.f32.pop %v7731
        %v7780 = verf.f32.pop %v7732
        %v7781 = verf.f32.pop %v7733
        %v7782 = verf.f32.pop %v7734
        %v7783 = verf.f32.pop %v7735
        %v7784 = verf.f32.pop %v7736
        %v7785 = verf.f32.pop %v7737
        %v7786 = verf.f32.pop %v7738
        %v7787 = verf.f32.pop %v7739
        %v7788 = verf.f32.pop %v7740
        %v7789 = verf.f32.pop %v7741
        %v7790 = verf.f32.pop %v7742
        %v7791 = verf.f32.pop %v7743
        %v7792 = verf.f32.pop %v7744
        %v7793 = verf.f32.pop %v7745
        %v7794 = verf.f32.pop %v7746
        %v7795 = verf.f32.pop %v7747
        %v7796 = verf.f32.pop %v7748
        %v7797 = verf.f32.pop %v7749
        %v7798 = verf.f32.pop %v7750
        %v7799 = verf.f32.pop %v7751
        %v7800 = vadd.f32 %v7752, 1.0
        %v7801 = vadd.f32 %v7753, 1.0
        %v7802 = vadd.f32 %v7754, 1.0
        %v7803 = vadd.f32 %v7755, 1.0
        %v7804 = vadd.f32 %v7756, 1.0
        %v7805 = vadd.f32 %v7757, 1.0
        %v7806 = vadd.f32 %v7758, 1.0
        %v7807 = vadd.f32 %v7759, 1.0
        %v7808 = vadd.f32 %v7760, 1.0
        %v7809 = vadd.f32 %v7761, 1.0
        %v7810 = vadd.f32 %v7762, 1.0
        %v7811 = vadd.f32 %v7763, 1.0
        %v7812 = vadd.f32 %v7764, 1.0
        %v7813 = vadd.f32 %v7765, 1.0
        %v7814 = vadd.f32 %v7766, 1.0
        %v7815 = vadd.f32 %v7767, 1.0
        %v7816 = vadd.f32 %v7768, 1.0
        %v7817 = vadd.f32 %v7769, 1.0
        %v7818 = vadd.f32 %v7770, 1.0
        %v7819 = vadd.f32 %v7771, 1.0
        %v7820 = vadd.f32 %v7772, 1.0
        %v7821 = vadd.f32 %v7773, 1.0
        %v7822 = vadd.f32 %v7774, 1.0
        %v7823 = vadd.f32 %v7775, 1.0
        %v7824 = vadd.f32 %v7776, 1.0
        %v7825 = vadd.f32 %v7777, 1.0
        %v7826 = vadd.f32 %v7778, 1.0
        %v7827 = vadd.f32 %v7779, 1.0
        %v7828 = vadd.f32 %v7780, 1.0
        %v7829 = vadd.f32 %v7781, 1.0
        %v7830 = vadd.f32 %v7782, 1.0
        %v7831 = vadd.f32 %v7783, 1.0
        %v7832 = vadd.f32 %v7784, 1.0
        %v7833 = vadd.f32 %v7785, 1.0
        %v7834 = vadd.f32 %v7786, 1.0
        %v7835 = vadd.f32 %v7787, 1.0
        %v7836 = vadd.f32 %v7788, 1.0
        %v7837 = vadd.f32 %v7789, 1.0
        %v7838 = vadd.f32 %v7790, 1.0
        %v7839 = vadd.f32 %v7791, 1.0
        %v7840 = vadd.f32 %v7792, 1.0
        %v7841 = vadd.f32 %v7793, 1.0
        %v7842 = vadd.f32 %v7794, 1.0
        %v7843 = vadd.f32 %v7795, 1.0
        %v7844 = vadd.f32 %v7796, 1.0
        %v7845 = vadd.f32 %v7797, 1.0
        %v7846 = vadd.f32 %v7798, 1.0
        %v7847 = vadd.f32 %v7799, 1.0
        %v7848 = vmul.f32 %v7656, %v7800
        %v7849 = vmul.f32 %v7657, %v7801
        %v7850 = vmul.f32 %v7658, %v7802
        %v7851 = vmul.f32 %v7659, %v7803
        %v7852 = vmul.f32 %v7660, %v7804
        %v7853 = vmul.f32 %v7661, %v7805
        %v7854 = vmul.f32 %v7662, %v7806
        %v7855 = vmul.f32 %v7663, %v7807
        %v7856 = vmul.f32 %v7664, %v7808
        %v7857 = vmul.f32 %v7665, %v7809
        %v7858 = vmul.f32 %v7666, %v7810
        %v7859 = vmul.f32 %v7667, %v7811
        %v7860 = vmul.f32 %v7668, %v7812
        %v7861 = vmul.f32 %v7669, %v7813
        %v7862 = vmul.f32 %v7670, %v7814
        %v7863 = vmul.f32 %v7671, %v7815
        %v7864 = vmul.f32 %v7672, %v7816
        %v7865 = vmul.f32 %v7673, %v7817
        %v7866 = vmul.f32 %v7674, %v7818
        %v7867 = vmul.f32 %v7675, %v7819
        %v7868 = vmul.f32 %v7676, %v7820
        %v7869 = vmul.f32 %v7677, %v7821
        %v7870 = vmul.f32 %v7678, %v7822
        %v7871 = vmul.f32 %v7679, %v7823
        %v7872 = vmul.f32 %v7680, %v7824
        %v7873 = vmul.f32 %v7681, %v7825
        %v7874 = vmul.f32 %v7682, %v7826
        %v7875 = vmul.f32 %v7683, %v7827
        %v7876 = vmul.f32 %v7684, %v7828
        %v7877 = vmul.f32 %v7685, %v7829
        %v7878 = vmul.f32 %v7686, %v7830
        %v7879 = vmul.f32 %v7687, %v7831
        %v7880 = vmul.f32 %v7688, %v7832
        %v7881 = vmul.f32 %v7689, %v7833
        %v7882 = vmul.f32 %v7690, %v7834
        %v7883 = vmul.f32 %v7691, %v7835
        %v7884 = vmul.f32 %v7692, %v7836
        %v7885 = vmul.f32 %v7693, %v7837
        %v7886 = vmul.f32 %v7694, %v7838
        %v7887 = vmul.f32 %v7695, %v7839
        %v7888 = vmul.f32 %v7696, %v7840
        %v7889 = vmul.f32 %v7697, %v7841
        %v7890 = vmul.f32 %v7698, %v7842
        %v7891 = vmul.f32 %v7699, %v7843
        %v7892 = vmul.f32 %v7700, %v7844
        %v7893 = vmul.f32 %v7701, %v7845
        %v7894 = vmul.f32 %v7702, %v7846
        %v7895 = vmul.f32 %v7703, %v7847
        %v7896 = vadd.f32 %v6841, %v7848
        %v7897 = vadd.f32 %v6842, %v7849
        %v7898 = vadd.f32 %v6843, %v7850
        %v7899 = vadd.f32 %v6844, %v7851
        %v7900 = vadd.f32 %v6845, %v7852
        %v7901 = vadd.f32 %v6846, %v7853
        %v7902 = vadd.f32 %v6847, %v7854
        %v7903 = vadd.f32 %v6848, %v7855
        %v7904 = vadd.f32 %v6849, %v7856
        %v7905 = vadd.f32 %v6850, %v7857
        %v7906 = vadd.f32 %v6851, %v7858
        %v7907 = vadd.f32 %v6852, %v7859
        %v7908 = vadd.f32 %v6853, %v7860
        %v7909 = vadd.f32 %v6854, %v7861
        %v7910 = vadd.f32 %v6855, %v7862
        %v7911 = vadd.f32 %v6856, %v7863
        %v7912 = vadd.f32 %v6857, %v7864
        %v7913 = vadd.f32 %v6858, %v7865
        %v7914 = vadd.f32 %v6859, %v7866
        %v7915 = vadd.f32 %v6860, %v7867
        %v7916 = vadd.f32 %v6861, %v7868
        %v7917 = vadd.f32 %v6862, %v7869
        %v7918 = vadd.f32 %v6863, %v7870
        %v7919 = vadd.f32 %v6864, %v7871
        %v7920 = vadd.f32 %v6865, %v7872
        %v7921 = vadd.f32 %v6866, %v7873
        %v7922 = vadd.f32 %v6867, %v7874
        %v7923 = vadd.f32 %v6868, %v7875
        %v7924 = vadd.f32 %v6869, %v7876
        %v7925 = vadd.f32 %v6870, %v7877
        %v7926 = vadd.f32 %v6871, %v7878
        %v7927 = vadd.f32 %v6872, %v7879
        %v7928 = vadd.f32 %v7880, %v6873
        %v7929 = vadd.f32 %v7881, %v6874
        %v7930 = vadd.f32 %v7882, %v6875
        %v7931 = vadd.f32 %v7883, %v6876
        %v7932 = vadd.f32 %v7884, %v6877
        %v7933 = vadd.f32 %v7885, %v6878
        %v7934 = vadd.f32 %v7886, %v6879
        %v7935 = vadd.f32 %v7887, %v6880
        %v7936 = vadd.f32 %v7888, %v6881
        %v7937 = vadd.f32 %v7889, %v6882
        %v7938 = vadd.f32 %v7890, %v6883
        %v7939 = vadd.f32 %v7891, %v6884
        %v7940 = vadd.f32 %v7892, %v6885
        %v7941 = vadd.f32 %v7893, %v6886
        %v7942 = vadd.f32 %v7894, %v6887
        %v7943 = vadd.f32 %v7895, %v6888
        %7944 = vrot.lane.b32.xlu0 %v7928, 27
        %v7945 = vpop.permute.xlu0 %7944
        %7946 = vrot.lane.b32.xlu0 %v7932, 27
        %v7947 = vpop.permute.xlu0 %7946
        %7948 = vrot.lane.b32.xlu0 %v7936, 27
        %v7949 = vpop.permute.xlu0 %7948
        %7950 = vrot.lane.b32.xlu0 %v7940, 27
        %v7951 = vpop.permute.xlu0 %7950
        %7952 = vrot.lane.b32.xlu0 %v7929, 27
        %v7953 = vpop.permute.xlu0 %7952
        %7954 = vrot.lane.b32.xlu0 %v7933, 27
        %v7955 = vpop.permute.xlu0 %7954
        %7956 = vrot.lane.b32.xlu0 %v7937, 27
        %v7957 = vpop.permute.xlu0 %7956
        %7958 = vrot.lane.b32.xlu0 %v7941, 27
        %v7959 = vpop.permute.xlu0 %7958
        %7960 = vrot.lane.b32.xlu0 %v7930, 27
        %v7961 = vpop.permute.xlu0 %7960
        %7962 = vrot.lane.b32.xlu0 %v7934, 27
        %v7963 = vpop.permute.xlu0 %7962
        %7964 = vrot.lane.b32.xlu0 %v7938, 27
        %v7965 = vpop.permute.xlu0 %7964
        %7966 = vrot.lane.b32.xlu0 %v7942, 27
        %v7967 = vpop.permute.xlu0 %7966
        %7968 = vrot.lane.b32.xlu0 %v7931, 27
        %v7969 = vpop.permute.xlu0 %7968
        %7970 = vrot.lane.b32.xlu0 %v7935, 27
        %v7971 = vpop.permute.xlu0 %7970
        %7972 = vrot.lane.b32.xlu0 %v7939, 27
        %v7973 = vpop.permute.xlu0 %7972
        %7974 = vrot.lane.b32.xlu0 %v7943, 27
        %v7975 = vpop.permute.xlu0 %7974
        %v7976 = vsel %vm3738, %v7961, %v7969
        %v7977 = vsel %vm3738, %v7963, %v7971
        %v7978 = vsel %vm3738, %v7965, %v7973
        %v7979 = vsel %vm3738, %v7967, %v7975
        %v7980 = vsel %vm3738, %v7953, %v7961
        %v7981 = vsel %vm3738, %v7955, %v7963
        %v7982 = vsel %vm3738, %v7957, %v7965
        %v7983 = vsel %vm3738, %v7959, %v7967
        %v7984 = vsel %vm3738, %v7945, %v7953
        %v7985 = vsel %vm3738, %v7947, %v7955
        %v7986 = vsel %vm3738, %v7949, %v7957
        %v7987 = vsel %vm3738, %v7951, %v7959
        %v7988 = vsel %vm3738, %v7969, %v7945
        %v7989 = vsel %vm3738, %v7971, %v7947
        %v7990 = vsel %vm3738, %v7973, %v7949
        %v7991 = vsel %vm3738, %v7975, %v7951
        %v7992 = vsel %vm3759, %v7988, 0.0
        %v7993 = vsel %vm3760, %v7984, 0.0
        %v7994 = vsel %vm3761, %v7980, 0.0
        %v7995 = vsel %vm3762, %v7976, 0.0
        %v7996 = vsel %vm3759, %v7989, 0.0
        %v7997 = vsel %vm3760, %v7985, 0.0
        %v7998 = vsel %vm3761, %v7981, 0.0
        %v7999 = vsel %vm3762, %v7977, 0.0
        %v8000 = vsel %vm3759, %v7990, 0.0
        %v8001 = vsel %vm3760, %v7986, 0.0
        %v8002 = vsel %vm3761, %v7982, 0.0
        %v8003 = vsel %vm3762, %v7978, 0.0
        %v8004 = vsel %vm3759, %v7991, 0.0
        %v8005 = vsel %vm3760, %v7987, 0.0
        %v8006 = vsel %vm3761, %v7983, 0.0
        %v8007 = vsel %vm3762, %v7979, 0.0
        %8008 = vrot.lane.b32.xlu0 %v7928, 101
        %v8009 = vpop.permute.xlu0 %8008
        %8010 = vrot.lane.b32.xlu0 %v7932, 101
        %v8011 = vpop.permute.xlu0 %8010
        %8012 = vrot.lane.b32.xlu0 %v7936, 101
        %v8013 = vpop.permute.xlu0 %8012
        %8014 = vrot.lane.b32.xlu0 %v7940, 101
        %v8015 = vpop.permute.xlu0 %8014
        %8016 = vrot.lane.b32.xlu0 %v7929, 101
        %v8017 = vpop.permute.xlu0 %8016
        %8018 = vrot.lane.b32.xlu0 %v7933, 101
        %v8019 = vpop.permute.xlu0 %8018
        %8020 = vrot.lane.b32.xlu0 %v7937, 101
        %v8021 = vpop.permute.xlu0 %8020
        %8022 = vrot.lane.b32.xlu0 %v7941, 101
        %v8023 = vpop.permute.xlu0 %8022
        %8024 = vrot.lane.b32.xlu0 %v7930, 101
        %v8025 = vpop.permute.xlu0 %8024
        %8026 = vrot.lane.b32.xlu0 %v7934, 101
        %v8027 = vpop.permute.xlu0 %8026
        %8028 = vrot.lane.b32.xlu0 %v7938, 101
        %v8029 = vpop.permute.xlu0 %8028
        %8030 = vrot.lane.b32.xlu0 %v7942, 101
        %v8031 = vpop.permute.xlu0 %8030
        %8032 = vrot.lane.b32.xlu0 %v7931, 101
        %v8033 = vpop.permute.xlu0 %8032
        %8034 = vrot.lane.b32.xlu0 %v7935, 101
        %v8035 = vpop.permute.xlu0 %8034
        %8036 = vrot.lane.b32.xlu0 %v7939, 101
        %v8037 = vpop.permute.xlu0 %8036
        %8038 = vrot.lane.b32.xlu0 %v7943, 101
        %v8039 = vpop.permute.xlu0 %8038
        %v8040 = vsel %vm3811, %v8025, %v8033
        %v8041 = vsel %vm3811, %v8027, %v8035
        %v8042 = vsel %vm3811, %v8029, %v8037
        %v8043 = vsel %vm3811, %v8031, %v8039
        %v8044 = vsel %vm3811, %v8017, %v8025
        %v8045 = vsel %vm3811, %v8019, %v8027
        %v8046 = vsel %vm3811, %v8021, %v8029
        %v8047 = vsel %vm3811, %v8023, %v8031
        %v8048 = vsel %vm3811, %v8009, %v8017
        %v8049 = vsel %vm3811, %v8011, %v8019
        %v8050 = vsel %vm3811, %v8013, %v8021
        %v8051 = vsel %vm3811, %v8015, %v8023
        %v8052 = vsel %vm3811, %v8033, %v8009
        %v8053 = vsel %vm3811, %v8035, %v8011
        %v8054 = vsel %vm3811, %v8037, %v8013
        %v8055 = vsel %vm3811, %v8039, %v8015
        %v8056 = vsel %vm3832, %v8048, 0.0
        %v8057 = vsel %vm3833, %v8044, 0.0
        %v8058 = vsel %vm3834, %v8040, 0.0
        %v8059 = vsel %vm3835, %v8052, 0.0
        %v8060 = vsel %vm3832, %v8049, 0.0
        %v8061 = vsel %vm3833, %v8045, 0.0
        %v8062 = vsel %vm3834, %v8041, 0.0
        %v8063 = vsel %vm3835, %v8053, 0.0
        %v8064 = vsel %vm3832, %v8050, 0.0
        %v8065 = vsel %vm3833, %v8046, 0.0
        %v8066 = vsel %vm3834, %v8042, 0.0
        %v8067 = vsel %vm3835, %v8054, 0.0
        %v8068 = vsel %vm3832, %v8051, 0.0
        %v8069 = vsel %vm3833, %v8047, 0.0
        %v8070 = vsel %vm3834, %v8043, 0.0
        %v8071 = vsel %vm3835, %v8055, 0.0
        %v8072 = vpack.c.bf16 %v7996, %v7992
        %v8073 = vpack.c.bf16 %v7997, %v7993
        %v8074 = vpack.c.bf16 %v7998, %v7994
        %v8075 = vpack.c.bf16 %v7999, %v7995
        %v8076 = vpack.c.bf16 %v8004, %v8000
        %v8077 = vpack.c.bf16 %v8005, %v8001
        %v8078 = vpack.c.bf16 %v8006, %v8002
        %v8079 = vpack.c.bf16 %v8007, %v8003
        %v8080 = vpack.c.bf16 %v7932, %v7928
        %v8081 = vpack.c.bf16 %v7933, %v7929
        %v8082 = vpack.c.bf16 %v7934, %v7930
        %v8083 = vpack.c.bf16 %v7935, %v7931
        %v8084 = vpack.c.bf16 %v7940, %v7936
        %v8085 = vpack.c.bf16 %v7941, %v7937
        %v8086 = vpack.c.bf16 %v7942, %v7938
        %v8087 = vpack.c.bf16 %v7943, %v7939
        %v8088 = vpack.c.bf16 %v8060, %v8056
        %v8089 = vpack.c.bf16 %v8061, %v8057
        %v8090 = vpack.c.bf16 %v8062, %v8058
        %v8091 = vpack.c.bf16 %v8063, %v8059
        %v8092 = vpack.c.bf16 %v8068, %v8064
        %v8093 = vpack.c.bf16 %v8069, %v8065
        %v8094 = vpack.c.bf16 %v8070, %v8066
        %v8095 = vpack.c.bf16 %v8071, %v8067
        %s8096 = scalar_lea.vmem [#allocation3], 140
        %v8097 = vld [vmem:[%s8096] sm:$0xf]
        %v8098 = vld [vmem:[%s8096 + $0x4] sm:$0xf]
        %v8099 = vld [vmem:[%s8096 + $0x8] sm:$0xf]
        %v8100 = vld [vmem:[%s8096 + $0xc] sm:$0xf]
        %v8101 = vld [vmem:[%s8096 + $0x10] sm:$0xf]
        %s8102 = scalar_lea.vmem %s3, 1120
        %v8103 = vld [vmem:[%s8102] sm:$0xff]
        %v8104 = vld [vmem:[%s8102 + $0x8] sm:$0xff]
        %v8105 = vld [vmem:[%s8102 + $0x10] sm:$0xff]
        %v8106 = vld [vmem:[%s8102 + $0x18] sm:$0xff]
        %v8107 = vld [vmem:[%s8102 + $0x20] sm:$0xff]
        %v8108 = vld [vmem:[%s8102 + $0x28] sm:$0xff]
        %v8109 = vld [vmem:[%s8102 + $0x30] sm:$0xff]
        %v8110 = vld [vmem:[%s8102 + $0x38] sm:$0xff]
        %v8111 = vld [vmem:[%s8102 + $0x40] sm:$0xff]
        %v8112 = vld [vmem:[%s8102 + $0x48] sm:$0xff]
        %v8113 = vld [vmem:[%s8102 + $0x50] sm:$0xff]
        %v8114 = vld [vmem:[%s8102 + $0x58] sm:$0xff]
        %v8115 = vld [vmem:[%s8102 + $0x60] sm:$0xff]
        %v8116 = vld [vmem:[%s8102 + $0x68] sm:$0xff]
        %v8117 = vld [vmem:[%s8102 + $0x70] sm:$0xff]
        %v8118 = vld [vmem:[%s8102 + $0x78] sm:$0xff]
        %v8119 = vld [vmem:[%s8102 + $0x80] sm:$0xff]
        %v8120 = vld [vmem:[%s8102 + $0x88] sm:$0xff]
        %v8121 = vld [vmem:[%s8102 + $0x90] sm:$0xff]
        %v8122 = vld [vmem:[%s8102 + $0x98] sm:$0xff]
        %v8128 = vunpack.c.l.b16 %v8097
        %v8129 = vunpack.c.l.b16 %v8098
        %v8130 = vunpack.c.l.b16 %v8099
        %v8131 = vunpack.c.l.b16 %v8100
        %v8132 = vunpack.c.l.b16 %v8101
        %v8133 = vpack.c.b16 %v8129, %v8128
        %v8134 = vpack.c.b16 %v8131, %v8130
        %v8135 = vpack.c.b16 %v8132, %v8132
        %v8137 = vsel %vm728, %v8133, 0
        %v8140 = vsel %vm728, %v8134, 0
        %v8143 = vsel %vm728, %v8135, 0
        %8145 = vmatprep.subr.bf16.mxu0 0
        %8146 = vmatpush1.bf16.msra.mxu0 0
        %8147 = vmatprep.subr.bf16.mxu0 0
        %8148 = vmatpush1.bf16.msra.mxu0 0
        %8149 = vmatprep.subr.bf16.mxu0 %v8093
        %8150 = vmatpush1.bf16.msra.mxu0 %v8092
        %8151 = vmatprep.subr.bf16.mxu0 %v8089
        %8152 = vmatpush1.bf16.msra.mxu0 %v8088
        %8153 = vmatprep.subr.bf16.mxu0 %v8085
        %8154 = vmatpush1.bf16.msra.mxu0 %v8084
        %8155 = vmatprep.subr.bf16.mxu0 %v8081
        %8156 = vmatpush1.bf16.msra.mxu0 %v8080
        %8157 = vmatprep.subr.bf16.mxu0 %v8077
        %8158 = vmatpush1.bf16.msra.mxu0 %v8076
        %8159 = vmatprep.subr.bf16.mxu0 %v8073
        %8160 = vmatpush1.bf16.msra.mxu0 %v8072
        %8161 = vmatprep.subr.bf16.mxu0 0
        %8162 = vmatpush2.bf16.msra.mxu0 0
        %8163 = vmatprep.subr.bf16.mxu0 0
        %8164 = vmatpush2.bf16.msra.mxu0 0
        %8165 = vmatprep.subr.bf16.mxu0 0
        %8166 = vmatpush2.bf16.msra.mxu0 0
        %8167 = vmatprep.subr.bf16.mxu0 0
        %8168 = vmatpush2.bf16.msra.mxu0 0
        %8169 = vmatprep.subr.bf16.mxu0 0
        %8170 = vmatpush2.bf16.msra.mxu0 0
        %8171 = vmatprep.subr.bf16.mxu0 0
        %8172 = vmatpush2.bf16.msra.mxu0 0
        %8173 = vmatprep.subr.bf16.mxu0 0
        %8174 = vmatpush2.bf16.msra.mxu0 0
        %8175 = vmatprep.subr.bf16.mxu0 0
        %8176 = vmatpush2.bf16.msra.mxu0 0
        %8177 = vmatprep.mubr.bf16.mxu0 0
        %8178 = vmatmul.mubr.bf16.gmra.mxu0 %v8137
        %v8179 = vpop.f32.mrf.mxu0
        %v8180 = vadd.f32 %v8103, %v8179
        %v8181 = vpop.f32.mrf.mxu0
        %v8182 = vadd.f32 %v8104, %v8181
        %v8183 = vpop.f32.mrf.mxu0
        %v8184 = vadd.f32 %v8107, %v8183
        %v8185 = vpop.f32.mrf.mxu0
        %v8186 = vadd.f32 %v8108, %v8185
        %8187 = vmatprep.mubr.bf16.mxu0 0
        %8188 = vmatmul.mubr.bf16.gmra.mxu0 %v8140
        %v8189 = vpop.f32.mrf.mxu0
        %v8190 = vadd.f32 %v8111, %v8189
        %v8191 = vpop.f32.mrf.mxu0
        %v8192 = vadd.f32 %v8112, %v8191
        %v8193 = vpop.f32.mrf.mxu0
        %v8194 = vadd.f32 %v8115, %v8193
        %v8195 = vpop.f32.mrf.mxu0
        %v8196 = vadd.f32 %v8116, %v8195
        %8197 = vmatprep.mubr.bf16.mxu0 0
        %8198 = vmatmul.mubr.bf16.gmra.mxu0 %v8143
        %v8199 = vpop.f32.mrf.mxu0
        %v8200 = vadd.f32 %v8119, %v8199
        %v8201 = vpop.f32.mrf.mxu0
        %v8202 = vadd.f32 %v8120, %v8201
        %v8203 = vpop.f32.mrf.mxu0
        %v8204 = vpop.f32.mrf.mxu0
        %8205 = vdwg.mxu0
        %8206 = vmatprep.subr.bf16.mxu0 0
        %8207 = vmatpush1.bf16.msra.mxu0 0
        %8208 = vmatprep.subr.bf16.mxu0 0
        %8209 = vmatpush1.bf16.msra.mxu0 0
        %8210 = vmatprep.subr.bf16.mxu0 %v8095
        %8211 = vmatpush1.bf16.msra.mxu0 %v8094
        %8212 = vmatprep.subr.bf16.mxu0 %v8091
        %8213 = vmatpush1.bf16.msra.mxu0 %v8090
        %8214 = vmatprep.subr.bf16.mxu0 %v8087
        %8215 = vmatpush1.bf16.msra.mxu0 %v8086
        %8216 = vmatprep.subr.bf16.mxu0 %v8083
        %8217 = vmatpush1.bf16.msra.mxu0 %v8082
        %8218 = vmatprep.subr.bf16.mxu0 %v8079
        %8219 = vmatpush1.bf16.msra.mxu0 %v8078
        %8220 = vmatprep.subr.bf16.mxu0 %v8075
        %8221 = vmatpush1.bf16.msra.mxu0 %v8074
        %8222 = vmatprep.subr.bf16.mxu0 0
        %8223 = vmatpush2.bf16.msra.mxu0 0
        %8224 = vmatprep.subr.bf16.mxu0 0
        %8225 = vmatpush2.bf16.msra.mxu0 0
        %8226 = vmatprep.subr.bf16.mxu0 0
        %8227 = vmatpush2.bf16.msra.mxu0 0
        %8228 = vmatprep.subr.bf16.mxu0 0
        %8229 = vmatpush2.bf16.msra.mxu0 0
        %8230 = vmatprep.subr.bf16.mxu0 0
        %8231 = vmatpush2.bf16.msra.mxu0 0
        %8232 = vmatprep.subr.bf16.mxu0 0
        %8233 = vmatpush2.bf16.msra.mxu0 0
        %8234 = vmatprep.subr.bf16.mxu0 0
        %8235 = vmatpush2.bf16.msra.mxu0 0
        %8236 = vmatprep.subr.bf16.mxu0 0
        %8237 = vmatpush2.bf16.msra.mxu0 0
        %8238 = vmatprep.mubr.bf16.mxu0 0
        %8239 = vmatmul.mubr.bf16.gmra.mxu0 %v8137
        %v8240 = vpop.f32.mrf.mxu0
        %v8241 = vadd.f32 %v8105, %v8240
        %v8242 = vpop.f32.mrf.mxu0
        %v8243 = vadd.f32 %v8106, %v8242
        %v8244 = vpop.f32.mrf.mxu0
        %v8245 = vadd.f32 %v8109, %v8244
        %v8246 = vpop.f32.mrf.mxu0
        %v8247 = vadd.f32 %v8110, %v8246
        %8248 = vmatprep.mubr.bf16.mxu0 0
        %8249 = vmatmul.mubr.bf16.gmra.mxu0 %v8140
        %v8250 = vpop.f32.mrf.mxu0
        %v8251 = vadd.f32 %v8113, %v8250
        %v8252 = vpop.f32.mrf.mxu0
        %v8253 = vadd.f32 %v8114, %v8252
        %v8254 = vpop.f32.mrf.mxu0
        %v8255 = vadd.f32 %v8117, %v8254
        %v8256 = vpop.f32.mrf.mxu0
        %v8257 = vadd.f32 %v8118, %v8256
        %8258 = vmatprep.mubr.bf16.mxu0 0
        %8259 = vmatmul.mubr.bf16.gmra.mxu0 %v8143
        %v8260 = vpop.f32.mrf.mxu0
        %v8261 = vadd.f32 %v8121, %v8260
        %v8262 = vpop.f32.mrf.mxu0
        %v8263 = vadd.f32 %v8122, %v8262
        %v8264 = vpop.f32.mrf.mxu0
        %v8265 = vpop.f32.mrf.mxu0
        %8266 = vdwg.mxu0
        %v8267 = vmul.f32 %v8180, 0.5
        %v8268 = vmul.f32 %v8182, 0.5
        %v8269 = vmul.f32 %v8241, 0.5
        %v8270 = vmul.f32 %v8243, 0.5
        %v8271 = vmul.f32 %v8184, 0.5
        %v8272 = vmul.f32 %v8186, 0.5
        %v8273 = vmul.f32 %v8245, 0.5
        %v8274 = vmul.f32 %v8247, 0.5
        %v8275 = vmul.f32 %v8190, 0.5
        %v8276 = vmul.f32 %v8192, 0.5
        %v8277 = vmul.f32 %v8251, 0.5
        %v8278 = vmul.f32 %v8253, 0.5
        %v8279 = vmul.f32 %v8194, 0.5
        %v8280 = vmul.f32 %v8196, 0.5
        %v8281 = vmul.f32 %v8255, 0.5
        %v8282 = vmul.f32 %v8257, 0.5
        %v8283 = vmul.f32 %v8200, 0.5
        %v8284 = vmul.f32 %v8202, 0.5
        %v8285 = vmul.f32 %v8261, 0.5
        %v8286 = vmul.f32 %v8263, 0.5
        %v8287 = vmul.f32 %v8180, 0.70710677
        %v8288 = vmul.f32 %v8182, 0.70710677
        %v8289 = vmul.f32 %v8241, 0.70710677
        %v8290 = vmul.f32 %v8243, 0.70710677
        %v8291 = vmul.f32 %v8184, 0.70710677
        %v8292 = vmul.f32 %v8186, 0.70710677
        %v8293 = vmul.f32 %v8245, 0.70710677
        %v8294 = vmul.f32 %v8247, 0.70710677
        %v8295 = vmul.f32 %v8190, 0.70710677
        %v8296 = vmul.f32 %v8192, 0.70710677
        %v8297 = vmul.f32 %v8251, 0.70710677
        %v8298 = vmul.f32 %v8253, 0.70710677
        %v8299 = vmul.f32 %v8194, 0.70710677
        %v8300 = vmul.f32 %v8196, 0.70710677
        %v8301 = vmul.f32 %v8255, 0.70710677
        %v8302 = vmul.f32 %v8257, 0.70710677
        %v8303 = vmul.f32 %v8200, 0.70710677
        %v8304 = vmul.f32 %v8202, 0.70710677
        %v8305 = vmul.f32 %v8261, 0.70710677
        %v8306 = vmul.f32 %v8263, 0.70710677
        %v8307 = verf.f32.pop %v8287
        %v8308 = verf.f32.pop %v8288
        %v8309 = verf.f32.pop %v8289
        %v8310 = verf.f32.pop %v8290
        %v8311 = verf.f32.pop %v8291
        %v8312 = verf.f32.pop %v8292
        %v8313 = verf.f32.pop %v8293
        %v8314 = verf.f32.pop %v8294
        %v8315 = verf.f32.pop %v8295
        %v8316 = verf.f32.pop %v8296
        %v8317 = verf.f32.pop %v8297
        %v8318 = verf.f32.pop %v8298
        %v8319 = verf.f32.pop %v8299
        %v8320 = verf.f32.pop %v8300
        %v8321 = verf.f32.pop %v8301
        %v8322 = verf.f32.pop %v8302
        %v8323 = verf.f32.pop %v8303
        %v8324 = verf.f32.pop %v8304
        %v8325 = verf.f32.pop %v8305
        %v8326 = verf.f32.pop %v8306
        %v8327 = vadd.f32 %v8307, 1.0
        %v8328 = vadd.f32 %v8308, 1.0
        %v8329 = vadd.f32 %v8309, 1.0
        %v8330 = vadd.f32 %v8310, 1.0
        %v8331 = vadd.f32 %v8311, 1.0
        %v8332 = vadd.f32 %v8312, 1.0
        %v8333 = vadd.f32 %v8313, 1.0
        %v8334 = vadd.f32 %v8314, 1.0
        %v8335 = vadd.f32 %v8315, 1.0
        %v8336 = vadd.f32 %v8316, 1.0
        %v8337 = vadd.f32 %v8317, 1.0
        %v8338 = vadd.f32 %v8318, 1.0
        %v8339 = vadd.f32 %v8319, 1.0
        %v8340 = vadd.f32 %v8320, 1.0
        %v8341 = vadd.f32 %v8321, 1.0
        %v8342 = vadd.f32 %v8322, 1.0
        %v8343 = vadd.f32 %v8323, 1.0
        %v8344 = vadd.f32 %v8324, 1.0
        %v8345 = vadd.f32 %v8325, 1.0
        %v8346 = vadd.f32 %v8326, 1.0
        %v8347 = vmul.f32 %v8267, %v8327
        %v8348 = vmul.f32 %v8268, %v8328
        %v8349 = vmul.f32 %v8269, %v8329
        %v8350 = vmul.f32 %v8270, %v8330
        %v8351 = vmul.f32 %v8271, %v8331
        %v8352 = vmul.f32 %v8272, %v8332
        %v8353 = vmul.f32 %v8273, %v8333
        %v8354 = vmul.f32 %v8274, %v8334
        %v8355 = vmul.f32 %v8275, %v8335
        %v8356 = vmul.f32 %v8276, %v8336
        %v8357 = vmul.f32 %v8277, %v8337
        %v8358 = vmul.f32 %v8278, %v8338
        %v8359 = vmul.f32 %v8279, %v8339
        %v8360 = vmul.f32 %v8280, %v8340
        %v8361 = vmul.f32 %v8281, %v8341
        %v8362 = vmul.f32 %v8282, %v8342
        %v8363 = vmul.f32 %v8283, %v8343
        %v8364 = vmul.f32 %v8284, %v8344
        %v8365 = vmul.f32 %v8285, %v8345
        %v8366 = vmul.f32 %v8286, %v8346
        %s8367 = scalar_lea.vmem %s4, 336
        %v8368 = vld [vmem:[%s8367] sm:$0xf]
        %v8369 = vld [vmem:[%s8367 + $0x4] sm:$0xf]
        %v8370 = vld [vmem:[%s8367 + $0x8] sm:$0xf]
        %v8371 = vld [vmem:[%s8367 + $0xc] sm:$0xf]
        %v8372 = vld [vmem:[%s8367 + $0x10] sm:$0xf]
        %v8373 = vld [vmem:[%s8367 + $0x14] sm:$0xf]
        %v8374 = vld [vmem:[%s8367 + $0x18] sm:$0xf]
        %v8375 = vld [vmem:[%s8367 + $0x1c] sm:$0xf]
        %v8376 = vld [vmem:[%s8367 + $0x20] sm:$0xf]
        %v8377 = vld [vmem:[%s8367 + $0x24] sm:$0xf]
        %v8378 = vld [vmem:[%s8367 + $0x28] sm:$0xf]
        %v8379 = vld [vmem:[%s8367 + $0x2c] sm:$0xf]
        %v8380 = vpack.c.bf16 %v8351, %v8347
        %v8381 = vpack.c.bf16 %v8352, %v8348
        %v8382 = vpack.c.bf16 %v8353, %v8349
        %v8383 = vpack.c.bf16 %v8354, %v8350
        %v8384 = vpack.c.bf16 %v8359, %v8355
        %v8385 = vpack.c.bf16 %v8360, %v8356
        %v8386 = vpack.c.bf16 %v8361, %v8357
        %v8387 = vpack.c.bf16 %v8362, %v8358
        %v8388 = vpack.c.bf16 %v8363, %v8363
        %v8389 = vpack.c.bf16 %v8364, %v8364
        %v8390 = vpack.c.bf16 %v8365, %v8365
        %v8391 = vpack.c.bf16 %v8366, %v8366
        %s8392 = scalar_lea.vmem %s5, 672
        %v8393 = vld [vmem:[%s8392] sm:$0xff]
        %v8394 = vld [vmem:[%s8392 + $0x8] sm:$0xff]
        %v8395 = vld [vmem:[%s8392 + $0x10] sm:$0xff]
        %v8396 = vld [vmem:[%s8392 + $0x18] sm:$0xff]
        %v8397 = vld [vmem:[%s8392 + $0x20] sm:$0xff]
        %v8398 = vld [vmem:[%s8392 + $0x28] sm:$0xff]
        %v8399 = vld [vmem:[%s8392 + $0x30] sm:$0xff]
        %v8400 = vld [vmem:[%s8392 + $0x38] sm:$0xff]
        %v8401 = vld [vmem:[%s8392 + $0x40] sm:$0xff]
        %v8402 = vld [vmem:[%s8392 + $0x48] sm:$0xff]
        %v8403 = vld [vmem:[%s8392 + $0x50] sm:$0xff]
        %v8404 = vld [vmem:[%s8392 + $0x58] sm:$0xff]
        %8406 = vset.pattern.permute.xlu0 0
        %8407 = vperm.xlu0 %8406, %v8393
        %v8408 = vpop.permute.xlu0 %8407
        %8411 = vset.pattern.permute.xlu0 0
        %8412 = vperm.xlu0 %8411, %v8394
        %v8413 = vpop.permute.xlu0 %8412
        %8416 = vset.pattern.permute.xlu0 0
        %8417 = vperm.xlu0 %8416, %v8395
        %v8418 = vpop.permute.xlu0 %8417
        %8421 = vset.pattern.permute.xlu0 0
        %8422 = vperm.xlu0 %8421, %v8396
        %v8423 = vpop.permute.xlu0 %8422
        %8426 = vset.pattern.permute.xlu0 0
        %8427 = vperm.xlu0 %8426, %v8397
        %v8428 = vpop.permute.xlu0 %8427
        %8431 = vset.pattern.permute.xlu0 0
        %8432 = vperm.xlu0 %8431, %v8398
        %v8433 = vpop.permute.xlu0 %8432
        %8436 = vset.pattern.permute.xlu0 0
        %8437 = vperm.xlu0 %8436, %v8399
        %v8438 = vpop.permute.xlu0 %8437
        %8441 = vset.pattern.permute.xlu0 0
        %8442 = vperm.xlu0 %8441, %v8400
        %v8443 = vpop.permute.xlu0 %8442
        %8446 = vset.pattern.permute.xlu0 0
        %8447 = vperm.xlu0 %8446, %v8401
        %v8448 = vpop.permute.xlu0 %8447
        %8450 = vset.pattern.permute.xlu0 0
        %8451 = vperm.xlu0 %8450, %v8402
        %v8452 = vpop.permute.xlu0 %8451
        %8454 = vset.pattern.permute.xlu0 0
        %8455 = vperm.xlu0 %8454, %v8403
        %v8456 = vpop.permute.xlu0 %8455
        %8458 = vset.pattern.permute.xlu0 0
        %8459 = vperm.xlu0 %8458, %v8404
        %v8460 = vpop.permute.xlu0 %8459
        %v8473 = vunpack.c.l.b16 %v8368
        %v8474 = vunpack.c.l.b16 %v8369
        %v8475 = vunpack.c.l.b16 %v8370
        %v8476 = vunpack.c.l.b16 %v8371
        %v8477 = vunpack.c.l.b16 %v8372
        %v8478 = vunpack.c.l.b16 %v8373
        %v8479 = vunpack.c.l.b16 %v8374
        %v8480 = vunpack.c.l.b16 %v8375
        %v8481 = vunpack.c.l.b16 %v8376
        %v8482 = vunpack.c.l.b16 %v8377
        %v8483 = vunpack.c.l.b16 %v8378
        %v8484 = vunpack.c.l.b16 %v8379
        %v8485 = vpack.c.b16 %v8474, %v8473
        %v8486 = vpack.c.b16 %v8476, %v8475
        %v8487 = vpack.c.b16 %v8478, %v8477
        %v8488 = vpack.c.b16 %v8480, %v8479
        %v8489 = vpack.c.b16 %v8482, %v8481
        %v8490 = vpack.c.b16 %v8484, %v8483
        %v8492 = vsel %vm1086, %v8485, 0
        %v8495 = vsel %vm1086, %v8486, 0
        %v8498 = vsel %vm1086, %v8487, 0
        %v8501 = vsel %vm1086, %v8488, 0
        %v8504 = vsel %vm1086, %v8489, 0
        %v8507 = vsel %vm1086, %v8490, 0
        %v8510 = vsel %vm1105, %v8388, 0
        %v8513 = vsel %vm1105, %v8389, 0
        %v8516 = vsel %vm1105, %v8390, 0
        %v8519 = vsel %vm1105, %v8391, 0
        %8521 = vmatprep.subr.bf16.mxu0 0
        %8522 = vmatpush1.bf16.msra.mxu0 0
        %8523 = vmatprep.subr.bf16.mxu0 0
        %8524 = vmatpush1.bf16.msra.mxu0 0
        %8525 = vmatprep.subr.bf16.mxu0 0
        %8526 = vmatpush1.bf16.msra.mxu0 0
        %8527 = vmatprep.subr.bf16.mxu0 0
        %8528 = vmatpush1.bf16.msra.mxu0 0
        %8529 = vmatprep.subr.bf16.mxu0 0
        %8530 = vmatpush1.bf16.msra.mxu0 0
        %8531 = vmatprep.subr.bf16.mxu0 %v8513
        %8532 = vmatpush1.bf16.msra.mxu0 %v8510
        %8533 = vmatprep.subr.bf16.mxu0 %v8385
        %8534 = vmatpush1.bf16.msra.mxu0 %v8384
        %8535 = vmatprep.subr.bf16.mxu0 %v8381
        %8536 = vmatpush1.bf16.msra.mxu0 %v8380
        %8537 = vmatprep.subr.bf16.mxu0 0
        %8538 = vmatpush2.bf16.msra.mxu0 0
        %8539 = vmatprep.subr.bf16.mxu0 0
        %8540 = vmatpush2.bf16.msra.mxu0 0
        %8541 = vmatprep.subr.bf16.mxu0 0
        %8542 = vmatpush2.bf16.msra.mxu0 0
        %8543 = vmatprep.subr.bf16.mxu0 0
        %8544 = vmatpush2.bf16.msra.mxu0 0
        %8545 = vmatprep.subr.bf16.mxu0 0
        %8546 = vmatpush2.bf16.msra.mxu0 0
        %8547 = vmatprep.subr.bf16.mxu0 0
        %8548 = vmatpush2.bf16.msra.mxu0 0
        %8549 = vmatprep.subr.bf16.mxu0 0
        %8550 = vmatpush2.bf16.msra.mxu0 0
        %8551 = vmatprep.subr.bf16.mxu0 0
        %8552 = vmatpush2.bf16.msra.mxu0 0
        %8553 = vmatprep.mubr.bf16.mxu0 0
        %8554 = vmatmul.mubr.bf16.gmra.mxu0 %v8492
        %v8555 = vpop.f32.mrf.mxu0
        %v8556 = vadd.f32 %v8408, %v8555
        %v8557 = vpop.f32.mrf.mxu0
        %v8558 = vadd.f32 %v8408, %v8557
        %v8559 = vpop.f32.mrf.mxu0
        %v8560 = vadd.f32 %v8413, %v8559
        %v8561 = vpop.f32.mrf.mxu0
        %v8562 = vadd.f32 %v8413, %v8561
        %8563 = vmatprep.mubr.bf16.mxu0 0
        %8564 = vmatmul.mubr.bf16.gmra.mxu0 %v8495
        %v8565 = vpop.f32.mrf.mxu0
        %v8566 = vadd.f32 %v8418, %v8565
        %v8567 = vpop.f32.mrf.mxu0
        %v8568 = vadd.f32 %v8418, %v8567
        %v8569 = vpop.f32.mrf.mxu0
        %v8570 = vadd.f32 %v8423, %v8569
        %v8571 = vpop.f32.mrf.mxu0
        %v8572 = vadd.f32 %v8423, %v8571
        %8573 = vmatprep.mubr.bf16.mxu0 0
        %8574 = vmatmul.mubr.bf16.gmra.mxu0 %v8498
        %v8575 = vpop.f32.mrf.mxu0
        %v8576 = vadd.f32 %v8428, %v8575
        %v8577 = vpop.f32.mrf.mxu0
        %v8578 = vadd.f32 %v8428, %v8577
        %v8579 = vpop.f32.mrf.mxu0
        %v8580 = vadd.f32 %v8433, %v8579
        %v8581 = vpop.f32.mrf.mxu0
        %v8582 = vadd.f32 %v8433, %v8581
        %8583 = vmatprep.mubr.bf16.mxu0 0
        %8584 = vmatmul.mubr.bf16.gmra.mxu0 %v8501
        %v8585 = vpop.f32.mrf.mxu0
        %v8586 = vadd.f32 %v8438, %v8585
        %v8587 = vpop.f32.mrf.mxu0
        %v8588 = vadd.f32 %v8438, %v8587
        %v8589 = vpop.f32.mrf.mxu0
        %v8590 = vadd.f32 %v8443, %v8589
        %v8591 = vpop.f32.mrf.mxu0
        %v8592 = vadd.f32 %v8443, %v8591
        %8593 = vmatprep.mubr.bf16.mxu0 0
        %8594 = vmatmul.mubr.bf16.gmra.mxu0 %v8504
        %v8595 = vpop.f32.mrf.mxu0
        %v8596 = vpop.f32.mrf.mxu0
        %v8597 = vpop.f32.mrf.mxu0
        %v8598 = vpop.f32.mrf.mxu0
        %8599 = vmatprep.mubr.bf16.mxu0 0
        %8600 = vmatmul.mubr.bf16.gmra.mxu0 %v8507
        %v8601 = vpop.f32.mrf.mxu0
        %v8602 = vpop.f32.mrf.mxu0
        %v8603 = vpop.f32.mrf.mxu0
        %v8604 = vpop.f32.mrf.mxu0
        %8605 = vdwg.mxu0
        %8606 = vmatprep.subr.bf16.mxu0 0
        %8607 = vmatpush1.bf16.msra.mxu0 0
        %8608 = vmatprep.subr.bf16.mxu0 0
        %8609 = vmatpush1.bf16.msra.mxu0 0
        %8610 = vmatprep.subr.bf16.mxu0 0
        %8611 = vmatpush1.bf16.msra.mxu0 0
        %8612 = vmatprep.subr.bf16.mxu0 0
        %8613 = vmatpush1.bf16.msra.mxu0 0
        %8614 = vmatprep.subr.bf16.mxu0 0
        %8615 = vmatpush1.bf16.msra.mxu0 0
        %8616 = vmatprep.subr.bf16.mxu0 %v8519
        %8617 = vmatpush1.bf16.msra.mxu0 %v8516
        %8618 = vmatprep.subr.bf16.mxu0 %v8387
        %8619 = vmatpush1.bf16.msra.mxu0 %v8386
        %8620 = vmatprep.subr.bf16.mxu0 %v8383
        %8621 = vmatpush1.bf16.msra.mxu0 %v8382
        %8622 = vmatprep.subr.bf16.mxu0 0
        %8623 = vmatpush2.bf16.msra.mxu0 0
        %8624 = vmatprep.subr.bf16.mxu0 0
        %8625 = vmatpush2.bf16.msra.mxu0 0
        %8626 = vmatprep.subr.bf16.mxu0 0
        %8627 = vmatpush2.bf16.msra.mxu0 0
        %8628 = vmatprep.subr.bf16.mxu0 0
        %8629 = vmatpush2.bf16.msra.mxu0 0
        %8630 = vmatprep.subr.bf16.mxu0 0
        %8631 = vmatpush2.bf16.msra.mxu0 0
        %8632 = vmatprep.subr.bf16.mxu0 0
        %8633 = vmatpush2.bf16.msra.mxu0 0
        %8634 = vmatprep.subr.bf16.mxu0 0
        %8635 = vmatpush2.bf16.msra.mxu0 0
        %8636 = vmatprep.subr.bf16.mxu0 0
        %8637 = vmatpush2.bf16.msra.mxu0 0
        %8638 = vmatprep.mubr.bf16.mxu0 0
        %8639 = vmatmul.mubr.bf16.gmra.mxu0 %v8492
        %v8640 = vpop.f32.mrf.mxu0
        %v8641 = vadd.f32 %v8408, %v8640
        %v8642 = vpop.f32.mrf.mxu0
        %v8643 = vadd.f32 %v8408, %v8642
        %v8644 = vpop.f32.mrf.mxu0
        %v8645 = vadd.f32 %v8413, %v8644
        %v8646 = vpop.f32.mrf.mxu0
        %v8647 = vadd.f32 %v8413, %v8646
        %8648 = vmatprep.mubr.bf16.mxu0 0
        %8649 = vmatmul.mubr.bf16.gmra.mxu0 %v8495
        %v8650 = vpop.f32.mrf.mxu0
        %v8651 = vadd.f32 %v8418, %v8650
        %v8652 = vpop.f32.mrf.mxu0
        %v8653 = vadd.f32 %v8418, %v8652
        %v8654 = vpop.f32.mrf.mxu0
        %v8655 = vadd.f32 %v8423, %v8654
        %v8656 = vpop.f32.mrf.mxu0
        %v8657 = vadd.f32 %v8423, %v8656
        %8658 = vmatprep.mubr.bf16.mxu0 0
        %8659 = vmatmul.mubr.bf16.gmra.mxu0 %v8498
        %v8660 = vpop.f32.mrf.mxu0
        %v8661 = vadd.f32 %v8428, %v8660
        %v8662 = vpop.f32.mrf.mxu0
        %v8663 = vadd.f32 %v8428, %v8662
        %v8664 = vpop.f32.mrf.mxu0
        %v8665 = vadd.f32 %v8433, %v8664
        %v8666 = vpop.f32.mrf.mxu0
        %v8667 = vadd.f32 %v8433, %v8666
        %8668 = vmatprep.mubr.bf16.mxu0 0
        %8669 = vmatmul.mubr.bf16.gmra.mxu0 %v8501
        %v8670 = vpop.f32.mrf.mxu0
        %v8671 = vadd.f32 %v8438, %v8670
        %v8672 = vpop.f32.mrf.mxu0
        %v8673 = vadd.f32 %v8438, %v8672
        %v8674 = vpop.f32.mrf.mxu0
        %v8675 = vadd.f32 %v8443, %v8674
        %v8676 = vpop.f32.mrf.mxu0
        %v8677 = vadd.f32 %v8443, %v8676
        %8678 = vmatprep.mubr.bf16.mxu0 0
        %8679 = vmatmul.mubr.bf16.gmra.mxu0 %v8504
        %v8680 = vpop.f32.mrf.mxu0
        %v8681 = vpop.f32.mrf.mxu0
        %v8682 = vpop.f32.mrf.mxu0
        %v8683 = vpop.f32.mrf.mxu0
        %8684 = vmatprep.mubr.bf16.mxu0 0
        %8685 = vmatmul.mubr.bf16.gmra.mxu0 %v8507
        %v8686 = vpop.f32.mrf.mxu0
        %v8687 = vpop.f32.mrf.mxu0
        %v8688 = vpop.f32.mrf.mxu0
        %v8689 = vpop.f32.mrf.mxu0
        %8690 = vdwg.mxu0
        %v8691 = vmul.f32 %v8556, 0.5
        %v8692 = vmul.f32 %v8558, 0.5
        %v8693 = vmul.f32 %v8641, 0.5
        %v8694 = vmul.f32 %v8643, 0.5
        %v8695 = vmul.f32 %v8560, 0.5
        %v8696 = vmul.f32 %v8562, 0.5
        %v8697 = vmul.f32 %v8645, 0.5
        %v8698 = vmul.f32 %v8647, 0.5
        %v8699 = vmul.f32 %v8566, 0.5
        %v8700 = vmul.f32 %v8568, 0.5
        %v8701 = vmul.f32 %v8651, 0.5
        %v8702 = vmul.f32 %v8653, 0.5
        %v8703 = vmul.f32 %v8570, 0.5
        %v8704 = vmul.f32 %v8572, 0.5
        %v8705 = vmul.f32 %v8655, 0.5
        %v8706 = vmul.f32 %v8657, 0.5
        %v8707 = vmul.f32 %v8576, 0.5
        %v8708 = vmul.f32 %v8578, 0.5
        %v8709 = vmul.f32 %v8661, 0.5
        %v8710 = vmul.f32 %v8663, 0.5
        %v8711 = vmul.f32 %v8580, 0.5
        %v8712 = vmul.f32 %v8582, 0.5
        %v8713 = vmul.f32 %v8665, 0.5
        %v8714 = vmul.f32 %v8667, 0.5
        %v8715 = vmul.f32 %v8586, 0.5
        %v8716 = vmul.f32 %v8588, 0.5
        %v8717 = vmul.f32 %v8671, 0.5
        %v8718 = vmul.f32 %v8673, 0.5
        %v8719 = vmul.f32 %v8590, 0.5
        %v8720 = vmul.f32 %v8592, 0.5
        %v8721 = vmul.f32 %v8675, 0.5
        %v8722 = vmul.f32 %v8677, 0.5
        %v8723 = vmul.f32 %v8556, 0.70710677
        %v8724 = vmul.f32 %v8558, 0.70710677
        %v8725 = vmul.f32 %v8641, 0.70710677
        %v8726 = vmul.f32 %v8643, 0.70710677
        %v8727 = vmul.f32 %v8560, 0.70710677
        %v8728 = vmul.f32 %v8562, 0.70710677
        %v8729 = vmul.f32 %v8645, 0.70710677
        %v8730 = vmul.f32 %v8647, 0.70710677
        %v8731 = vmul.f32 %v8566, 0.70710677
        %v8732 = vmul.f32 %v8568, 0.70710677
        %v8733 = vmul.f32 %v8651, 0.70710677
        %v8734 = vmul.f32 %v8653, 0.70710677
        %v8735 = vmul.f32 %v8570, 0.70710677
        %v8736 = vmul.f32 %v8572, 0.70710677
        %v8737 = vmul.f32 %v8655, 0.70710677
        %v8738 = vmul.f32 %v8657, 0.70710677
        %v8739 = vmul.f32 %v8576, 0.70710677
        %v8740 = vmul.f32 %v8578, 0.70710677
        %v8741 = vmul.f32 %v8661, 0.70710677
        %v8742 = vmul.f32 %v8663, 0.70710677
        %v8743 = vmul.f32 %v8580, 0.70710677
        %v8744 = vmul.f32 %v8582, 0.70710677
        %v8745 = vmul.f32 %v8665, 0.70710677
        %v8746 = vmul.f32 %v8667, 0.70710677
        %v8747 = vmul.f32 %v8586, 0.70710677
        %v8748 = vmul.f32 %v8588, 0.70710677
        %v8749 = vmul.f32 %v8671, 0.70710677
        %v8750 = vmul.f32 %v8673, 0.70710677
        %v8751 = vmul.f32 %v8590, 0.70710677
        %v8752 = vmul.f32 %v8592, 0.70710677
        %v8753 = vmul.f32 %v8675, 0.70710677
        %v8754 = vmul.f32 %v8677, 0.70710677
        %v8755 = verf.f32.pop %v8723
        %v8756 = verf.f32.pop %v8724
        %v8757 = verf.f32.pop %v8725
        %v8758 = verf.f32.pop %v8726
        %v8759 = verf.f32.pop %v8727
        %v8760 = verf.f32.pop %v8728
        %v8761 = verf.f32.pop %v8729
        %v8762 = verf.f32.pop %v8730
        %v8763 = verf.f32.pop %v8731
        %v8764 = verf.f32.pop %v8732
        %v8765 = verf.f32.pop %v8733
        %v8766 = verf.f32.pop %v8734
        %v8767 = verf.f32.pop %v8735
        %v8768 = verf.f32.pop %v8736
        %v8769 = verf.f32.pop %v8737
        %v8770 = verf.f32.pop %v8738
        %v8771 = verf.f32.pop %v8739
        %v8772 = verf.f32.pop %v8740
        %v8773 = verf.f32.pop %v8741
        %v8774 = verf.f32.pop %v8742
        %v8775 = verf.f32.pop %v8743
        %v8776 = verf.f32.pop %v8744
        %v8777 = verf.f32.pop %v8745
        %v8778 = verf.f32.pop %v8746
        %v8779 = verf.f32.pop %v8747
        %v8780 = verf.f32.pop %v8748
        %v8781 = verf.f32.pop %v8749
        %v8782 = verf.f32.pop %v8750
        %v8783 = verf.f32.pop %v8751
        %v8784 = verf.f32.pop %v8752
        %v8785 = verf.f32.pop %v8753
        %v8786 = verf.f32.pop %v8754
        %v8787 = vadd.f32 %v8755, 1.0
        %v8788 = vadd.f32 %v8756, 1.0
        %v8789 = vadd.f32 %v8757, 1.0
        %v8790 = vadd.f32 %v8758, 1.0
        %v8791 = vadd.f32 %v8759, 1.0
        %v8792 = vadd.f32 %v8760, 1.0
        %v8793 = vadd.f32 %v8761, 1.0
        %v8794 = vadd.f32 %v8762, 1.0
        %v8795 = vadd.f32 %v8763, 1.0
        %v8796 = vadd.f32 %v8764, 1.0
        %v8797 = vadd.f32 %v8765, 1.0
        %v8798 = vadd.f32 %v8766, 1.0
        %v8799 = vadd.f32 %v8767, 1.0
        %v8800 = vadd.f32 %v8768, 1.0
        %v8801 = vadd.f32 %v8769, 1.0
        %v8802 = vadd.f32 %v8770, 1.0
        %v8803 = vadd.f32 %v8771, 1.0
        %v8804 = vadd.f32 %v8772, 1.0
        %v8805 = vadd.f32 %v8773, 1.0
        %v8806 = vadd.f32 %v8774, 1.0
        %v8807 = vadd.f32 %v8775, 1.0
        %v8808 = vadd.f32 %v8776, 1.0
        %v8809 = vadd.f32 %v8777, 1.0
        %v8810 = vadd.f32 %v8778, 1.0
        %v8811 = vadd.f32 %v8779, 1.0
        %v8812 = vadd.f32 %v8780, 1.0
        %v8813 = vadd.f32 %v8781, 1.0
        %v8814 = vadd.f32 %v8782, 1.0
        %v8815 = vadd.f32 %v8783, 1.0
        %v8816 = vadd.f32 %v8784, 1.0
        %v8817 = vadd.f32 %v8785, 1.0
        %v8818 = vadd.f32 %v8786, 1.0
        %v8819 = vmul.f32 %v8691, %v8787
        %v8820 = vmul.f32 %v8692, %v8788
        %v8821 = vmul.f32 %v8693, %v8789
        %v8822 = vmul.f32 %v8694, %v8790
        %v8823 = vmul.f32 %v8695, %v8791
        %v8824 = vmul.f32 %v8696, %v8792
        %v8825 = vmul.f32 %v8697, %v8793
        %v8826 = vmul.f32 %v8698, %v8794
        %v8827 = vmul.f32 %v8699, %v8795
        %v8828 = vmul.f32 %v8700, %v8796
        %v8829 = vmul.f32 %v8701, %v8797
        %v8830 = vmul.f32 %v8702, %v8798
        %v8831 = vmul.f32 %v8703, %v8799
        %v8832 = vmul.f32 %v8704, %v8800
        %v8833 = vmul.f32 %v8705, %v8801
        %v8834 = vmul.f32 %v8706, %v8802
        %v8835 = vmul.f32 %v8707, %v8803
        %v8836 = vmul.f32 %v8708, %v8804
        %v8837 = vmul.f32 %v8709, %v8805
        %v8838 = vmul.f32 %v8710, %v8806
        %v8839 = vmul.f32 %v8711, %v8807
        %v8840 = vmul.f32 %v8712, %v8808
        %v8841 = vmul.f32 %v8713, %v8809
        %v8842 = vmul.f32 %v8714, %v8810
        %v8843 = vmul.f32 %v8715, %v8811
        %v8844 = vmul.f32 %v8716, %v8812
        %v8845 = vmul.f32 %v8717, %v8813
        %v8846 = vmul.f32 %v8718, %v8814
        %v8847 = vmul.f32 %v8719, %v8815
        %v8848 = vmul.f32 %v8720, %v8816
        %v8849 = vmul.f32 %v8721, %v8817
        %v8850 = vmul.f32 %v8722, %v8818
        %v8851 = vadd.f32 %v7896, %v8819
        %v8852 = vadd.f32 %v7897, %v8820
        %v8853 = vadd.f32 %v7898, %v8821
        %v8854 = vadd.f32 %v7899, %v8822
        %v8855 = vadd.f32 %v7900, %v8823
        %v8856 = vadd.f32 %v7901, %v8824
        %v8857 = vadd.f32 %v7902, %v8825
        %v8858 = vadd.f32 %v7903, %v8826
        %v8859 = vadd.f32 %v7904, %v8827
        %v8860 = vadd.f32 %v7905, %v8828
        %v8861 = vadd.f32 %v7906, %v8829
        %v8862 = vadd.f32 %v7907, %v8830
        %v8863 = vadd.f32 %v7908, %v8831
        %v8864 = vadd.f32 %v7909, %v8832
        %v8865 = vadd.f32 %v7910, %v8833
        %v8866 = vadd.f32 %v7911, %v8834
        %v8867 = vadd.f32 %v7912, %v8835
        %v8868 = vadd.f32 %v7913, %v8836
        %v8869 = vadd.f32 %v7914, %v8837
        %v8870 = vadd.f32 %v7915, %v8838
        %v8871 = vadd.f32 %v7916, %v8839
        %v8872 = vadd.f32 %v7917, %v8840
        %v8873 = vadd.f32 %v7918, %v8841
        %v8874 = vadd.f32 %v7919, %v8842
        %v8875 = vadd.f32 %v7920, %v8843
        %v8876 = vadd.f32 %v7921, %v8844
        %v8877 = vadd.f32 %v7922, %v8845
        %v8878 = vadd.f32 %v7923, %v8846
        %v8879 = vadd.f32 %v7924, %v8847
        %v8880 = vadd.f32 %v7925, %v8848
        %v8881 = vadd.f32 %v7926, %v8849
        %v8882 = vadd.f32 %v7927, %v8850
        %v8883 = vmul.f32 %v8851, 0.5
        %v8884 = vmul.f32 %v8852, 0.5
        %v8885 = vmul.f32 %v8853, 0.5
        %v8886 = vmul.f32 %v8854, 0.5
        %v8887 = vmul.f32 %v8855, 0.5
        %v8888 = vmul.f32 %v8856, 0.5
        %v8889 = vmul.f32 %v8857, 0.5
        %v8890 = vmul.f32 %v8858, 0.5
        %v8891 = vmul.f32 %v8859, 0.5
        %v8892 = vmul.f32 %v8860, 0.5
        %v8893 = vmul.f32 %v8861, 0.5
        %v8894 = vmul.f32 %v8862, 0.5
        %v8895 = vmul.f32 %v8863, 0.5
        %v8896 = vmul.f32 %v8864, 0.5
        %v8897 = vmul.f32 %v8865, 0.5
        %v8898 = vmul.f32 %v8866, 0.5
        %v8899 = vmul.f32 %v8867, 0.5
        %v8900 = vmul.f32 %v8868, 0.5
        %v8901 = vmul.f32 %v8869, 0.5
        %v8902 = vmul.f32 %v8870, 0.5
        %v8903 = vmul.f32 %v8871, 0.5
        %v8904 = vmul.f32 %v8872, 0.5
        %v8905 = vmul.f32 %v8873, 0.5
        %v8906 = vmul.f32 %v8874, 0.5
        %v8907 = vmul.f32 %v8875, 0.5
        %v8908 = vmul.f32 %v8876, 0.5
        %v8909 = vmul.f32 %v8877, 0.5
        %v8910 = vmul.f32 %v8878, 0.5
        %v8911 = vmul.f32 %v8879, 0.5
        %v8912 = vmul.f32 %v8880, 0.5
        %v8913 = vmul.f32 %v8881, 0.5
        %v8914 = vmul.f32 %v8882, 0.5
        %v8915 = vmul.f32 %v8851, 0.70710677
        %v8916 = vmul.f32 %v8852, 0.70710677
        %v8917 = vmul.f32 %v8853, 0.70710677
        %v8918 = vmul.f32 %v8854, 0.70710677
        %v8919 = vmul.f32 %v8855, 0.70710677
        %v8920 = vmul.f32 %v8856, 0.70710677
        %v8921 = vmul.f32 %v8857, 0.70710677
        %v8922 = vmul.f32 %v8858, 0.70710677
        %v8923 = vmul.f32 %v8859, 0.70710677
        %v8924 = vmul.f32 %v8860, 0.70710677
        %v8925 = vmul.f32 %v8861, 0.70710677
        %v8926 = vmul.f32 %v8862, 0.70710677
        %v8927 = vmul.f32 %v8863, 0.70710677
        %v8928 = vmul.f32 %v8864, 0.70710677
        %v8929 = vmul.f32 %v8865, 0.70710677
        %v8930 = vmul.f32 %v8866, 0.70710677
        %v8931 = vmul.f32 %v8867, 0.70710677
        %v8932 = vmul.f32 %v8868, 0.70710677
        %v8933 = vmul.f32 %v8869, 0.70710677
        %v8934 = vmul.f32 %v8870, 0.70710677
        %v8935 = vmul.f32 %v8871, 0.70710677
        %v8936 = vmul.f32 %v8872, 0.70710677
        %v8937 = vmul.f32 %v8873, 0.70710677
        %v8938 = vmul.f32 %v8874, 0.70710677
        %v8939 = vmul.f32 %v8875, 0.70710677
        %v8940 = vmul.f32 %v8876, 0.70710677
        %v8941 = vmul.f32 %v8877, 0.70710677
        %v8942 = vmul.f32 %v8878, 0.70710677
        %v8943 = vmul.f32 %v8879, 0.70710677
        %v8944 = vmul.f32 %v8880, 0.70710677
        %v8945 = vmul.f32 %v8881, 0.70710677
        %v8946 = vmul.f32 %v8882, 0.70710677
        %v8947 = verf.f32.pop %v8915
        %v8948 = verf.f32.pop %v8916
        %v8949 = verf.f32.pop %v8917
        %v8950 = verf.f32.pop %v8918
        %v8951 = verf.f32.pop %v8919
        %v8952 = verf.f32.pop %v8920
        %v8953 = verf.f32.pop %v8921
        %v8954 = verf.f32.pop %v8922
        %v8955 = verf.f32.pop %v8923
        %v8956 = verf.f32.pop %v8924
        %v8957 = verf.f32.pop %v8925
        %v8958 = verf.f32.pop %v8926
        %v8959 = verf.f32.pop %v8927
        %v8960 = verf.f32.pop %v8928
        %v8961 = verf.f32.pop %v8929
        %v8962 = verf.f32.pop %v8930
        %v8963 = verf.f32.pop %v8931
        %v8964 = verf.f32.pop %v8932
        %v8965 = verf.f32.pop %v8933
        %v8966 = verf.f32.pop %v8934
        %v8967 = verf.f32.pop %v8935
        %v8968 = verf.f32.pop %v8936
        %v8969 = verf.f32.pop %v8937
        %v8970 = verf.f32.pop %v8938
        %v8971 = verf.f32.pop %v8939
        %v8972 = verf.f32.pop %v8940
        %v8973 = verf.f32.pop %v8941
        %v8974 = verf.f32.pop %v8942
        %v8975 = verf.f32.pop %v8943
        %v8976 = verf.f32.pop %v8944
        %v8977 = verf.f32.pop %v8945
        %v8978 = verf.f32.pop %v8946
        %v8979 = vadd.f32 %v8947, 1.0
        %v8980 = vadd.f32 %v8948, 1.0
        %v8981 = vadd.f32 %v8949, 1.0
        %v8982 = vadd.f32 %v8950, 1.0
        %v8983 = vadd.f32 %v8951, 1.0
        %v8984 = vadd.f32 %v8952, 1.0
        %v8985 = vadd.f32 %v8953, 1.0
        %v8986 = vadd.f32 %v8954, 1.0
        %v8987 = vadd.f32 %v8955, 1.0
        %v8988 = vadd.f32 %v8956, 1.0
        %v8989 = vadd.f32 %v8957, 1.0
        %v8990 = vadd.f32 %v8958, 1.0
        %v8991 = vadd.f32 %v8959, 1.0
        %v8992 = vadd.f32 %v8960, 1.0
        %v8993 = vadd.f32 %v8961, 1.0
        %v8994 = vadd.f32 %v8962, 1.0
        %v8995 = vadd.f32 %v8963, 1.0
        %v8996 = vadd.f32 %v8964, 1.0
        %v8997 = vadd.f32 %v8965, 1.0
        %v8998 = vadd.f32 %v8966, 1.0
        %v8999 = vadd.f32 %v8967, 1.0
        %v9000 = vadd.f32 %v8968, 1.0
        %v9001 = vadd.f32 %v8969, 1.0
        %v9002 = vadd.f32 %v8970, 1.0
        %v9003 = vadd.f32 %v8971, 1.0
        %v9004 = vadd.f32 %v8972, 1.0
        %v9005 = vadd.f32 %v8973, 1.0
        %v9006 = vadd.f32 %v8974, 1.0
        %v9007 = vadd.f32 %v8975, 1.0
        %v9008 = vadd.f32 %v8976, 1.0
        %v9009 = vadd.f32 %v8977, 1.0
        %v9010 = vadd.f32 %v8978, 1.0
        %v9011 = vmul.f32 %v8883, %v8979
        %v9012 = vmul.f32 %v8884, %v8980
        %v9013 = vmul.f32 %v8885, %v8981
        %v9014 = vmul.f32 %v8886, %v8982
        %v9015 = vmul.f32 %v8887, %v8983
        %v9016 = vmul.f32 %v8888, %v8984
        %v9017 = vmul.f32 %v8889, %v8985
        %v9018 = vmul.f32 %v8890, %v8986
        %v9019 = vmul.f32 %v8891, %v8987
        %v9020 = vmul.f32 %v8892, %v8988
        %v9021 = vmul.f32 %v8893, %v8989
        %v9022 = vmul.f32 %v8894, %v8990
        %v9023 = vmul.f32 %v8895, %v8991
        %v9024 = vmul.f32 %v8896, %v8992
        %v9025 = vmul.f32 %v8897, %v8993
        %v9026 = vmul.f32 %v8898, %v8994
        %v9027 = vmul.f32 %v8899, %v8995
        %v9028 = vmul.f32 %v8900, %v8996
        %v9029 = vmul.f32 %v8901, %v8997
        %v9030 = vmul.f32 %v8902, %v8998
        %v9031 = vmul.f32 %v8903, %v8999
        %v9032 = vmul.f32 %v8904, %v9000
        %v9033 = vmul.f32 %v8905, %v9001
        %v9034 = vmul.f32 %v8906, %v9002
        %v9035 = vmul.f32 %v8907, %v9003
        %v9036 = vmul.f32 %v8908, %v9004
        %v9037 = vmul.f32 %v8909, %v9005
        %v9038 = vmul.f32 %v8910, %v9006
        %v9039 = vmul.f32 %v8911, %v9007
        %v9040 = vmul.f32 %v8912, %v9008
        %v9041 = vmul.f32 %v8913, %v9009
        %v9042 = vmul.f32 %v8914, %v9010
        %v9043 = vld [vmem:[%s6] sm:$0xf]
        %v9044 = vld [vmem:[%s6 + $0x4] sm:$0xf]
        %v9045 = vld [vmem:[%s6 + $0x8] sm:$0xf]
        %v9046 = vld [vmem:[%s6 + $0xc] sm:$0xf]
        %v9047 = vld [vmem:[%s6 + $0x10] sm:$0xf]
        %v9048 = vld [vmem:[%s6 + $0x14] sm:$0xf]
        %v9049 = vld [vmem:[%s6 + $0x18] sm:$0xf]
        %v9050 = vld [vmem:[%s6 + $0x1c] sm:$0xf]
        %v9051 = vpack.c.bf16 %v9015, %v9011
        %v9052 = vpack.c.bf16 %v9016, %v9012
        %v9053 = vpack.c.bf16 %v9017, %v9013
        %v9054 = vpack.c.bf16 %v9018, %v9014
        %v9055 = vpack.c.bf16 %v9023, %v9019
        %v9056 = vpack.c.bf16 %v9024, %v9020
        %v9057 = vpack.c.bf16 %v9025, %v9021
        %v9058 = vpack.c.bf16 %v9026, %v9022
        %v9059 = vpack.c.bf16 %v9031, %v9027
        %v9060 = vpack.c.bf16 %v9032, %v9028
        %v9061 = vpack.c.bf16 %v9033, %v9029
        %v9062 = vpack.c.bf16 %v9034, %v9030
        %v9063 = vpack.c.bf16 %v9039, %v9035
        %v9064 = vpack.c.bf16 %v9040, %v9036
        %v9065 = vpack.c.bf16 %v9041, %v9037
        %v9066 = vpack.c.bf16 %v9042, %v9038
        %v9067 = vld [vmem:[%s7] sm:$0xff]
        %v9068 = vld [vmem:[%s7 + $0x8] sm:$0xff]
        %v9069 = vld [vmem:[%s7 + $0x10] sm:$0xff]
        %v9070 = vld [vmem:[%s7 + $0x18] sm:$0xff]
        %v9071 = vld [vmem:[%s7 + $0x20] sm:$0xff]
        %v9072 = vld [vmem:[%s7 + $0x28] sm:$0xff]
        %v9073 = vld [vmem:[%s7 + $0x30] sm:$0xff]
        %v9074 = vld [vmem:[%s7 + $0x38] sm:$0xff]
        %9076 = vset.pattern.permute.xlu0 0
        %9077 = vperm.xlu0 %9076, %v9067
        %v9078 = vpop.permute.xlu0 %9077
        %9081 = vset.pattern.permute.xlu0 0
        %9082 = vperm.xlu0 %9081, %v9068
        %v9083 = vpop.permute.xlu0 %9082
        %9086 = vset.pattern.permute.xlu0 0
        %9087 = vperm.xlu0 %9086, %v9069
        %v9088 = vpop.permute.xlu0 %9087
        %9091 = vset.pattern.permute.xlu0 0
        %9092 = vperm.xlu0 %9091, %v9070
        %v9093 = vpop.permute.xlu0 %9092
        %9096 = vset.pattern.permute.xlu0 0
        %9097 = vperm.xlu0 %9096, %v9071
        %v9098 = vpop.permute.xlu0 %9097
        %9101 = vset.pattern.permute.xlu0 0
        %9102 = vperm.xlu0 %9101, %v9072
        %v9103 = vpop.permute.xlu0 %9102
        %9106 = vset.pattern.permute.xlu0 0
        %9107 = vperm.xlu0 %9106, %v9073
        %v9108 = vpop.permute.xlu0 %9107
        %9111 = vset.pattern.permute.xlu0 0
        %9112 = vperm.xlu0 %9111, %v9074
        %v9113 = vpop.permute.xlu0 %9112
        %v9123 = vunpack.c.l.b16 %v9043
        %v9124 = vunpack.c.l.b16 %v9044
        %v9125 = vunpack.c.l.b16 %v9045
        %v9126 = vunpack.c.l.b16 %v9046
        %v9127 = vunpack.c.l.b16 %v9047
        %v9128 = vunpack.c.l.b16 %v9048
        %v9129 = vunpack.c.l.b16 %v9049
        %v9130 = vunpack.c.l.b16 %v9050
        %v9131 = vpack.c.b16 %v9124, %v9123
        %v9132 = vpack.c.b16 %v9126, %v9125
        %v9133 = vpack.c.b16 %v9128, %v9127
        %v9134 = vpack.c.b16 %v9130, %v9129
        %vm9135 = vcmask 523264
        %v9137 = vsel %vm9135, %v9131, 0
        %v9140 = vsel %vm9135, %v9132, 0
        %v9143 = vsel %vm9135, %v9133, 0
        %v9146 = vsel %vm9135, %v9134, 0
        %9148 = vmatprep.subr.bf16.mxu0 0
        %9149 = vmatpush1.bf16.msra.mxu0 0
        %9150 = vmatprep.subr.bf16.mxu0 0
        %9151 = vmatpush1.bf16.msra.mxu0 0
        %9152 = vmatprep.subr.bf16.mxu0 0
        %9153 = vmatpush1.bf16.msra.mxu0 0
        %9154 = vmatprep.subr.bf16.mxu0 0
        %9155 = vmatpush1.bf16.msra.mxu0 0
        %9156 = vmatprep.subr.bf16.mxu0 %v9064
        %9157 = vmatpush1.bf16.msra.mxu0 %v9063
        %9158 = vmatprep.subr.bf16.mxu0 %v9060
        %9159 = vmatpush1.bf16.msra.mxu0 %v9059
        %9160 = vmatprep.subr.bf16.mxu0 %v9056
        %9161 = vmatpush1.bf16.msra.mxu0 %v9055
        %9162 = vmatprep.subr.bf16.mxu0 %v9052
        %9163 = vmatpush1.bf16.msra.mxu0 %v9051
        %9164 = vmatprep.subr.bf16.mxu0 0
        %9165 = vmatpush2.bf16.msra.mxu0 0
        %9166 = vmatprep.subr.bf16.mxu0 0
        %9167 = vmatpush2.bf16.msra.mxu0 0
        %9168 = vmatprep.subr.bf16.mxu0 0
        %9169 = vmatpush2.bf16.msra.mxu0 0
        %9170 = vmatprep.subr.bf16.mxu0 0
        %9171 = vmatpush2.bf16.msra.mxu0 0
        %9172 = vmatprep.subr.bf16.mxu0 0
        %9173 = vmatpush2.bf16.msra.mxu0 0
        %9174 = vmatprep.subr.bf16.mxu0 0
        %9175 = vmatpush2.bf16.msra.mxu0 0
        %9176 = vmatprep.subr.bf16.mxu0 0
        %9177 = vmatpush2.bf16.msra.mxu0 0
        %9178 = vmatprep.subr.bf16.mxu0 0
        %9179 = vmatpush2.bf16.msra.mxu0 0
        %9180 = vmatprep.mubr.bf16.mxu0 0
        %9181 = vmatmul.mubr.bf16.gmra.mxu0 %v9137
        %v9182 = vpop.f32.mrf.mxu0
        %v9183 = vadd.f32 %v9078, %v9182
        %v9184 = vpop.f32.mrf.mxu0
        %v9185 = vadd.f32 %v9078, %v9184
        %v9186 = vpop.f32.mrf.mxu0
        %v9187 = vadd.f32 %v9083, %v9186
        %v9188 = vpop.f32.mrf.mxu0
        %v9189 = vadd.f32 %v9083, %v9188
        %9190 = vmatprep.mubr.bf16.mxu0 0
        %9191 = vmatmul.mubr.bf16.gmra.mxu0 %v9140
        %v9192 = vpop.f32.mrf.mxu0
        %v9193 = vadd.f32 %v9088, %v9192
        %v9194 = vpop.f32.mrf.mxu0
        %v9195 = vadd.f32 %v9088, %v9194
        %v9196 = vpop.f32.mrf.mxu0
        %v9197 = vadd.f32 %v9093, %v9196
        %v9198 = vpop.f32.mrf.mxu0
        %v9199 = vadd.f32 %v9093, %v9198
        %9200 = vmatprep.mubr.bf16.mxu0 0
        %9201 = vmatmul.mubr.bf16.gmra.mxu0 %v9143
        %v9202 = vpop.f32.mrf.mxu0
        %v9203 = vadd.f32 %v9098, %v9202
        %v9204 = vpop.f32.mrf.mxu0
        %v9205 = vadd.f32 %v9098, %v9204
        %v9206 = vpop.f32.mrf.mxu0
        %v9207 = vadd.f32 %v9103, %v9206
        %v9208 = vpop.f32.mrf.mxu0
        %v9209 = vadd.f32 %v9103, %v9208
        %9210 = vmatprep.mubr.bf16.mxu0 0
        %9211 = vmatmul.mubr.bf16.gmra.mxu0 %v9146
        %v9212 = vpop.f32.mrf.mxu0
        %v9213 = vadd.f32 %v9108, %v9212
        %v9214 = vpop.f32.mrf.mxu0
        %v9215 = vadd.f32 %v9108, %v9214
        %v9216 = vpop.f32.mrf.mxu0
        %v9217 = vadd.f32 %v9113, %v9216
        %v9218 = vpop.f32.mrf.mxu0
        %v9219 = vadd.f32 %v9113, %v9218
        %9220 = vdwg.mxu0
        %9221 = vmatprep.subr.bf16.mxu0 0
        %9222 = vmatpush1.bf16.msra.mxu0 0
        %9223 = vmatprep.subr.bf16.mxu0 0
        %9224 = vmatpush1.bf16.msra.mxu0 0
        %9225 = vmatprep.subr.bf16.mxu0 0
        %9226 = vmatpush1.bf16.msra.mxu0 0
        %9227 = vmatprep.subr.bf16.mxu0 0
        %9228 = vmatpush1.bf16.msra.mxu0 0
        %9229 = vmatprep.subr.bf16.mxu0 %v9066
        %9230 = vmatpush1.bf16.msra.mxu0 %v9065
        %9231 = vmatprep.subr.bf16.mxu0 %v9062
        %9232 = vmatpush1.bf16.msra.mxu0 %v9061
        %9233 = vmatprep.subr.bf16.mxu0 %v9058
        %9234 = vmatpush1.bf16.msra.mxu0 %v9057
        %9235 = vmatprep.subr.bf16.mxu0 %v9054
        %9236 = vmatpush1.bf16.msra.mxu0 %v9053
        %9237 = vmatprep.subr.bf16.mxu0 0
        %9238 = vmatpush2.bf16.msra.mxu0 0
        %9239 = vmatprep.subr.bf16.mxu0 0
        %9240 = vmatpush2.bf16.msra.mxu0 0
        %9241 = vmatprep.subr.bf16.mxu0 0
        %9242 = vmatpush2.bf16.msra.mxu0 0
        %9243 = vmatprep.subr.bf16.mxu0 0
        %9244 = vmatpush2.bf16.msra.mxu0 0
        %9245 = vmatprep.subr.bf16.mxu0 0
        %9246 = vmatpush2.bf16.msra.mxu0 0
        %9247 = vmatprep.subr.bf16.mxu0 0
        %9248 = vmatpush2.bf16.msra.mxu0 0
        %9249 = vmatprep.subr.bf16.mxu0 0
        %9250 = vmatpush2.bf16.msra.mxu0 0
        %9251 = vmatprep.subr.bf16.mxu0 0
        %9252 = vmatpush2.bf16.msra.mxu0 0
        %9253 = vmatprep.mubr.bf16.mxu0 0
        %9254 = vmatmul.mubr.bf16.gmra.mxu0 %v9137
        %v9255 = vpop.f32.mrf.mxu0
        %v9256 = vadd.f32 %v9078, %v9255
        %v9257 = vpop.f32.mrf.mxu0
        %v9258 = vadd.f32 %v9078, %v9257
        %v9259 = vpop.f32.mrf.mxu0
        %v9260 = vadd.f32 %v9083, %v9259
        %v9261 = vpop.f32.mrf.mxu0
        %v9262 = vadd.f32 %v9083, %v9261
        %9263 = vmatprep.mubr.bf16.mxu0 0
        %9264 = vmatmul.mubr.bf16.gmra.mxu0 %v9140
        %v9265 = vpop.f32.mrf.mxu0
        %v9266 = vadd.f32 %v9088, %v9265
        %v9267 = vpop.f32.mrf.mxu0
        %v9268 = vadd.f32 %v9088, %v9267
        %v9269 = vpop.f32.mrf.mxu0
        %v9270 = vadd.f32 %v9093, %v9269
        %v9271 = vpop.f32.mrf.mxu0
        %v9272 = vadd.f32 %v9093, %v9271
        %9273 = vmatprep.mubr.bf16.mxu0 0
        %9274 = vmatmul.mubr.bf16.gmra.mxu0 %v9143
        %v9275 = vpop.f32.mrf.mxu0
        %v9276 = vadd.f32 %v9098, %v9275
        %v9277 = vpop.f32.mrf.mxu0
        %v9278 = vadd.f32 %v9098, %v9277
        %v9279 = vpop.f32.mrf.mxu0
        %v9280 = vadd.f32 %v9103, %v9279
        %v9281 = vpop.f32.mrf.mxu0
        %v9282 = vadd.f32 %v9103, %v9281
        %9283 = vmatprep.mubr.bf16.mxu0 0
        %9284 = vmatmul.mubr.bf16.gmra.mxu0 %v9146
        %v9285 = vpop.f32.mrf.mxu0
        %v9286 = vadd.f32 %v9108, %v9285
        %v9287 = vpop.f32.mrf.mxu0
        %v9288 = vadd.f32 %v9108, %v9287
        %v9289 = vpop.f32.mrf.mxu0
        %v9290 = vadd.f32 %v9113, %v9289
        %v9291 = vpop.f32.mrf.mxu0
        %v9292 = vadd.f32 %v9113, %v9291
        %9293 = vdwg.mxu0
        %v9294 = vmul.f32 %v9183, 0.5
        %v9295 = vmul.f32 %v9185, 0.5
        %v9296 = vmul.f32 %v9256, 0.5
        %v9297 = vmul.f32 %v9258, 0.5
        %v9298 = vmul.f32 %v9187, 0.5
        %v9299 = vmul.f32 %v9189, 0.5
        %v9300 = vmul.f32 %v9260, 0.5
        %v9301 = vmul.f32 %v9262, 0.5
        %v9302 = vmul.f32 %v9193, 0.5
        %v9303 = vmul.f32 %v9195, 0.5
        %v9304 = vmul.f32 %v9266, 0.5
        %v9305 = vmul.f32 %v9268, 0.5
        %v9306 = vmul.f32 %v9197, 0.5
        %v9307 = vmul.f32 %v9199, 0.5
        %v9308 = vmul.f32 %v9270, 0.5
        %v9309 = vmul.f32 %v9272, 0.5
        %v9310 = vmul.f32 %v9203, 0.5
        %v9311 = vmul.f32 %v9205, 0.5
        %v9312 = vmul.f32 %v9276, 0.5
        %v9313 = vmul.f32 %v9278, 0.5
        %v9314 = vmul.f32 %v9207, 0.5
        %v9315 = vmul.f32 %v9209, 0.5
        %v9316 = vmul.f32 %v9280, 0.5
        %v9317 = vmul.f32 %v9282, 0.5
        %v9318 = vmul.f32 %v9213, 0.5
        %v9319 = vmul.f32 %v9215, 0.5
        %v9320 = vmul.f32 %v9286, 0.5
        %v9321 = vmul.f32 %v9288, 0.5
        %v9322 = vmul.f32 %v9217, 0.5
        %v9323 = vmul.f32 %v9219, 0.5
        %v9324 = vmul.f32 %v9290, 0.5
        %v9325 = vmul.f32 %v9292, 0.5
        %v9326 = vmul.f32 %v9183, 0.70710677
        %v9327 = vmul.f32 %v9185, 0.70710677
        %v9328 = vmul.f32 %v9256, 0.70710677
        %v9329 = vmul.f32 %v9258, 0.70710677
        %v9330 = vmul.f32 %v9187, 0.70710677
        %v9331 = vmul.f32 %v9189, 0.70710677
        %v9332 = vmul.f32 %v9260, 0.70710677
        %v9333 = vmul.f32 %v9262, 0.70710677
        %v9334 = vmul.f32 %v9193, 0.70710677
        %v9335 = vmul.f32 %v9195, 0.70710677
        %v9336 = vmul.f32 %v9266, 0.70710677
        %v9337 = vmul.f32 %v9268, 0.70710677
        %v9338 = vmul.f32 %v9197, 0.70710677
        %v9339 = vmul.f32 %v9199, 0.70710677
        %v9340 = vmul.f32 %v9270, 0.70710677
        %v9341 = vmul.f32 %v9272, 0.70710677
        %v9342 = vmul.f32 %v9203, 0.70710677
        %v9343 = vmul.f32 %v9205, 0.70710677
        %v9344 = vmul.f32 %v9276, 0.70710677
        %v9345 = vmul.f32 %v9278, 0.70710677
        %v9346 = vmul.f32 %v9207, 0.70710677
        %v9347 = vmul.f32 %v9209, 0.70710677
        %v9348 = vmul.f32 %v9280, 0.70710677
        %v9349 = vmul.f32 %v9282, 0.70710677
        %v9350 = vmul.f32 %v9213, 0.70710677
        %v9351 = vmul.f32 %v9215, 0.70710677
        %v9352 = vmul.f32 %v9286, 0.70710677
        %v9353 = vmul.f32 %v9288, 0.70710677
        %v9354 = vmul.f32 %v9217, 0.70710677
        %v9355 = vmul.f32 %v9219, 0.70710677
        %v9356 = vmul.f32 %v9290, 0.70710677
        %v9357 = vmul.f32 %v9292, 0.70710677
        %v9358 = verf.f32.pop %v9326
        %v9359 = verf.f32.pop %v9327
        %v9360 = verf.f32.pop %v9328
        %v9361 = verf.f32.pop %v9329
        %v9362 = verf.f32.pop %v9330
        %v9363 = verf.f32.pop %v9331
        %v9364 = verf.f32.pop %v9332
        %v9365 = verf.f32.pop %v9333
        %v9366 = verf.f32.pop %v9334
        %v9367 = verf.f32.pop %v9335
        %v9368 = verf.f32.pop %v9336
        %v9369 = verf.f32.pop %v9337
        %v9370 = verf.f32.pop %v9338
        %v9371 = verf.f32.pop %v9339
        %v9372 = verf.f32.pop %v9340
        %v9373 = verf.f32.pop %v9341
        %v9374 = verf.f32.pop %v9342
        %v9375 = verf.f32.pop %v9343
        %v9376 = verf.f32.pop %v9344
        %v9377 = verf.f32.pop %v9345
        %v9378 = verf.f32.pop %v9346
        %v9379 = verf.f32.pop %v9347
        %v9380 = verf.f32.pop %v9348
        %v9381 = verf.f32.pop %v9349
        %v9382 = verf.f32.pop %v9350
        %v9383 = verf.f32.pop %v9351
        %v9384 = verf.f32.pop %v9352
        %v9385 = verf.f32.pop %v9353
        %v9386 = verf.f32.pop %v9354
        %v9387 = verf.f32.pop %v9355
        %v9388 = verf.f32.pop %v9356
        %v9389 = verf.f32.pop %v9357
        %v9390 = vadd.f32 %v9358, 1.0
        %v9391 = vadd.f32 %v9359, 1.0
        %v9392 = vadd.f32 %v9360, 1.0
        %v9393 = vadd.f32 %v9361, 1.0
        %v9394 = vadd.f32 %v9362, 1.0
        %v9395 = vadd.f32 %v9363, 1.0
        %v9396 = vadd.f32 %v9364, 1.0
        %v9397 = vadd.f32 %v9365, 1.0
        %v9398 = vadd.f32 %v9366, 1.0
        %v9399 = vadd.f32 %v9367, 1.0
        %v9400 = vadd.f32 %v9368, 1.0
        %v9401 = vadd.f32 %v9369, 1.0
        %v9402 = vadd.f32 %v9370, 1.0
        %v9403 = vadd.f32 %v9371, 1.0
        %v9404 = vadd.f32 %v9372, 1.0
        %v9405 = vadd.f32 %v9373, 1.0
        %v9406 = vadd.f32 %v9374, 1.0
        %v9407 = vadd.f32 %v9375, 1.0
        %v9408 = vadd.f32 %v9376, 1.0
        %v9409 = vadd.f32 %v9377, 1.0
        %v9410 = vadd.f32 %v9378, 1.0
        %v9411 = vadd.f32 %v9379, 1.0
        %v9412 = vadd.f32 %v9380, 1.0
        %v9413 = vadd.f32 %v9381, 1.0
        %v9414 = vadd.f32 %v9382, 1.0
        %v9415 = vadd.f32 %v9383, 1.0
        %v9416 = vadd.f32 %v9384, 1.0
        %v9417 = vadd.f32 %v9385, 1.0
        %v9418 = vadd.f32 %v9386, 1.0
        %v9419 = vadd.f32 %v9387, 1.0
        %v9420 = vadd.f32 %v9388, 1.0
        %v9421 = vadd.f32 %v9389, 1.0
        %v9422 = vmul.f32 %v9294, %v9390
        %v9423 = vmul.f32 %v9295, %v9391
        %v9424 = vmul.f32 %v9296, %v9392
        %v9425 = vmul.f32 %v9297, %v9393
        %v9426 = vmul.f32 %v9298, %v9394
        %v9427 = vmul.f32 %v9299, %v9395
        %v9428 = vmul.f32 %v9300, %v9396
        %v9429 = vmul.f32 %v9301, %v9397
        %v9430 = vmul.f32 %v9302, %v9398
        %v9431 = vmul.f32 %v9303, %v9399
        %v9432 = vmul.f32 %v9304, %v9400
        %v9433 = vmul.f32 %v9305, %v9401
        %v9434 = vmul.f32 %v9306, %v9402
        %v9435 = vmul.f32 %v9307, %v9403
        %v9436 = vmul.f32 %v9308, %v9404
        %v9437 = vmul.f32 %v9309, %v9405
        %v9438 = vmul.f32 %v9310, %v9406
        %v9439 = vmul.f32 %v9311, %v9407
        %v9440 = vmul.f32 %v9312, %v9408
        %v9441 = vmul.f32 %v9313, %v9409
        %v9442 = vmul.f32 %v9314, %v9410
        %v9443 = vmul.f32 %v9315, %v9411
        %v9444 = vmul.f32 %v9316, %v9412
        %v9445 = vmul.f32 %v9317, %v9413
        %v9446 = vmul.f32 %v9318, %v9414
        %v9447 = vmul.f32 %v9319, %v9415
        %v9448 = vmul.f32 %v9320, %v9416
        %v9449 = vmul.f32 %v9321, %v9417
        %v9450 = vmul.f32 %v9322, %v9418
        %v9451 = vmul.f32 %v9323, %v9419
        %v9452 = vmul.f32 %v9324, %v9420
        %v9453 = vmul.f32 %v9325, %v9421
        %v9454 = vld [vmem:[%s8] sm:$0x1]
        %v9455 = vpack.c.bf16 %v9426, %v9422
        %v9456 = vpack.c.bf16 %v9427, %v9423
        %v9457 = vpack.c.bf16 %v9428, %v9424
        %v9458 = vpack.c.bf16 %v9429, %v9425
        %v9459 = vpack.c.bf16 %v9434, %v9430
        %v9460 = vpack.c.bf16 %v9435, %v9431
        %v9461 = vpack.c.bf16 %v9436, %v9432
        %v9462 = vpack.c.bf16 %v9437, %v9433
        %v9463 = vpack.c.bf16 %v9442, %v9438
        %v9464 = vpack.c.bf16 %v9443, %v9439
        %v9465 = vpack.c.bf16 %v9444, %v9440
        %v9466 = vpack.c.bf16 %v9445, %v9441
        %v9467 = vpack.c.bf16 %v9450, %v9446
        %v9468 = vpack.c.bf16 %v9451, %v9447
        %v9469 = vpack.c.bf16 %v9452, %v9448
        %v9470 = vpack.c.bf16 %v9453, %v9449
        %v9471 = vld [vmem:[#allocation2] sm:$0x1]
        %9473 = vset.pattern.permute.xlu0 0
        %9474 = vperm.xlu0 %9473, %v9471
        %v9475 = vpop.permute.xlu0 %9474
        %v9477 = vlaneseq
        %v9478 = vshrl.u32 %v9477, 7
        %v9479 = vsub.s32 0, %v9478
        %v9480 = vrot.slane %v9475, %v9479
        %v9482 = vsel %vm9135, %v9454, 0
        %9484 = vmatprep.subr.bf16.mxu0 0
        %9485 = vmatpush1.bf16.msra.mxu0 0
        %9486 = vmatprep.subr.bf16.mxu0 0
        %9487 = vmatpush1.bf16.msra.mxu0 0
        %9488 = vmatprep.subr.bf16.mxu0 0
        %9489 = vmatpush1.bf16.msra.mxu0 0
        %9490 = vmatprep.subr.bf16.mxu0 0
        %9491 = vmatpush1.bf16.msra.mxu0 0
        %9492 = vmatprep.subr.bf16.mxu0 %v9468
        %9493 = vmatpush1.bf16.msra.mxu0 %v9467
        %9494 = vmatprep.subr.bf16.mxu0 %v9464
        %9495 = vmatpush1.bf16.msra.mxu0 %v9463
        %9496 = vmatprep.subr.bf16.mxu0 %v9460
        %9497 = vmatpush1.bf16.msra.mxu0 %v9459
        %9498 = vmatprep.subr.bf16.mxu0 %v9456
        %9499 = vmatpush1.bf16.msra.mxu0 %v9455
        %9500 = vmatprep.subr.bf16.mxu0 0
        %9501 = vmatpush2.bf16.msra.mxu0 0
        %9502 = vmatprep.subr.bf16.mxu0 0
        %9503 = vmatpush2.bf16.msra.mxu0 0
        %9504 = vmatprep.subr.bf16.mxu0 0
        %9505 = vmatpush2.bf16.msra.mxu0 0
        %9506 = vmatprep.subr.bf16.mxu0 0
        %9507 = vmatpush2.bf16.msra.mxu0 0
        %9508 = vmatprep.subr.bf16.mxu0 0
        %9509 = vmatpush2.bf16.msra.mxu0 0
        %9510 = vmatprep.subr.bf16.mxu0 0
        %9511 = vmatpush2.bf16.msra.mxu0 0
        %9512 = vmatprep.subr.bf16.mxu0 0
        %9513 = vmatpush2.bf16.msra.mxu0 0
        %9514 = vmatprep.subr.bf16.mxu0 0
        %9515 = vmatpush2.bf16.msra.mxu0 0
        %9516 = vmatprep.mubr.bf16.mxu0 0
        %9517 = vmatmul.mubr.bf16.gmra.mxu0 %v9482
        %v9518 = vpop.f32.mrf.mxu0
        %v9519 = vadd.f32 %v9480, %v9518
        %v9520 = vpop.f32.mrf.mxu0
        %v9521 = vadd.f32 %v9480, %v9520
        %v9522 = vpop.f32.mrf.mxu0
        %v9523 = vpop.f32.mrf.mxu0
        %9524 = vdwg.mxu0
        %9525 = vmatprep.subr.bf16.mxu0 0
        %9526 = vmatpush1.bf16.msra.mxu0 0
        %9527 = vmatprep.subr.bf16.mxu0 0
        %9528 = vmatpush1.bf16.msra.mxu0 0
        %9529 = vmatprep.subr.bf16.mxu0 0
        %9530 = vmatpush1.bf16.msra.mxu0 0
        %9531 = vmatprep.subr.bf16.mxu0 0
        %9532 = vmatpush1.bf16.msra.mxu0 0
        %9533 = vmatprep.subr.bf16.mxu0 %v9470
        %9534 = vmatpush1.bf16.msra.mxu0 %v9469
        %9535 = vmatprep.subr.bf16.mxu0 %v9466
        %9536 = vmatpush1.bf16.msra.mxu0 %v9465
        %9537 = vmatprep.subr.bf16.mxu0 %v9462
        %9538 = vmatpush1.bf16.msra.mxu0 %v9461
        %9539 = vmatprep.subr.bf16.mxu0 %v9458
        %9540 = vmatpush1.bf16.msra.mxu0 %v9457
        %9541 = vmatprep.subr.bf16.mxu0 0
        %9542 = vmatpush2.bf16.msra.mxu0 0
        %9543 = vmatprep.subr.bf16.mxu0 0
        %9544 = vmatpush2.bf16.msra.mxu0 0
        %9545 = vmatprep.subr.bf16.mxu0 0
        %9546 = vmatpush2.bf16.msra.mxu0 0
        %9547 = vmatprep.subr.bf16.mxu0 0
        %9548 = vmatpush2.bf16.msra.mxu0 0
        %9549 = vmatprep.subr.bf16.mxu0 0
        %9550 = vmatpush2.bf16.msra.mxu0 0
        %9551 = vmatprep.subr.bf16.mxu0 0
        %9552 = vmatpush2.bf16.msra.mxu0 0
        %9553 = vmatprep.subr.bf16.mxu0 0
        %9554 = vmatpush2.bf16.msra.mxu0 0
        %9555 = vmatprep.subr.bf16.mxu0 0
        %9556 = vmatpush2.bf16.msra.mxu0 0
        %9557 = vmatprep.mubr.bf16.mxu0 0
        %9558 = vmatmul.mubr.bf16.gmra.mxu0 %v9482
        %v9559 = vpop.f32.mrf.mxu0
        %v9560 = vadd.f32 %v9480, %v9559
        %v9561 = vpop.f32.mrf.mxu0
        %v9562 = vadd.f32 %v9480, %v9561
        %v9563 = vpop.f32.mrf.mxu0
        %v9564 = vpop.f32.mrf.mxu0
        %9565 = vdwg.mxu0
        %v9570 = vcombine.low %v9519, %v9521
        %v9571 = vcombine.low %v9560, %v9562
        %v9573 = vunpack.c.l.s4 1966171168
        %v9574 = vunpack.c.0.s8 %v9573
        %v9575 = vlaneseq
        %v9576 = vshrl.u32 %v9575, 7
        %v9577 = vsub.s32 %v9574, %v9576
        %v9578 = vrot.slane %v9570, %v9577
        %v9580 = vunpack.c.l.s4 1966171168
        %v9581 = vunpack.c.0.s8 %v9580
        %v9582 = vlaneseq
        %v9583 = vshrl.u32 %v9582, 7
        %v9584 = vsub.s32 %v9581, %v9583
        %v9585 = vrot.slane %v9571, %v9584
        %v9586 = vcombine.low %v9578, %v9585
        %v9588 = vunpack.c.l.s4 1966171168
        %v9589 = vunpack.c.0.s8 %v9588
        %v9590 = vlaneseq
        %v9591 = vshrl.u32 %v9590, 7
        %v9592 = vsub.s32 %v9589, %v9591
        %v9593 = vrot.slane %v9586, %v9592
        %v9595 = vlaneseq
        %vm9596 = vcmp.ge.s32.totalorder %v9595, 0
        %vm9597 = vcmp.lt.s32.totalorder %v9595, 512
        %vm9598 = vmand %vm9596, %vm9597
        %9599 = vst.msk [vmem:[%s367] sm:$0xf] %vm9598, %v9593
        %s9600 = sand.u32 %s250, 1
        %s9601 = scalar_lea.sflag [#allocation5], %s9600
        %s9602 = sand.u32 %s250, 1
        %s9603 = smul.addr %s9602, 4
        %s9604 = scalar_lea.vmem [#allocation6], %s9603
        // Predicated region
        $region65: #{tpu_custom_call.1} parent=59 // pred_check
          %p9605 = pneg %p260
        $region66: #{tpu_custom_call.1} parent=59 // pred_check_branch
          %9607 = sbr.rel (%p9605) target = $region68
        $region67: #{tpu_custom_call.1} parent=59 // pred_region
          %s9609 = ssub.s32 64, 64
          %9610 = vsyncadd %s9601, %s9609
          %s9611 = smul.addr %s27, 4
          %s9612 = smul.addr %s9611, 16
          %s9613 = scalar_lea.hbm %s10, %s9612
          %s9615 = sshll.u32 %s9604, 4
          %s9616 = int_to_ptr.vmem [resolvable:$true] %s9615
          %9618 = dma.vmem_to_hbm [thread:$0]  %s9616, 64, %s9613, %s9601
        $region68: #{tpu_custom_call.1} parent=59 // pred_fallthru
          _
      $region60: #{tpu_custom_call.1} parent=5 // pred_fallthru
        _
      %p9619 = scmp.le.s32.totalorder 2, %s22
      // Predicated region
      $region69: #{tpu_custom_call.1} parent=5 // pred_check
        %p9620 = pneg %p9619
      $region70: #{tpu_custom_call.1} parent=5 // pred_check_branch
        %9622 = sbr.rel (%p9620) target = $region72
      $region71: #{tpu_custom_call.1} parent=5 // pred_region
        %s9623 = ssub.s32 %s22, 2
        // Predicated region
        $region73: #{tpu_custom_call.1} parent=71 // pred_check
          %p9624 = pneg %p266
        $region74: #{tpu_custom_call.1} parent=71 // pred_check_branch
          %9626 = sbr.rel (%p9624) target = $region76
        $region75: #{tpu_custom_call.1} parent=71 // pred_region
          %s9627 = sand.u32 %s251, 1
          %s9628 = scalar_lea.sflag [#allocation5], %s9627
          %s9629 = sand.u32 %s251, 1
          %s9630 = smul.addr %s9629, 4
          %s9631 = scalar_lea.vmem [#allocation6], %s9630
          %9632 = dma.done %s9628, 64
        $region76: #{tpu_custom_call.1} parent=71 // pred_fallthru
          _
      $region72: #{tpu_custom_call.1} parent=5 // pred_fallthru
        _
    $region6: #{tpu_custom_call.1} parent=1 // loop_footer
      %s26 = sadd.s32 1, %s22
    $region7: #{tpu_custom_call.1} parent=1 // loop_footer_branch
      %21 = sbr.rel target = $region3
    $region8: #{tpu_custom_call.1} parent=1 // loop_exit
      _
    %9633 = vsyncpa [#allocation4], 1
    %s9634 = scalar_lea.sflag [#allocation4], 1
    %9635 = vsyncpa %s9634, 1
    %9636 = vsyncpa [#allocation5], 1
    %s9637 = scalar_lea.sflag [#allocation5], 1
    %9638 = vsyncpa %s9637, 1

</llo_original>
